<compile_context>
chip_gen: v5e
topology: v5e:2x2
jax: 0.10.0
libtpu: 0.0.40
codegen_flags: <defaults>
</compile_context>

<pallas_src>
import jax
import jax.numpy as jnp
from jax.experimental import pallas as pl
from jax.experimental.pallas import tpu as pltpu

EPS = 1e-5


# ---------------------------------------------------------------------------
# Pallas kernels
# ---------------------------------------------------------------------------
def _make_gemm_relu_stats_kernel(tm, m_valid):
    """GEMM + bias + ReLU with BatchNorm batch-statistics epilogue.

    Writes the ReLU'd tile and per-column (sum, sum-of-squares) partials;
    rows >= m_valid (grid padding) are masked out of the statistics.
    """

    def kernel(x_ref, w_ref, b_ref, y_ref, st_ref):
        acc = jnp.dot(x_ref[...], w_ref[...],
                      preferred_element_type=jnp.float32)
        y = jnp.maximum(acc + b_ref[...], 0.0)
        y_ref[...] = y.astype(y_ref.dtype)

        row = (jax.lax.broadcasted_iota(jnp.int32, (tm, 1), 0)
               + pl.program_id(0) * tm)
        yv = jnp.where(row < m_valid, y, 0.0)
        s = jnp.sum(yv, axis=0, keepdims=True)          # (1, C)
        q = jnp.sum(yv * yv, axis=0, keepdims=True)     # (1, C)
        sel = jax.lax.broadcasted_iota(jnp.int32, (8, 1), 0)
        st = jnp.where(sel == 0, s, jnp.where(sel == 1, q, 0.0))   # (8, C)
        st_ref[...] = st[None]                                     # (1, 8, C)

    return kernel


def _affine_residual_kernel(y_ref, r_ref, sc_ref, sh_ref, o_ref):
    # out = BN3 affine of the relu'd conv output + (already normalized) skip
    o_ref[...] = (y_ref[...].astype(jnp.float32) * sc_ref[...]
                  + sh_ref[...] + r_ref[...])


# ---------------------------------------------------------------------------
# Pallas wrappers
# ---------------------------------------------------------------------------
def gemm_relu_stats(cols, w, bias, *, tm=256, out_dtype=jnp.float32):
    """y = relu(cols @ w + bias) plus per-tile column sum/sumsq partials.

    cols: (M, K)  w: (K, C)  bias: (C,)
    returns  y (M, C) in out_dtype  and  stats (G, 8, C) f32 with
    stats[:, 0] = column sums, stats[:, 1] = column sums of squares.
    """
    M, K = cols.shape
    C = w.shape[1]

    # pad the contraction dim to a multiple of 16 (bf16 sublane packing)
    Kp = pl.cdiv(K, 16) * 16
    if Kp != K:
        cols = jnp.pad(cols, ((0, 0), (0, Kp - K)))
        w = jnp.pad(w, ((0, Kp - K), (0, 0)))
        K = Kp

    tm = max(8, min(tm, pl.cdiv(M, 8) * 8))
    Mp = pl.cdiv(M, tm) * tm
    if Mp != M:
        cols = jnp.pad(cols, ((0, Mp - M), (0, 0)))
    G = Mp // tm

    y, stats = pl.pallas_call(
        _make_gemm_relu_stats_kernel(tm, M),
        out_shape=(jax.ShapeDtypeStruct((Mp, C), out_dtype),
                   jax.ShapeDtypeStruct((G, 8, C), jnp.float32)),
        grid=(G,),
        in_specs=[
            pl.BlockSpec((tm, K), lambda i: (i, 0)),
            pl.BlockSpec((K, C), lambda i: (0, 0)),
            pl.BlockSpec((1, C), lambda i: (0, 0)),
        ],
        out_specs=(
            pl.BlockSpec((tm, C), lambda i: (i, 0)),
            pl.BlockSpec((1, 8, C), lambda i: (i, 0, 0)),
        ),
        compiler_params=pltpu.CompilerParams(
            dimension_semantics=("parallel",),
            vmem_limit_bytes=32 * 1024 * 1024),
    )(cols, w, bias.reshape(1, C).astype(jnp.float32))
    return y[:M], stats


def affine_residual(y, skip, scale, shift, *, tm=256):
    """out = y * scale + shift + skip  (per-column affine + residual add)."""
    M, C = y.shape
    tm = max(8, min(tm, pl.cdiv(M, 8) * 8))
    Mp = pl.cdiv(M, tm) * tm
    if Mp != M:
        y = jnp.pad(y, ((0, Mp - M), (0, 0)))
        skip = jnp.pad(skip, ((0, Mp - M), (0, 0)))
    out = pl.pallas_call(
        _affine_residual_kernel,
        out_shape=jax.ShapeDtypeStruct((Mp, C), jnp.float32),
        grid=(Mp // tm,),
        in_specs=[
            pl.BlockSpec((tm, C), lambda i: (i, 0)),
            pl.BlockSpec((tm, C), lambda i: (i, 0)),
            pl.BlockSpec((1, C), lambda i: (0, 0)),
            pl.BlockSpec((1, C), lambda i: (0, 0)),
        ],
        out_specs=pl.BlockSpec((tm, C), lambda i: (i, 0)),
        compiler_params=pltpu.CompilerParams(dimension_semantics=("parallel",)),
    )(y, skip, scale.reshape(1, C), shift.reshape(1, C))
    return out[:M]


# ---------------------------------------------------------------------------
# JAX glue: im2col, subpixel weights, BN stat reduction
# ---------------------------------------------------------------------------
def _im2col3(xp, Do, Ho, Wo):
    """xp: (N, Do+2, Ho+2, Wo+2, C) -> (N*Do*Ho*Wo, 27*C), tap-major K."""
    N, C = xp.shape[0], xp.shape[-1]
    taps = []
    for a in range(3):
        for b in range(3):
            for c in range(3):
                taps.append(xp[:, a:a + Do, b:b + Ho, c:c + Wo, :])
    cols = jnp.stack(taps, axis=4)                 # (N, Do, Ho, Wo, 27, C)
    return cols.reshape(N * Do * Ho * Wo, 27 * C)


def _subpixel_convT_weights(W_skip, W1, b_skip, b1):
    """Fuse both ConvTranspose3d(k=4,s=2,p=1) weights into one GEMM weight.

    Output columns = (parity pd,ph,pw) x (path skip/conv1) x Cout.  The GEMM
    consumes a K=3 im2col of the 1-padded ORIGINAL input: output voxel 2j+p
    only uses kernel taps k = 3-p-2t (t in {0,1}) at padded positions j+p+t.
    """
    Cin, Cout = W_skip.shape[0], W_skip.shape[1]
    Wt = jnp.stack([W_skip, W1], axis=0)           # (2, Cin, Cout, 4, 4, 4)
    Wf = jnp.zeros((27 * Cin, 8, 2, Cout), jnp.float32)
    for pd in range(2):
        for ph in range(2):
            for pw in range(2):
                pidx = pd * 4 + ph * 2 + pw
                for td in range(2):
                    for th in range(2):
                        for tw in range(2):
                            tt = (pd + td) * 9 + (ph + th) * 3 + (pw + tw)
                            wk = Wt[:, :, :, 3 - pd - 2 * td,
                                    3 - ph - 2 * th, 3 - pw - 2 * tw]
                            Wf = Wf.at[tt * Cin:(tt + 1) * Cin, pidx, :, :].set(
                                jnp.transpose(wk, (1, 0, 2)))
    Wf = Wf.reshape(27 * Cin, 16 * Cout)
    bias = jnp.broadcast_to(jnp.stack([b_skip, b1], axis=0)[None],
                            (8, 2, Cout)).reshape(16 * Cout)
    return Wf, bias


def _bn_scale_shift(stats, group, count, gamma, beta):
    """Reduce per-tile (sum, sumsq) partials to a per-channel BN affine.

    Columns are `group` copies of the channel axis (parity / voxel-packing
    copies belong to the same BatchNorm channel and are aggregated here).
    """
    s = stats[:, 0, :].sum(axis=0)
    q = stats[:, 1, :].sum(axis=0)
    c = s.shape[0] // group
    s = s.reshape(group, c).sum(axis=0)
    q = q.reshape(group, c).sum(axis=0)
    mean = s / count
    var = jnp.maximum(q / count - mean * mean, 0.0)
    scale = gamma * jax.lax.rsqrt(var + EPS)
    shift = beta - mean * scale
    return scale, shift


# ---------------------------------------------------------------------------
# Forward pass
# ---------------------------------------------------------------------------
def deresblock_forward(x, p):
    """x: (N, Cin, D, H, W) NCDHW float32 -> (N, Cout, 2D, 2H, 2W).

    Matches DeResBlock.forward (kernel=3, stride=2) with training-mode
    BatchNorm3d (batch statistics over N,D,H,W per channel, eps=1e-5).
    """
    N, Cin, D, H, W = x.shape
    Cout = p["W_skip"].shape[1]
    Do, Ho, Wo = 2 * D, 2 * H, 2 * W
    M1 = N * D * H * W
    M2 = N * Do * Ho * Wo

    x_cl = jnp.transpose(x, (0, 2, 3, 4, 1))                       # NDHWC
    xp = jnp.pad(x_cl, ((0, 0), (1, 1), (1, 1), (1, 1), (0, 0)))

    # --- stage 1: fused subpixel ConvTranspose (skip || conv1) + ReLU + stats
    cols1 = _im2col3(xp, D, H, W)                                  # (M1, 27*Cin)
    Wf, bias_f = _subpixel_convT_weights(p["W_skip"], p["W1"],
                                         p["b_skip"], p["b1"])
    y1, st1 = gemm_relu_stats(cols1, Wf, bias_f, tm=256)

    gamma1 = jnp.concatenate([p["g_skip"], p["g1"]])
    beta1 = jnp.concatenate([p["be_skip"], p["be1"]])
    scale1, shift1 = _bn_scale_shift(st1, group=8, count=8 * M1,
                                     gamma=gamma1, beta=beta1)
    scale1 = scale1.reshape(2, Cout)
    shift1 = shift1.reshape(2, Cout)

    # depth-to-space (parity -> spatial) with the BN affine folded in
    y_sp = y1.reshape(N, D, H, W, 2, 2, 2, 2, Cout)
    y_sp = y_sp.transpose(0, 1, 4, 2, 5, 3, 6, 7, 8)
    y_sp = y_sp.reshape(N, Do, Ho, Wo, 2, Cout) * scale1 + shift1
    skip = y_sp[..., 0, :]                                         # f32
    h = y_sp[..., 1, :].astype(jnp.bfloat16)                       # bf16 feed

    # --- stage 2: Conv3d(k=3, p=1) + ReLU + stats, lane-dense packed output
    hp = jnp.pad(h, ((0, 0), (1, 1), (1, 1), (1, 1), (0, 0)))
    cols3 = _im2col3(hp, Do, Ho, Wo)                               # (M2, 27*Cout) bf16
    P = 128 // Cout if (Cout <= 128 and 128 % Cout == 0
                        and M2 % max(1, 128 // Cout) == 0) else 1
    R = M2 // P
    cols3 = cols3.reshape(R, P * 27 * Cout)
    W3m = jnp.transpose(p["W3"], (2, 3, 4, 1, 0)).reshape(27 * Cout, Cout)
    W3bd = jnp.einsum("ab,kc->akbc", jnp.eye(P, dtype=jnp.float32), W3m)
    W3bd = W3bd.reshape(P * 27 * Cout, P * Cout).astype(jnp.bfloat16)
    b3t = jnp.tile(p["b3"], P)

    y3, st3 = gemm_relu_stats(cols3, W3bd, b3t, tm=256)
    scale3, shift3 = _bn_scale_shift(st3, group=P, count=M2,
                                     gamma=p["g3"], beta=p["be3"])

    # --- final: BN3 affine on the conv path + residual add (skip already BN'd)
    out = affine_residual(y3, skip.reshape(R, P * Cout),
                          jnp.tile(scale3, P), jnp.tile(shift3, P), tm=256)
    out = out.reshape(N, Do, Ho, Wo, Cout).transpose(0, 4, 1, 2, 3)
    return out


# ---------------------------------------------------------------------------
# Pure-JAX reference (XLA convs, f32) for a correctness check
# ---------------------------------------------------------------------------
def _ref_forward(x, p):
    def convT(x, Wt, b):
        Wc = jnp.transpose(jnp.flip(Wt, axis=(2, 3, 4)), (1, 0, 2, 3, 4))
        y = jax.lax.conv_general_dilated(
            x, Wc, window_strides=(1, 1, 1), padding=[(2, 2)] * 3,
            lhs_dilation=(2, 2, 2),
            dimension_numbers=("NCDHW", "OIDHW", "NCDHW"))
        return y + b[None, :, None, None, None]

    def conv(x, W, b):
        y = jax.lax.conv_general_dilated(
            x, W, window_strides=(1, 1, 1), padding=[(1, 1)] * 3,
            dimension_numbers=("NCDHW", "OIDHW", "NCDHW"))
        return y + b[None, :, None, None, None]

    def relu_bn_ref(y, g, be):
        y = jnp.maximum(y, 0.0)
        m = jnp.mean(y, axis=(0, 2, 3, 4), keepdims=True)
        v = jnp.mean(jnp.square(y - m), axis=(0, 2, 3, 4), keepdims=True)
        return ((y - m) * jax.lax.rsqrt(v + 1e-5) * g[None, :, None, None, None]
                + be[None, :, None, None, None])

    skip = relu_bn_ref(convT(x, p["W_skip"], p["b_skip"]), p["g_skip"], p["be_skip"])
    h = relu_bn_ref(convT(x, p["W1"], p["b1"]), p["g1"], p["be1"])
    cb = relu_bn_ref(conv(h, p["W3"], p["b3"]), p["g3"], p["be3"])
    return skip + cb


# ---------------------------------------------------------------------------
if __name__ == "__main__":
    N, Cin, Cout, S = 2, 4, 8, 8  # input spatial 8^3 -> output 16^3

    key = jax.random.PRNGKey(0)
    ks = jax.random.split(key, 13)
    f32 = jnp.float32
    params = dict(
        # skip: ConvTranspose3d(Cin, Cout, 4, stride=2, padding=1) + BN
        W_skip=0.1 * jax.random.normal(ks[0], (Cin, Cout, 4, 4, 4), f32),
        b_skip=0.1 * jax.random.normal(ks[1], (Cout,), f32),
        g_skip=1.0 + 0.1 * jax.random.normal(ks[2], (Cout,), f32),
        be_skip=0.1 * jax.random.normal(ks[3], (Cout,), f32),
        # conv_block first: ConvTranspose3d + BN
        W1=0.1 * jax.random.normal(ks[4], (Cin, Cout, 4, 4, 4), f32),
        b1=0.1 * jax.random.normal(ks[5], (Cout,), f32),
        g1=1.0 + 0.1 * jax.random.normal(ks[6], (Cout,), f32),
        be1=0.1 * jax.random.normal(ks[7], (Cout,), f32),
        # conv_block second: Conv3d(Cout, Cout, 3, padding=1) + BN
        W3=0.1 * jax.random.normal(ks[8], (Cout, Cout, 3, 3, 3), f32),
        b3=0.1 * jax.random.normal(ks[9], (Cout,), f32),
        g3=1.0 + 0.1 * jax.random.normal(ks[10], (Cout,), f32),
        be3=0.1 * jax.random.normal(ks[11], (Cout,), f32),
    )
    x = jax.random.normal(ks[12], (N, Cin, S, S, S), f32)

    fwd = jax.jit(deresblock_forward)
    out = jax.block_until_ready(fwd(x, params))
    assert out.shape == (N, Cout, 2 * S, 2 * S, 2 * S), out.shape

    ref = jax.block_until_ready(jax.jit(_ref_forward)(x, params))
    err = float(jnp.max(jnp.abs(out - ref)))
    assert err < 5e-2, f"max abs error vs reference too large: {err}"

    print("KERNEL_OK")
</pallas_src>

<mosaic_0001>
module attributes {stable_mosaic.version = 11 : i64} {
  func.func @kernel(%arg0: i32, %arg1: memref<256x112xf32, #tpu.memory_space<vmem>>, %arg2: memref<112x128xf32, #tpu.memory_space<vmem>>, %arg3: memref<1x128xf32, #tpu.memory_space<vmem>>, %arg4: memref<256x128xf32, #tpu.memory_space<vmem>>, %arg5: memref<1x8x128xf32, #tpu.memory_space<vmem>>) attributes {dimension_semantics = [#tpu.dimension_semantics<parallel>], iteration_bounds = array<i64: 4>, scalar_prefetch = 0 : i64, scratch_operands = 0 : i64, tpu.core_type = #tpu.core_type<tc>, window_params = [{transform_indices = @transform_0, window_bounds = array<i64: 256, 112>}, {pipeline_mode = #tpu.pipeline_mode<synchronous>, transform_indices = @transform_1, window_bounds = array<i64: 112, 128>}, {pipeline_mode = #tpu.pipeline_mode<synchronous>, transform_indices = @transform_2, window_bounds = array<i64: 1, 128>}, {transform_indices = @transform_3, window_bounds = array<i64: 256, 128>}, {transform_indices = @transform_4, window_bounds = array<i64: 1, 8, 128>}]} {
    %c0 = arith.constant 0 : index
    %c0_0 = arith.constant 0 : index
    %0 = vector.load %arg1[%c0, %c0_0] : memref<256x112xf32, #tpu.memory_space<vmem>>, vector<256x112xf32>
    %c0_1 = arith.constant 0 : index
    %c0_2 = arith.constant 0 : index
    %1 = vector.load %arg2[%c0_1, %c0_2] : memref<112x128xf32, #tpu.memory_space<vmem>>, vector<112x128xf32>
    %cst = arith.constant dense<0.000000e+00> : vector<256x128xf32>
    %2 = tpu.matmul %0, %1, %cst {dimension_numbers = #tpu.dot_dimension_numbers<[1], [0], [0], [1], [0, 0, 1, 1], [], []>} : vector<256x112xf32>, vector<112x128xf32>, vector<256x128xf32> -> vector<256x128xf32>
    %c0_3 = arith.constant 0 : index
    %c0_4 = arith.constant 0 : index
    %3 = vector.load %arg3[%c0_3, %c0_4] : memref<1x128xf32, #tpu.memory_space<vmem>>, vector<1x128xf32>
    %4 = vector.broadcast %3 : vector<1x128xf32> to vector<256x128xf32>
    %5 = arith.addf %2, %4 : vector<256x128xf32>
    %cst_5 = arith.constant 0.000000e+00 : f32
    %6 = vector.broadcast %cst_5 : f32 to vector<256x128xf32>
    %7 = arith.maximumf %5, %6 : vector<256x128xf32>
    %c0_6 = arith.constant 0 : index
    %c0_7 = arith.constant 0 : index
    %8 = vector.load %arg4[%c0_6, %c0_7] : memref<256x128xf32, #tpu.memory_space<vmem>>, vector<256x128xf32>
    tpu.vector_store %arg4[%c0_6, %c0_7], %7 {strides = array<i32>} : memref<256x128xf32, #tpu.memory_space<vmem>>, vector<256x128xf32>,
    %9 = tpu.iota {dimensions = array<i32: 0>} : vector<256x1xi32>
    %c256_i32 = arith.constant 256 : i32
    %10 = arith.muli %arg0, %c256_i32 : i32
    %11 = vector.broadcast %10 : i32 to vector<256x1xi32>
    %12 = arith.addi %9, %11 : vector<256x1xi32>
    %c1024_i32 = arith.constant 1024 : i32
    %13 = vector.broadcast %c1024_i32 : i32 to vector<256x1xi32>
    %14 = arith.cmpi slt, %12, %13 : vector<256x1xi32>
    %cst_8 = arith.constant 0.000000e+00 : f32
    %15 = vector.shape_cast %14 : vector<256x1xi1> to vector<256x1xi1>
    %16 = vector.broadcast %15 : vector<256x1xi1> to vector<256x128xi1>
    %17 = vector.broadcast %cst_8 : f32 to vector<256x128xf32>
    %18 = arith.select %16, %7, %17 : vector<256x128xi1>, vector<256x128xf32>
    %cst_9 = arith.constant dense<0.000000e+00> : vector<128xf32>
    %19 = vector.multi_reduction <add>, %18, %cst_9 [0] : vector<256x128xf32> to vector<128xf32>
    %20 = vector.shape_cast %19 : vector<128xf32> to vector<1x128xf32>
    %21 = arith.mulf %18, %18 : vector<256x128xf32>
    %cst_10 = arith.constant dense<0.000000e+00> : vector<128xf32>
    %22 = vector.multi_reduction <add>, %21, %cst_10 [0] : vector<256x128xf32> to vector<128xf32>
    %23 = vector.shape_cast %22 : vector<128xf32> to vector<1x128xf32>
    %24 = tpu.iota {dimensions = array<i32: 0>} : vector<8x1xi32>
    %c0_i32 = arith.constant 0 : i32
    %25 = vector.broadcast %c0_i32 : i32 to vector<8x1xi32>
    %26 = arith.cmpi eq, %24, %25 : vector<8x1xi32>
    %c1_i32 = arith.constant 1 : i32
    %27 = vector.broadcast %c1_i32 : i32 to vector<8x1xi32>
    %28 = arith.cmpi eq, %24, %27 : vector<8x1xi32>
    %cst_11 = arith.constant 0.000000e+00 : f32
    %29 = vector.shape_cast %28 : vector<8x1xi1> to vector<8x1xi1>
    %30 = vector.broadcast %29 : vector<8x1xi1> to vector<8x128xi1>
    %31 = vector.shape_cast %23 : vector<1x128xf32> to vector<1x128xf32>
    %32 = vector.broadcast %31 : vector<1x128xf32> to vector<8x128xf32>
    %33 = vector.broadcast %cst_11 : f32 to vector<8x128xf32>
    %34 = arith.select %30, %32, %33 : vector<8x128xi1>, vector<8x128xf32>
    %35 = vector.shape_cast %26 : vector<8x1xi1> to vector<8x1xi1>
    %36 = vector.broadcast %35 : vector<8x1xi1> to vector<8x128xi1>
    %37 = vector.shape_cast %20 : vector<1x128xf32> to vector<1x128xf32>
    %38 = vector.broadcast %37 : vector<1x128xf32> to vector<8x128xf32>
    %39 = arith.select %36, %38, %34 : vector<8x128xi1>, vector<8x128xf32>
    %40 = vector.shape_cast %39 : vector<8x128xf32> to vector<1x8x128xf32>
    %c0_12 = arith.constant 0 : index
    %c0_13 = arith.constant 0 : index
    %c0_14 = arith.constant 0 : index
    %41 = vector.load %arg5[%c0_12, %c0_13, %c0_14] : memref<1x8x128xf32, #tpu.memory_space<vmem>>, vector<1x8x128xf32>
    tpu.vector_store %arg5[%c0_12, %c0_13, %c0_14], %40 {strides = array<i32>} : memref<1x8x128xf32, #tpu.memory_space<vmem>>, vector<1x8x128xf32>,
    return
  }
  func.func @transform_0(%arg0: i32) -> (i32, i32) {
    %c0_i32 = arith.constant 0 : i32
    %c0_i32_0 = arith.constant 0 : i32
    return %arg0, %c0_i32 : i32, i32
  }
  func.func @transform_1(%arg0: i32) -> (i32, i32) {
    %c0_i32 = arith.constant 0 : i32
    %c0_i32_0 = arith.constant 0 : i32
    %c0_i32_1 = arith.constant 0 : i32
    return %c0_i32, %c0_i32_0 : i32, i32
  }
  func.func @transform_2(%arg0: i32) -> (i32, i32) {
    %c0_i32 = arith.constant 0 : i32
    %c0_i32_0 = arith.constant 0 : i32
    %c0_i32_1 = arith.constant 0 : i32
    return %c0_i32, %c0_i32_0 : i32, i32
  }
  func.func @transform_3(%arg0: i32) -> (i32, i32) {
    %c0_i32 = arith.constant 0 : i32
    %c0_i32_0 = arith.constant 0 : i32
    return %arg0, %c0_i32 : i32, i32
  }
  func.func @transform_4(%arg0: i32) -> (i32, i32, i32) {
    %c0_i32 = arith.constant 0 : i32
    %c0_i32_0 = arith.constant 0 : i32
    %c0_i32_1 = arith.constant 0 : i32
    return %arg0, %c0_i32, %c0_i32_0 : i32, i32, i32
  }
}

module attributes {stable_mosaic.version = 11 : i64} {
  func.func @kernel(%arg0: i32, %arg1: memref<256x3456xbf16, #tpu.memory_space<vmem>>, %arg2: memref<3456x128xbf16, #tpu.memory_space<vmem>>, %arg3: memref<1x128xf32, #tpu.memory_space<vmem>>, %arg4: memref<256x128xf32, #tpu.memory_space<vmem>>, %arg5: memref<1x8x128xf32, #tpu.memory_space<vmem>>) attributes {dimension_semantics = [#tpu.dimension_semantics<parallel>], iteration_bounds = array<i64: 2>, scalar_prefetch = 0 : i64, scratch_operands = 0 : i64, tpu.core_type = #tpu.core_type<tc>, window_params = [{transform_indices = @transform_0, window_bounds = array<i64: 256, 3456>}, {pipeline_mode = #tpu.pipeline_mode<synchronous>, transform_indices = @transform_1, window_bounds = array<i64: 3456, 128>}, {pipeline_mode = #tpu.pipeline_mode<synchronous>, transform_indices = @transform_2, window_bounds = array<i64: 1, 128>}, {transform_indices = @transform_3, window_bounds = array<i64: 256, 128>}, {transform_indices = @transform_4, window_bounds = array<i64: 1, 8, 128>}]} {
    %c0 = arith.constant 0 : index
    %c0_0 = arith.constant 0 : index
    %0 = vector.load %arg1[%c0, %c0_0] : memref<256x3456xbf16, #tpu.memory_space<vmem>>, vector<256x3456xbf16>
    %c0_1 = arith.constant 0 : index
    %c0_2 = arith.constant 0 : index
    %1 = vector.load %arg2[%c0_1, %c0_2] : memref<3456x128xbf16, #tpu.memory_space<vmem>>, vector<3456x128xbf16>
    %cst = arith.constant dense<0.000000e+00> : vector<256x128xf32>
    %2 = tpu.matmul %0, %1, %cst {dimension_numbers = #tpu.dot_dimension_numbers<[1], [0], [0], [1], [0, 0, 1, 1], [], []>} : vector<256x3456xbf16>, vector<3456x128xbf16>, vector<256x128xf32> -> vector<256x128xf32>
    %c0_3 = arith.constant 0 : index
    %c0_4 = arith.constant 0 : index
    %3 = vector.load %arg3[%c0_3, %c0_4] : memref<1x128xf32, #tpu.memory_space<vmem>>, vector<1x128xf32>
    %4 = vector.broadcast %3 : vector<1x128xf32> to vector<256x128xf32>
    %5 = arith.addf %2, %4 : vector<256x128xf32>
    %cst_5 = arith.constant 0.000000e+00 : f32
    %6 = vector.broadcast %cst_5 : f32 to vector<256x128xf32>
    %7 = arith.maximumf %5, %6 : vector<256x128xf32>
    %c0_6 = arith.constant 0 : index
    %c0_7 = arith.constant 0 : index
    %8 = vector.load %arg4[%c0_6, %c0_7] : memref<256x128xf32, #tpu.memory_space<vmem>>, vector<256x128xf32>
    tpu.vector_store %arg4[%c0_6, %c0_7], %7 {strides = array<i32>} : memref<256x128xf32, #tpu.memory_space<vmem>>, vector<256x128xf32>,
    %9 = tpu.iota {dimensions = array<i32: 0>} : vector<256x1xi32>
    %c256_i32 = arith.constant 256 : i32
    %10 = arith.muli %arg0, %c256_i32 : i32
    %11 = vector.broadcast %10 : i32 to vector<256x1xi32>
    %12 = arith.addi %9, %11 : vector<256x1xi32>
    %c512_i32 = arith.constant 512 : i32
    %13 = vector.broadcast %c512_i32 : i32 to vector<256x1xi32>
    %14 = arith.cmpi slt, %12, %13 : vector<256x1xi32>
    %cst_8 = arith.constant 0.000000e+00 : f32
    %15 = vector.shape_cast %14 : vector<256x1xi1> to vector<256x1xi1>
    %16 = vector.broadcast %15 : vector<256x1xi1> to vector<256x128xi1>
    %17 = vector.broadcast %cst_8 : f32 to vector<256x128xf32>
    %18 = arith.select %16, %7, %17 : vector<256x128xi1>, vector<256x128xf32>
    %cst_9 = arith.constant dense<0.000000e+00> : vector<128xf32>
    %19 = vector.multi_reduction <add>, %18, %cst_9 [0] : vector<256x128xf32> to vector<128xf32>
    %20 = vector.shape_cast %19 : vector<128xf32> to vector<1x128xf32>
    %21 = arith.mulf %18, %18 : vector<256x128xf32>
    %cst_10 = arith.constant dense<0.000000e+00> : vector<128xf32>
    %22 = vector.multi_reduction <add>, %21, %cst_10 [0] : vector<256x128xf32> to vector<128xf32>
    %23 = vector.shape_cast %22 : vector<128xf32> to vector<1x128xf32>
    %24 = tpu.iota {dimensions = array<i32: 0>} : vector<8x1xi32>
    %c0_i32 = arith.constant 0 : i32
    %25 = vector.broadcast %c0_i32 : i32 to vector<8x1xi32>
    %26 = arith.cmpi eq, %24, %25 : vector<8x1xi32>
    %c1_i32 = arith.constant 1 : i32
    %27 = vector.broadcast %c1_i32 : i32 to vector<8x1xi32>
    %28 = arith.cmpi eq, %24, %27 : vector<8x1xi32>
    %cst_11 = arith.constant 0.000000e+00 : f32
    %29 = vector.shape_cast %28 : vector<8x1xi1> to vector<8x1xi1>
    %30 = vector.broadcast %29 : vector<8x1xi1> to vector<8x128xi1>
    %31 = vector.shape_cast %23 : vector<1x128xf32> to vector<1x128xf32>
    %32 = vector.broadcast %31 : vector<1x128xf32> to vector<8x128xf32>
    %33 = vector.broadcast %cst_11 : f32 to vector<8x128xf32>
    %34 = arith.select %30, %32, %33 : vector<8x128xi1>, vector<8x128xf32>
    %35 = vector.shape_cast %26 : vector<8x1xi1> to vector<8x1xi1>
    %36 = vector.broadcast %35 : vector<8x1xi1> to vector<8x128xi1>
    %37 = vector.shape_cast %20 : vector<1x128xf32> to vector<1x128xf32>
    %38 = vector.broadcast %37 : vector<1x128xf32> to vector<8x128xf32>
    %39 = arith.select %36, %38, %34 : vector<8x128xi1>, vector<8x128xf32>
    %40 = vector.shape_cast %39 : vector<8x128xf32> to vector<1x8x128xf32>
    %c0_12 = arith.constant 0 : index
    %c0_13 = arith.constant 0 : index
    %c0_14 = arith.constant 0 : index
    %41 = vector.load %arg5[%c0_12, %c0_13, %c0_14] : memref<1x8x128xf32, #tpu.memory_space<vmem>>, vector<1x8x128xf32>
    tpu.vector_store %arg5[%c0_12, %c0_13, %c0_14], %40 {strides = array<i32>} : memref<1x8x128xf32, #tpu.memory_space<vmem>>, vector<1x8x128xf32>,
    return
  }
  func.func @transform_0(%arg0: i32) -> (i32, i32) {
    %c0_i32 = arith.constant 0 : i32
    %c0_i32_0 = arith.constant 0 : i32
    return %arg0, %c0_i32 : i32, i32
  }
  func.func @transform_1(%arg0: i32) -> (i32, i32) {
    %c0_i32 = arith.constant 0 : i32
    %c0_i32_0 = arith.constant 0 : i32
    %c0_i32_1 = arith.constant 0 : i32
    return %c0_i32, %c0_i32_0 : i32, i32
  }
  func.func @transform_2(%arg0: i32) -> (i32, i32) {
    %c0_i32 = arith.constant 0 : i32
    %c0_i32_0 = arith.constant 0 : i32
    %c0_i32_1 = arith.constant 0 : i32
    return %c0_i32, %c0_i32_0 : i32, i32
  }
  func.func @transform_3(%arg0: i32) -> (i32, i32) {
    %c0_i32 = arith.constant 0 : i32
    %c0_i32_0 = arith.constant 0 : i32
    return %arg0, %c0_i32 : i32, i32
  }
  func.func @transform_4(%arg0: i32) -> (i32, i32, i32) {
    %c0_i32 = arith.constant 0 : i32
    %c0_i32_0 = arith.constant 0 : i32
    %c0_i32_1 = arith.constant 0 : i32
    return %arg0, %c0_i32, %c0_i32_0 : i32, i32, i32
  }
}

module attributes {stable_mosaic.version = 11 : i64} {
  func.func @_affine_residual_kernel(%arg0: i32, %arg1: memref<256x128xf32, #tpu.memory_space<vmem>>, %arg2: memref<256x128xf32, #tpu.memory_space<vmem>>, %arg3: memref<1x128xf32, #tpu.memory_space<vmem>>, %arg4: memref<1x128xf32, #tpu.memory_space<vmem>>, %arg5: memref<256x128xf32, #tpu.memory_space<vmem>>) attributes {dimension_semantics = [#tpu.dimension_semantics<parallel>], iteration_bounds = array<i64: 2>, scalar_prefetch = 0 : i64, scratch_operands = 0 : i64, tpu.core_type = #tpu.core_type<tc>, window_params = [{transform_indices = @transform_0, window_bounds = array<i64: 256, 128>}, {transform_indices = @transform_1, window_bounds = array<i64: 256, 128>}, {pipeline_mode = #tpu.pipeline_mode<synchronous>, transform_indices = @transform_2, window_bounds = array<i64: 1, 128>}, {pipeline_mode = #tpu.pipeline_mode<synchronous>, transform_indices = @transform_3, window_bounds = array<i64: 1, 128>}, {transform_indices = @transform_4, window_bounds = array<i64: 256, 128>}]} {
    %c0 = arith.constant 0 : index
    %c0_0 = arith.constant 0 : index
    %0 = vector.load %arg1[%c0, %c0_0] : memref<256x128xf32, #tpu.memory_space<vmem>>, vector<256x128xf32>
    %c0_1 = arith.constant 0 : index
    %c0_2 = arith.constant 0 : index
    %1 = vector.load %arg3[%c0_1, %c0_2] : memref<1x128xf32, #tpu.memory_space<vmem>>, vector<1x128xf32>
    %2 = vector.broadcast %1 : vector<1x128xf32> to vector<256x128xf32>
    %3 = arith.mulf %0, %2 : vector<256x128xf32>
    %c0_3 = arith.constant 0 : index
    %c0_4 = arith.constant 0 : index
    %4 = vector.load %arg4[%c0_3, %c0_4] : memref<1x128xf32, #tpu.memory_space<vmem>>, vector<1x128xf32>
    %5 = vector.broadcast %4 : vector<1x128xf32> to vector<256x128xf32>
    %6 = arith.addf %3, %5 : vector<256x128xf32>
    %c0_5 = arith.constant 0 : index
    %c0_6 = arith.constant 0 : index
    %7 = vector.load %arg2[%c0_5, %c0_6] : memref<256x128xf32, #tpu.memory_space<vmem>>, vector<256x128xf32>
    %8 = arith.addf %6, %7 : vector<256x128xf32>
    %c0_7 = arith.constant 0 : index
    %c0_8 = arith.constant 0 : index
    %9 = vector.load %arg5[%c0_7, %c0_8] : memref<256x128xf32, #tpu.memory_space<vmem>>, vector<256x128xf32>
    tpu.vector_store %arg5[%c0_7, %c0_8], %8 {strides = array<i32>} : memref<256x128xf32, #tpu.memory_space<vmem>>, vector<256x128xf32>,
    return
  }
  func.func @transform_0(%arg0: i32) -> (i32, i32) {
    %c0_i32 = arith.constant 0 : i32
    %c0_i32_0 = arith.constant 0 : i32
    return %arg0, %c0_i32 : i32, i32
  }
  func.func @transform_1(%arg0: i32) -> (i32, i32) {
    %c0_i32 = arith.constant 0 : i32
    %c0_i32_0 = arith.constant 0 : i32
    return %arg0, %c0_i32 : i32, i32
  }
  func.func @transform_2(%arg0: i32) -> (i32, i32) {
    %c0_i32 = arith.constant 0 : i32
    %c0_i32_0 = arith.constant 0 : i32
    %c0_i32_1 = arith.constant 0 : i32
    return %c0_i32, %c0_i32_0 : i32, i32
  }
  func.func @transform_3(%arg0: i32) -> (i32, i32) {
    %c0_i32 = arith.constant 0 : i32
    %c0_i32_0 = arith.constant 0 : i32
    %c0_i32_1 = arith.constant 0 : i32
    return %c0_i32, %c0_i32_0 : i32, i32
  }
  func.func @transform_4(%arg0: i32) -> (i32, i32) {
    %c0_i32 = arith.constant 0 : i32
    %c0_i32_0 = arith.constant 0 : i32
    return %arg0, %c0_i32 : i32, i32
  }
}

</mosaic_0001>

<llo_original>
// kernel: deresblock_forward.3
$region0: #{deresblock_forward.3}
  #allocation0 [shape = 'u32[]', space=smem, size = 0x4, offset = 0x4, fixed_abs, tag = 'smem constant byte address 0x4 - core index']
  #allocation1 [shape = 'u32[72,128]{1,0:T(1,128)}', space=vmem, size = 0x9000, scoped, tag = 'internal scratch']
  %s0 = inlined_call_operand.vmem [shape: f32[1024,112], index: 0, kind: input, shape index: {}]
  %s1 = inlined_call_operand.vmem [shape: f32[112,128], index: 1, kind: input, shape index: {}]
  %s2 = inlined_call_operand.vmem [shape: f32[1,128], index: 2, kind: input, shape index: {}]
  %s3 = inlined_call_operand.vmem [shape: f32[1024,128], index: 3, kind: output, shape index: {0}]
  %s4 = inlined_call_operand.vmem [shape: f32[4,8,128], index: 4, kind: output, shape index: {1}]
  %5 = xla_tuple %s3, %s4
  %s6 = sld [smem:[#allocation0]]
  $region53: #{deresblock_forward.3} parent=0
    _
  %s8 = ssub.s32 1, %s6
  %s9 = scalar_select 0, %s8, %s6
  loop: start=0, step=1, limit=6
  $region2: #{deresblock_forward.3} parent=0 // loop_pre_header
    _
  $region3: #{deresblock_forward.3} parent=0 // loop_header
    %s11 = sphi 0, %s15
    %p12 = scmp.ge.s32.totalorder %s11, 6
    %s21 = sphi 0, %s23
    %s24 = sphi 0, %s21
    %s25 = sphi 0, %s24
    %s41 = sphi 0, %s25
    %s45 = sphi 0, %s45
    %s47 = sphi 0, %s45
    %s48 = sphi 0, %s47
    %s62 = sphi 0, %s48
    %s66 = sphi 0, %s66
    %s68 = sphi 0, %s66
    %s69 = sphi 0, %s68
    %s83 = sphi 0, %s69
    %s89 = sphi 0, %s91
    %s92 = sphi 0, %s89
    %s93 = sphi 0, %s92
    %s109 = sphi 0, %s93
    %s115 = sphi 0, %s117
    %s118 = sphi 0, %s115
    %s119 = sphi 0, %s118
    %s135 = sphi 0, %s119
  $region4: #{deresblock_forward.3} parent=0 // loop_header_branch
    %14 = sbr.rel (%p12) target = $region8
  $region5: #{deresblock_forward.3} parent=0 // loop_body
    %s16 = ssub.s32 %s11, 1
    %s17 = ssub.s32 %s11, 2
    %s18 = sadd.s32 %s11, 1
    %s19 = ssub.s32 %s11, %s18
    %p20 = scmp.eq.s32.totalorder %s19, 0
    %s22 = sadd.s32 %s21, 1
    %s23 = scalar_select %p20, %s21, %s22
    %p26 = pneg %p20
    %p27 = scmp.eq.s32.totalorder %s11, 3
    %p28 = por %p26, %p27
    %p29 = scmp.ne.s32.totalorder %s21, %s24
    %p30 = scmp.eq.s32.totalorder %s11, 0
    %p31 = por %p29, %p30
    %p32 = scmp.ne.s32.totalorder %s21, %s24
    %p33 = scmp.eq.s32.totalorder %s16, 3
    %p34 = por %p32, %p33
    %p35 = scmp.ne.s32.totalorder %s24, %s25
    %p36 = scmp.eq.s32.totalorder %s16, 0
    %p37 = por %p35, %p36
    %p38 = scmp.ne.s32.totalorder %s24, %s25
    %p39 = scmp.eq.s32.totalorder %s17, 3
    %p40 = por %p38, %p39
    %p42 = scmp.ne.s32.totalorder %s25, %s41
    %p43 = scmp.eq.s32.totalorder %s17, 0
    %p44 = por %p42, %p43
    %s46 = sadd.s32 %s45, 1
    %p49 = scmp.eq.s32.totalorder %s11, 3
    %p50 = scmp.ne.s32.totalorder %s45, %s47
    %p51 = scmp.eq.s32.totalorder %s11, 0
    %p52 = por %p50, %p51
    %p53 = scmp.ne.s32.totalorder %s45, %s47
    %p54 = scmp.eq.s32.totalorder %s16, 3
    %p55 = por %p53, %p54
    %p56 = scmp.ne.s32.totalorder %s47, %s48
    %p57 = scmp.eq.s32.totalorder %s16, 0
    %p58 = por %p56, %p57
    %p59 = scmp.ne.s32.totalorder %s47, %s48
    %p60 = scmp.eq.s32.totalorder %s17, 3
    %p61 = por %p59, %p60
    %p63 = scmp.ne.s32.totalorder %s48, %s62
    %p64 = scmp.eq.s32.totalorder %s17, 0
    %p65 = por %p63, %p64
    %s67 = sadd.s32 %s66, 1
    %p70 = scmp.eq.s32.totalorder %s11, 3
    %p71 = scmp.ne.s32.totalorder %s66, %s68
    %p72 = scmp.eq.s32.totalorder %s11, 0
    %p73 = por %p71, %p72
    %p74 = scmp.ne.s32.totalorder %s66, %s68
    %p75 = scmp.eq.s32.totalorder %s16, 3
    %p76 = por %p74, %p75
    %p77 = scmp.ne.s32.totalorder %s68, %s69
    %p78 = scmp.eq.s32.totalorder %s16, 0
    %p79 = por %p77, %p78
    %p80 = scmp.ne.s32.totalorder %s68, %s69
    %p81 = scmp.eq.s32.totalorder %s17, 3
    %p82 = por %p80, %p81
    %p84 = scmp.ne.s32.totalorder %s69, %s83
    %p85 = scmp.eq.s32.totalorder %s17, 0
    %p86 = por %p84, %p85
    %s87 = ssub.s32 %s11, %s18
    %p88 = scmp.eq.s32.totalorder %s87, 0
    %s90 = sadd.s32 %s89, 1
    %s91 = scalar_select %p88, %s89, %s90
    %p94 = pneg %p88
    %p95 = scmp.eq.s32.totalorder %s11, 3
    %p96 = por %p94, %p95
    %p97 = scmp.ne.s32.totalorder %s89, %s92
    %p98 = scmp.eq.s32.totalorder %s11, 0
    %p99 = por %p97, %p98
    %p100 = scmp.ne.s32.totalorder %s89, %s92
    %p101 = scmp.eq.s32.totalorder %s16, 3
    %p102 = por %p100, %p101
    %p103 = scmp.ne.s32.totalorder %s92, %s93
    %p104 = scmp.eq.s32.totalorder %s16, 0
    %p105 = por %p103, %p104
    %p106 = scmp.ne.s32.totalorder %s92, %s93
    %p107 = scmp.eq.s32.totalorder %s17, 3
    %p108 = por %p106, %p107
    %p110 = scmp.ne.s32.totalorder %s93, %s109
    %p111 = scmp.eq.s32.totalorder %s17, 0
    %p112 = por %p110, %p111
    %s113 = ssub.s32 %s11, %s18
    %p114 = scmp.eq.s32.totalorder %s113, 0
    %s116 = sadd.s32 %s115, 1
    %s117 = scalar_select %p114, %s115, %s116
    %p120 = pneg %p114
    %p121 = scmp.eq.s32.totalorder %s11, 3
    %p122 = por %p120, %p121
    %p123 = scmp.ne.s32.totalorder %s115, %s118
    %p124 = scmp.eq.s32.totalorder %s11, 0
    %p125 = por %p123, %p124
    %p126 = scmp.ne.s32.totalorder %s115, %s118
    %p127 = scmp.eq.s32.totalorder %s16, 3
    %p128 = por %p126, %p127
    %p129 = scmp.ne.s32.totalorder %s118, %s119
    %p130 = scmp.eq.s32.totalorder %s16, 0
    %p131 = por %p129, %p130
    %p132 = scmp.ne.s32.totalorder %s118, %s119
    %p133 = scmp.eq.s32.totalorder %s17, 3
    %p134 = por %p132, %p133
    %p136 = scmp.ne.s32.totalorder %s119, %s135
    %p137 = scmp.eq.s32.totalorder %s17, 0
    %p138 = por %p136, %p137
    %p139 = scmp.le.s32.totalorder 1, %s11
    %p140 = scmp.lt.s32.totalorder %s11, 5
    %p141 = pnand %p139, %p140
    %p142 = pneg %p141
    // Predicated region
    $region9: #{deresblock_forward.3} parent=5 // pred_check
      _
    $region10: #{deresblock_forward.3} parent=5 // pred_check_branch
      %144 = sbr.rel (%p141) target = $region12
    $region11: #{deresblock_forward.3} parent=5 // pred_region
      %s145 = ssub.s32 %s11, 1
      // Predicated region
      $region13: #{deresblock_forward.3} parent=11 // pred_check
        %p146 = pneg %p58
      $region14: #{deresblock_forward.3} parent=11 // pred_check_branch
        %148 = sbr.rel (%p146) target = $region16
      $region15: #{deresblock_forward.3} parent=11 // pred_region
        _
      $region16: #{deresblock_forward.3} parent=11 // pred_fallthru
        _
      // Predicated region
      $region17: #{deresblock_forward.3} parent=11 // pred_check
        %p149 = pneg %p79
      $region18: #{deresblock_forward.3} parent=11 // pred_check_branch
        %151 = sbr.rel (%p149) target = $region20
      $region19: #{deresblock_forward.3} parent=11 // pred_region
        _
      $region20: #{deresblock_forward.3} parent=11 // pred_fallthru
        _
    $region12: #{deresblock_forward.3} parent=5 // pred_fallthru
      _
    %p152 = scmp.lt.s32.totalorder %s11, 4
    // Predicated region
    $region21: #{deresblock_forward.3} parent=5 // pred_check
      %p153 = pneg %p152
    $region22: #{deresblock_forward.3} parent=5 // pred_check_branch
      %155 = sbr.rel (%p153) target = $region24
    $region23: #{deresblock_forward.3} parent=5 // pred_region
      // Predicated region
      $region25: #{deresblock_forward.3} parent=23 // pred_check
        %p156 = pneg %p31
      $region26: #{deresblock_forward.3} parent=23 // pred_check_branch
        %158 = sbr.rel (%p156) target = $region28
      $region27: #{deresblock_forward.3} parent=23 // pred_region
        %s159 = smul.u32 32, %s11
        %p160 = scmp.lt.s32.totalorder %s159, 127
        %s161 = scalar_select %p160, %s159, 127
        %s162 = smul.addr %s161, 8
        %s163 = scalar_lea.vmem %s0, %s162
        %s164 = smul.u32 32, %s11
      $region28: #{deresblock_forward.3} parent=23 // pred_fallthru
        _
    $region24: #{deresblock_forward.3} parent=5 // pred_fallthru
      _
    %p165 = scmp.le.s32.totalorder 1, %s11
    %p166 = scmp.lt.s32.totalorder %s11, 5
    %p167 = pnand %p165, %p166
    %p168 = pneg %p167
    // Predicated region
    $region29: #{deresblock_forward.3} parent=5 // pred_check
      _
    $region30: #{deresblock_forward.3} parent=5 // pred_check_branch
      %170 = sbr.rel (%p167) target = $region32
    $region31: #{deresblock_forward.3} parent=5 // pred_region
      %s171 = ssub.s32 %s11, 1
      %s172 = smul.u32 32, %s16
      %p173 = scmp.lt.s32.totalorder %s172, 127
      %s174 = scalar_select %p173, %s172, 127
      %s175 = smul.addr %s174, 8
      %s176 = scalar_lea.vmem %s0, %s175
      %p177 = pneg %p37
      %p178 = pneg %p34
      %p179 = pneg %p58
      %p180 = pneg %p55
      %p181 = pneg %p79
      %p182 = pneg %p76
      %p183 = pneg %p105
      %p184 = pneg %p102
      %s185 = smul.u32 32, %s16
      %p186 = scmp.lt.s32.totalorder %s185, 127
      %s187 = scalar_select %p186, %s185, 127
      %s188 = smul.addr %s187, 8
      %s189 = scalar_lea.vmem %s3, %s188
      %p190 = pneg %p131
      %p191 = pneg %p128
      %p192 = scmp.lt.s32.totalorder %s16, 3
      %s193 = scalar_select %p192, %s16, 3
      %s194 = smul.addr %s193, 8
      %s195 = scalar_lea.vmem %s4, %s194
      %s196 = smul.u32 32, %s16
      %p197 = scmp.lt.s32.totalorder %s196, 127
      %s198 = scalar_select %p197, %s196, 127
      %s199 = smul.addr %s198, 8
      %s200 = scalar_lea.vmem %s0, %s199
      %s201 = smul.u32 32, %s16
      %s202 = smul.u32 32, %s16
      %p203 = scmp.lt.s32.totalorder %s202, 127
      %s204 = scalar_select %p203, %s202, 127
      %s205 = smul.addr %s204, 8
      %s206 = scalar_lea.vmem %s3, %s205
      %s207 = smul.u32 32, %s16
      %p208 = scmp.lt.s32.totalorder %s16, 3
      %s209 = scalar_select %p208, %s16, 3
      %s210 = smul.addr %s209, 8
      %s211 = scalar_lea.vmem %s4, %s210
      %v212 = vld [vmem:[%s200] sm:$0xff]
      %v213 = vld [vmem:[%s200 + $0x8] sm:$0xff]
      %v214 = vld [vmem:[%s200 + $0x10] sm:$0xff]
      %v215 = vld [vmem:[%s200 + $0x18] sm:$0xff]
      %v216 = vld [vmem:[%s200 + $0x20] sm:$0xff]
      %v217 = vld [vmem:[%s200 + $0x28] sm:$0xff]
      %v218 = vld [vmem:[%s200 + $0x30] sm:$0xff]
      %v219 = vld [vmem:[%s200 + $0x38] sm:$0xff]
      %v220 = vld [vmem:[%s200 + $0x40] sm:$0xff]
      %v221 = vld [vmem:[%s200 + $0x48] sm:$0xff]
      %v222 = vld [vmem:[%s200 + $0x50] sm:$0xff]
      %v223 = vld [vmem:[%s200 + $0x58] sm:$0xff]
      %v224 = vld [vmem:[%s200 + $0x60] sm:$0xff]
      %v225 = vld [vmem:[%s200 + $0x68] sm:$0xff]
      %v226 = vld [vmem:[%s200 + $0x70] sm:$0xff]
      %v227 = vld [vmem:[%s200 + $0x78] sm:$0xff]
      %v228 = vld [vmem:[%s200 + $0x80] sm:$0xff]
      %v229 = vld [vmem:[%s200 + $0x88] sm:$0xff]
      %v230 = vld [vmem:[%s200 + $0x90] sm:$0xff]
      %v231 = vld [vmem:[%s200 + $0x98] sm:$0xff]
      %v232 = vld [vmem:[%s200 + $0xa0] sm:$0xff]
      %v233 = vld [vmem:[%s200 + $0xa8] sm:$0xff]
      %v234 = vld [vmem:[%s200 + $0xb0] sm:$0xff]
      %v235 = vld [vmem:[%s200 + $0xb8] sm:$0xff]
      %v236 = vld [vmem:[%s200 + $0xc0] sm:$0xff]
      %v237 = vld [vmem:[%s200 + $0xc8] sm:$0xff]
      %v238 = vld [vmem:[%s200 + $0xd0] sm:$0xff]
      %v239 = vld [vmem:[%s200 + $0xd8] sm:$0xff]
      %v240 = vld [vmem:[%s200 + $0xe0] sm:$0xff]
      %v241 = vld [vmem:[%s200 + $0xe8] sm:$0xff]
      %v242 = vld [vmem:[%s200 + $0xf0] sm:$0xff]
      %v243 = vld [vmem:[%s200 + $0xf8] sm:$0xff]
      %v244 = vld [vmem:[%s1] sm:$0xff]
      %v245 = vld [vmem:[%s1 + $0x8] sm:$0xff]
      %v246 = vld [vmem:[%s1 + $0x10] sm:$0xff]
      %v247 = vld [vmem:[%s1 + $0x18] sm:$0xff]
      %v248 = vld [vmem:[%s1 + $0x20] sm:$0xff]
      %v249 = vld [vmem:[%s1 + $0x28] sm:$0xff]
      %v250 = vld [vmem:[%s1 + $0x30] sm:$0xff]
      %v251 = vld [vmem:[%s1 + $0x38] sm:$0xff]
      %v252 = vld [vmem:[%s1 + $0x40] sm:$0xff]
      %v253 = vld [vmem:[%s1 + $0x48] sm:$0xff]
      %v254 = vld [vmem:[%s1 + $0x50] sm:$0xff]
      %v255 = vld [vmem:[%s1 + $0x58] sm:$0xff]
      %v256 = vld [vmem:[%s1 + $0x60] sm:$0xff]
      %v257 = vld [vmem:[%s1 + $0x68] sm:$0xff]
      %v258 = vld [vmem:[%s2] sm:$0x1]
      %v260 = vperm.slane %v258, 0
      %vm262 = vcmask 916480
      %v264 = vsel %vm262, %v212, 0
      %v267 = vsel %vm262, %v213, 0
      %v270 = vsel %vm262, %v214, 0
      %v273 = vsel %vm262, %v215, 0
      %v276 = vsel %vm262, %v216, 0
      %v279 = vsel %vm262, %v217, 0
      %v282 = vsel %vm262, %v218, 0
      %v285 = vsel %vm262, %v219, 0
      %v288 = vsel %vm262, %v220, 0
      %v291 = vsel %vm262, %v221, 0
      %v294 = vsel %vm262, %v222, 0
      %v297 = vsel %vm262, %v223, 0
      %v300 = vsel %vm262, %v224, 0
      %v303 = vsel %vm262, %v225, 0
      %v306 = vsel %vm262, %v226, 0
      %v309 = vsel %vm262, %v227, 0
      %v312 = vsel %vm262, %v228, 0
      %v315 = vsel %vm262, %v229, 0
      %v318 = vsel %vm262, %v230, 0
      %v321 = vsel %vm262, %v231, 0
      %v324 = vsel %vm262, %v232, 0
      %v327 = vsel %vm262, %v233, 0
      %v330 = vsel %vm262, %v234, 0
      %v333 = vsel %vm262, %v235, 0
      %v336 = vsel %vm262, %v236, 0
      %v339 = vsel %vm262, %v237, 0
      %v342 = vsel %vm262, %v238, 0
      %v345 = vsel %vm262, %v239, 0
      %v348 = vsel %vm262, %v240, 0
      %v351 = vsel %vm262, %v241, 0
      %v354 = vsel %vm262, %v242, 0
      %v357 = vsel %vm262, %v243, 0
      %359 = vmatpush.msra.mxu0 0.0
      %360 = vmatpush.msra.mxu0 0.0
      %361 = vmatpush.msra.mxu0 %v257
      %362 = vmatpush.msra.mxu0 %v256
      %363 = vmatpush.msra.mxu0 %v255
      %364 = vmatpush.msra.mxu0 %v254
      %365 = vmatpush.msra.mxu0 %v253
      %366 = vmatpush.msra.mxu0 %v252
      %367 = vmatpush.msra.mxu0 %v251
      %368 = vmatpush.msra.mxu0 %v250
      %369 = vmatpush.msra.mxu0 %v249
      %370 = vmatpush.msra.mxu0 %v248
      %371 = vmatpush.msra.mxu0 %v247
      %372 = vmatpush.msra.mxu0 %v246
      %373 = vmatpush.msra.mxu0 %v245
      %374 = vmatpush.msra.mxu0 %v244
      %375 = vmatmul.f32.gmra.mxu0 %v264
      %v376 = vpop.f32.mrf.mxu0
      %v377 = vadd.f32 %v260, %v376
      %378 = vmatmul.f32.gmra.mxu0 %v267
      %v379 = vpop.f32.mrf.mxu0
      %v380 = vadd.f32 %v260, %v379
      %381 = vmatmul.f32.gmra.mxu0 %v270
      %v382 = vpop.f32.mrf.mxu0
      %v383 = vadd.f32 %v260, %v382
      %384 = vmatmul.f32.gmra.mxu0 %v273
      %v385 = vpop.f32.mrf.mxu0
      %v386 = vadd.f32 %v260, %v385
      %387 = vmatmul.f32.gmra.mxu0 %v276
      %v388 = vpop.f32.mrf.mxu0
      %v389 = vadd.f32 %v260, %v388
      %390 = vmatmul.f32.gmra.mxu0 %v279
      %v391 = vpop.f32.mrf.mxu0
      %v392 = vadd.f32 %v260, %v391
      %393 = vmatmul.f32.gmra.mxu0 %v282
      %v394 = vpop.f32.mrf.mxu0
      %v395 = vadd.f32 %v260, %v394
      %396 = vmatmul.f32.gmra.mxu0 %v285
      %v397 = vpop.f32.mrf.mxu0
      %v398 = vadd.f32 %v260, %v397
      %399 = vmatmul.f32.gmra.mxu0 %v288
      %v400 = vpop.f32.mrf.mxu0
      %v401 = vadd.f32 %v260, %v400
      %402 = vmatmul.f32.gmra.mxu0 %v291
      %v403 = vpop.f32.mrf.mxu0
      %v404 = vadd.f32 %v260, %v403
      %405 = vmatmul.f32.gmra.mxu0 %v294
      %v406 = vpop.f32.mrf.mxu0
      %v407 = vadd.f32 %v260, %v406
      %408 = vmatmul.f32.gmra.mxu0 %v297
      %v409 = vpop.f32.mrf.mxu0
      %v410 = vadd.f32 %v260, %v409
      %411 = vmatmul.f32.gmra.mxu0 %v300
      %v412 = vpop.f32.mrf.mxu0
      %v413 = vadd.f32 %v260, %v412
      %414 = vmatmul.f32.gmra.mxu0 %v303
      %v415 = vpop.f32.mrf.mxu0
      %v416 = vadd.f32 %v260, %v415
      %417 = vmatmul.f32.gmra.mxu0 %v306
      %v418 = vpop.f32.mrf.mxu0
      %v419 = vadd.f32 %v260, %v418
      %420 = vmatmul.f32.gmra.mxu0 %v309
      %v421 = vpop.f32.mrf.mxu0
      %v422 = vadd.f32 %v260, %v421
      %423 = vmatmul.f32.gmra.mxu0 %v312
      %v424 = vpop.f32.mrf.mxu0
      %v425 = vadd.f32 %v260, %v424
      %426 = vmatmul.f32.gmra.mxu0 %v315
      %v427 = vpop.f32.mrf.mxu0
      %v428 = vadd.f32 %v260, %v427
      %429 = vmatmul.f32.gmra.mxu0 %v318
      %v430 = vpop.f32.mrf.mxu0
      %v431 = vadd.f32 %v260, %v430
      %432 = vmatmul.f32.gmra.mxu0 %v321
      %v433 = vpop.f32.mrf.mxu0
      %v434 = vadd.f32 %v260, %v433
      %435 = vmatmul.f32.gmra.mxu0 %v324
      %v436 = vpop.f32.mrf.mxu0
      %v437 = vadd.f32 %v260, %v436
      %438 = vmatmul.f32.gmra.mxu0 %v327
      %v439 = vpop.f32.mrf.mxu0
      %v440 = vadd.f32 %v260, %v439
      %441 = vmatmul.f32.gmra.mxu0 %v330
      %v442 = vpop.f32.mrf.mxu0
      %v443 = vadd.f32 %v260, %v442
      %444 = vmatmul.f32.gmra.mxu0 %v333
      %v445 = vpop.f32.mrf.mxu0
      %v446 = vadd.f32 %v260, %v445
      %447 = vmatmul.f32.gmra.mxu0 %v336
      %v448 = vpop.f32.mrf.mxu0
      %v449 = vadd.f32 %v260, %v448
      %450 = vmatmul.f32.gmra.mxu0 %v339
      %v451 = vpop.f32.mrf.mxu0
      %v452 = vadd.f32 %v260, %v451
      %453 = vmatmul.f32.gmra.mxu0 %v342
      %v454 = vpop.f32.mrf.mxu0
      %v455 = vadd.f32 %v260, %v454
      %456 = vmatmul.f32.gmra.mxu0 %v345
      %v457 = vpop.f32.mrf.mxu0
      %v458 = vadd.f32 %v260, %v457
      %459 = vmatmul.f32.gmra.mxu0 %v348
      %v460 = vpop.f32.mrf.mxu0
      %v461 = vadd.f32 %v260, %v460
      %462 = vmatmul.f32.gmra.mxu0 %v351
      %v463 = vpop.f32.mrf.mxu0
      %v464 = vadd.f32 %v260, %v463
      %465 = vmatmul.f32.gmra.mxu0 %v354
      %v466 = vpop.f32.mrf.mxu0
      %v467 = vadd.f32 %v260, %v466
      %468 = vmatmul.f32.gmra.mxu0 %v357
      %v469 = vpop.f32.mrf.mxu0
      %v470 = vadd.f32 %v260, %v469
      %471 = vdwg.mxu0
      %v472 = vmax.f32 %v377, 0.0
      %v473 = vmax.f32 %v380, 0.0
      %v474 = vmax.f32 %v383, 0.0
      %v475 = vmax.f32 %v386, 0.0
      %v476 = vmax.f32 %v389, 0.0
      %v477 = vmax.f32 %v392, 0.0
      %v478 = vmax.f32 %v395, 0.0
      %v479 = vmax.f32 %v398, 0.0
      %v480 = vmax.f32 %v401, 0.0
      %v481 = vmax.f32 %v404, 0.0
      %v482 = vmax.f32 %v407, 0.0
      %v483 = vmax.f32 %v410, 0.0
      %v484 = vmax.f32 %v413, 0.0
      %v485 = vmax.f32 %v416, 0.0
      %v486 = vmax.f32 %v419, 0.0
      %v487 = vmax.f32 %v422, 0.0
      %v488 = vmax.f32 %v425, 0.0
      %v489 = vmax.f32 %v428, 0.0
      %v490 = vmax.f32 %v431, 0.0
      %v491 = vmax.f32 %v434, 0.0
      %v492 = vmax.f32 %v437, 0.0
      %v493 = vmax.f32 %v440, 0.0
      %v494 = vmax.f32 %v443, 0.0
      %v495 = vmax.f32 %v446, 0.0
      %v496 = vmax.f32 %v449, 0.0
      %v497 = vmax.f32 %v452, 0.0
      %v498 = vmax.f32 %v455, 0.0
      %v499 = vmax.f32 %v458, 0.0
      %v500 = vmax.f32 %v461, 0.0
      %v501 = vmax.f32 %v464, 0.0
      %v502 = vmax.f32 %v467, 0.0
      %v503 = vmax.f32 %v470, 0.0
      %504 = vst [vmem:[%s206] sm:$0xff] %v472
      %505 = vst [vmem:[%s206 + $0x8] sm:$0xff] %v473
      %506 = vst [vmem:[%s206 + $0x10] sm:$0xff] %v474
      %507 = vst [vmem:[%s206 + $0x18] sm:$0xff] %v475
      %508 = vst [vmem:[%s206 + $0x20] sm:$0xff] %v476
      %509 = vst [vmem:[%s206 + $0x28] sm:$0xff] %v477
      %510 = vst [vmem:[%s206 + $0x30] sm:$0xff] %v478
      %511 = vst [vmem:[%s206 + $0x38] sm:$0xff] %v479
      %512 = vst [vmem:[%s206 + $0x40] sm:$0xff] %v480
      %513 = vst [vmem:[%s206 + $0x48] sm:$0xff] %v481
      %514 = vst [vmem:[%s206 + $0x50] sm:$0xff] %v482
      %515 = vst [vmem:[%s206 + $0x58] sm:$0xff] %v483
      %516 = vst [vmem:[%s206 + $0x60] sm:$0xff] %v484
      %517 = vst [vmem:[%s206 + $0x68] sm:$0xff] %v485
      %518 = vst [vmem:[%s206 + $0x70] sm:$0xff] %v486
      %519 = vst [vmem:[%s206 + $0x78] sm:$0xff] %v487
      %520 = vst [vmem:[%s206 + $0x80] sm:$0xff] %v488
      %521 = vst [vmem:[%s206 + $0x88] sm:$0xff] %v489
      %522 = vst [vmem:[%s206 + $0x90] sm:$0xff] %v490
      %523 = vst [vmem:[%s206 + $0x98] sm:$0xff] %v491
      %524 = vst [vmem:[%s206 + $0xa0] sm:$0xff] %v492
      %525 = vst [vmem:[%s206 + $0xa8] sm:$0xff] %v493
      %526 = vst [vmem:[%s206 + $0xb0] sm:$0xff] %v494
      %527 = vst [vmem:[%s206 + $0xb8] sm:$0xff] %v495
      %528 = vst [vmem:[%s206 + $0xc0] sm:$0xff] %v496
      %529 = vst [vmem:[%s206 + $0xc8] sm:$0xff] %v497
      %530 = vst [vmem:[%s206 + $0xd0] sm:$0xff] %v498
      %531 = vst [vmem:[%s206 + $0xd8] sm:$0xff] %v499
      %532 = vst [vmem:[%s206 + $0xe0] sm:$0xff] %v500
      %533 = vst [vmem:[%s206 + $0xe8] sm:$0xff] %v501
      %534 = vst [vmem:[%s206 + $0xf0] sm:$0xff] %v502
      %535 = vst [vmem:[%s206 + $0xf8] sm:$0xff] %v503
      %v536 = vlaneseq
      %v537 = vshrl.u32 %v536, 7
      %v538 = vadd.s32 %v537, 8
      %v539 = vadd.s32 %v537, 16
      %v540 = vadd.s32 %v537, 24
      %v541 = vadd.s32 %v537, 32
      %v542 = vadd.s32 %v537, 40
      %v543 = vadd.s32 %v537, 48
      %v544 = vadd.s32 %v537, 56
      %v545 = vadd.s32 %v537, 64
      %v546 = vadd.s32 %v537, 72
      %v547 = vadd.s32 %v537, 80
      %v548 = vadd.s32 %v537, 88
      %v549 = vadd.s32 %v537, 96
      %v550 = vadd.s32 %v537, 104
      %v551 = vadd.s32 %v537, 112
      %v552 = vadd.s32 %v537, 120
      %v553 = vadd.s32 %v537, 128
      %v554 = vadd.s32 %v537, 136
      %v555 = vadd.s32 %v537, 144
      %v556 = vadd.s32 %v537, 152
      %v557 = vadd.s32 %v537, 160
      %v558 = vadd.s32 %v537, 168
      %v559 = vadd.s32 %v537, 176
      %v560 = vadd.s32 %v537, 184
      %v561 = vadd.s32 %v537, 192
      %v562 = vadd.s32 %v537, 200
      %v563 = vadd.s32 %v537, 208
      %v564 = vadd.s32 %v537, 216
      %v565 = vadd.s32 %v537, 224
      %v566 = vadd.s32 %v537, 232
      %v567 = vadd.s32 %v537, 240
      %v568 = vadd.s32 %v537, 248
      %s569 = smul.u32 %s16, 256
      %v570 = vstv %s569
      %v571 = vadd.s32 %v537, %v570
      %v572 = vadd.s32 %v538, %v570
      %v573 = vadd.s32 %v539, %v570
      %v574 = vadd.s32 %v540, %v570
      %v575 = vadd.s32 %v541, %v570
      %v576 = vadd.s32 %v542, %v570
      %v577 = vadd.s32 %v543, %v570
      %v578 = vadd.s32 %v544, %v570
      %v579 = vadd.s32 %v545, %v570
      %v580 = vadd.s32 %v546, %v570
      %v581 = vadd.s32 %v547, %v570
      %v582 = vadd.s32 %v548, %v570
      %v583 = vadd.s32 %v549, %v570
      %v584 = vadd.s32 %v550, %v570
      %v585 = vadd.s32 %v551, %v570
      %v586 = vadd.s32 %v552, %v570
      %v587 = vadd.s32 %v553, %v570
      %v588 = vadd.s32 %v554, %v570
      %v589 = vadd.s32 %v555, %v570
      %v590 = vadd.s32 %v556, %v570
      %v591 = vadd.s32 %v557, %v570
      %v592 = vadd.s32 %v558, %v570
      %v593 = vadd.s32 %v559, %v570
      %v594 = vadd.s32 %v560, %v570
      %v595 = vadd.s32 %v561, %v570
      %v596 = vadd.s32 %v562, %v570
      %v597 = vadd.s32 %v563, %v570
      %v598 = vadd.s32 %v564, %v570
      %v599 = vadd.s32 %v565, %v570
      %v600 = vadd.s32 %v566, %v570
      %v601 = vadd.s32 %v567, %v570
      %v602 = vadd.s32 %v568, %v570
      %vm603 = vcmp.lt.s32.totalorder %v571, 1024
      %vm604 = vcmp.lt.s32.totalorder %v572, 1024
      %vm605 = vcmp.lt.s32.totalorder %v573, 1024
      %vm606 = vcmp.lt.s32.totalorder %v574, 1024
      %vm607 = vcmp.lt.s32.totalorder %v575, 1024
      %vm608 = vcmp.lt.s32.totalorder %v576, 1024
      %vm609 = vcmp.lt.s32.totalorder %v577, 1024
      %vm610 = vcmp.lt.s32.totalorder %v578, 1024
      %vm611 = vcmp.lt.s32.totalorder %v579, 1024
      %vm612 = vcmp.lt.s32.totalorder %v580, 1024
      %vm613 = vcmp.lt.s32.totalorder %v581, 1024
      %vm614 = vcmp.lt.s32.totalorder %v582, 1024
      %vm615 = vcmp.lt.s32.totalorder %v583, 1024
      %vm616 = vcmp.lt.s32.totalorder %v584, 1024
      %vm617 = vcmp.lt.s32.totalorder %v585, 1024
      %vm618 = vcmp.lt.s32.totalorder %v586, 1024
      %vm619 = vcmp.lt.s32.totalorder %v587, 1024
      %vm620 = vcmp.lt.s32.totalorder %v588, 1024
      %vm621 = vcmp.lt.s32.totalorder %v589, 1024
      %vm622 = vcmp.lt.s32.totalorder %v590, 1024
      %vm623 = vcmp.lt.s32.totalorder %v591, 1024
      %vm624 = vcmp.lt.s32.totalorder %v592, 1024
      %vm625 = vcmp.lt.s32.totalorder %v593, 1024
      %vm626 = vcmp.lt.s32.totalorder %v594, 1024
      %vm627 = vcmp.lt.s32.totalorder %v595, 1024
      %vm628 = vcmp.lt.s32.totalorder %v596, 1024
      %vm629 = vcmp.lt.s32.totalorder %v597, 1024
      %vm630 = vcmp.lt.s32.totalorder %v598, 1024
      %vm631 = vcmp.lt.s32.totalorder %v599, 1024
      %vm632 = vcmp.lt.s32.totalorder %v600, 1024
      %vm633 = vcmp.lt.s32.totalorder %v601, 1024
      %vm634 = vcmp.lt.s32.totalorder %v602, 1024
      %v635 = vsel %vm603, 1, 0
      %v636 = vsel %vm604, 1, 0
      %v637 = vsel %vm605, 1, 0
      %v638 = vsel %vm606, 1, 0
      %v639 = vsel %vm607, 1, 0
      %v640 = vsel %vm608, 1, 0
      %v641 = vsel %vm609, 1, 0
      %v642 = vsel %vm610, 1, 0
      %v643 = vsel %vm611, 1, 0
      %v644 = vsel %vm612, 1, 0
      %v645 = vsel %vm613, 1, 0
      %v646 = vsel %vm614, 1, 0
      %v647 = vsel %vm615, 1, 0
      %v648 = vsel %vm616, 1, 0
      %v649 = vsel %vm617, 1, 0
      %v650 = vsel %vm618, 1, 0
      %v651 = vsel %vm619, 1, 0
      %v652 = vsel %vm620, 1, 0
      %v653 = vsel %vm621, 1, 0
      %v654 = vsel %vm622, 1, 0
      %v655 = vsel %vm623, 1, 0
      %v656 = vsel %vm624, 1, 0
      %v657 = vsel %vm625, 1, 0
      %v658 = vsel %vm626, 1, 0
      %v659 = vsel %vm627, 1, 0
      %v660 = vsel %vm628, 1, 0
      %v661 = vsel %vm629, 1, 0
      %v662 = vsel %vm630, 1, 0
      %v663 = vsel %vm631, 1, 0
      %v664 = vsel %vm632, 1, 0
      %v665 = vsel %vm633, 1, 0
      %v666 = vsel %vm634, 1, 0
      %vm667 = vcmp.eq.s32.totalorder %v635, 1
      %vm668 = vcmp.eq.s32.totalorder %v636, 1
      %vm669 = vcmp.eq.s32.totalorder %v637, 1
      %vm670 = vcmp.eq.s32.totalorder %v638, 1
      %vm671 = vcmp.eq.s32.totalorder %v639, 1
      %vm672 = vcmp.eq.s32.totalorder %v640, 1
      %vm673 = vcmp.eq.s32.totalorder %v641, 1
      %vm674 = vcmp.eq.s32.totalorder %v642, 1
      %vm675 = vcmp.eq.s32.totalorder %v643, 1
      %vm676 = vcmp.eq.s32.totalorder %v644, 1
      %vm677 = vcmp.eq.s32.totalorder %v645, 1
      %vm678 = vcmp.eq.s32.totalorder %v646, 1
      %vm679 = vcmp.eq.s32.totalorder %v647, 1
      %vm680 = vcmp.eq.s32.totalorder %v648, 1
      %vm681 = vcmp.eq.s32.totalorder %v649, 1
      %vm682 = vcmp.eq.s32.totalorder %v650, 1
      %vm683 = vcmp.eq.s32.totalorder %v651, 1
      %vm684 = vcmp.eq.s32.totalorder %v652, 1
      %vm685 = vcmp.eq.s32.totalorder %v653, 1
      %vm686 = vcmp.eq.s32.totalorder %v654, 1
      %vm687 = vcmp.eq.s32.totalorder %v655, 1
      %vm688 = vcmp.eq.s32.totalorder %v656, 1
      %vm689 = vcmp.eq.s32.totalorder %v657, 1
      %vm690 = vcmp.eq.s32.totalorder %v658, 1
      %vm691 = vcmp.eq.s32.totalorder %v659, 1
      %vm692 = vcmp.eq.s32.totalorder %v660, 1
      %vm693 = vcmp.eq.s32.totalorder %v661, 1
      %vm694 = vcmp.eq.s32.totalorder %v662, 1
      %vm695 = vcmp.eq.s32.totalorder %v663, 1
      %vm696 = vcmp.eq.s32.totalorder %v664, 1
      %vm697 = vcmp.eq.s32.totalorder %v665, 1
      %vm698 = vcmp.eq.s32.totalorder %v666, 1
      %v699 = vsel %vm667, %v472, 0.0
      %v700 = vsel %vm668, %v473, 0.0
      %v701 = vsel %vm669, %v474, 0.0
      %v702 = vsel %vm670, %v475, 0.0
      %v703 = vsel %vm671, %v476, 0.0
      %v704 = vsel %vm672, %v477, 0.0
      %v705 = vsel %vm673, %v478, 0.0
      %v706 = vsel %vm674, %v479, 0.0
      %v707 = vsel %vm675, %v480, 0.0
      %v708 = vsel %vm676, %v481, 0.0
      %v709 = vsel %vm677, %v482, 0.0
      %v710 = vsel %vm678, %v483, 0.0
      %v711 = vsel %vm679, %v484, 0.0
      %v712 = vsel %vm680, %v485, 0.0
      %v713 = vsel %vm681, %v486, 0.0
      %v714 = vsel %vm682, %v487, 0.0
      %v715 = vsel %vm683, %v488, 0.0
      %v716 = vsel %vm684, %v489, 0.0
      %v717 = vsel %vm685, %v490, 0.0
      %v718 = vsel %vm686, %v491, 0.0
      %v719 = vsel %vm687, %v492, 0.0
      %v720 = vsel %vm688, %v493, 0.0
      %v721 = vsel %vm689, %v494, 0.0
      %v722 = vsel %vm690, %v495, 0.0
      %v723 = vsel %vm691, %v496, 0.0
      %v724 = vsel %vm692, %v497, 0.0
      %v725 = vsel %vm693, %v498, 0.0
      %v726 = vsel %vm694, %v499, 0.0
      %v727 = vsel %vm695, %v500, 0.0
      %v728 = vsel %vm696, %v501, 0.0
      %v729 = vsel %vm697, %v502, 0.0
      %v730 = vsel %vm698, %v503, 0.0
      %v731 = vadd.f32 %v699, %v700
      %v732 = vadd.f32 %v731, %v701
      %v733 = vadd.f32 %v732, %v702
      %v734 = vadd.f32 %v733, %v703
      %v735 = vadd.f32 %v734, %v704
      %v736 = vadd.f32 %v735, %v705
      %v737 = vadd.f32 %v736, %v706
      %v738 = vadd.f32 %v737, %v707
      %v739 = vadd.f32 %v738, %v708
      %v740 = vadd.f32 %v739, %v709
      %v741 = vadd.f32 %v740, %v710
      %v742 = vadd.f32 %v741, %v711
      %v743 = vadd.f32 %v742, %v712
      %v744 = vadd.f32 %v743, %v713
      %v745 = vadd.f32 %v744, %v714
      %v746 = vadd.f32 %v745, %v715
      %v747 = vadd.f32 %v746, %v716
      %v748 = vadd.f32 %v747, %v717
      %v749 = vadd.f32 %v748, %v718
      %v750 = vadd.f32 %v749, %v719
      %v751 = vadd.f32 %v750, %v720
      %v752 = vadd.f32 %v751, %v721
      %v753 = vadd.f32 %v752, %v722
      %v754 = vadd.f32 %v753, %v723
      %v755 = vadd.f32 %v754, %v724
      %v756 = vadd.f32 %v755, %v725
      %v757 = vadd.f32 %v756, %v726
      %v758 = vadd.f32 %v757, %v727
      %v759 = vadd.f32 %v758, %v728
      %v760 = vadd.f32 %v759, %v729
      %v761 = vadd.f32 %v760, %v730
      %v762 = vrot.slane %v761, 4
      %v763 = vadd.f32 %v761, %v762
      %v764 = vrot.slane %v763, 2
      %v765 = vadd.f32 %v763, %v764
      %v766 = vrot.slane %v765, 1
      %v767 = vadd.f32 %v765, %v766
      %v768 = vmul.f32 %v699, %v699
      %v769 = vmul.f32 %v700, %v700
      %v770 = vmul.f32 %v701, %v701
      %v771 = vmul.f32 %v702, %v702
      %v772 = vmul.f32 %v703, %v703
      %v773 = vmul.f32 %v704, %v704
      %v774 = vmul.f32 %v705, %v705
      %v775 = vmul.f32 %v706, %v706
      %v776 = vmul.f32 %v707, %v707
      %v777 = vmul.f32 %v708, %v708
      %v778 = vmul.f32 %v709, %v709
      %v779 = vmul.f32 %v710, %v710
      %v780 = vmul.f32 %v711, %v711
      %v781 = vmul.f32 %v712, %v712
      %v782 = vmul.f32 %v713, %v713
      %v783 = vmul.f32 %v714, %v714
      %v784 = vmul.f32 %v715, %v715
      %v785 = vmul.f32 %v716, %v716
      %v786 = vmul.f32 %v717, %v717
      %v787 = vmul.f32 %v718, %v718
      %v788 = vmul.f32 %v719, %v719
      %v789 = vmul.f32 %v720, %v720
      %v790 = vmul.f32 %v721, %v721
      %v791 = vmul.f32 %v722, %v722
      %v792 = vmul.f32 %v723, %v723
      %v793 = vmul.f32 %v724, %v724
      %v794 = vmul.f32 %v725, %v725
      %v795 = vmul.f32 %v726, %v726
      %v796 = vmul.f32 %v727, %v727
      %v797 = vmul.f32 %v728, %v728
      %v798 = vmul.f32 %v729, %v729
      %v799 = vmul.f32 %v730, %v730
      %v800 = vadd.f32 %v768, %v769
      %v801 = vadd.f32 %v800, %v770
      %v802 = vadd.f32 %v801, %v771
      %v803 = vadd.f32 %v802, %v772
      %v804 = vadd.f32 %v803, %v773
      %v805 = vadd.f32 %v804, %v774
      %v806 = vadd.f32 %v805, %v775
      %v807 = vadd.f32 %v806, %v776
      %v808 = vadd.f32 %v807, %v777
      %v809 = vadd.f32 %v808, %v778
      %v810 = vadd.f32 %v809, %v779
      %v811 = vadd.f32 %v810, %v780
      %v812 = vadd.f32 %v811, %v781
      %v813 = vadd.f32 %v812, %v782
      %v814 = vadd.f32 %v813, %v783
      %v815 = vadd.f32 %v814, %v784
      %v816 = vadd.f32 %v815, %v785
      %v817 = vadd.f32 %v816, %v786
      %v818 = vadd.f32 %v817, %v787
      %v819 = vadd.f32 %v818, %v788
      %v820 = vadd.f32 %v819, %v789
      %v821 = vadd.f32 %v820, %v790
      %v822 = vadd.f32 %v821, %v791
      %v823 = vadd.f32 %v822, %v792
      %v824 = vadd.f32 %v823, %v793
      %v825 = vadd.f32 %v824, %v794
      %v826 = vadd.f32 %v825, %v795
      %v827 = vadd.f32 %v826, %v796
      %v828 = vadd.f32 %v827, %v797
      %v829 = vadd.f32 %v828, %v798
      %v830 = vadd.f32 %v829, %v799
      %v831 = vrot.slane %v830, 4
      %v832 = vadd.f32 %v830, %v831
      %v833 = vrot.slane %v832, 2
      %v834 = vadd.f32 %v832, %v833
      %v835 = vrot.slane %v834, 1
      %v836 = vadd.f32 %v834, %v835
      %vm837 = vcmp.eq.s32.totalorder %v537, 0
      %vm838 = vcmp.eq.s32.totalorder %v537, 1
      %v839 = vsel %vm838, 1, 0
      %vm840 = vcmp.eq.s32.totalorder %v839, 1
      %v841 = vsel %vm840, %v836, 0.0
      %v842 = vsel %vm837, 1, 0
      %vm843 = vcmp.eq.s32.totalorder %v842, 1
      %v844 = vsel %vm843, %v767, %v841
      %845 = vst [vmem:[%s211] sm:$0xff] %v844
      %s846 = smul.u32 32, %s16
      %p847 = scmp.lt.s32.totalorder %s846, 127
      %s848 = scalar_select %p847, %s846, 127
      %s849 = smul.addr %s848, 8
      %s850 = scalar_lea.vmem %s3, %s849
      %p851 = scmp.lt.s32.totalorder %s16, 3
      %s852 = scalar_select %p851, %s16, 3
      %s853 = smul.addr %s852, 8
      %s854 = scalar_lea.vmem %s4, %s853
      // Predicated region
      $region33: #{deresblock_forward.3} parent=31 // pred_check
        %p855 = pneg %p102
      $region34: #{deresblock_forward.3} parent=31 // pred_check_branch
        %857 = sbr.rel (%p855) target = $region36
      $region35: #{deresblock_forward.3} parent=31 // pred_region
        %s858 = smul.u32 32, %s16
      $region36: #{deresblock_forward.3} parent=31 // pred_fallthru
        _
      // Predicated region
      $region37: #{deresblock_forward.3} parent=31 // pred_check
        %p859 = pneg %p128
      $region38: #{deresblock_forward.3} parent=31 // pred_check_branch
        %861 = sbr.rel (%p859) target = $region40
      $region39: #{deresblock_forward.3} parent=31 // pred_region
        _
      $region40: #{deresblock_forward.3} parent=31 // pred_fallthru
        _
    $region32: #{deresblock_forward.3} parent=5 // pred_fallthru
      _
    %p862 = scmp.le.s32.totalorder 2, %s11
    // Predicated region
    $region41: #{deresblock_forward.3} parent=5 // pred_check
      %p863 = pneg %p862
    $region42: #{deresblock_forward.3} parent=5 // pred_check_branch
      %865 = sbr.rel (%p863) target = $region44
    $region43: #{deresblock_forward.3} parent=5 // pred_region
      %s866 = ssub.s32 %s11, 2
      // Predicated region
      $region45: #{deresblock_forward.3} parent=43 // pred_check
        %p867 = pneg %p108
      $region46: #{deresblock_forward.3} parent=43 // pred_check_branch
        %869 = sbr.rel (%p867) target = $region48
      $region47: #{deresblock_forward.3} parent=43 // pred_region
        %s870 = smul.u32 32, %s17
        %p871 = scmp.lt.s32.totalorder %s870, 127
        %s872 = scalar_select %p871, %s870, 127
        %s873 = smul.addr %s872, 8
        %s874 = scalar_lea.vmem %s3, %s873
      $region48: #{deresblock_forward.3} parent=43 // pred_fallthru
        _
      // Predicated region
      $region49: #{deresblock_forward.3} parent=43 // pred_check
        %p875 = pneg %p134
      $region50: #{deresblock_forward.3} parent=43 // pred_check_branch
        %877 = sbr.rel (%p875) target = $region52
      $region51: #{deresblock_forward.3} parent=43 // pred_region
        %p878 = scmp.lt.s32.totalorder %s17, 3
        %s879 = scalar_select %p878, %s17, 3
        %s880 = smul.addr %s879, 8
        %s881 = scalar_lea.vmem %s4, %s880
      $region52: #{deresblock_forward.3} parent=43 // pred_fallthru
        _
    $region44: #{deresblock_forward.3} parent=5 // pred_fallthru
      _
  $region6: #{deresblock_forward.3} parent=0 // loop_footer
    %s15 = sadd.s32 1, %s11
  $region7: #{deresblock_forward.3} parent=0 // loop_footer_branch
    %10 = sbr.rel target = $region3
  $region8: #{deresblock_forward.3} parent=0 // loop_exit
    _

// kernel: tile.18
$region0: #{tile.18}
  #allocation0 [shape = 's32[1]{0}', space=sflag, size = 0x4, scoped, tag = 'scoped memory for tile.18']
  %s0 = inlined_call_operand.vmem [shape: f32[8], index: 0, kind: input, shape index: {}]
  %s1 = inlined_call_operand.vmem [shape: f32[16,8], index: 1, kind: output, shape index: {}]
  // Predicated region
  $region2: #{tile.18} parent=0 // pred_check
    _
  $region3: #{tile.18} parent=0 // pred_check_branch
    %3 = sbr.rel (0) target = $region5
  $region4: #{tile.18} parent=0 // pred_region
    _
  $region5: #{tile.18} parent=0 // pred_fallthru
    _
  %v4 = vld [vmem:[%s0] ss:$0 sm:$0xff]
  %5 = vst [vmem:[%s1] sm:$0xff] %v4
  %s6 = scalar_lea.vmem %s1, 8
  %7 = vst [vmem:[%s6] sm:$0xff] %v4

// kernel: tile.19
$region0: #{tile.19}
  %s0 = inlined_call_operand.vmem [shape: f32[16,8], index: 0, kind: input, shape index: {}]
  %s1 = inlined_call_operand.vmem [shape: f32[1,128], index: 1, kind: output, shape index: {}]
  $region1: #{tile.19} parent=0
    #allocation0 [shape = 'u8[4096]{0}', space=vmem, size = 0x1000, scoped, tag = 'scoped mem for output reshape']
    %v2 = vld [vmem:[%s0] sm:$0x1]
    %vm3 = vcmask 64512
    %4 = vst.msk [vmem:[#allocation0] sm:$0x1] %vm3, %v2
    %s5 = scalar_lea.vmem %s0, 15
    %v6 = vld [vmem:[%s5] sm:$0x1]
    %7 = vrot.lane.b32.xlu0 %v6, 120
    %v8 = vpop.permute.xlu0 %7
    %vm9 = vcmask 1048512
    %10 = vst.msk [vmem:[#allocation0] sm:$0x1] %vm9, %v8
    %s11 = scalar_lea.vmem %s0, 14
    %v12 = vld [vmem:[%s11] sm:$0x1]
    %13 = vrot.lane.b32.xlu0 %v12, 112
    %v14 = vpop.permute.xlu0 %13
    %vm15 = vcmask 982912
    %16 = vst.msk [vmem:[#allocation0] sm:$0x1] %vm15, %v14
    %s17 = scalar_lea.vmem %s0, 13
    %v18 = vld [vmem:[%s17] sm:$0x1]
    %19 = vrot.lane.b32.xlu0 %v18, 104
    %v20 = vpop.permute.xlu0 %19
    %vm21 = vcmask 917312
    %22 = vst.msk [vmem:[#allocation0] sm:$0x1] %vm21, %v20
    %s23 = scalar_lea.vmem %s0, 12
    %v24 = vld [vmem:[%s23] sm:$0x1]
    %25 = vrot.lane.b32.xlu0 %v24, 96
    %v26 = vpop.permute.xlu0 %25
    %vm27 = vcmask 851712
    %28 = vst.msk [vmem:[#allocation0] sm:$0x1] %vm27, %v26
    %s29 = scalar_lea.vmem %s0, 11
    %v30 = vld [vmem:[%s29] sm:$0x1]
    %31 = vrot.lane.b32.xlu0 %v30, 88
    %v32 = vpop.permute.xlu0 %31
    %vm33 = vcmask 786112
    %34 = vst.msk [vmem:[#allocation0] sm:$0x1] %vm33, %v32
    %s35 = scalar_lea.vmem %s0, 10
    %v36 = vld [vmem:[%s35] sm:$0x1]
    %37 = vrot.lane.b32.xlu0 %v36, 80
    %v38 = vpop.permute.xlu0 %37
    %vm39 = vcmask 720512
    %40 = vst.msk [vmem:[#allocation0] sm:$0x1] %vm39, %v38
    %s41 = scalar_lea.vmem %s0, 9
    %v42 = vld [vmem:[%s41] sm:$0x1]
    %43 = vrot.lane.b32.xlu0 %v42, 72
    %v44 = vpop.permute.xlu0 %43
    %vm45 = vcmask 654912
    %46 = vst.msk [vmem:[#allocation0] sm:$0x1] %vm45, %v44
    %s47 = scalar_lea.vmem %s0, 8
    %v48 = vld [vmem:[%s47] sm:$0x1]
    %49 = vrot.lane.b32.xlu0 %v48, 64
    %v50 = vpop.permute.xlu0 %49
    %vm51 = vcmask 589312
    %52 = vst.msk [vmem:[#allocation0] sm:$0x1] %vm51, %v50
    %s53 = scalar_lea.vmem %s0, 7
    %v54 = vld [vmem:[%s53] sm:$0x1]
    %55 = vrot.lane.b32.xlu0 %v54, 56
    %v56 = vpop.permute.xlu0 %55
    %vm57 = vcmask 523712
    %58 = vst.msk [vmem:[#allocation0] sm:$0x1] %vm57, %v56
    %s59 = scalar_lea.vmem %s0, 6
    %v60 = vld [vmem:[%s59] sm:$0x1]
    %61 = vrot.lane.b32.xlu0 %v60, 48
    %v62 = vpop.permute.xlu0 %61
    %vm63 = vcmask 458112
    %64 = vst.msk [vmem:[#allocation0] sm:$0x1] %vm63, %v62
    %s65 = scalar_lea.vmem %s0, 5
    %v66 = vld [vmem:[%s65] sm:$0x1]
    %67 = vrot.lane.b32.xlu0 %v66, 40
    %v68 = vpop.permute.xlu0 %67
    %vm69 = vcmask 392512
    %70 = vst.msk [vmem:[#allocation0] sm:$0x1] %vm69, %v68
    %s71 = scalar_lea.vmem %s0, 4
    %v72 = vld [vmem:[%s71] sm:$0x1]
    %73 = vrot.lane.b32.xlu0 %v72, 32
    %v74 = vpop.permute.xlu0 %73
    %vm75 = vcmask 326912
    %76 = vst.msk [vmem:[#allocation0] sm:$0x1] %vm75, %v74
    %s77 = scalar_lea.vmem %s0, 3
    %v78 = vld [vmem:[%s77] sm:$0x1]
    %79 = vrot.lane.b32.xlu0 %v78, 24
    %v80 = vpop.permute.xlu0 %79
    %vm81 = vcmask 261312
    %82 = vst.msk [vmem:[#allocation0] sm:$0x1] %vm81, %v80
    %s83 = scalar_lea.vmem %s0, 2
    %v84 = vld [vmem:[%s83] sm:$0x1]
    %85 = vrot.lane.b32.xlu0 %v84, 16
    %v86 = vpop.permute.xlu0 %85
    %vm87 = vcmask 195712
    %88 = vst.msk [vmem:[#allocation0] sm:$0x1] %vm87, %v86
    %s89 = scalar_lea.vmem %s0, 1
    %v90 = vld [vmem:[%s89] sm:$0x1]
    %91 = vrot.lane.b32.xlu0 %v90, 8
    %v92 = vpop.permute.xlu0 %91
    %vm93 = vcmask 130112
    %94 = vst.msk [vmem:[#allocation0] sm:$0x1] %vm93, %v92
    %s96 = ssub.s32 2, 1
    %v97 = vld [vmem:[#allocation0] sm:%s96]
    %s99 = ssub.s32 2, 1
    %100 = vst [vmem:[%s1] sm:%s99] %v97

// kernel: deresblock_forward.4
$region0: #{deresblock_forward.4}
  #allocation0 [shape = 'u32[]', space=smem, size = 0x4, offset = 0x4, fixed_abs, tag = 'smem constant byte address 0x4 - core index']
  #allocation1 [shape = 'u32[72,128]{1,0:T(1,128)}', space=vmem, size = 0x9000, scoped, tag = 'internal scratch']
  %s0 = inlined_call_operand.vmem [shape: bf16[512,3456], index: 0, kind: input, shape index: {}]
  %s1 = inlined_call_operand.vmem [shape: bf16[3456,128], index: 1, kind: input, shape index: {}]
  %s2 = inlined_call_operand.vmem [shape: f32[1,128], index: 2, kind: input, shape index: {}]
  %s3 = inlined_call_operand.vmem [shape: f32[512,128], index: 3, kind: output, shape index: {0}]
  %s4 = inlined_call_operand.vmem [shape: f32[2,8,128], index: 4, kind: output, shape index: {1}]
  %5 = xla_tuple %s3, %s4
  %s6 = sld [smem:[#allocation0]]
  $region53: #{deresblock_forward.4} parent=0
    _
  %s8 = ssub.s32 1, %s6
  %s9 = scalar_select 0, %s8, %s6
  loop: start=0, step=1, limit=4
  $region2: #{deresblock_forward.4} parent=0 // loop_pre_header
    _
  $region3: #{deresblock_forward.4} parent=0 // loop_header
    %s11 = sphi 0, %s15
    %p12 = scmp.ge.s32.totalorder %s11, 4
    %s21 = sphi 0, %s23
    %s24 = sphi 0, %s21
    %s25 = sphi 0, %s24
    %s41 = sphi 0, %s25
    %s45 = sphi 0, %s45
    %s47 = sphi 0, %s45
    %s48 = sphi 0, %s47
    %s62 = sphi 0, %s48
    %s66 = sphi 0, %s66
    %s68 = sphi 0, %s66
    %s69 = sphi 0, %s68
    %s83 = sphi 0, %s69
    %s89 = sphi 0, %s91
    %s92 = sphi 0, %s89
    %s93 = sphi 0, %s92
    %s109 = sphi 0, %s93
    %s115 = sphi 0, %s117
    %s118 = sphi 0, %s115
    %s119 = sphi 0, %s118
    %s135 = sphi 0, %s119
  $region4: #{deresblock_forward.4} parent=0 // loop_header_branch
    %14 = sbr.rel (%p12) target = $region8
  $region5: #{deresblock_forward.4} parent=0 // loop_body
    %s16 = ssub.s32 %s11, 1
    %s17 = ssub.s32 %s11, 2
    %s18 = sadd.s32 %s11, 1
    %s19 = ssub.s32 %s11, %s18
    %p20 = scmp.eq.s32.totalorder %s19, 0
    %s22 = sadd.s32 %s21, 1
    %s23 = scalar_select %p20, %s21, %s22
    %p26 = pneg %p20
    %p27 = scmp.eq.s32.totalorder %s11, 1
    %p28 = por %p26, %p27
    %p29 = scmp.ne.s32.totalorder %s21, %s24
    %p30 = scmp.eq.s32.totalorder %s11, 0
    %p31 = por %p29, %p30
    %p32 = scmp.ne.s32.totalorder %s21, %s24
    %p33 = scmp.eq.s32.totalorder %s16, 1
    %p34 = por %p32, %p33
    %p35 = scmp.ne.s32.totalorder %s24, %s25
    %p36 = scmp.eq.s32.totalorder %s16, 0
    %p37 = por %p35, %p36
    %p38 = scmp.ne.s32.totalorder %s24, %s25
    %p39 = scmp.eq.s32.totalorder %s17, 1
    %p40 = por %p38, %p39
    %p42 = scmp.ne.s32.totalorder %s25, %s41
    %p43 = scmp.eq.s32.totalorder %s17, 0
    %p44 = por %p42, %p43
    %s46 = sadd.s32 %s45, 1
    %p49 = scmp.eq.s32.totalorder %s11, 1
    %p50 = scmp.ne.s32.totalorder %s45, %s47
    %p51 = scmp.eq.s32.totalorder %s11, 0
    %p52 = por %p50, %p51
    %p53 = scmp.ne.s32.totalorder %s45, %s47
    %p54 = scmp.eq.s32.totalorder %s16, 1
    %p55 = por %p53, %p54
    %p56 = scmp.ne.s32.totalorder %s47, %s48
    %p57 = scmp.eq.s32.totalorder %s16, 0
    %p58 = por %p56, %p57
    %p59 = scmp.ne.s32.totalorder %s47, %s48
    %p60 = scmp.eq.s32.totalorder %s17, 1
    %p61 = por %p59, %p60
    %p63 = scmp.ne.s32.totalorder %s48, %s62
    %p64 = scmp.eq.s32.totalorder %s17, 0
    %p65 = por %p63, %p64
    %s67 = sadd.s32 %s66, 1
    %p70 = scmp.eq.s32.totalorder %s11, 1
    %p71 = scmp.ne.s32.totalorder %s66, %s68
    %p72 = scmp.eq.s32.totalorder %s11, 0
    %p73 = por %p71, %p72
    %p74 = scmp.ne.s32.totalorder %s66, %s68
    %p75 = scmp.eq.s32.totalorder %s16, 1
    %p76 = por %p74, %p75
    %p77 = scmp.ne.s32.totalorder %s68, %s69
    %p78 = scmp.eq.s32.totalorder %s16, 0
    %p79 = por %p77, %p78
    %p80 = scmp.ne.s32.totalorder %s68, %s69
    %p81 = scmp.eq.s32.totalorder %s17, 1
    %p82 = por %p80, %p81
    %p84 = scmp.ne.s32.totalorder %s69, %s83
    %p85 = scmp.eq.s32.totalorder %s17, 0
    %p86 = por %p84, %p85
    %s87 = ssub.s32 %s11, %s18
    %p88 = scmp.eq.s32.totalorder %s87, 0
    %s90 = sadd.s32 %s89, 1
    %s91 = scalar_select %p88, %s89, %s90
    %p94 = pneg %p88
    %p95 = scmp.eq.s32.totalorder %s11, 1
    %p96 = por %p94, %p95
    %p97 = scmp.ne.s32.totalorder %s89, %s92
    %p98 = scmp.eq.s32.totalorder %s11, 0
    %p99 = por %p97, %p98
    %p100 = scmp.ne.s32.totalorder %s89, %s92
    %p101 = scmp.eq.s32.totalorder %s16, 1
    %p102 = por %p100, %p101
    %p103 = scmp.ne.s32.totalorder %s92, %s93
    %p104 = scmp.eq.s32.totalorder %s16, 0
    %p105 = por %p103, %p104
    %p106 = scmp.ne.s32.totalorder %s92, %s93
    %p107 = scmp.eq.s32.totalorder %s17, 1
    %p108 = por %p106, %p107
    %p110 = scmp.ne.s32.totalorder %s93, %s109
    %p111 = scmp.eq.s32.totalorder %s17, 0
    %p112 = por %p110, %p111
    %s113 = ssub.s32 %s11, %s18
    %p114 = scmp.eq.s32.totalorder %s113, 0
    %s116 = sadd.s32 %s115, 1
    %s117 = scalar_select %p114, %s115, %s116
    %p120 = pneg %p114
    %p121 = scmp.eq.s32.totalorder %s11, 1
    %p122 = por %p120, %p121
    %p123 = scmp.ne.s32.totalorder %s115, %s118
    %p124 = scmp.eq.s32.totalorder %s11, 0
    %p125 = por %p123, %p124
    %p126 = scmp.ne.s32.totalorder %s115, %s118
    %p127 = scmp.eq.s32.totalorder %s16, 1
    %p128 = por %p126, %p127
    %p129 = scmp.ne.s32.totalorder %s118, %s119
    %p130 = scmp.eq.s32.totalorder %s16, 0
    %p131 = por %p129, %p130
    %p132 = scmp.ne.s32.totalorder %s118, %s119
    %p133 = scmp.eq.s32.totalorder %s17, 1
    %p134 = por %p132, %p133
    %p136 = scmp.ne.s32.totalorder %s119, %s135
    %p137 = scmp.eq.s32.totalorder %s17, 0
    %p138 = por %p136, %p137
    %p139 = scmp.le.s32.totalorder 1, %s11
    %p140 = scmp.lt.s32.totalorder %s11, 3
    %p141 = pnand %p139, %p140
    %p142 = pneg %p141
    // Predicated region
    $region9: #{deresblock_forward.4} parent=5 // pred_check
      _
    $region10: #{deresblock_forward.4} parent=5 // pred_check_branch
      %144 = sbr.rel (%p141) target = $region12
    $region11: #{deresblock_forward.4} parent=5 // pred_region
      %s145 = ssub.s32 %s11, 1
      // Predicated region
      $region13: #{deresblock_forward.4} parent=11 // pred_check
        %p146 = pneg %p58
      $region14: #{deresblock_forward.4} parent=11 // pred_check_branch
        %148 = sbr.rel (%p146) target = $region16
      $region15: #{deresblock_forward.4} parent=11 // pred_region
        _
      $region16: #{deresblock_forward.4} parent=11 // pred_fallthru
        _
      // Predicated region
      $region17: #{deresblock_forward.4} parent=11 // pred_check
        %p149 = pneg %p79
      $region18: #{deresblock_forward.4} parent=11 // pred_check_branch
        %151 = sbr.rel (%p149) target = $region20
      $region19: #{deresblock_forward.4} parent=11 // pred_region
        _
      $region20: #{deresblock_forward.4} parent=11 // pred_fallthru
        _
    $region12: #{deresblock_forward.4} parent=5 // pred_fallthru
      _
    %p152 = scmp.lt.s32.totalorder %s11, 2
    // Predicated region
    $region21: #{deresblock_forward.4} parent=5 // pred_check
      %p153 = pneg %p152
    $region22: #{deresblock_forward.4} parent=5 // pred_check_branch
      %155 = sbr.rel (%p153) target = $region24
    $region23: #{deresblock_forward.4} parent=5 // pred_region
      // Predicated region
      $region25: #{deresblock_forward.4} parent=23 // pred_check
        %p156 = pneg %p31
      $region26: #{deresblock_forward.4} parent=23 // pred_check_branch
        %158 = sbr.rel (%p156) target = $region28
      $region27: #{deresblock_forward.4} parent=23 // pred_region
        %s159 = smul.u32 32, %s11
        %p160 = scmp.lt.s32.totalorder %s159, 63
        %s161 = scalar_select %p160, %s159, 63
        %s162 = smul.addr %s161, 27
        %s163 = smul.addr %s162, 4
        %s164 = scalar_lea.vmem %s0, %s163
        %s165 = smul.u32 32, %s11
      $region28: #{deresblock_forward.4} parent=23 // pred_fallthru
        _
    $region24: #{deresblock_forward.4} parent=5 // pred_fallthru
      _
    %p166 = scmp.le.s32.totalorder 1, %s11
    %p167 = scmp.lt.s32.totalorder %s11, 3
    %p168 = pnand %p166, %p167
    %p169 = pneg %p168
    // Predicated region
    $region29: #{deresblock_forward.4} parent=5 // pred_check
      _
    $region30: #{deresblock_forward.4} parent=5 // pred_check_branch
      %171 = sbr.rel (%p168) target = $region32
    $region31: #{deresblock_forward.4} parent=5 // pred_region
      %s172 = ssub.s32 %s11, 1
      %s173 = smul.u32 32, %s16
      %p174 = scmp.lt.s32.totalorder %s173, 63
      %s175 = scalar_select %p174, %s173, 63
      %s176 = smul.addr %s175, 27
      %s177 = smul.addr %s176, 4
      %s178 = scalar_lea.vmem %s0, %s177
      %p179 = pneg %p37
      %p180 = pneg %p34
      %p181 = pneg %p58
      %p182 = pneg %p55
      %p183 = pneg %p79
      %p184 = pneg %p76
      %p185 = pneg %p105
      %p186 = pneg %p102
      %s187 = smul.u32 32, %s16
      %p188 = scmp.lt.s32.totalorder %s187, 63
      %s189 = scalar_select %p188, %s187, 63
      %s190 = smul.addr %s189, 8
      %s191 = scalar_lea.vmem %s3, %s190
      %p192 = pneg %p131
      %p193 = pneg %p128
      %p194 = scmp.lt.s32.totalorder %s16, 1
      %s195 = scalar_select %p194, %s16, 1
      %s196 = smul.addr %s195, 8
      %s197 = scalar_lea.vmem %s4, %s196
      %s198 = smul.u32 32, %s16
      %p199 = scmp.lt.s32.totalorder %s198, 63
      %s200 = scalar_select %p199, %s198, 63
      %s201 = smul.addr %s200, 27
      %s202 = smul.addr %s201, 4
      %s203 = scalar_lea.vmem %s0, %s202
      %s204 = smul.u32 32, %s16
      %s205 = smul.u32 32, %s16
      %p206 = scmp.lt.s32.totalorder %s205, 63
      %s207 = scalar_select %p206, %s205, 63
      %s208 = smul.addr %s207, 8
      %s209 = scalar_lea.vmem %s3, %s208
      %s210 = smul.u32 32, %s16
      %p211 = scmp.lt.s32.totalorder %s16, 1
      %s212 = scalar_select %p211, %s16, 1
      %s213 = smul.addr %s212, 8
      %s214 = scalar_lea.vmem %s4, %s213
      %v215 = vld [vmem:[%s203] sm:$0xff]
      %v216 = vld [vmem:[%s203 + $0x8] sm:$0xff]
      %v217 = vld [vmem:[%s203 + $0x10] sm:$0xff]
      %v218 = vld [vmem:[%s203 + $0x18] sm:$0xff]
      %v219 = vld [vmem:[%s203 + $0x20] sm:$0xff]
      %v220 = vld [vmem:[%s203 + $0x28] sm:$0xff]
      %v221 = vld [vmem:[%s203 + $0x30] sm:$0xff]
      %v222 = vld [vmem:[%s203 + $0x38] sm:$0xff]
      %v223 = vld [vmem:[%s203 + $0x40] sm:$0xff]
      %v224 = vld [vmem:[%s203 + $0x48] sm:$0xff]
      %v225 = vld [vmem:[%s203 + $0x50] sm:$0xff]
      %v226 = vld [vmem:[%s203 + $0x58] sm:$0xff]
      %v227 = vld [vmem:[%s203 + $0x60] sm:$0xff]
      %v228 = vld [vmem:[%s203 + $0x68] sm:$0xf]
      %v229 = vld [vmem:[%s203 + $0x6c] sm:$0xff]
      %v230 = vld [vmem:[%s203 + $0x74] sm:$0xff]
      %v231 = vld [vmem:[%s203 + $0x7c] sm:$0xff]
      %v232 = vld [vmem:[%s203 + $0x84] sm:$0xff]
      %v233 = vld [vmem:[%s203 + $0x8c] sm:$0xff]
      %v234 = vld [vmem:[%s203 + $0x94] sm:$0xff]
      %v235 = vld [vmem:[%s203 + $0x9c] sm:$0xff]
      %v236 = vld [vmem:[%s203 + $0xa4] sm:$0xff]
      %v237 = vld [vmem:[%s203 + $0xac] sm:$0xff]
      %v238 = vld [vmem:[%s203 + $0xb4] sm:$0xff]
      %v239 = vld [vmem:[%s203 + $0xbc] sm:$0xff]
      %v240 = vld [vmem:[%s203 + $0xc4] sm:$0xff]
      %v241 = vld [vmem:[%s203 + $0xcc] sm:$0xff]
      %v242 = vld [vmem:[%s203 + $0xd4] sm:$0xf]
      %v243 = vld [vmem:[%s203 + $0xd8] sm:$0xff]
      %v244 = vld [vmem:[%s203 + $0xe0] sm:$0xff]
      %v245 = vld [vmem:[%s203 + $0xe8] sm:$0xff]
      %v246 = vld [vmem:[%s203 + $0xf0] sm:$0xff]
      %v247 = vld [vmem:[%s203 + $0xf8] sm:$0xff]
      %v248 = vld [vmem:[%s203 + $0x100] sm:$0xff]
      %v249 = vld [vmem:[%s203 + $0x108] sm:$0xff]
      %v250 = vld [vmem:[%s203 + $0x110] sm:$0xff]
      %v251 = vld [vmem:[%s203 + $0x118] sm:$0xff]
      %v252 = vld [vmem:[%s203 + $0x120] sm:$0xff]
      %v253 = vld [vmem:[%s203 + $0x128] sm:$0xff]
      %v254 = vld [vmem:[%s203 + $0x130] sm:$0xff]
      %v255 = vld [vmem:[%s203 + $0x138] sm:$0xff]
      %v256 = vld [vmem:[%s203 + $0x140] sm:$0xf]
      %v257 = vld [vmem:[%s203 + $0x144] sm:$0xff]
      %v258 = vld [vmem:[%s203 + $0x14c] sm:$0xff]
      %v259 = vld [vmem:[%s203 + $0x154] sm:$0xff]
      %v260 = vld [vmem:[%s203 + $0x15c] sm:$0xff]
      %v261 = vld [vmem:[%s203 + $0x164] sm:$0xff]
      %v262 = vld [vmem:[%s203 + $0x16c] sm:$0xff]
      %v263 = vld [vmem:[%s203 + $0x174] sm:$0xff]
      %v264 = vld [vmem:[%s203 + $0x17c] sm:$0xff]
      %v265 = vld [vmem:[%s203 + $0x184] sm:$0xff]
      %v266 = vld [vmem:[%s203 + $0x18c] sm:$0xff]
      %v267 = vld [vmem:[%s203 + $0x194] sm:$0xff]
      %v268 = vld [vmem:[%s203 + $0x19c] sm:$0xff]
      %v269 = vld [vmem:[%s203 + $0x1a4] sm:$0xff]
      %v270 = vld [vmem:[%s203 + $0x1ac] sm:$0xf]
      %v271 = vld [vmem:[%s203 + $0x1b0] sm:$0xff]
      %v272 = vld [vmem:[%s203 + $0x1b8] sm:$0xff]
      %v273 = vld [vmem:[%s203 + $0x1c0] sm:$0xff]
      %v274 = vld [vmem:[%s203 + $0x1c8] sm:$0xff]
      %v275 = vld [vmem:[%s203 + $0x1d0] sm:$0xff]
      %v276 = vld [vmem:[%s203 + $0x1d8] sm:$0xff]
      %v277 = vld [vmem:[%s203 + $0x1e0] sm:$0xff]
      %v278 = vld [vmem:[%s203 + $0x1e8] sm:$0xff]
      %v279 = vld [vmem:[%s203 + $0x1f0] sm:$0xff]
      %v280 = vld [vmem:[%s203 + $0x1f8] sm:$0xff]
      %v281 = vld [vmem:[%s203 + $0x200] sm:$0xff]
      %v282 = vld [vmem:[%s203 + $0x208] sm:$0xff]
      %v283 = vld [vmem:[%s203 + $0x210] sm:$0xff]
      %v284 = vld [vmem:[%s203 + $0x218] sm:$0xf]
      %v285 = vld [vmem:[%s203 + $0x21c] sm:$0xff]
      %v286 = vld [vmem:[%s203 + $0x224] sm:$0xff]
      %v287 = vld [vmem:[%s203 + $0x22c] sm:$0xff]
      %v288 = vld [vmem:[%s203 + $0x234] sm:$0xff]
      %v289 = vld [vmem:[%s203 + $0x23c] sm:$0xff]
      %v290 = vld [vmem:[%s203 + $0x244] sm:$0xff]
      %v291 = vld [vmem:[%s203 + $0x24c] sm:$0xff]
      %v292 = vld [vmem:[%s203 + $0x254] sm:$0xff]
      %v293 = vld [vmem:[%s203 + $0x25c] sm:$0xff]
      %v294 = vld [vmem:[%s203 + $0x264] sm:$0xff]
      %v295 = vld [vmem:[%s203 + $0x26c] sm:$0xff]
      %v296 = vld [vmem:[%s203 + $0x274] sm:$0xff]
      %v297 = vld [vmem:[%s203 + $0x27c] sm:$0xff]
      %v298 = vld [vmem:[%s203 + $0x284] sm:$0xf]
      %v299 = vld [vmem:[%s203 + $0x288] sm:$0xff]
      %v300 = vld [vmem:[%s203 + $0x290] sm:$0xff]
      %v301 = vld [vmem:[%s203 + $0x298] sm:$0xff]
      %v302 = vld [vmem:[%s203 + $0x2a0] sm:$0xff]
      %v303 = vld [vmem:[%s203 + $0x2a8] sm:$0xff]
      %v304 = vld [vmem:[%s203 + $0x2b0] sm:$0xff]
      %v305 = vld [vmem:[%s203 + $0x2b8] sm:$0xff]
      %v306 = vld [vmem:[%s203 + $0x2c0] sm:$0xff]
      %v307 = vld [vmem:[%s203 + $0x2c8] sm:$0xff]
      %v308 = vld [vmem:[%s203 + $0x2d0] sm:$0xff]
      %v309 = vld [vmem:[%s203 + $0x2d8] sm:$0xff]
      %v310 = vld [vmem:[%s203 + $0x2e0] sm:$0xff]
      %v311 = vld [vmem:[%s203 + $0x2e8] sm:$0xff]
      %v312 = vld [vmem:[%s203 + $0x2f0] sm:$0xf]
      %v313 = vld [vmem:[%s203 + $0x2f4] sm:$0xff]
      %v314 = vld [vmem:[%s203 + $0x2fc] sm:$0xff]
      %v315 = vld [vmem:[%s203 + $0x304] sm:$0xff]
      %v316 = vld [vmem:[%s203 + $0x30c] sm:$0xff]
      %v317 = vld [vmem:[%s203 + $0x314] sm:$0xff]
      %v318 = vld [vmem:[%s203 + $0x31c] sm:$0xff]
      %v319 = vld [vmem:[%s203 + $0x324] sm:$0xff]
      %v320 = vld [vmem:[%s203 + $0x32c] sm:$0xff]
      %v321 = vld [vmem:[%s203 + $0x334] sm:$0xff]
      %v322 = vld [vmem:[%s203 + $0x33c] sm:$0xff]
      %v323 = vld [vmem:[%s203 + $0x344] sm:$0xff]
      %v324 = vld [vmem:[%s203 + $0x34c] sm:$0xff]
      %v325 = vld [vmem:[%s203 + $0x354] sm:$0xff]
      %v326 = vld [vmem:[%s203 + $0x35c] sm:$0xf]
      %v327 = vld [vmem:[%s203 + $0x360] sm:$0xff]
      %v328 = vld [vmem:[%s203 + $0x368] sm:$0xff]
      %v329 = vld [vmem:[%s203 + $0x370] sm:$0xff]
      %v330 = vld [vmem:[%s203 + $0x378] sm:$0xff]
      %v331 = vld [vmem:[%s203 + $0x380] sm:$0xff]
      %v332 = vld [vmem:[%s203 + $0x388] sm:$0xff]
      %v333 = vld [vmem:[%s203 + $0x390] sm:$0xff]
      %v334 = vld [vmem:[%s203 + $0x398] sm:$0xff]
      %v335 = vld [vmem:[%s203 + $0x3a0] sm:$0xff]
      %v336 = vld [vmem:[%s203 + $0x3a8] sm:$0xff]
      %v337 = vld [vmem:[%s203 + $0x3b0] sm:$0xff]
      %v338 = vld [vmem:[%s203 + $0x3b8] sm:$0xff]
      %v339 = vld [vmem:[%s203 + $0x3c0] sm:$0xff]
      %v340 = vld [vmem:[%s203 + $0x3c8] sm:$0xf]
      %v341 = vld [vmem:[%s203 + $0x3cc] sm:$0xff]
      %v342 = vld [vmem:[%s203 + $0x3d4] sm:$0xff]
      %v343 = vld [vmem:[%s203 + $0x3dc] sm:$0xff]
      %v344 = vld [vmem:[%s203 + $0x3e4] sm:$0xff]
      %v345 = vld [vmem:[%s203 + $0x3ec] sm:$0xff]
      %v346 = vld [vmem:[%s203 + $0x3f4] sm:$0xff]
      %v347 = vld [vmem:[%s203 + $0x3fc] sm:$0xff]
      %v348 = vld [vmem:[%s203 + $0x404] sm:$0xff]
      %v349 = vld [vmem:[%s203 + $0x40c] sm:$0xff]
      %v350 = vld [vmem:[%s203 + $0x414] sm:$0xff]
      %v351 = vld [vmem:[%s203 + $0x41c] sm:$0xff]
      %v352 = vld [vmem:[%s203 + $0x424] sm:$0xff]
      %v353 = vld [vmem:[%s203 + $0x42c] sm:$0xff]
      %v354 = vld [vmem:[%s203 + $0x434] sm:$0xf]
      %v355 = vld [vmem:[%s203 + $0x438] sm:$0xff]
      %v356 = vld [vmem:[%s203 + $0x440] sm:$0xff]
      %v357 = vld [vmem:[%s203 + $0x448] sm:$0xff]
      %v358 = vld [vmem:[%s203 + $0x450] sm:$0xff]
      %v359 = vld [vmem:[%s203 + $0x458] sm:$0xff]
      %v360 = vld [vmem:[%s203 + $0x460] sm:$0xff]
      %v361 = vld [vmem:[%s203 + $0x468] sm:$0xff]
      %v362 = vld [vmem:[%s203 + $0x470] sm:$0xff]
      %v363 = vld [vmem:[%s203 + $0x478] sm:$0xff]
      %v364 = vld [vmem:[%s203 + $0x480] sm:$0xff]
      %v365 = vld [vmem:[%s203 + $0x488] sm:$0xff]
      %v366 = vld [vmem:[%s203 + $0x490] sm:$0xff]
      %v367 = vld [vmem:[%s203 + $0x498] sm:$0xff]
      %v368 = vld [vmem:[%s203 + $0x4a0] sm:$0xf]
      %v369 = vld [vmem:[%s203 + $0x4a4] sm:$0xff]
      %v370 = vld [vmem:[%s203 + $0x4ac] sm:$0xff]
      %v371 = vld [vmem:[%s203 + $0x4b4] sm:$0xff]
      %v372 = vld [vmem:[%s203 + $0x4bc] sm:$0xff]
      %v373 = vld [vmem:[%s203 + $0x4c4] sm:$0xff]
      %v374 = vld [vmem:[%s203 + $0x4cc] sm:$0xff]
      %v375 = vld [vmem:[%s203 + $0x4d4] sm:$0xff]
      %v376 = vld [vmem:[%s203 + $0x4dc] sm:$0xff]
      %v377 = vld [vmem:[%s203 + $0x4e4] sm:$0xff]
      %v378 = vld [vmem:[%s203 + $0x4ec] sm:$0xff]
      %v379 = vld [vmem:[%s203 + $0x4f4] sm:$0xff]
      %v380 = vld [vmem:[%s203 + $0x4fc] sm:$0xff]
      %v381 = vld [vmem:[%s203 + $0x504] sm:$0xff]
      %v382 = vld [vmem:[%s203 + $0x50c] sm:$0xf]
      %v383 = vld [vmem:[%s203 + $0x510] sm:$0xff]
      %v384 = vld [vmem:[%s203 + $0x518] sm:$0xff]
      %v385 = vld [vmem:[%s203 + $0x520] sm:$0xff]
      %v386 = vld [vmem:[%s203 + $0x528] sm:$0xff]
      %v387 = vld [vmem:[%s203 + $0x530] sm:$0xff]
      %v388 = vld [vmem:[%s203 + $0x538] sm:$0xff]
      %v389 = vld [vmem:[%s203 + $0x540] sm:$0xff]
      %v390 = vld [vmem:[%s203 + $0x548] sm:$0xff]
      %v391 = vld [vmem:[%s203 + $0x550] sm:$0xff]
      %v392 = vld [vmem:[%s203 + $0x558] sm:$0xff]
      %v393 = vld [vmem:[%s203 + $0x560] sm:$0xff]
      %v394 = vld [vmem:[%s203 + $0x568] sm:$0xff]
      %v395 = vld [vmem:[%s203 + $0x570] sm:$0xff]
      %v396 = vld [vmem:[%s203 + $0x578] sm:$0xf]
      %v397 = vld [vmem:[%s203 + $0x57c] sm:$0xff]
      %v398 = vld [vmem:[%s203 + $0x584] sm:$0xff]
      %v399 = vld [vmem:[%s203 + $0x58c] sm:$0xff]
      %v400 = vld [vmem:[%s203 + $0x594] sm:$0xff]
      %v401 = vld [vmem:[%s203 + $0x59c] sm:$0xff]
      %v402 = vld [vmem:[%s203 + $0x5a4] sm:$0xff]
      %v403 = vld [vmem:[%s203 + $0x5ac] sm:$0xff]
      %v404 = vld [vmem:[%s203 + $0x5b4] sm:$0xff]
      %v405 = vld [vmem:[%s203 + $0x5bc] sm:$0xff]
      %v406 = vld [vmem:[%s203 + $0x5c4] sm:$0xff]
      %v407 = vld [vmem:[%s203 + $0x5cc] sm:$0xff]
      %v408 = vld [vmem:[%s203 + $0x5d4] sm:$0xff]
      %v409 = vld [vmem:[%s203 + $0x5dc] sm:$0xff]
      %v410 = vld [vmem:[%s203 + $0x5e4] sm:$0xf]
      %v411 = vld [vmem:[%s203 + $0x5e8] sm:$0xff]
      %v412 = vld [vmem:[%s203 + $0x5f0] sm:$0xff]
      %v413 = vld [vmem:[%s203 + $0x5f8] sm:$0xff]
      %v414 = vld [vmem:[%s203 + $0x600] sm:$0xff]
      %v415 = vld [vmem:[%s203 + $0x608] sm:$0xff]
      %v416 = vld [vmem:[%s203 + $0x610] sm:$0xff]
      %v417 = vld [vmem:[%s203 + $0x618] sm:$0xff]
      %v418 = vld [vmem:[%s203 + $0x620] sm:$0xff]
      %v419 = vld [vmem:[%s203 + $0x628] sm:$0xff]
      %v420 = vld [vmem:[%s203 + $0x630] sm:$0xff]
      %v421 = vld [vmem:[%s203 + $0x638] sm:$0xff]
      %v422 = vld [vmem:[%s203 + $0x640] sm:$0xff]
      %v423 = vld [vmem:[%s203 + $0x648] sm:$0xff]
      %v424 = vld [vmem:[%s203 + $0x650] sm:$0xf]
      %v425 = vld [vmem:[%s203 + $0x654] sm:$0xff]
      %v426 = vld [vmem:[%s203 + $0x65c] sm:$0xff]
      %v427 = vld [vmem:[%s203 + $0x664] sm:$0xff]
      %v428 = vld [vmem:[%s203 + $0x66c] sm:$0xff]
      %v429 = vld [vmem:[%s203 + $0x674] sm:$0xff]
      %v430 = vld [vmem:[%s203 + $0x67c] sm:$0xff]
      %v431 = vld [vmem:[%s203 + $0x684] sm:$0xff]
      %v432 = vld [vmem:[%s203 + $0x68c] sm:$0xff]
      %v433 = vld [vmem:[%s203 + $0x694] sm:$0xff]
      %v434 = vld [vmem:[%s203 + $0x69c] sm:$0xff]
      %v435 = vld [vmem:[%s203 + $0x6a4] sm:$0xff]
      %v436 = vld [vmem:[%s203 + $0x6ac] sm:$0xff]
      %v437 = vld [vmem:[%s203 + $0x6b4] sm:$0xff]
      %v438 = vld [vmem:[%s203 + $0x6bc] sm:$0xf]
      %v439 = vld [vmem:[%s203 + $0x6c0] sm:$0xff]
      %v440 = vld [vmem:[%s203 + $0x6c8] sm:$0xff]
      %v441 = vld [vmem:[%s203 + $0x6d0] sm:$0xff]
      %v442 = vld [vmem:[%s203 + $0x6d8] sm:$0xff]
      %v443 = vld [vmem:[%s203 + $0x6e0] sm:$0xff]
      %v444 = vld [vmem:[%s203 + $0x6e8] sm:$0xff]
      %v445 = vld [vmem:[%s203 + $0x6f0] sm:$0xff]
      %v446 = vld [vmem:[%s203 + $0x6f8] sm:$0xff]
      %v447 = vld [vmem:[%s203 + $0x700] sm:$0xff]
      %v448 = vld [vmem:[%s203 + $0x708] sm:$0xff]
      %v449 = vld [vmem:[%s203 + $0x710] sm:$0xff]
      %v450 = vld [vmem:[%s203 + $0x718] sm:$0xff]
      %v451 = vld [vmem:[%s203 + $0x720] sm:$0xff]
      %v452 = vld [vmem:[%s203 + $0x728] sm:$0xf]
      %v453 = vld [vmem:[%s203 + $0x72c] sm:$0xff]
      %v454 = vld [vmem:[%s203 + $0x734] sm:$0xff]
      %v455 = vld [vmem:[%s203 + $0x73c] sm:$0xff]
      %v456 = vld [vmem:[%s203 + $0x744] sm:$0xff]
      %v457 = vld [vmem:[%s203 + $0x74c] sm:$0xff]
      %v458 = vld [vmem:[%s203 + $0x754] sm:$0xff]
      %v459 = vld [vmem:[%s203 + $0x75c] sm:$0xff]
      %v460 = vld [vmem:[%s203 + $0x764] sm:$0xff]
      %v461 = vld [vmem:[%s203 + $0x76c] sm:$0xff]
      %v462 = vld [vmem:[%s203 + $0x774] sm:$0xff]
      %v463 = vld [vmem:[%s203 + $0x77c] sm:$0xff]
      %v464 = vld [vmem:[%s203 + $0x784] sm:$0xff]
      %v465 = vld [vmem:[%s203 + $0x78c] sm:$0xff]
      %v466 = vld [vmem:[%s203 + $0x794] sm:$0xf]
      %v467 = vld [vmem:[%s203 + $0x798] sm:$0xff]
      %v468 = vld [vmem:[%s203 + $0x7a0] sm:$0xff]
      %v469 = vld [vmem:[%s203 + $0x7a8] sm:$0xff]
      %v470 = vld [vmem:[%s203 + $0x7b0] sm:$0xff]
      %v471 = vld [vmem:[%s203 + $0x7b8] sm:$0xff]
      %v472 = vld [vmem:[%s203 + $0x7c0] sm:$0xff]
      %v473 = vld [vmem:[%s203 + $0x7c8] sm:$0xff]
      %v474 = vld [vmem:[%s203 + $0x7d0] sm:$0xff]
      %v475 = vld [vmem:[%s203 + $0x7d8] sm:$0xff]
      %v476 = vld [vmem:[%s203 + $0x7e0] sm:$0xff]
      %v477 = vld [vmem:[%s203 + $0x7e8] sm:$0xff]
      %v478 = vld [vmem:[%s203 + $0x7f0] sm:$0xff]
      %v479 = vld [vmem:[%s203 + $0x7f8] sm:$0xff]
      %v480 = vld [vmem:[%s203 + $0x800] sm:$0xf]
      %v481 = vld [vmem:[%s203 + $0x804] sm:$0xff]
      %v482 = vld [vmem:[%s203 + $0x80c] sm:$0xff]
      %v483 = vld [vmem:[%s203 + $0x814] sm:$0xff]
      %v484 = vld [vmem:[%s203 + $0x81c] sm:$0xff]
      %v485 = vld [vmem:[%s203 + $0x824] sm:$0xff]
      %v486 = vld [vmem:[%s203 + $0x82c] sm:$0xff]
      %v487 = vld [vmem:[%s203 + $0x834] sm:$0xff]
      %v488 = vld [vmem:[%s203 + $0x83c] sm:$0xff]
      %v489 = vld [vmem:[%s203 + $0x844] sm:$0xff]
      %v490 = vld [vmem:[%s203 + $0x84c] sm:$0xff]
      %v491 = vld [vmem:[%s203 + $0x854] sm:$0xff]
      %v492 = vld [vmem:[%s203 + $0x85c] sm:$0xff]
      %v493 = vld [vmem:[%s203 + $0x864] sm:$0xff]
      %v494 = vld [vmem:[%s203 + $0x86c] sm:$0xf]
      %v495 = vld [vmem:[%s203 + $0x870] sm:$0xff]
      %v496 = vld [vmem:[%s203 + $0x878] sm:$0xff]
      %v497 = vld [vmem:[%s203 + $0x880] sm:$0xff]
      %v498 = vld [vmem:[%s203 + $0x888] sm:$0xff]
      %v499 = vld [vmem:[%s203 + $0x890] sm:$0xff]
      %v500 = vld [vmem:[%s203 + $0x898] sm:$0xff]
      %v501 = vld [vmem:[%s203 + $0x8a0] sm:$0xff]
      %v502 = vld [vmem:[%s203 + $0x8a8] sm:$0xff]
      %v503 = vld [vmem:[%s203 + $0x8b0] sm:$0xff]
      %v504 = vld [vmem:[%s203 + $0x8b8] sm:$0xff]
      %v505 = vld [vmem:[%s203 + $0x8c0] sm:$0xff]
      %v506 = vld [vmem:[%s203 + $0x8c8] sm:$0xff]
      %v507 = vld [vmem:[%s203 + $0x8d0] sm:$0xff]
      %v508 = vld [vmem:[%s203 + $0x8d8] sm:$0xf]
      %v509 = vld [vmem:[%s203 + $0x8dc] sm:$0xff]
      %v510 = vld [vmem:[%s203 + $0x8e4] sm:$0xff]
      %v511 = vld [vmem:[%s203 + $0x8ec] sm:$0xff]
      %v512 = vld [vmem:[%s203 + $0x8f4] sm:$0xff]
      %v513 = vld [vmem:[%s203 + $0x8fc] sm:$0xff]
      %v514 = vld [vmem:[%s203 + $0x904] sm:$0xff]
      %v515 = vld [vmem:[%s203 + $0x90c] sm:$0xff]
      %v516 = vld [vmem:[%s203 + $0x914] sm:$0xff]
      %v517 = vld [vmem:[%s203 + $0x91c] sm:$0xff]
      %v518 = vld [vmem:[%s203 + $0x924] sm:$0xff]
      %v519 = vld [vmem:[%s203 + $0x92c] sm:$0xff]
      %v520 = vld [vmem:[%s203 + $0x934] sm:$0xff]
      %v521 = vld [vmem:[%s203 + $0x93c] sm:$0xff]
      %v522 = vld [vmem:[%s203 + $0x944] sm:$0xf]
      %v523 = vld [vmem:[%s203 + $0x948] sm:$0xff]
      %v524 = vld [vmem:[%s203 + $0x950] sm:$0xff]
      %v525 = vld [vmem:[%s203 + $0x958] sm:$0xff]
      %v526 = vld [vmem:[%s203 + $0x960] sm:$0xff]
      %v527 = vld [vmem:[%s203 + $0x968] sm:$0xff]
      %v528 = vld [vmem:[%s203 + $0x970] sm:$0xff]
      %v529 = vld [vmem:[%s203 + $0x978] sm:$0xff]
      %v530 = vld [vmem:[%s203 + $0x980] sm:$0xff]
      %v531 = vld [vmem:[%s203 + $0x988] sm:$0xff]
      %v532 = vld [vmem:[%s203 + $0x990] sm:$0xff]
      %v533 = vld [vmem:[%s203 + $0x998] sm:$0xff]
      %v534 = vld [vmem:[%s203 + $0x9a0] sm:$0xff]
      %v535 = vld [vmem:[%s203 + $0x9a8] sm:$0xff]
      %v536 = vld [vmem:[%s203 + $0x9b0] sm:$0xf]
      %v537 = vld [vmem:[%s203 + $0x9b4] sm:$0xff]
      %v538 = vld [vmem:[%s203 + $0x9bc] sm:$0xff]
      %v539 = vld [vmem:[%s203 + $0x9c4] sm:$0xff]
      %v540 = vld [vmem:[%s203 + $0x9cc] sm:$0xff]
      %v541 = vld [vmem:[%s203 + $0x9d4] sm:$0xff]
      %v542 = vld [vmem:[%s203 + $0x9dc] sm:$0xff]
      %v543 = vld [vmem:[%s203 + $0x9e4] sm:$0xff]
      %v544 = vld [vmem:[%s203 + $0x9ec] sm:$0xff]
      %v545 = vld [vmem:[%s203 + $0x9f4] sm:$0xff]
      %v546 = vld [vmem:[%s203 + $0x9fc] sm:$0xff]
      %v547 = vld [vmem:[%s203 + $0xa04] sm:$0xff]
      %v548 = vld [vmem:[%s203 + $0xa0c] sm:$0xff]
      %v549 = vld [vmem:[%s203 + $0xa14] sm:$0xff]
      %v550 = vld [vmem:[%s203 + $0xa1c] sm:$0xf]
      %v551 = vld [vmem:[%s203 + $0xa20] sm:$0xff]
      %v552 = vld [vmem:[%s203 + $0xa28] sm:$0xff]
      %v553 = vld [vmem:[%s203 + $0xa30] sm:$0xff]
      %v554 = vld [vmem:[%s203 + $0xa38] sm:$0xff]
      %v555 = vld [vmem:[%s203 + $0xa40] sm:$0xff]
      %v556 = vld [vmem:[%s203 + $0xa48] sm:$0xff]
      %v557 = vld [vmem:[%s203 + $0xa50] sm:$0xff]
      %v558 = vld [vmem:[%s203 + $0xa58] sm:$0xff]
      %v559 = vld [vmem:[%s203 + $0xa60] sm:$0xff]
      %v560 = vld [vmem:[%s203 + $0xa68] sm:$0xff]
      %v561 = vld [vmem:[%s203 + $0xa70] sm:$0xff]
      %v562 = vld [vmem:[%s203 + $0xa78] sm:$0xff]
      %v563 = vld [vmem:[%s203 + $0xa80] sm:$0xff]
      %v564 = vld [vmem:[%s203 + $0xa88] sm:$0xf]
      %v565 = vld [vmem:[%s203 + $0xa8c] sm:$0xff]
      %v566 = vld [vmem:[%s203 + $0xa94] sm:$0xff]
      %v567 = vld [vmem:[%s203 + $0xa9c] sm:$0xff]
      %v568 = vld [vmem:[%s203 + $0xaa4] sm:$0xff]
      %v569 = vld [vmem:[%s203 + $0xaac] sm:$0xff]
      %v570 = vld [vmem:[%s203 + $0xab4] sm:$0xff]
      %v571 = vld [vmem:[%s203 + $0xabc] sm:$0xff]
      %v572 = vld [vmem:[%s203 + $0xac4] sm:$0xff]
      %v573 = vld [vmem:[%s203 + $0xacc] sm:$0xff]
      %v574 = vld [vmem:[%s203 + $0xad4] sm:$0xff]
      %v575 = vld [vmem:[%s203 + $0xadc] sm:$0xff]
      %v576 = vld [vmem:[%s203 + $0xae4] sm:$0xff]
      %v577 = vld [vmem:[%s203 + $0xaec] sm:$0xff]
      %v578 = vld [vmem:[%s203 + $0xaf4] sm:$0xf]
      %v579 = vld [vmem:[%s203 + $0xaf8] sm:$0xff]
      %v580 = vld [vmem:[%s203 + $0xb00] sm:$0xff]
      %v581 = vld [vmem:[%s203 + $0xb08] sm:$0xff]
      %v582 = vld [vmem:[%s203 + $0xb10] sm:$0xff]
      %v583 = vld [vmem:[%s203 + $0xb18] sm:$0xff]
      %v584 = vld [vmem:[%s203 + $0xb20] sm:$0xff]
      %v585 = vld [vmem:[%s203 + $0xb28] sm:$0xff]
      %v586 = vld [vmem:[%s203 + $0xb30] sm:$0xff]
      %v587 = vld [vmem:[%s203 + $0xb38] sm:$0xff]
      %v588 = vld [vmem:[%s203 + $0xb40] sm:$0xff]
      %v589 = vld [vmem:[%s203 + $0xb48] sm:$0xff]
      %v590 = vld [vmem:[%s203 + $0xb50] sm:$0xff]
      %v591 = vld [vmem:[%s203 + $0xb58] sm:$0xff]
      %v592 = vld [vmem:[%s203 + $0xb60] sm:$0xf]
      %v593 = vld [vmem:[%s203 + $0xb64] sm:$0xff]
      %v594 = vld [vmem:[%s203 + $0xb6c] sm:$0xff]
      %v595 = vld [vmem:[%s203 + $0xb74] sm:$0xff]
      %v596 = vld [vmem:[%s203 + $0xb7c] sm:$0xff]
      %v597 = vld [vmem:[%s203 + $0xb84] sm:$0xff]
      %v598 = vld [vmem:[%s203 + $0xb8c] sm:$0xff]
      %v599 = vld [vmem:[%s203 + $0xb94] sm:$0xff]
      %v600 = vld [vmem:[%s203 + $0xb9c] sm:$0xff]
      %v601 = vld [vmem:[%s203 + $0xba4] sm:$0xff]
      %v602 = vld [vmem:[%s203 + $0xbac] sm:$0xff]
      %v603 = vld [vmem:[%s203 + $0xbb4] sm:$0xff]
      %v604 = vld [vmem:[%s203 + $0xbbc] sm:$0xff]
      %v605 = vld [vmem:[%s203 + $0xbc4] sm:$0xff]
      %v606 = vld [vmem:[%s203 + $0xbcc] sm:$0xf]
      %v607 = vld [vmem:[%s203 + $0xbd0] sm:$0xff]
      %v608 = vld [vmem:[%s203 + $0xbd8] sm:$0xff]
      %v609 = vld [vmem:[%s203 + $0xbe0] sm:$0xff]
      %v610 = vld [vmem:[%s203 + $0xbe8] sm:$0xff]
      %v611 = vld [vmem:[%s203 + $0xbf0] sm:$0xff]
      %v612 = vld [vmem:[%s203 + $0xbf8] sm:$0xff]
      %v613 = vld [vmem:[%s203 + $0xc00] sm:$0xff]
      %v614 = vld [vmem:[%s203 + $0xc08] sm:$0xff]
      %v615 = vld [vmem:[%s203 + $0xc10] sm:$0xff]
      %v616 = vld [vmem:[%s203 + $0xc18] sm:$0xff]
      %v617 = vld [vmem:[%s203 + $0xc20] sm:$0xff]
      %v618 = vld [vmem:[%s203 + $0xc28] sm:$0xff]
      %v619 = vld [vmem:[%s203 + $0xc30] sm:$0xff]
      %v620 = vld [vmem:[%s203 + $0xc38] sm:$0xf]
      %v621 = vld [vmem:[%s203 + $0xc3c] sm:$0xff]
      %v622 = vld [vmem:[%s203 + $0xc44] sm:$0xff]
      %v623 = vld [vmem:[%s203 + $0xc4c] sm:$0xff]
      %v624 = vld [vmem:[%s203 + $0xc54] sm:$0xff]
      %v625 = vld [vmem:[%s203 + $0xc5c] sm:$0xff]
      %v626 = vld [vmem:[%s203 + $0xc64] sm:$0xff]
      %v627 = vld [vmem:[%s203 + $0xc6c] sm:$0xff]
      %v628 = vld [vmem:[%s203 + $0xc74] sm:$0xff]
      %v629 = vld [vmem:[%s203 + $0xc7c] sm:$0xff]
      %v630 = vld [vmem:[%s203 + $0xc84] sm:$0xff]
      %v631 = vld [vmem:[%s203 + $0xc8c] sm:$0xff]
      %v632 = vld [vmem:[%s203 + $0xc94] sm:$0xff]
      %v633 = vld [vmem:[%s203 + $0xc9c] sm:$0xff]
      %v634 = vld [vmem:[%s203 + $0xca4] sm:$0xf]
      %v635 = vld [vmem:[%s203 + $0xca8] sm:$0xff]
      %v636 = vld [vmem:[%s203 + $0xcb0] sm:$0xff]
      %v637 = vld [vmem:[%s203 + $0xcb8] sm:$0xff]
      %v638 = vld [vmem:[%s203 + $0xcc0] sm:$0xff]
      %v639 = vld [vmem:[%s203 + $0xcc8] sm:$0xff]
      %v640 = vld [vmem:[%s203 + $0xcd0] sm:$0xff]
      %v641 = vld [vmem:[%s203 + $0xcd8] sm:$0xff]
      %v642 = vld [vmem:[%s203 + $0xce0] sm:$0xff]
      %v643 = vld [vmem:[%s203 + $0xce8] sm:$0xff]
      %v644 = vld [vmem:[%s203 + $0xcf0] sm:$0xff]
      %v645 = vld [vmem:[%s203 + $0xcf8] sm:$0xff]
      %v646 = vld [vmem:[%s203 + $0xd00] sm:$0xff]
      %v647 = vld [vmem:[%s203 + $0xd08] sm:$0xff]
      %v648 = vld [vmem:[%s203 + $0xd10] sm:$0xf]
      %v649 = vld [vmem:[%s203 + $0xd14] sm:$0xff]
      %v650 = vld [vmem:[%s203 + $0xd1c] sm:$0xff]
      %v651 = vld [vmem:[%s203 + $0xd24] sm:$0xff]
      %v652 = vld [vmem:[%s203 + $0xd2c] sm:$0xff]
      %v653 = vld [vmem:[%s203 + $0xd34] sm:$0xff]
      %v654 = vld [vmem:[%s203 + $0xd3c] sm:$0xff]
      %v655 = vld [vmem:[%s203 + $0xd44] sm:$0xff]
      %v656 = vld [vmem:[%s203 + $0xd4c] sm:$0xff]
      %v657 = vld [vmem:[%s203 + $0xd54] sm:$0xff]
      %v658 = vld [vmem:[%s203 + $0xd5c] sm:$0xff]
      %v659 = vld [vmem:[%s203 + $0xd64] sm:$0xff]
      %v660 = vld [vmem:[%s203 + $0xd6c] sm:$0xff]
      %v661 = vld [vmem:[%s203 + $0xd74] sm:$0xff]
      %v662 = vld [vmem:[%s203 + $0xd7c] sm:$0xf]
      %v663 = vld [vmem:[%s1] sm:$0xf]
      %v664 = vld [vmem:[%s1 + $0x4] sm:$0xf]
      %v665 = vld [vmem:[%s1 + $0x8] sm:$0xf]
      %v666 = vld [vmem:[%s1 + $0xc] sm:$0xf]
      %v667 = vld [vmem:[%s1 + $0x10] sm:$0xf]
      %v668 = vld [vmem:[%s1 + $0x14] sm:$0xf]
      %v669 = vld [vmem:[%s1 + $0x18] sm:$0xf]
      %v670 = vld [vmem:[%s1 + $0x1c] sm:$0xf]
      %v671 = vld [vmem:[%s1 + $0x20] sm:$0xf]
      %v672 = vld [vmem:[%s1 + $0x24] sm:$0xf]
      %v673 = vld [vmem:[%s1 + $0x28] sm:$0xf]
      %v674 = vld [vmem:[%s1 + $0x2c] sm:$0xf]
      %v675 = vld [vmem:[%s1 + $0x30] sm:$0xf]
      %v676 = vld [vmem:[%s1 + $0x34] sm:$0xf]
      %v677 = vld [vmem:[%s1 + $0x38] sm:$0xf]
      %v678 = vld [vmem:[%s1 + $0x3c] sm:$0xf]
      %v679 = vld [vmem:[%s1 + $0x40] sm:$0xf]
      %v680 = vld [vmem:[%s1 + $0x44] sm:$0xf]
      %v681 = vld [vmem:[%s1 + $0x48] sm:$0xf]
      %v682 = vld [vmem:[%s1 + $0x4c] sm:$0xf]
      %v683 = vld [vmem:[%s1 + $0x50] sm:$0xf]
      %v684 = vld [vmem:[%s1 + $0x54] sm:$0xf]
      %v685 = vld [vmem:[%s1 + $0x58] sm:$0xf]
      %v686 = vld [vmem:[%s1 + $0x5c] sm:$0xf]
      %v687 = vld [vmem:[%s1 + $0x60] sm:$0xf]
      %v688 = vld [vmem:[%s1 + $0x64] sm:$0xf]
      %v689 = vld [vmem:[%s1 + $0x68] sm:$0xf]
      %v690 = vld [vmem:[%s1 + $0x6c] sm:$0xf]
      %v691 = vld [vmem:[%s1 + $0x70] sm:$0xf]
      %v692 = vld [vmem:[%s1 + $0x74] sm:$0xf]
      %v693 = vld [vmem:[%s1 + $0x78] sm:$0xf]
      %v694 = vld [vmem:[%s1 + $0x7c] sm:$0xf]
      %v695 = vld [vmem:[%s1 + $0x80] sm:$0xf]
      %v696 = vld [vmem:[%s1 + $0x84] sm:$0xf]
      %v697 = vld [vmem:[%s1 + $0x88] sm:$0xf]
      %v698 = vld [vmem:[%s1 + $0x8c] sm:$0xf]
      %v699 = vld [vmem:[%s1 + $0x90] sm:$0xf]
      %v700 = vld [vmem:[%s1 + $0x94] sm:$0xf]
      %v701 = vld [vmem:[%s1 + $0x98] sm:$0xf]
      %v702 = vld [vmem:[%s1 + $0x9c] sm:$0xf]
      %v703 = vld [vmem:[%s1 + $0xa0] sm:$0xf]
      %v704 = vld [vmem:[%s1 + $0xa4] sm:$0xf]
      %v705 = vld [vmem:[%s1 + $0xa8] sm:$0xf]
      %v706 = vld [vmem:[%s1 + $0xac] sm:$0xf]
      %v707 = vld [vmem:[%s1 + $0xb0] sm:$0xf]
      %v708 = vld [vmem:[%s1 + $0xb4] sm:$0xf]
      %v709 = vld [vmem:[%s1 + $0xb8] sm:$0xf]
      %v710 = vld [vmem:[%s1 + $0xbc] sm:$0xf]
      %v711 = vld [vmem:[%s1 + $0xc0] sm:$0xf]
      %v712 = vld [vmem:[%s1 + $0xc4] sm:$0xf]
      %v713 = vld [vmem:[%s1 + $0xc8] sm:$0xf]
      %v714 = vld [vmem:[%s1 + $0xcc] sm:$0xf]
      %v715 = vld [vmem:[%s1 + $0xd0] sm:$0xf]
      %v716 = vld [vmem:[%s1 + $0xd4] sm:$0xf]
      %v717 = vld [vmem:[%s1 + $0xd8] sm:$0xf]
      %v718 = vld [vmem:[%s1 + $0xdc] sm:$0xf]
      %v719 = vld [vmem:[%s1 + $0xe0] sm:$0xf]
      %v720 = vld [vmem:[%s1 + $0xe4] sm:$0xf]
      %v721 = vld [vmem:[%s1 + $0xe8] sm:$0xf]
      %v722 = vld [vmem:[%s1 + $0xec] sm:$0xf]
      %v723 = vld [vmem:[%s1 + $0xf0] sm:$0xf]
      %v724 = vld [vmem:[%s1 + $0xf4] sm:$0xf]
      %v725 = vld [vmem:[%s1 + $0xf8] sm:$0xf]
      %v726 = vld [vmem:[%s1 + $0xfc] sm:$0xf]
      %v727 = vld [vmem:[%s1 + $0x100] sm:$0xf]
      %v728 = vld [vmem:[%s1 + $0x104] sm:$0xf]
      %v729 = vld [vmem:[%s1 + $0x108] sm:$0xf]
      %v730 = vld [vmem:[%s1 + $0x10c] sm:$0xf]
      %v731 = vld [vmem:[%s1 + $0x110] sm:$0xf]
      %v732 = vld [vmem:[%s1 + $0x114] sm:$0xf]
      %v733 = vld [vmem:[%s1 + $0x118] sm:$0xf]
      %v734 = vld [vmem:[%s1 + $0x11c] sm:$0xf]
      %v735 = vld [vmem:[%s1 + $0x120] sm:$0xf]
      %v736 = vld [vmem:[%s1 + $0x124] sm:$0xf]
      %v737 = vld [vmem:[%s1 + $0x128] sm:$0xf]
      %v738 = vld [vmem:[%s1 + $0x12c] sm:$0xf]
      %v739 = vld [vmem:[%s1 + $0x130] sm:$0xf]
      %v740 = vld [vmem:[%s1 + $0x134] sm:$0xf]
      %v741 = vld [vmem:[%s1 + $0x138] sm:$0xf]
      %v742 = vld [vmem:[%s1 + $0x13c] sm:$0xf]
      %v743 = vld [vmem:[%s1 + $0x140] sm:$0xf]
      %v744 = vld [vmem:[%s1 + $0x144] sm:$0xf]
      %v745 = vld [vmem:[%s1 + $0x148] sm:$0xf]
      %v746 = vld [vmem:[%s1 + $0x14c] sm:$0xf]
      %v747 = vld [vmem:[%s1 + $0x150] sm:$0xf]
      %v748 = vld [vmem:[%s1 + $0x154] sm:$0xf]
      %v749 = vld [vmem:[%s1 + $0x158] sm:$0xf]
      %v750 = vld [vmem:[%s1 + $0x15c] sm:$0xf]
      %v751 = vld [vmem:[%s1 + $0x160] sm:$0xf]
      %v752 = vld [vmem:[%s1 + $0x164] sm:$0xf]
      %v753 = vld [vmem:[%s1 + $0x168] sm:$0xf]
      %v754 = vld [vmem:[%s1 + $0x16c] sm:$0xf]
      %v755 = vld [vmem:[%s1 + $0x170] sm:$0xf]
      %v756 = vld [vmem:[%s1 + $0x174] sm:$0xf]
      %v757 = vld [vmem:[%s1 + $0x178] sm:$0xf]
      %v758 = vld [vmem:[%s1 + $0x17c] sm:$0xf]
      %v759 = vld [vmem:[%s1 + $0x180] sm:$0xf]
      %v760 = vld [vmem:[%s1 + $0x184] sm:$0xf]
      %v761 = vld [vmem:[%s1 + $0x188] sm:$0xf]
      %v762 = vld [vmem:[%s1 + $0x18c] sm:$0xf]
      %v763 = vld [vmem:[%s1 + $0x190] sm:$0xf]
      %v764 = vld [vmem:[%s1 + $0x194] sm:$0xf]
      %v765 = vld [vmem:[%s1 + $0x198] sm:$0xf]
      %v766 = vld [vmem:[%s1 + $0x19c] sm:$0xf]
      %v767 = vld [vmem:[%s1 + $0x1a0] sm:$0xf]
      %v768 = vld [vmem:[%s1 + $0x1a4] sm:$0xf]
      %v769 = vld [vmem:[%s1 + $0x1a8] sm:$0xf]
      %v770 = vld [vmem:[%s1 + $0x1ac] sm:$0xf]
      %v771 = vld [vmem:[%s1 + $0x1b0] sm:$0xf]
      %v772 = vld [vmem:[%s1 + $0x1b4] sm:$0xf]
      %v773 = vld [vmem:[%s1 + $0x1b8] sm:$0xf]
      %v774 = vld [vmem:[%s1 + $0x1bc] sm:$0xf]
      %v775 = vld [vmem:[%s1 + $0x1c0] sm:$0xf]
      %v776 = vld [vmem:[%s1 + $0x1c4] sm:$0xf]
      %v777 = vld [vmem:[%s1 + $0x1c8] sm:$0xf]
      %v778 = vld [vmem:[%s1 + $0x1cc] sm:$0xf]
      %v779 = vld [vmem:[%s1 + $0x1d0] sm:$0xf]
      %v780 = vld [vmem:[%s1 + $0x1d4] sm:$0xf]
      %v781 = vld [vmem:[%s1 + $0x1d8] sm:$0xf]
      %v782 = vld [vmem:[%s1 + $0x1dc] sm:$0xf]
      %v783 = vld [vmem:[%s1 + $0x1e0] sm:$0xf]
      %v784 = vld [vmem:[%s1 + $0x1e4] sm:$0xf]
      %v785 = vld [vmem:[%s1 + $0x1e8] sm:$0xf]
      %v786 = vld [vmem:[%s1 + $0x1ec] sm:$0xf]
      %v787 = vld [vmem:[%s1 + $0x1f0] sm:$0xf]
      %v788 = vld [vmem:[%s1 + $0x1f4] sm:$0xf]
      %v789 = vld [vmem:[%s1 + $0x1f8] sm:$0xf]
      %v790 = vld [vmem:[%s1 + $0x1fc] sm:$0xf]
      %v791 = vld [vmem:[%s1 + $0x200] sm:$0xf]
      %v792 = vld [vmem:[%s1 + $0x204] sm:$0xf]
      %v793 = vld [vmem:[%s1 + $0x208] sm:$0xf]
      %v794 = vld [vmem:[%s1 + $0x20c] sm:$0xf]
      %v795 = vld [vmem:[%s1 + $0x210] sm:$0xf]
      %v796 = vld [vmem:[%s1 + $0x214] sm:$0xf]
      %v797 = vld [vmem:[%s1 + $0x218] sm:$0xf]
      %v798 = vld [vmem:[%s1 + $0x21c] sm:$0xf]
      %v799 = vld [vmem:[%s1 + $0x220] sm:$0xf]
      %v800 = vld [vmem:[%s1 + $0x224] sm:$0xf]
      %v801 = vld [vmem:[%s1 + $0x228] sm:$0xf]
      %v802 = vld [vmem:[%s1 + $0x22c] sm:$0xf]
      %v803 = vld [vmem:[%s1 + $0x230] sm:$0xf]
      %v804 = vld [vmem:[%s1 + $0x234] sm:$0xf]
      %v805 = vld [vmem:[%s1 + $0x238] sm:$0xf]
      %v806 = vld [vmem:[%s1 + $0x23c] sm:$0xf]
      %v807 = vld [vmem:[%s1 + $0x240] sm:$0xf]
      %v808 = vld [vmem:[%s1 + $0x244] sm:$0xf]
      %v809 = vld [vmem:[%s1 + $0x248] sm:$0xf]
      %v810 = vld [vmem:[%s1 + $0x24c] sm:$0xf]
      %v811 = vld [vmem:[%s1 + $0x250] sm:$0xf]
      %v812 = vld [vmem:[%s1 + $0x254] sm:$0xf]
      %v813 = vld [vmem:[%s1 + $0x258] sm:$0xf]
      %v814 = vld [vmem:[%s1 + $0x25c] sm:$0xf]
      %v815 = vld [vmem:[%s1 + $0x260] sm:$0xf]
      %v816 = vld [vmem:[%s1 + $0x264] sm:$0xf]
      %v817 = vld [vmem:[%s1 + $0x268] sm:$0xf]
      %v818 = vld [vmem:[%s1 + $0x26c] sm:$0xf]
      %v819 = vld [vmem:[%s1 + $0x270] sm:$0xf]
      %v820 = vld [vmem:[%s1 + $0x274] sm:$0xf]
      %v821 = vld [vmem:[%s1 + $0x278] sm:$0xf]
      %v822 = vld [vmem:[%s1 + $0x27c] sm:$0xf]
      %v823 = vld [vmem:[%s1 + $0x280] sm:$0xf]
      %v824 = vld [vmem:[%s1 + $0x284] sm:$0xf]
      %v825 = vld [vmem:[%s1 + $0x288] sm:$0xf]
      %v826 = vld [vmem:[%s1 + $0x28c] sm:$0xf]
      %v827 = vld [vmem:[%s1 + $0x290] sm:$0xf]
      %v828 = vld [vmem:[%s1 + $0x294] sm:$0xf]
      %v829 = vld [vmem:[%s1 + $0x298] sm:$0xf]
      %v830 = vld [vmem:[%s1 + $0x29c] sm:$0xf]
      %v831 = vld [vmem:[%s1 + $0x2a0] sm:$0xf]
      %v832 = vld [vmem:[%s1 + $0x2a4] sm:$0xf]
      %v833 = vld [vmem:[%s1 + $0x2a8] sm:$0xf]
      %v834 = vld [vmem:[%s1 + $0x2ac] sm:$0xf]
      %v835 = vld [vmem:[%s1 + $0x2b0] sm:$0xf]
      %v836 = vld [vmem:[%s1 + $0x2b4] sm:$0xf]
      %v837 = vld [vmem:[%s1 + $0x2b8] sm:$0xf]
      %v838 = vld [vmem:[%s1 + $0x2bc] sm:$0xf]
      %v839 = vld [vmem:[%s1 + $0x2c0] sm:$0xf]
      %v840 = vld [vmem:[%s1 + $0x2c4] sm:$0xf]
      %v841 = vld [vmem:[%s1 + $0x2c8] sm:$0xf]
      %v842 = vld [vmem:[%s1 + $0x2cc] sm:$0xf]
      %v843 = vld [vmem:[%s1 + $0x2d0] sm:$0xf]
      %v844 = vld [vmem:[%s1 + $0x2d4] sm:$0xf]
      %v845 = vld [vmem:[%s1 + $0x2d8] sm:$0xf]
      %v846 = vld [vmem:[%s1 + $0x2dc] sm:$0xf]
      %v847 = vld [vmem:[%s1 + $0x2e0] sm:$0xf]
      %v848 = vld [vmem:[%s1 + $0x2e4] sm:$0xf]
      %v849 = vld [vmem:[%s1 + $0x2e8] sm:$0xf]
      %v850 = vld [vmem:[%s1 + $0x2ec] sm:$0xf]
      %v851 = vld [vmem:[%s1 + $0x2f0] sm:$0xf]
      %v852 = vld [vmem:[%s1 + $0x2f4] sm:$0xf]
      %v853 = vld [vmem:[%s1 + $0x2f8] sm:$0xf]
      %v854 = vld [vmem:[%s1 + $0x2fc] sm:$0xf]
      %v855 = vld [vmem:[%s1 + $0x300] sm:$0xf]
      %v856 = vld [vmem:[%s1 + $0x304] sm:$0xf]
      %v857 = vld [vmem:[%s1 + $0x308] sm:$0xf]
      %v858 = vld [vmem:[%s1 + $0x30c] sm:$0xf]
      %v859 = vld [vmem:[%s1 + $0x310] sm:$0xf]
      %v860 = vld [vmem:[%s1 + $0x314] sm:$0xf]
      %v861 = vld [vmem:[%s1 + $0x318] sm:$0xf]
      %v862 = vld [vmem:[%s1 + $0x31c] sm:$0xf]
      %v863 = vld [vmem:[%s1 + $0x320] sm:$0xf]
      %v864 = vld [vmem:[%s1 + $0x324] sm:$0xf]
      %v865 = vld [vmem:[%s1 + $0x328] sm:$0xf]
      %v866 = vld [vmem:[%s1 + $0x32c] sm:$0xf]
      %v867 = vld [vmem:[%s1 + $0x330] sm:$0xf]
      %v868 = vld [vmem:[%s1 + $0x334] sm:$0xf]
      %v869 = vld [vmem:[%s1 + $0x338] sm:$0xf]
      %v870 = vld [vmem:[%s1 + $0x33c] sm:$0xf]
      %v871 = vld [vmem:[%s1 + $0x340] sm:$0xf]
      %v872 = vld [vmem:[%s1 + $0x344] sm:$0xf]
      %v873 = vld [vmem:[%s1 + $0x348] sm:$0xf]
      %v874 = vld [vmem:[%s1 + $0x34c] sm:$0xf]
      %v875 = vld [vmem:[%s1 + $0x350] sm:$0xf]
      %v876 = vld [vmem:[%s1 + $0x354] sm:$0xf]
      %v877 = vld [vmem:[%s1 + $0x358] sm:$0xf]
      %v878 = vld [vmem:[%s1 + $0x35c] sm:$0xf]
      %v879 = vld [vmem:[%s1 + $0x360] sm:$0xf]
      %v880 = vld [vmem:[%s1 + $0x364] sm:$0xf]
      %v881 = vld [vmem:[%s1 + $0x368] sm:$0xf]
      %v882 = vld [vmem:[%s1 + $0x36c] sm:$0xf]
      %v883 = vld [vmem:[%s1 + $0x370] sm:$0xf]
      %v884 = vld [vmem:[%s1 + $0x374] sm:$0xf]
      %v885 = vld [vmem:[%s1 + $0x378] sm:$0xf]
      %v886 = vld [vmem:[%s1 + $0x37c] sm:$0xf]
      %v887 = vld [vmem:[%s1 + $0x380] sm:$0xf]
      %v888 = vld [vmem:[%s1 + $0x384] sm:$0xf]
      %v889 = vld [vmem:[%s1 + $0x388] sm:$0xf]
      %v890 = vld [vmem:[%s1 + $0x38c] sm:$0xf]
      %v891 = vld [vmem:[%s1 + $0x390] sm:$0xf]
      %v892 = vld [vmem:[%s1 + $0x394] sm:$0xf]
      %v893 = vld [vmem:[%s1 + $0x398] sm:$0xf]
      %v894 = vld [vmem:[%s1 + $0x39c] sm:$0xf]
      %v895 = vld [vmem:[%s1 + $0x3a0] sm:$0xf]
      %v896 = vld [vmem:[%s1 + $0x3a4] sm:$0xf]
      %v897 = vld [vmem:[%s1 + $0x3a8] sm:$0xf]
      %v898 = vld [vmem:[%s1 + $0x3ac] sm:$0xf]
      %v899 = vld [vmem:[%s1 + $0x3b0] sm:$0xf]
      %v900 = vld [vmem:[%s1 + $0x3b4] sm:$0xf]
      %v901 = vld [vmem:[%s1 + $0x3b8] sm:$0xf]
      %v902 = vld [vmem:[%s1 + $0x3bc] sm:$0xf]
      %v903 = vld [vmem:[%s1 + $0x3c0] sm:$0xf]
      %v904 = vld [vmem:[%s1 + $0x3c4] sm:$0xf]
      %v905 = vld [vmem:[%s1 + $0x3c8] sm:$0xf]
      %v906 = vld [vmem:[%s1 + $0x3cc] sm:$0xf]
      %v907 = vld [vmem:[%s1 + $0x3d0] sm:$0xf]
      %v908 = vld [vmem:[%s1 + $0x3d4] sm:$0xf]
      %v909 = vld [vmem:[%s1 + $0x3d8] sm:$0xf]
      %v910 = vld [vmem:[%s1 + $0x3dc] sm:$0xf]
      %v911 = vld [vmem:[%s1 + $0x3e0] sm:$0xf]
      %v912 = vld [vmem:[%s1 + $0x3e4] sm:$0xf]
      %v913 = vld [vmem:[%s1 + $0x3e8] sm:$0xf]
      %v914 = vld [vmem:[%s1 + $0x3ec] sm:$0xf]
      %v915 = vld [vmem:[%s1 + $0x3f0] sm:$0xf]
      %v916 = vld [vmem:[%s1 + $0x3f4] sm:$0xf]
      %v917 = vld [vmem:[%s1 + $0x3f8] sm:$0xf]
      %v918 = vld [vmem:[%s1 + $0x3fc] sm:$0xf]
      %v919 = vld [vmem:[%s1 + $0x400] sm:$0xf]
      %v920 = vld [vmem:[%s1 + $0x404] sm:$0xf]
      %v921 = vld [vmem:[%s1 + $0x408] sm:$0xf]
      %v922 = vld [vmem:[%s1 + $0x40c] sm:$0xf]
      %v923 = vld [vmem:[%s1 + $0x410] sm:$0xf]
      %v924 = vld [vmem:[%s1 + $0x414] sm:$0xf]
      %v925 = vld [vmem:[%s1 + $0x418] sm:$0xf]
      %v926 = vld [vmem:[%s1 + $0x41c] sm:$0xf]
      %v927 = vld [vmem:[%s1 + $0x420] sm:$0xf]
      %v928 = vld [vmem:[%s1 + $0x424] sm:$0xf]
      %v929 = vld [vmem:[%s1 + $0x428] sm:$0xf]
      %v930 = vld [vmem:[%s1 + $0x42c] sm:$0xf]
      %v931 = vld [vmem:[%s1 + $0x430] sm:$0xf]
      %v932 = vld [vmem:[%s1 + $0x434] sm:$0xf]
      %v933 = vld [vmem:[%s1 + $0x438] sm:$0xf]
      %v934 = vld [vmem:[%s1 + $0x43c] sm:$0xf]
      %v935 = vld [vmem:[%s1 + $0x440] sm:$0xf]
      %v936 = vld [vmem:[%s1 + $0x444] sm:$0xf]
      %v937 = vld [vmem:[%s1 + $0x448] sm:$0xf]
      %v938 = vld [vmem:[%s1 + $0x44c] sm:$0xf]
      %v939 = vld [vmem:[%s1 + $0x450] sm:$0xf]
      %v940 = vld [vmem:[%s1 + $0x454] sm:$0xf]
      %v941 = vld [vmem:[%s1 + $0x458] sm:$0xf]
      %v942 = vld [vmem:[%s1 + $0x45c] sm:$0xf]
      %v943 = vld [vmem:[%s1 + $0x460] sm:$0xf]
      %v944 = vld [vmem:[%s1 + $0x464] sm:$0xf]
      %v945 = vld [vmem:[%s1 + $0x468] sm:$0xf]
      %v946 = vld [vmem:[%s1 + $0x46c] sm:$0xf]
      %v947 = vld [vmem:[%s1 + $0x470] sm:$0xf]
      %v948 = vld [vmem:[%s1 + $0x474] sm:$0xf]
      %v949 = vld [vmem:[%s1 + $0x478] sm:$0xf]
      %v950 = vld [vmem:[%s1 + $0x47c] sm:$0xf]
      %v951 = vld [vmem:[%s1 + $0x480] sm:$0xf]
      %v952 = vld [vmem:[%s1 + $0x484] sm:$0xf]
      %v953 = vld [vmem:[%s1 + $0x488] sm:$0xf]
      %v954 = vld [vmem:[%s1 + $0x48c] sm:$0xf]
      %v955 = vld [vmem:[%s1 + $0x490] sm:$0xf]
      %v956 = vld [vmem:[%s1 + $0x494] sm:$0xf]
      %v957 = vld [vmem:[%s1 + $0x498] sm:$0xf]
      %v958 = vld [vmem:[%s1 + $0x49c] sm:$0xf]
      %v959 = vld [vmem:[%s1 + $0x4a0] sm:$0xf]
      %v960 = vld [vmem:[%s1 + $0x4a4] sm:$0xf]
      %v961 = vld [vmem:[%s1 + $0x4a8] sm:$0xf]
      %v962 = vld [vmem:[%s1 + $0x4ac] sm:$0xf]
      %v963 = vld [vmem:[%s1 + $0x4b0] sm:$0xf]
      %v964 = vld [vmem:[%s1 + $0x4b4] sm:$0xf]
      %v965 = vld [vmem:[%s1 + $0x4b8] sm:$0xf]
      %v966 = vld [vmem:[%s1 + $0x4bc] sm:$0xf]
      %v967 = vld [vmem:[%s1 + $0x4c0] sm:$0xf]
      %v968 = vld [vmem:[%s1 + $0x4c4] sm:$0xf]
      %v969 = vld [vmem:[%s1 + $0x4c8] sm:$0xf]
      %v970 = vld [vmem:[%s1 + $0x4cc] sm:$0xf]
      %v971 = vld [vmem:[%s1 + $0x4d0] sm:$0xf]
      %v972 = vld [vmem:[%s1 + $0x4d4] sm:$0xf]
      %v973 = vld [vmem:[%s1 + $0x4d8] sm:$0xf]
      %v974 = vld [vmem:[%s1 + $0x4dc] sm:$0xf]
      %v975 = vld [vmem:[%s1 + $0x4e0] sm:$0xf]
      %v976 = vld [vmem:[%s1 + $0x4e4] sm:$0xf]
      %v977 = vld [vmem:[%s1 + $0x4e8] sm:$0xf]
      %v978 = vld [vmem:[%s1 + $0x4ec] sm:$0xf]
      %v979 = vld [vmem:[%s1 + $0x4f0] sm:$0xf]
      %v980 = vld [vmem:[%s1 + $0x4f4] sm:$0xf]
      %v981 = vld [vmem:[%s1 + $0x4f8] sm:$0xf]
      %v982 = vld [vmem:[%s1 + $0x4fc] sm:$0xf]
      %v983 = vld [vmem:[%s1 + $0x500] sm:$0xf]
      %v984 = vld [vmem:[%s1 + $0x504] sm:$0xf]
      %v985 = vld [vmem:[%s1 + $0x508] sm:$0xf]
      %v986 = vld [vmem:[%s1 + $0x50c] sm:$0xf]
      %v987 = vld [vmem:[%s1 + $0x510] sm:$0xf]
      %v988 = vld [vmem:[%s1 + $0x514] sm:$0xf]
      %v989 = vld [vmem:[%s1 + $0x518] sm:$0xf]
      %v990 = vld [vmem:[%s1 + $0x51c] sm:$0xf]
      %v991 = vld [vmem:[%s1 + $0x520] sm:$0xf]
      %v992 = vld [vmem:[%s1 + $0x524] sm:$0xf]
      %v993 = vld [vmem:[%s1 + $0x528] sm:$0xf]
      %v994 = vld [vmem:[%s1 + $0x52c] sm:$0xf]
      %v995 = vld [vmem:[%s1 + $0x530] sm:$0xf]
      %v996 = vld [vmem:[%s1 + $0x534] sm:$0xf]
      %v997 = vld [vmem:[%s1 + $0x538] sm:$0xf]
      %v998 = vld [vmem:[%s1 + $0x53c] sm:$0xf]
      %v999 = vld [vmem:[%s1 + $0x540] sm:$0xf]
      %v1000 = vld [vmem:[%s1 + $0x544] sm:$0xf]
      %v1001 = vld [vmem:[%s1 + $0x548] sm:$0xf]
      %v1002 = vld [vmem:[%s1 + $0x54c] sm:$0xf]
      %v1003 = vld [vmem:[%s1 + $0x550] sm:$0xf]
      %v1004 = vld [vmem:[%s1 + $0x554] sm:$0xf]
      %v1005 = vld [vmem:[%s1 + $0x558] sm:$0xf]
      %v1006 = vld [vmem:[%s1 + $0x55c] sm:$0xf]
      %v1007 = vld [vmem:[%s1 + $0x560] sm:$0xf]
      %v1008 = vld [vmem:[%s1 + $0x564] sm:$0xf]
      %v1009 = vld [vmem:[%s1 + $0x568] sm:$0xf]
      %v1010 = vld [vmem:[%s1 + $0x56c] sm:$0xf]
      %v1011 = vld [vmem:[%s1 + $0x570] sm:$0xf]
      %v1012 = vld [vmem:[%s1 + $0x574] sm:$0xf]
      %v1013 = vld [vmem:[%s1 + $0x578] sm:$0xf]
      %v1014 = vld [vmem:[%s1 + $0x57c] sm:$0xf]
      %v1015 = vld [vmem:[%s1 + $0x580] sm:$0xf]
      %v1016 = vld [vmem:[%s1 + $0x584] sm:$0xf]
      %v1017 = vld [vmem:[%s1 + $0x588] sm:$0xf]
      %v1018 = vld [vmem:[%s1 + $0x58c] sm:$0xf]
      %v1019 = vld [vmem:[%s1 + $0x590] sm:$0xf]
      %v1020 = vld [vmem:[%s1 + $0x594] sm:$0xf]
      %v1021 = vld [vmem:[%s1 + $0x598] sm:$0xf]
      %v1022 = vld [vmem:[%s1 + $0x59c] sm:$0xf]
      %v1023 = vld [vmem:[%s1 + $0x5a0] sm:$0xf]
      %v1024 = vld [vmem:[%s1 + $0x5a4] sm:$0xf]
      %v1025 = vld [vmem:[%s1 + $0x5a8] sm:$0xf]
      %v1026 = vld [vmem:[%s1 + $0x5ac] sm:$0xf]
      %v1027 = vld [vmem:[%s1 + $0x5b0] sm:$0xf]
      %v1028 = vld [vmem:[%s1 + $0x5b4] sm:$0xf]
      %v1029 = vld [vmem:[%s1 + $0x5b8] sm:$0xf]
      %v1030 = vld [vmem:[%s1 + $0x5bc] sm:$0xf]
      %v1031 = vld [vmem:[%s1 + $0x5c0] sm:$0xf]
      %v1032 = vld [vmem:[%s1 + $0x5c4] sm:$0xf]
      %v1033 = vld [vmem:[%s1 + $0x5c8] sm:$0xf]
      %v1034 = vld [vmem:[%s1 + $0x5cc] sm:$0xf]
      %v1035 = vld [vmem:[%s1 + $0x5d0] sm:$0xf]
      %v1036 = vld [vmem:[%s1 + $0x5d4] sm:$0xf]
      %v1037 = vld [vmem:[%s1 + $0x5d8] sm:$0xf]
      %v1038 = vld [vmem:[%s1 + $0x5dc] sm:$0xf]
      %v1039 = vld [vmem:[%s1 + $0x5e0] sm:$0xf]
      %v1040 = vld [vmem:[%s1 + $0x5e4] sm:$0xf]
      %v1041 = vld [vmem:[%s1 + $0x5e8] sm:$0xf]
      %v1042 = vld [vmem:[%s1 + $0x5ec] sm:$0xf]
      %v1043 = vld [vmem:[%s1 + $0x5f0] sm:$0xf]
      %v1044 = vld [vmem:[%s1 + $0x5f4] sm:$0xf]
      %v1045 = vld [vmem:[%s1 + $0x5f8] sm:$0xf]
      %v1046 = vld [vmem:[%s1 + $0x5fc] sm:$0xf]
      %v1047 = vld [vmem:[%s1 + $0x600] sm:$0xf]
      %v1048 = vld [vmem:[%s1 + $0x604] sm:$0xf]
      %v1049 = vld [vmem:[%s1 + $0x608] sm:$0xf]
      %v1050 = vld [vmem:[%s1 + $0x60c] sm:$0xf]
      %v1051 = vld [vmem:[%s1 + $0x610] sm:$0xf]
      %v1052 = vld [vmem:[%s1 + $0x614] sm:$0xf]
      %v1053 = vld [vmem:[%s1 + $0x618] sm:$0xf]
      %v1054 = vld [vmem:[%s1 + $0x61c] sm:$0xf]
      %v1055 = vld [vmem:[%s1 + $0x620] sm:$0xf]
      %v1056 = vld [vmem:[%s1 + $0x624] sm:$0xf]
      %v1057 = vld [vmem:[%s1 + $0x628] sm:$0xf]
      %v1058 = vld [vmem:[%s1 + $0x62c] sm:$0xf]
      %v1059 = vld [vmem:[%s1 + $0x630] sm:$0xf]
      %v1060 = vld [vmem:[%s1 + $0x634] sm:$0xf]
      %v1061 = vld [vmem:[%s1 + $0x638] sm:$0xf]
      %v1062 = vld [vmem:[%s1 + $0x63c] sm:$0xf]
      %v1063 = vld [vmem:[%s1 + $0x640] sm:$0xf]
      %v1064 = vld [vmem:[%s1 + $0x644] sm:$0xf]
      %v1065 = vld [vmem:[%s1 + $0x648] sm:$0xf]
      %v1066 = vld [vmem:[%s1 + $0x64c] sm:$0xf]
      %v1067 = vld [vmem:[%s1 + $0x650] sm:$0xf]
      %v1068 = vld [vmem:[%s1 + $0x654] sm:$0xf]
      %v1069 = vld [vmem:[%s1 + $0x658] sm:$0xf]
      %v1070 = vld [vmem:[%s1 + $0x65c] sm:$0xf]
      %v1071 = vld [vmem:[%s1 + $0x660] sm:$0xf]
      %v1072 = vld [vmem:[%s1 + $0x664] sm:$0xf]
      %v1073 = vld [vmem:[%s1 + $0x668] sm:$0xf]
      %v1074 = vld [vmem:[%s1 + $0x66c] sm:$0xf]
      %v1075 = vld [vmem:[%s1 + $0x670] sm:$0xf]
      %v1076 = vld [vmem:[%s1 + $0x674] sm:$0xf]
      %v1077 = vld [vmem:[%s1 + $0x678] sm:$0xf]
      %v1078 = vld [vmem:[%s1 + $0x67c] sm:$0xf]
      %v1079 = vld [vmem:[%s1 + $0x680] sm:$0xf]
      %v1080 = vld [vmem:[%s1 + $0x684] sm:$0xf]
      %v1081 = vld [vmem:[%s1 + $0x688] sm:$0xf]
      %v1082 = vld [vmem:[%s1 + $0x68c] sm:$0xf]
      %v1083 = vld [vmem:[%s1 + $0x690] sm:$0xf]
      %v1084 = vld [vmem:[%s1 + $0x694] sm:$0xf]
      %v1085 = vld [vmem:[%s1 + $0x698] sm:$0xf]
      %v1086 = vld [vmem:[%s1 + $0x69c] sm:$0xf]
      %v1087 = vld [vmem:[%s1 + $0x6a0] sm:$0xf]
      %v1088 = vld [vmem:[%s1 + $0x6a4] sm:$0xf]
      %v1089 = vld [vmem:[%s1 + $0x6a8] sm:$0xf]
      %v1090 = vld [vmem:[%s1 + $0x6ac] sm:$0xf]
      %v1091 = vld [vmem:[%s1 + $0x6b0] sm:$0xf]
      %v1092 = vld [vmem:[%s1 + $0x6b4] sm:$0xf]
      %v1093 = vld [vmem:[%s1 + $0x6b8] sm:$0xf]
      %v1094 = vld [vmem:[%s1 + $0x6bc] sm:$0xf]
      %v1095 = vld [vmem:[%s2] sm:$0x1]
      %v1097 = vperm.slane %v1095, 0
      %v1547 = vunpack.c.l.b16 %v215
      %v1548 = vunpack.c.h.b16 %v215
      %v1549 = vunpack.c.l.b16 %v216
      %v1550 = vunpack.c.h.b16 %v216
      %v1551 = vunpack.c.l.b16 %v217
      %v1552 = vunpack.c.h.b16 %v217
      %v1553 = vunpack.c.l.b16 %v218
      %v1554 = vunpack.c.h.b16 %v218
      %v1555 = vunpack.c.l.b16 %v219
      %v1556 = vunpack.c.h.b16 %v219
      %v1557 = vunpack.c.l.b16 %v220
      %v1558 = vunpack.c.h.b16 %v220
      %v1559 = vunpack.c.l.b16 %v221
      %v1560 = vunpack.c.h.b16 %v221
      %v1561 = vunpack.c.l.b16 %v222
      %v1562 = vunpack.c.h.b16 %v222
      %v1563 = vunpack.c.l.b16 %v223
      %v1564 = vunpack.c.h.b16 %v223
      %v1565 = vunpack.c.l.b16 %v224
      %v1566 = vunpack.c.h.b16 %v224
      %v1567 = vunpack.c.l.b16 %v225
      %v1568 = vunpack.c.h.b16 %v225
      %v1569 = vunpack.c.l.b16 %v226
      %v1570 = vunpack.c.h.b16 %v226
      %v1571 = vunpack.c.l.b16 %v227
      %v1572 = vunpack.c.h.b16 %v227
      %v1573 = vunpack.c.l.b16 %v228
      %v1574 = vunpack.c.l.b16 %v229
      %v1575 = vunpack.c.h.b16 %v229
      %v1576 = vunpack.c.l.b16 %v230
      %v1577 = vunpack.c.h.b16 %v230
      %v1578 = vunpack.c.l.b16 %v231
      %v1579 = vunpack.c.h.b16 %v231
      %v1580 = vunpack.c.l.b16 %v232
      %v1581 = vunpack.c.h.b16 %v232
      %v1582 = vunpack.c.l.b16 %v233
      %v1583 = vunpack.c.h.b16 %v233
      %v1584 = vunpack.c.l.b16 %v234
      %v1585 = vunpack.c.h.b16 %v234
      %v1586 = vunpack.c.l.b16 %v235
      %v1587 = vunpack.c.h.b16 %v235
      %v1588 = vunpack.c.l.b16 %v236
      %v1589 = vunpack.c.h.b16 %v236
      %v1590 = vunpack.c.l.b16 %v237
      %v1591 = vunpack.c.h.b16 %v237
      %v1592 = vunpack.c.l.b16 %v238
      %v1593 = vunpack.c.h.b16 %v238
      %v1594 = vunpack.c.l.b16 %v239
      %v1595 = vunpack.c.h.b16 %v239
      %v1596 = vunpack.c.l.b16 %v240
      %v1597 = vunpack.c.h.b16 %v240
      %v1598 = vunpack.c.l.b16 %v241
      %v1599 = vunpack.c.h.b16 %v241
      %v1600 = vunpack.c.l.b16 %v242
      %v1601 = vunpack.c.l.b16 %v243
      %v1602 = vunpack.c.h.b16 %v243
      %v1603 = vunpack.c.l.b16 %v244
      %v1604 = vunpack.c.h.b16 %v244
      %v1605 = vunpack.c.l.b16 %v245
      %v1606 = vunpack.c.h.b16 %v245
      %v1607 = vunpack.c.l.b16 %v246
      %v1608 = vunpack.c.h.b16 %v246
      %v1609 = vunpack.c.l.b16 %v247
      %v1610 = vunpack.c.h.b16 %v247
      %v1611 = vunpack.c.l.b16 %v248
      %v1612 = vunpack.c.h.b16 %v248
      %v1613 = vunpack.c.l.b16 %v249
      %v1614 = vunpack.c.h.b16 %v249
      %v1615 = vunpack.c.l.b16 %v250
      %v1616 = vunpack.c.h.b16 %v250
      %v1617 = vunpack.c.l.b16 %v251
      %v1618 = vunpack.c.h.b16 %v251
      %v1619 = vunpack.c.l.b16 %v252
      %v1620 = vunpack.c.h.b16 %v252
      %v1621 = vunpack.c.l.b16 %v253
      %v1622 = vunpack.c.h.b16 %v253
      %v1623 = vunpack.c.l.b16 %v254
      %v1624 = vunpack.c.h.b16 %v254
      %v1625 = vunpack.c.l.b16 %v255
      %v1626 = vunpack.c.h.b16 %v255
      %v1627 = vunpack.c.l.b16 %v256
      %v1628 = vunpack.c.l.b16 %v257
      %v1629 = vunpack.c.h.b16 %v257
      %v1630 = vunpack.c.l.b16 %v258
      %v1631 = vunpack.c.h.b16 %v258
      %v1632 = vunpack.c.l.b16 %v259
      %v1633 = vunpack.c.h.b16 %v259
      %v1634 = vunpack.c.l.b16 %v260
      %v1635 = vunpack.c.h.b16 %v260
      %v1636 = vunpack.c.l.b16 %v261
      %v1637 = vunpack.c.h.b16 %v261
      %v1638 = vunpack.c.l.b16 %v262
      %v1639 = vunpack.c.h.b16 %v262
      %v1640 = vunpack.c.l.b16 %v263
      %v1641 = vunpack.c.h.b16 %v263
      %v1642 = vunpack.c.l.b16 %v264
      %v1643 = vunpack.c.h.b16 %v264
      %v1644 = vunpack.c.l.b16 %v265
      %v1645 = vunpack.c.h.b16 %v265
      %v1646 = vunpack.c.l.b16 %v266
      %v1647 = vunpack.c.h.b16 %v266
      %v1648 = vunpack.c.l.b16 %v267
      %v1649 = vunpack.c.h.b16 %v267
      %v1650 = vunpack.c.l.b16 %v268
      %v1651 = vunpack.c.h.b16 %v268
      %v1652 = vunpack.c.l.b16 %v269
      %v1653 = vunpack.c.h.b16 %v269
      %v1654 = vunpack.c.l.b16 %v270
      %v1655 = vunpack.c.l.b16 %v271
      %v1656 = vunpack.c.h.b16 %v271
      %v1657 = vunpack.c.l.b16 %v272
      %v1658 = vunpack.c.h.b16 %v272
      %v1659 = vunpack.c.l.b16 %v273
      %v1660 = vunpack.c.h.b16 %v273
      %v1661 = vunpack.c.l.b16 %v274
      %v1662 = vunpack.c.h.b16 %v274
      %v1663 = vunpack.c.l.b16 %v275
      %v1664 = vunpack.c.h.b16 %v275
      %v1665 = vunpack.c.l.b16 %v276
      %v1666 = vunpack.c.h.b16 %v276
      %v1667 = vunpack.c.l.b16 %v277
      %v1668 = vunpack.c.h.b16 %v277
      %v1669 = vunpack.c.l.b16 %v278
      %v1670 = vunpack.c.h.b16 %v278
      %v1671 = vunpack.c.l.b16 %v279
      %v1672 = vunpack.c.h.b16 %v279
      %v1673 = vunpack.c.l.b16 %v280
      %v1674 = vunpack.c.h.b16 %v280
      %v1675 = vunpack.c.l.b16 %v281
      %v1676 = vunpack.c.h.b16 %v281
      %v1677 = vunpack.c.l.b16 %v282
      %v1678 = vunpack.c.h.b16 %v282
      %v1679 = vunpack.c.l.b16 %v283
      %v1680 = vunpack.c.h.b16 %v283
      %v1681 = vunpack.c.l.b16 %v284
      %v1682 = vunpack.c.l.b16 %v285
      %v1683 = vunpack.c.h.b16 %v285
      %v1684 = vunpack.c.l.b16 %v286
      %v1685 = vunpack.c.h.b16 %v286
      %v1686 = vunpack.c.l.b16 %v287
      %v1687 = vunpack.c.h.b16 %v287
      %v1688 = vunpack.c.l.b16 %v288
      %v1689 = vunpack.c.h.b16 %v288
      %v1690 = vunpack.c.l.b16 %v289
      %v1691 = vunpack.c.h.b16 %v289
      %v1692 = vunpack.c.l.b16 %v290
      %v1693 = vunpack.c.h.b16 %v290
      %v1694 = vunpack.c.l.b16 %v291
      %v1695 = vunpack.c.h.b16 %v291
      %v1696 = vunpack.c.l.b16 %v292
      %v1697 = vunpack.c.h.b16 %v292
      %v1698 = vunpack.c.l.b16 %v293
      %v1699 = vunpack.c.h.b16 %v293
      %v1700 = vunpack.c.l.b16 %v294
      %v1701 = vunpack.c.h.b16 %v294
      %v1702 = vunpack.c.l.b16 %v295
      %v1703 = vunpack.c.h.b16 %v295
      %v1704 = vunpack.c.l.b16 %v296
      %v1705 = vunpack.c.h.b16 %v296
      %v1706 = vunpack.c.l.b16 %v297
      %v1707 = vunpack.c.h.b16 %v297
      %v1708 = vunpack.c.l.b16 %v298
      %v1709 = vunpack.c.l.b16 %v299
      %v1710 = vunpack.c.h.b16 %v299
      %v1711 = vunpack.c.l.b16 %v300
      %v1712 = vunpack.c.h.b16 %v300
      %v1713 = vunpack.c.l.b16 %v301
      %v1714 = vunpack.c.h.b16 %v301
      %v1715 = vunpack.c.l.b16 %v302
      %v1716 = vunpack.c.h.b16 %v302
      %v1717 = vunpack.c.l.b16 %v303
      %v1718 = vunpack.c.h.b16 %v303
      %v1719 = vunpack.c.l.b16 %v304
      %v1720 = vunpack.c.h.b16 %v304
      %v1721 = vunpack.c.l.b16 %v305
      %v1722 = vunpack.c.h.b16 %v305
      %v1723 = vunpack.c.l.b16 %v306
      %v1724 = vunpack.c.h.b16 %v306
      %v1725 = vunpack.c.l.b16 %v307
      %v1726 = vunpack.c.h.b16 %v307
      %v1727 = vunpack.c.l.b16 %v308
      %v1728 = vunpack.c.h.b16 %v308
      %v1729 = vunpack.c.l.b16 %v309
      %v1730 = vunpack.c.h.b16 %v309
      %v1731 = vunpack.c.l.b16 %v310
      %v1732 = vunpack.c.h.b16 %v310
      %v1733 = vunpack.c.l.b16 %v311
      %v1734 = vunpack.c.h.b16 %v311
      %v1735 = vunpack.c.l.b16 %v312
      %v1736 = vunpack.c.l.b16 %v313
      %v1737 = vunpack.c.h.b16 %v313
      %v1738 = vunpack.c.l.b16 %v314
      %v1739 = vunpack.c.h.b16 %v314
      %v1740 = vunpack.c.l.b16 %v315
      %v1741 = vunpack.c.h.b16 %v315
      %v1742 = vunpack.c.l.b16 %v316
      %v1743 = vunpack.c.h.b16 %v316
      %v1744 = vunpack.c.l.b16 %v317
      %v1745 = vunpack.c.h.b16 %v317
      %v1746 = vunpack.c.l.b16 %v318
      %v1747 = vunpack.c.h.b16 %v318
      %v1748 = vunpack.c.l.b16 %v319
      %v1749 = vunpack.c.h.b16 %v319
      %v1750 = vunpack.c.l.b16 %v320
      %v1751 = vunpack.c.h.b16 %v320
      %v1752 = vunpack.c.l.b16 %v321
      %v1753 = vunpack.c.h.b16 %v321
      %v1754 = vunpack.c.l.b16 %v322
      %v1755 = vunpack.c.h.b16 %v322
      %v1756 = vunpack.c.l.b16 %v323
      %v1757 = vunpack.c.h.b16 %v323
      %v1758 = vunpack.c.l.b16 %v324
      %v1759 = vunpack.c.h.b16 %v324
      %v1760 = vunpack.c.l.b16 %v325
      %v1761 = vunpack.c.h.b16 %v325
      %v1762 = vunpack.c.l.b16 %v326
      %v1763 = vunpack.c.l.b16 %v327
      %v1764 = vunpack.c.h.b16 %v327
      %v1765 = vunpack.c.l.b16 %v328
      %v1766 = vunpack.c.h.b16 %v328
      %v1767 = vunpack.c.l.b16 %v329
      %v1768 = vunpack.c.h.b16 %v329
      %v1769 = vunpack.c.l.b16 %v330
      %v1770 = vunpack.c.h.b16 %v330
      %v1771 = vunpack.c.l.b16 %v331
      %v1772 = vunpack.c.h.b16 %v331
      %v1773 = vunpack.c.l.b16 %v332
      %v1774 = vunpack.c.h.b16 %v332
      %v1775 = vunpack.c.l.b16 %v333
      %v1776 = vunpack.c.h.b16 %v333
      %v1777 = vunpack.c.l.b16 %v334
      %v1778 = vunpack.c.h.b16 %v334
      %v1779 = vunpack.c.l.b16 %v335
      %v1780 = vunpack.c.h.b16 %v335
      %v1781 = vunpack.c.l.b16 %v336
      %v1782 = vunpack.c.h.b16 %v336
      %v1783 = vunpack.c.l.b16 %v337
      %v1784 = vunpack.c.h.b16 %v337
      %v1785 = vunpack.c.l.b16 %v338
      %v1786 = vunpack.c.h.b16 %v338
      %v1787 = vunpack.c.l.b16 %v339
      %v1788 = vunpack.c.h.b16 %v339
      %v1789 = vunpack.c.l.b16 %v340
      %v1790 = vunpack.c.l.b16 %v341
      %v1791 = vunpack.c.h.b16 %v341
      %v1792 = vunpack.c.l.b16 %v342
      %v1793 = vunpack.c.h.b16 %v342
      %v1794 = vunpack.c.l.b16 %v343
      %v1795 = vunpack.c.h.b16 %v343
      %v1796 = vunpack.c.l.b16 %v344
      %v1797 = vunpack.c.h.b16 %v344
      %v1798 = vunpack.c.l.b16 %v345
      %v1799 = vunpack.c.h.b16 %v345
      %v1800 = vunpack.c.l.b16 %v346
      %v1801 = vunpack.c.h.b16 %v346
      %v1802 = vunpack.c.l.b16 %v347
      %v1803 = vunpack.c.h.b16 %v347
      %v1804 = vunpack.c.l.b16 %v348
      %v1805 = vunpack.c.h.b16 %v348
      %v1806 = vunpack.c.l.b16 %v349
      %v1807 = vunpack.c.h.b16 %v349
      %v1808 = vunpack.c.l.b16 %v350
      %v1809 = vunpack.c.h.b16 %v350
      %v1810 = vunpack.c.l.b16 %v351
      %v1811 = vunpack.c.h.b16 %v351
      %v1812 = vunpack.c.l.b16 %v352
      %v1813 = vunpack.c.h.b16 %v352
      %v1814 = vunpack.c.l.b16 %v353
      %v1815 = vunpack.c.h.b16 %v353
      %v1816 = vunpack.c.l.b16 %v354
      %v1817 = vunpack.c.l.b16 %v355
      %v1818 = vunpack.c.h.b16 %v355
      %v1819 = vunpack.c.l.b16 %v356
      %v1820 = vunpack.c.h.b16 %v356
      %v1821 = vunpack.c.l.b16 %v357
      %v1822 = vunpack.c.h.b16 %v357
      %v1823 = vunpack.c.l.b16 %v358
      %v1824 = vunpack.c.h.b16 %v358
      %v1825 = vunpack.c.l.b16 %v359
      %v1826 = vunpack.c.h.b16 %v359
      %v1827 = vunpack.c.l.b16 %v360
      %v1828 = vunpack.c.h.b16 %v360
      %v1829 = vunpack.c.l.b16 %v361
      %v1830 = vunpack.c.h.b16 %v361
      %v1831 = vunpack.c.l.b16 %v362
      %v1832 = vunpack.c.h.b16 %v362
      %v1833 = vunpack.c.l.b16 %v363
      %v1834 = vunpack.c.h.b16 %v363
      %v1835 = vunpack.c.l.b16 %v364
      %v1836 = vunpack.c.h.b16 %v364
      %v1837 = vunpack.c.l.b16 %v365
      %v1838 = vunpack.c.h.b16 %v365
      %v1839 = vunpack.c.l.b16 %v366
      %v1840 = vunpack.c.h.b16 %v366
      %v1841 = vunpack.c.l.b16 %v367
      %v1842 = vunpack.c.h.b16 %v367
      %v1843 = vunpack.c.l.b16 %v368
      %v1844 = vunpack.c.l.b16 %v369
      %v1845 = vunpack.c.h.b16 %v369
      %v1846 = vunpack.c.l.b16 %v370
      %v1847 = vunpack.c.h.b16 %v370
      %v1848 = vunpack.c.l.b16 %v371
      %v1849 = vunpack.c.h.b16 %v371
      %v1850 = vunpack.c.l.b16 %v372
      %v1851 = vunpack.c.h.b16 %v372
      %v1852 = vunpack.c.l.b16 %v373
      %v1853 = vunpack.c.h.b16 %v373
      %v1854 = vunpack.c.l.b16 %v374
      %v1855 = vunpack.c.h.b16 %v374
      %v1856 = vunpack.c.l.b16 %v375
      %v1857 = vunpack.c.h.b16 %v375
      %v1858 = vunpack.c.l.b16 %v376
      %v1859 = vunpack.c.h.b16 %v376
      %v1860 = vunpack.c.l.b16 %v377
      %v1861 = vunpack.c.h.b16 %v377
      %v1862 = vunpack.c.l.b16 %v378
      %v1863 = vunpack.c.h.b16 %v378
      %v1864 = vunpack.c.l.b16 %v379
      %v1865 = vunpack.c.h.b16 %v379
      %v1866 = vunpack.c.l.b16 %v380
      %v1867 = vunpack.c.h.b16 %v380
      %v1868 = vunpack.c.l.b16 %v381
      %v1869 = vunpack.c.h.b16 %v381
      %v1870 = vunpack.c.l.b16 %v382
      %v1871 = vunpack.c.l.b16 %v383
      %v1872 = vunpack.c.h.b16 %v383
      %v1873 = vunpack.c.l.b16 %v384
      %v1874 = vunpack.c.h.b16 %v384
      %v1875 = vunpack.c.l.b16 %v385
      %v1876 = vunpack.c.h.b16 %v385
      %v1877 = vunpack.c.l.b16 %v386
      %v1878 = vunpack.c.h.b16 %v386
      %v1879 = vunpack.c.l.b16 %v387
      %v1880 = vunpack.c.h.b16 %v387
      %v1881 = vunpack.c.l.b16 %v388
      %v1882 = vunpack.c.h.b16 %v388
      %v1883 = vunpack.c.l.b16 %v389
      %v1884 = vunpack.c.h.b16 %v389
      %v1885 = vunpack.c.l.b16 %v390
      %v1886 = vunpack.c.h.b16 %v390
      %v1887 = vunpack.c.l.b16 %v391
      %v1888 = vunpack.c.h.b16 %v391
      %v1889 = vunpack.c.l.b16 %v392
      %v1890 = vunpack.c.h.b16 %v392
      %v1891 = vunpack.c.l.b16 %v393
      %v1892 = vunpack.c.h.b16 %v393
      %v1893 = vunpack.c.l.b16 %v394
      %v1894 = vunpack.c.h.b16 %v394
      %v1895 = vunpack.c.l.b16 %v395
      %v1896 = vunpack.c.h.b16 %v395
      %v1897 = vunpack.c.l.b16 %v396
      %v1898 = vunpack.c.l.b16 %v397
      %v1899 = vunpack.c.h.b16 %v397
      %v1900 = vunpack.c.l.b16 %v398
      %v1901 = vunpack.c.h.b16 %v398
      %v1902 = vunpack.c.l.b16 %v399
      %v1903 = vunpack.c.h.b16 %v399
      %v1904 = vunpack.c.l.b16 %v400
      %v1905 = vunpack.c.h.b16 %v400
      %v1906 = vunpack.c.l.b16 %v401
      %v1907 = vunpack.c.h.b16 %v401
      %v1908 = vunpack.c.l.b16 %v402
      %v1909 = vunpack.c.h.b16 %v402
      %v1910 = vunpack.c.l.b16 %v403
      %v1911 = vunpack.c.h.b16 %v403
      %v1912 = vunpack.c.l.b16 %v404
      %v1913 = vunpack.c.h.b16 %v404
      %v1914 = vunpack.c.l.b16 %v405
      %v1915 = vunpack.c.h.b16 %v405
      %v1916 = vunpack.c.l.b16 %v406
      %v1917 = vunpack.c.h.b16 %v406
      %v1918 = vunpack.c.l.b16 %v407
      %v1919 = vunpack.c.h.b16 %v407
      %v1920 = vunpack.c.l.b16 %v408
      %v1921 = vunpack.c.h.b16 %v408
      %v1922 = vunpack.c.l.b16 %v409
      %v1923 = vunpack.c.h.b16 %v409
      %v1924 = vunpack.c.l.b16 %v410
      %v1925 = vunpack.c.l.b16 %v411
      %v1926 = vunpack.c.h.b16 %v411
      %v1927 = vunpack.c.l.b16 %v412
      %v1928 = vunpack.c.h.b16 %v412
      %v1929 = vunpack.c.l.b16 %v413
      %v1930 = vunpack.c.h.b16 %v413
      %v1931 = vunpack.c.l.b16 %v414
      %v1932 = vunpack.c.h.b16 %v414
      %v1933 = vunpack.c.l.b16 %v415
      %v1934 = vunpack.c.h.b16 %v415
      %v1935 = vunpack.c.l.b16 %v416
      %v1936 = vunpack.c.h.b16 %v416
      %v1937 = vunpack.c.l.b16 %v417
      %v1938 = vunpack.c.h.b16 %v417
      %v1939 = vunpack.c.l.b16 %v418
      %v1940 = vunpack.c.h.b16 %v418
      %v1941 = vunpack.c.l.b16 %v419
      %v1942 = vunpack.c.h.b16 %v419
      %v1943 = vunpack.c.l.b16 %v420
      %v1944 = vunpack.c.h.b16 %v420
      %v1945 = vunpack.c.l.b16 %v421
      %v1946 = vunpack.c.h.b16 %v421
      %v1947 = vunpack.c.l.b16 %v422
      %v1948 = vunpack.c.h.b16 %v422
      %v1949 = vunpack.c.l.b16 %v423
      %v1950 = vunpack.c.h.b16 %v423
      %v1951 = vunpack.c.l.b16 %v424
      %v1952 = vunpack.c.l.b16 %v425
      %v1953 = vunpack.c.h.b16 %v425
      %v1954 = vunpack.c.l.b16 %v426
      %v1955 = vunpack.c.h.b16 %v426
      %v1956 = vunpack.c.l.b16 %v427
      %v1957 = vunpack.c.h.b16 %v427
      %v1958 = vunpack.c.l.b16 %v428
      %v1959 = vunpack.c.h.b16 %v428
      %v1960 = vunpack.c.l.b16 %v429
      %v1961 = vunpack.c.h.b16 %v429
      %v1962 = vunpack.c.l.b16 %v430
      %v1963 = vunpack.c.h.b16 %v430
      %v1964 = vunpack.c.l.b16 %v431
      %v1965 = vunpack.c.h.b16 %v431
      %v1966 = vunpack.c.l.b16 %v432
      %v1967 = vunpack.c.h.b16 %v432
      %v1968 = vunpack.c.l.b16 %v433
      %v1969 = vunpack.c.h.b16 %v433
      %v1970 = vunpack.c.l.b16 %v434
      %v1971 = vunpack.c.h.b16 %v434
      %v1972 = vunpack.c.l.b16 %v435
      %v1973 = vunpack.c.h.b16 %v435
      %v1974 = vunpack.c.l.b16 %v436
      %v1975 = vunpack.c.h.b16 %v436
      %v1976 = vunpack.c.l.b16 %v437
      %v1977 = vunpack.c.h.b16 %v437
      %v1978 = vunpack.c.l.b16 %v438
      %v1979 = vunpack.c.l.b16 %v439
      %v1980 = vunpack.c.h.b16 %v439
      %v1981 = vunpack.c.l.b16 %v440
      %v1982 = vunpack.c.h.b16 %v440
      %v1983 = vunpack.c.l.b16 %v441
      %v1984 = vunpack.c.h.b16 %v441
      %v1985 = vunpack.c.l.b16 %v442
      %v1986 = vunpack.c.h.b16 %v442
      %v1987 = vunpack.c.l.b16 %v443
      %v1988 = vunpack.c.h.b16 %v443
      %v1989 = vunpack.c.l.b16 %v444
      %v1990 = vunpack.c.h.b16 %v444
      %v1991 = vunpack.c.l.b16 %v445
      %v1992 = vunpack.c.h.b16 %v445
      %v1993 = vunpack.c.l.b16 %v446
      %v1994 = vunpack.c.h.b16 %v446
      %v1995 = vunpack.c.l.b16 %v447
      %v1996 = vunpack.c.h.b16 %v447
      %v1997 = vunpack.c.l.b16 %v448
      %v1998 = vunpack.c.h.b16 %v448
      %v1999 = vunpack.c.l.b16 %v449
      %v2000 = vunpack.c.h.b16 %v449
      %v2001 = vunpack.c.l.b16 %v450
      %v2002 = vunpack.c.h.b16 %v450
      %v2003 = vunpack.c.l.b16 %v451
      %v2004 = vunpack.c.h.b16 %v451
      %v2005 = vunpack.c.l.b16 %v452
      %v2006 = vunpack.c.l.b16 %v453
      %v2007 = vunpack.c.h.b16 %v453
      %v2008 = vunpack.c.l.b16 %v454
      %v2009 = vunpack.c.h.b16 %v454
      %v2010 = vunpack.c.l.b16 %v455
      %v2011 = vunpack.c.h.b16 %v455
      %v2012 = vunpack.c.l.b16 %v456
      %v2013 = vunpack.c.h.b16 %v456
      %v2014 = vunpack.c.l.b16 %v457
      %v2015 = vunpack.c.h.b16 %v457
      %v2016 = vunpack.c.l.b16 %v458
      %v2017 = vunpack.c.h.b16 %v458
      %v2018 = vunpack.c.l.b16 %v459
      %v2019 = vunpack.c.h.b16 %v459
      %v2020 = vunpack.c.l.b16 %v460
      %v2021 = vunpack.c.h.b16 %v460
      %v2022 = vunpack.c.l.b16 %v461
      %v2023 = vunpack.c.h.b16 %v461
      %v2024 = vunpack.c.l.b16 %v462
      %v2025 = vunpack.c.h.b16 %v462
      %v2026 = vunpack.c.l.b16 %v463
      %v2027 = vunpack.c.h.b16 %v463
      %v2028 = vunpack.c.l.b16 %v464
      %v2029 = vunpack.c.h.b16 %v464
      %v2030 = vunpack.c.l.b16 %v465
      %v2031 = vunpack.c.h.b16 %v465
      %v2032 = vunpack.c.l.b16 %v466
      %v2033 = vunpack.c.l.b16 %v467
      %v2034 = vunpack.c.h.b16 %v467
      %v2035 = vunpack.c.l.b16 %v468
      %v2036 = vunpack.c.h.b16 %v468
      %v2037 = vunpack.c.l.b16 %v469
      %v2038 = vunpack.c.h.b16 %v469
      %v2039 = vunpack.c.l.b16 %v470
      %v2040 = vunpack.c.h.b16 %v470
      %v2041 = vunpack.c.l.b16 %v471
      %v2042 = vunpack.c.h.b16 %v471
      %v2043 = vunpack.c.l.b16 %v472
      %v2044 = vunpack.c.h.b16 %v472
      %v2045 = vunpack.c.l.b16 %v473
      %v2046 = vunpack.c.h.b16 %v473
      %v2047 = vunpack.c.l.b16 %v474
      %v2048 = vunpack.c.h.b16 %v474
      %v2049 = vunpack.c.l.b16 %v475
      %v2050 = vunpack.c.h.b16 %v475
      %v2051 = vunpack.c.l.b16 %v476
      %v2052 = vunpack.c.h.b16 %v476
      %v2053 = vunpack.c.l.b16 %v477
      %v2054 = vunpack.c.h.b16 %v477
      %v2055 = vunpack.c.l.b16 %v478
      %v2056 = vunpack.c.h.b16 %v478
      %v2057 = vunpack.c.l.b16 %v479
      %v2058 = vunpack.c.h.b16 %v479
      %v2059 = vunpack.c.l.b16 %v480
      %v2060 = vunpack.c.l.b16 %v481
      %v2061 = vunpack.c.h.b16 %v481
      %v2062 = vunpack.c.l.b16 %v482
      %v2063 = vunpack.c.h.b16 %v482
      %v2064 = vunpack.c.l.b16 %v483
      %v2065 = vunpack.c.h.b16 %v483
      %v2066 = vunpack.c.l.b16 %v484
      %v2067 = vunpack.c.h.b16 %v484
      %v2068 = vunpack.c.l.b16 %v485
      %v2069 = vunpack.c.h.b16 %v485
      %v2070 = vunpack.c.l.b16 %v486
      %v2071 = vunpack.c.h.b16 %v486
      %v2072 = vunpack.c.l.b16 %v487
      %v2073 = vunpack.c.h.b16 %v487
      %v2074 = vunpack.c.l.b16 %v488
      %v2075 = vunpack.c.h.b16 %v488
      %v2076 = vunpack.c.l.b16 %v489
      %v2077 = vunpack.c.h.b16 %v489
      %v2078 = vunpack.c.l.b16 %v490
      %v2079 = vunpack.c.h.b16 %v490
      %v2080 = vunpack.c.l.b16 %v491
      %v2081 = vunpack.c.h.b16 %v491
      %v2082 = vunpack.c.l.b16 %v492
      %v2083 = vunpack.c.h.b16 %v492
      %v2084 = vunpack.c.l.b16 %v493
      %v2085 = vunpack.c.h.b16 %v493
      %v2086 = vunpack.c.l.b16 %v494
      %v2087 = vunpack.c.l.b16 %v495
      %v2088 = vunpack.c.h.b16 %v495
      %v2089 = vunpack.c.l.b16 %v496
      %v2090 = vunpack.c.h.b16 %v496
      %v2091 = vunpack.c.l.b16 %v497
      %v2092 = vunpack.c.h.b16 %v497
      %v2093 = vunpack.c.l.b16 %v498
      %v2094 = vunpack.c.h.b16 %v498
      %v2095 = vunpack.c.l.b16 %v499
      %v2096 = vunpack.c.h.b16 %v499
      %v2097 = vunpack.c.l.b16 %v500
      %v2098 = vunpack.c.h.b16 %v500
      %v2099 = vunpack.c.l.b16 %v501
      %v2100 = vunpack.c.h.b16 %v501
      %v2101 = vunpack.c.l.b16 %v502
      %v2102 = vunpack.c.h.b16 %v502
      %v2103 = vunpack.c.l.b16 %v503
      %v2104 = vunpack.c.h.b16 %v503
      %v2105 = vunpack.c.l.b16 %v504
      %v2106 = vunpack.c.h.b16 %v504
      %v2107 = vunpack.c.l.b16 %v505
      %v2108 = vunpack.c.h.b16 %v505
      %v2109 = vunpack.c.l.b16 %v506
      %v2110 = vunpack.c.h.b16 %v506
      %v2111 = vunpack.c.l.b16 %v507
      %v2112 = vunpack.c.h.b16 %v507
      %v2113 = vunpack.c.l.b16 %v508
      %v2114 = vunpack.c.l.b16 %v509
      %v2115 = vunpack.c.h.b16 %v509
      %v2116 = vunpack.c.l.b16 %v510
      %v2117 = vunpack.c.h.b16 %v510
      %v2118 = vunpack.c.l.b16 %v511
      %v2119 = vunpack.c.h.b16 %v511
      %v2120 = vunpack.c.l.b16 %v512
      %v2121 = vunpack.c.h.b16 %v512
      %v2122 = vunpack.c.l.b16 %v513
      %v2123 = vunpack.c.h.b16 %v513
      %v2124 = vunpack.c.l.b16 %v514
      %v2125 = vunpack.c.h.b16 %v514
      %v2126 = vunpack.c.l.b16 %v515
      %v2127 = vunpack.c.h.b16 %v515
      %v2128 = vunpack.c.l.b16 %v516
      %v2129 = vunpack.c.h.b16 %v516
      %v2130 = vunpack.c.l.b16 %v517
      %v2131 = vunpack.c.h.b16 %v517
      %v2132 = vunpack.c.l.b16 %v518
      %v2133 = vunpack.c.h.b16 %v518
      %v2134 = vunpack.c.l.b16 %v519
      %v2135 = vunpack.c.h.b16 %v519
      %v2136 = vunpack.c.l.b16 %v520
      %v2137 = vunpack.c.h.b16 %v520
      %v2138 = vunpack.c.l.b16 %v521
      %v2139 = vunpack.c.h.b16 %v521
      %v2140 = vunpack.c.l.b16 %v522
      %v2141 = vunpack.c.l.b16 %v523
      %v2142 = vunpack.c.h.b16 %v523
      %v2143 = vunpack.c.l.b16 %v524
      %v2144 = vunpack.c.h.b16 %v524
      %v2145 = vunpack.c.l.b16 %v525
      %v2146 = vunpack.c.h.b16 %v525
      %v2147 = vunpack.c.l.b16 %v526
      %v2148 = vunpack.c.h.b16 %v526
      %v2149 = vunpack.c.l.b16 %v527
      %v2150 = vunpack.c.h.b16 %v527
      %v2151 = vunpack.c.l.b16 %v528
      %v2152 = vunpack.c.h.b16 %v528
      %v2153 = vunpack.c.l.b16 %v529
      %v2154 = vunpack.c.h.b16 %v529
      %v2155 = vunpack.c.l.b16 %v530
      %v2156 = vunpack.c.h.b16 %v530
      %v2157 = vunpack.c.l.b16 %v531
      %v2158 = vunpack.c.h.b16 %v531
      %v2159 = vunpack.c.l.b16 %v532
      %v2160 = vunpack.c.h.b16 %v532
      %v2161 = vunpack.c.l.b16 %v533
      %v2162 = vunpack.c.h.b16 %v533
      %v2163 = vunpack.c.l.b16 %v534
      %v2164 = vunpack.c.h.b16 %v534
      %v2165 = vunpack.c.l.b16 %v535
      %v2166 = vunpack.c.h.b16 %v535
      %v2167 = vunpack.c.l.b16 %v536
      %v2168 = vunpack.c.l.b16 %v537
      %v2169 = vunpack.c.h.b16 %v537
      %v2170 = vunpack.c.l.b16 %v538
      %v2171 = vunpack.c.h.b16 %v538
      %v2172 = vunpack.c.l.b16 %v539
      %v2173 = vunpack.c.h.b16 %v539
      %v2174 = vunpack.c.l.b16 %v540
      %v2175 = vunpack.c.h.b16 %v540
      %v2176 = vunpack.c.l.b16 %v541
      %v2177 = vunpack.c.h.b16 %v541
      %v2178 = vunpack.c.l.b16 %v542
      %v2179 = vunpack.c.h.b16 %v542
      %v2180 = vunpack.c.l.b16 %v543
      %v2181 = vunpack.c.h.b16 %v543
      %v2182 = vunpack.c.l.b16 %v544
      %v2183 = vunpack.c.h.b16 %v544
      %v2184 = vunpack.c.l.b16 %v545
      %v2185 = vunpack.c.h.b16 %v545
      %v2186 = vunpack.c.l.b16 %v546
      %v2187 = vunpack.c.h.b16 %v546
      %v2188 = vunpack.c.l.b16 %v547
      %v2189 = vunpack.c.h.b16 %v547
      %v2190 = vunpack.c.l.b16 %v548
      %v2191 = vunpack.c.h.b16 %v548
      %v2192 = vunpack.c.l.b16 %v549
      %v2193 = vunpack.c.h.b16 %v549
      %v2194 = vunpack.c.l.b16 %v550
      %v2195 = vunpack.c.l.b16 %v551
      %v2196 = vunpack.c.h.b16 %v551
      %v2197 = vunpack.c.l.b16 %v552
      %v2198 = vunpack.c.h.b16 %v552
      %v2199 = vunpack.c.l.b16 %v553
      %v2200 = vunpack.c.h.b16 %v553
      %v2201 = vunpack.c.l.b16 %v554
      %v2202 = vunpack.c.h.b16 %v554
      %v2203 = vunpack.c.l.b16 %v555
      %v2204 = vunpack.c.h.b16 %v555
      %v2205 = vunpack.c.l.b16 %v556
      %v2206 = vunpack.c.h.b16 %v556
      %v2207 = vunpack.c.l.b16 %v557
      %v2208 = vunpack.c.h.b16 %v557
      %v2209 = vunpack.c.l.b16 %v558
      %v2210 = vunpack.c.h.b16 %v558
      %v2211 = vunpack.c.l.b16 %v559
      %v2212 = vunpack.c.h.b16 %v559
      %v2213 = vunpack.c.l.b16 %v560
      %v2214 = vunpack.c.h.b16 %v560
      %v2215 = vunpack.c.l.b16 %v561
      %v2216 = vunpack.c.h.b16 %v561
      %v2217 = vunpack.c.l.b16 %v562
      %v2218 = vunpack.c.h.b16 %v562
      %v2219 = vunpack.c.l.b16 %v563
      %v2220 = vunpack.c.h.b16 %v563
      %v2221 = vunpack.c.l.b16 %v564
      %v2222 = vunpack.c.l.b16 %v565
      %v2223 = vunpack.c.h.b16 %v565
      %v2224 = vunpack.c.l.b16 %v566
      %v2225 = vunpack.c.h.b16 %v566
      %v2226 = vunpack.c.l.b16 %v567
      %v2227 = vunpack.c.h.b16 %v567
      %v2228 = vunpack.c.l.b16 %v568
      %v2229 = vunpack.c.h.b16 %v568
      %v2230 = vunpack.c.l.b16 %v569
      %v2231 = vunpack.c.h.b16 %v569
      %v2232 = vunpack.c.l.b16 %v570
      %v2233 = vunpack.c.h.b16 %v570
      %v2234 = vunpack.c.l.b16 %v571
      %v2235 = vunpack.c.h.b16 %v571
      %v2236 = vunpack.c.l.b16 %v572
      %v2237 = vunpack.c.h.b16 %v572
      %v2238 = vunpack.c.l.b16 %v573
      %v2239 = vunpack.c.h.b16 %v573
      %v2240 = vunpack.c.l.b16 %v574
      %v2241 = vunpack.c.h.b16 %v574
      %v2242 = vunpack.c.l.b16 %v575
      %v2243 = vunpack.c.h.b16 %v575
      %v2244 = vunpack.c.l.b16 %v576
      %v2245 = vunpack.c.h.b16 %v576
      %v2246 = vunpack.c.l.b16 %v577
      %v2247 = vunpack.c.h.b16 %v577
      %v2248 = vunpack.c.l.b16 %v578
      %v2249 = vunpack.c.l.b16 %v579
      %v2250 = vunpack.c.h.b16 %v579
      %v2251 = vunpack.c.l.b16 %v580
      %v2252 = vunpack.c.h.b16 %v580
      %v2253 = vunpack.c.l.b16 %v581
      %v2254 = vunpack.c.h.b16 %v581
      %v2255 = vunpack.c.l.b16 %v582
      %v2256 = vunpack.c.h.b16 %v582
      %v2257 = vunpack.c.l.b16 %v583
      %v2258 = vunpack.c.h.b16 %v583
      %v2259 = vunpack.c.l.b16 %v584
      %v2260 = vunpack.c.h.b16 %v584
      %v2261 = vunpack.c.l.b16 %v585
      %v2262 = vunpack.c.h.b16 %v585
      %v2263 = vunpack.c.l.b16 %v586
      %v2264 = vunpack.c.h.b16 %v586
      %v2265 = vunpack.c.l.b16 %v587
      %v2266 = vunpack.c.h.b16 %v587
      %v2267 = vunpack.c.l.b16 %v588
      %v2268 = vunpack.c.h.b16 %v588
      %v2269 = vunpack.c.l.b16 %v589
      %v2270 = vunpack.c.h.b16 %v589
      %v2271 = vunpack.c.l.b16 %v590
      %v2272 = vunpack.c.h.b16 %v590
      %v2273 = vunpack.c.l.b16 %v591
      %v2274 = vunpack.c.h.b16 %v591
      %v2275 = vunpack.c.l.b16 %v592
      %v2276 = vunpack.c.l.b16 %v593
      %v2277 = vunpack.c.h.b16 %v593
      %v2278 = vunpack.c.l.b16 %v594
      %v2279 = vunpack.c.h.b16 %v594
      %v2280 = vunpack.c.l.b16 %v595
      %v2281 = vunpack.c.h.b16 %v595
      %v2282 = vunpack.c.l.b16 %v596
      %v2283 = vunpack.c.h.b16 %v596
      %v2284 = vunpack.c.l.b16 %v597
      %v2285 = vunpack.c.h.b16 %v597
      %v2286 = vunpack.c.l.b16 %v598
      %v2287 = vunpack.c.h.b16 %v598
      %v2288 = vunpack.c.l.b16 %v599
      %v2289 = vunpack.c.h.b16 %v599
      %v2290 = vunpack.c.l.b16 %v600
      %v2291 = vunpack.c.h.b16 %v600
      %v2292 = vunpack.c.l.b16 %v601
      %v2293 = vunpack.c.h.b16 %v601
      %v2294 = vunpack.c.l.b16 %v602
      %v2295 = vunpack.c.h.b16 %v602
      %v2296 = vunpack.c.l.b16 %v603
      %v2297 = vunpack.c.h.b16 %v603
      %v2298 = vunpack.c.l.b16 %v604
      %v2299 = vunpack.c.h.b16 %v604
      %v2300 = vunpack.c.l.b16 %v605
      %v2301 = vunpack.c.h.b16 %v605
      %v2302 = vunpack.c.l.b16 %v606
      %v2303 = vunpack.c.l.b16 %v607
      %v2304 = vunpack.c.h.b16 %v607
      %v2305 = vunpack.c.l.b16 %v608
      %v2306 = vunpack.c.h.b16 %v608
      %v2307 = vunpack.c.l.b16 %v609
      %v2308 = vunpack.c.h.b16 %v609
      %v2309 = vunpack.c.l.b16 %v610
      %v2310 = vunpack.c.h.b16 %v610
      %v2311 = vunpack.c.l.b16 %v611
      %v2312 = vunpack.c.h.b16 %v611
      %v2313 = vunpack.c.l.b16 %v612
      %v2314 = vunpack.c.h.b16 %v612
      %v2315 = vunpack.c.l.b16 %v613
      %v2316 = vunpack.c.h.b16 %v613
      %v2317 = vunpack.c.l.b16 %v614
      %v2318 = vunpack.c.h.b16 %v614
      %v2319 = vunpack.c.l.b16 %v615
      %v2320 = vunpack.c.h.b16 %v615
      %v2321 = vunpack.c.l.b16 %v616
      %v2322 = vunpack.c.h.b16 %v616
      %v2323 = vunpack.c.l.b16 %v617
      %v2324 = vunpack.c.h.b16 %v617
      %v2325 = vunpack.c.l.b16 %v618
      %v2326 = vunpack.c.h.b16 %v618
      %v2327 = vunpack.c.l.b16 %v619
      %v2328 = vunpack.c.h.b16 %v619
      %v2329 = vunpack.c.l.b16 %v620
      %v2330 = vunpack.c.l.b16 %v621
      %v2331 = vunpack.c.h.b16 %v621
      %v2332 = vunpack.c.l.b16 %v622
      %v2333 = vunpack.c.h.b16 %v622
      %v2334 = vunpack.c.l.b16 %v623
      %v2335 = vunpack.c.h.b16 %v623
      %v2336 = vunpack.c.l.b16 %v624
      %v2337 = vunpack.c.h.b16 %v624
      %v2338 = vunpack.c.l.b16 %v625
      %v2339 = vunpack.c.h.b16 %v625
      %v2340 = vunpack.c.l.b16 %v626
      %v2341 = vunpack.c.h.b16 %v626
      %v2342 = vunpack.c.l.b16 %v627
      %v2343 = vunpack.c.h.b16 %v627
      %v2344 = vunpack.c.l.b16 %v628
      %v2345 = vunpack.c.h.b16 %v628
      %v2346 = vunpack.c.l.b16 %v629
      %v2347 = vunpack.c.h.b16 %v629
      %v2348 = vunpack.c.l.b16 %v630
      %v2349 = vunpack.c.h.b16 %v630
      %v2350 = vunpack.c.l.b16 %v631
      %v2351 = vunpack.c.h.b16 %v631
      %v2352 = vunpack.c.l.b16 %v632
      %v2353 = vunpack.c.h.b16 %v632
      %v2354 = vunpack.c.l.b16 %v633
      %v2355 = vunpack.c.h.b16 %v633
      %v2356 = vunpack.c.l.b16 %v634
      %v2357 = vunpack.c.l.b16 %v635
      %v2358 = vunpack.c.h.b16 %v635
      %v2359 = vunpack.c.l.b16 %v636
      %v2360 = vunpack.c.h.b16 %v636
      %v2361 = vunpack.c.l.b16 %v637
      %v2362 = vunpack.c.h.b16 %v637
      %v2363 = vunpack.c.l.b16 %v638
      %v2364 = vunpack.c.h.b16 %v638
      %v2365 = vunpack.c.l.b16 %v639
      %v2366 = vunpack.c.h.b16 %v639
      %v2367 = vunpack.c.l.b16 %v640
      %v2368 = vunpack.c.h.b16 %v640
      %v2369 = vunpack.c.l.b16 %v641
      %v2370 = vunpack.c.h.b16 %v641
      %v2371 = vunpack.c.l.b16 %v642
      %v2372 = vunpack.c.h.b16 %v642
      %v2373 = vunpack.c.l.b16 %v643
      %v2374 = vunpack.c.h.b16 %v643
      %v2375 = vunpack.c.l.b16 %v644
      %v2376 = vunpack.c.h.b16 %v644
      %v2377 = vunpack.c.l.b16 %v645
      %v2378 = vunpack.c.h.b16 %v645
      %v2379 = vunpack.c.l.b16 %v646
      %v2380 = vunpack.c.h.b16 %v646
      %v2381 = vunpack.c.l.b16 %v647
      %v2382 = vunpack.c.h.b16 %v647
      %v2383 = vunpack.c.l.b16 %v648
      %v2384 = vunpack.c.l.b16 %v649
      %v2385 = vunpack.c.h.b16 %v649
      %v2386 = vunpack.c.l.b16 %v650
      %v2387 = vunpack.c.h.b16 %v650
      %v2388 = vunpack.c.l.b16 %v651
      %v2389 = vunpack.c.h.b16 %v651
      %v2390 = vunpack.c.l.b16 %v652
      %v2391 = vunpack.c.h.b16 %v652
      %v2392 = vunpack.c.l.b16 %v653
      %v2393 = vunpack.c.h.b16 %v653
      %v2394 = vunpack.c.l.b16 %v654
      %v2395 = vunpack.c.h.b16 %v654
      %v2396 = vunpack.c.l.b16 %v655
      %v2397 = vunpack.c.h.b16 %v655
      %v2398 = vunpack.c.l.b16 %v656
      %v2399 = vunpack.c.h.b16 %v656
      %v2400 = vunpack.c.l.b16 %v657
      %v2401 = vunpack.c.h.b16 %v657
      %v2402 = vunpack.c.l.b16 %v658
      %v2403 = vunpack.c.h.b16 %v658
      %v2404 = vunpack.c.l.b16 %v659
      %v2405 = vunpack.c.h.b16 %v659
      %v2406 = vunpack.c.l.b16 %v660
      %v2407 = vunpack.c.h.b16 %v660
      %v2408 = vunpack.c.l.b16 %v661
      %v2409 = vunpack.c.h.b16 %v661
      %v2410 = vunpack.c.l.b16 %v662
      %v2411 = vpack.c.b16 %v1574, %v1547
      %v2412 = vpack.c.b16 %v1575, %v1548
      %v2413 = vpack.c.b16 %v1576, %v1549
      %v2414 = vpack.c.b16 %v1577, %v1550
      %v2415 = vpack.c.b16 %v1578, %v1551
      %v2416 = vpack.c.b16 %v1579, %v1552
      %v2417 = vpack.c.b16 %v1580, %v1553
      %v2418 = vpack.c.b16 %v1581, %v1554
      %v2419 = vpack.c.b16 %v1582, %v1555
      %v2420 = vpack.c.b16 %v1583, %v1556
      %v2421 = vpack.c.b16 %v1584, %v1557
      %v2422 = vpack.c.b16 %v1585, %v1558
      %v2423 = vpack.c.b16 %v1586, %v1559
      %v2424 = vpack.c.b16 %v1587, %v1560
      %v2425 = vpack.c.b16 %v1588, %v1561
      %v2426 = vpack.c.b16 %v1589, %v1562
      %v2427 = vpack.c.b16 %v1590, %v1563
      %v2428 = vpack.c.b16 %v1591, %v1564
      %v2429 = vpack.c.b16 %v1592, %v1565
      %v2430 = vpack.c.b16 %v1593, %v1566
      %v2431 = vpack.c.b16 %v1594, %v1567
      %v2432 = vpack.c.b16 %v1595, %v1568
      %v2433 = vpack.c.b16 %v1596, %v1569
      %v2434 = vpack.c.b16 %v1597, %v1570
      %v2435 = vpack.c.b16 %v1598, %v1571
      %v2436 = vpack.c.b16 %v1599, %v1572
      %v2437 = vpack.c.b16 %v1600, %v1573
      %v2438 = vpack.c.b16 %v1628, %v1601
      %v2439 = vpack.c.b16 %v1629, %v1602
      %v2440 = vpack.c.b16 %v1630, %v1603
      %v2441 = vpack.c.b16 %v1631, %v1604
      %v2442 = vpack.c.b16 %v1632, %v1605
      %v2443 = vpack.c.b16 %v1633, %v1606
      %v2444 = vpack.c.b16 %v1634, %v1607
      %v2445 = vpack.c.b16 %v1635, %v1608
      %v2446 = vpack.c.b16 %v1636, %v1609
      %v2447 = vpack.c.b16 %v1637, %v1610
      %v2448 = vpack.c.b16 %v1638, %v1611
      %v2449 = vpack.c.b16 %v1639, %v1612
      %v2450 = vpack.c.b16 %v1640, %v1613
      %v2451 = vpack.c.b16 %v1641, %v1614
      %v2452 = vpack.c.b16 %v1642, %v1615
      %v2453 = vpack.c.b16 %v1643, %v1616
      %v2454 = vpack.c.b16 %v1644, %v1617
      %v2455 = vpack.c.b16 %v1645, %v1618
      %v2456 = vpack.c.b16 %v1646, %v1619
      %v2457 = vpack.c.b16 %v1647, %v1620
      %v2458 = vpack.c.b16 %v1648, %v1621
      %v2459 = vpack.c.b16 %v1649, %v1622
      %v2460 = vpack.c.b16 %v1650, %v1623
      %v2461 = vpack.c.b16 %v1651, %v1624
      %v2462 = vpack.c.b16 %v1652, %v1625
      %v2463 = vpack.c.b16 %v1653, %v1626
      %v2464 = vpack.c.b16 %v1654, %v1627
      %v2465 = vpack.c.b16 %v1682, %v1655
      %v2466 = vpack.c.b16 %v1683, %v1656
      %v2467 = vpack.c.b16 %v1684, %v1657
      %v2468 = vpack.c.b16 %v1685, %v1658
      %v2469 = vpack.c.b16 %v1686, %v1659
      %v2470 = vpack.c.b16 %v1687, %v1660
      %v2471 = vpack.c.b16 %v1688, %v1661
      %v2472 = vpack.c.b16 %v1689, %v1662
      %v2473 = vpack.c.b16 %v1690, %v1663
      %v2474 = vpack.c.b16 %v1691, %v1664
      %v2475 = vpack.c.b16 %v1692, %v1665
      %v2476 = vpack.c.b16 %v1693, %v1666
      %v2477 = vpack.c.b16 %v1694, %v1667
      %v2478 = vpack.c.b16 %v1695, %v1668
      %v2479 = vpack.c.b16 %v1696, %v1669
      %v2480 = vpack.c.b16 %v1697, %v1670
      %v2481 = vpack.c.b16 %v1698, %v1671
      %v2482 = vpack.c.b16 %v1699, %v1672
      %v2483 = vpack.c.b16 %v1700, %v1673
      %v2484 = vpack.c.b16 %v1701, %v1674
      %v2485 = vpack.c.b16 %v1702, %v1675
      %v2486 = vpack.c.b16 %v1703, %v1676
      %v2487 = vpack.c.b16 %v1704, %v1677
      %v2488 = vpack.c.b16 %v1705, %v1678
      %v2489 = vpack.c.b16 %v1706, %v1679
      %v2490 = vpack.c.b16 %v1707, %v1680
      %v2491 = vpack.c.b16 %v1708, %v1681
      %v2492 = vpack.c.b16 %v1736, %v1709
      %v2493 = vpack.c.b16 %v1737, %v1710
      %v2494 = vpack.c.b16 %v1738, %v1711
      %v2495 = vpack.c.b16 %v1739, %v1712
      %v2496 = vpack.c.b16 %v1740, %v1713
      %v2497 = vpack.c.b16 %v1741, %v1714
      %v2498 = vpack.c.b16 %v1742, %v1715
      %v2499 = vpack.c.b16 %v1743, %v1716
      %v2500 = vpack.c.b16 %v1744, %v1717
      %v2501 = vpack.c.b16 %v1745, %v1718
      %v2502 = vpack.c.b16 %v1746, %v1719
      %v2503 = vpack.c.b16 %v1747, %v1720
      %v2504 = vpack.c.b16 %v1748, %v1721
      %v2505 = vpack.c.b16 %v1749, %v1722
      %v2506 = vpack.c.b16 %v1750, %v1723
      %v2507 = vpack.c.b16 %v1751, %v1724
      %v2508 = vpack.c.b16 %v1752, %v1725
      %v2509 = vpack.c.b16 %v1753, %v1726
      %v2510 = vpack.c.b16 %v1754, %v1727
      %v2511 = vpack.c.b16 %v1755, %v1728
      %v2512 = vpack.c.b16 %v1756, %v1729
      %v2513 = vpack.c.b16 %v1757, %v1730
      %v2514 = vpack.c.b16 %v1758, %v1731
      %v2515 = vpack.c.b16 %v1759, %v1732
      %v2516 = vpack.c.b16 %v1760, %v1733
      %v2517 = vpack.c.b16 %v1761, %v1734
      %v2518 = vpack.c.b16 %v1762, %v1735
      %v2519 = vpack.c.b16 %v1790, %v1763
      %v2520 = vpack.c.b16 %v1791, %v1764
      %v2521 = vpack.c.b16 %v1792, %v1765
      %v2522 = vpack.c.b16 %v1793, %v1766
      %v2523 = vpack.c.b16 %v1794, %v1767
      %v2524 = vpack.c.b16 %v1795, %v1768
      %v2525 = vpack.c.b16 %v1796, %v1769
      %v2526 = vpack.c.b16 %v1797, %v1770
      %v2527 = vpack.c.b16 %v1798, %v1771
      %v2528 = vpack.c.b16 %v1799, %v1772
      %v2529 = vpack.c.b16 %v1800, %v1773
      %v2530 = vpack.c.b16 %v1801, %v1774
      %v2531 = vpack.c.b16 %v1802, %v1775
      %v2532 = vpack.c.b16 %v1803, %v1776
      %v2533 = vpack.c.b16 %v1804, %v1777
      %v2534 = vpack.c.b16 %v1805, %v1778
      %v2535 = vpack.c.b16 %v1806, %v1779
      %v2536 = vpack.c.b16 %v1807, %v1780
      %v2537 = vpack.c.b16 %v1808, %v1781
      %v2538 = vpack.c.b16 %v1809, %v1782
      %v2539 = vpack.c.b16 %v1810, %v1783
      %v2540 = vpack.c.b16 %v1811, %v1784
      %v2541 = vpack.c.b16 %v1812, %v1785
      %v2542 = vpack.c.b16 %v1813, %v1786
      %v2543 = vpack.c.b16 %v1814, %v1787
      %v2544 = vpack.c.b16 %v1815, %v1788
      %v2545 = vpack.c.b16 %v1816, %v1789
      %v2546 = vpack.c.b16 %v1844, %v1817
      %v2547 = vpack.c.b16 %v1845, %v1818
      %v2548 = vpack.c.b16 %v1846, %v1819
      %v2549 = vpack.c.b16 %v1847, %v1820
      %v2550 = vpack.c.b16 %v1848, %v1821
      %v2551 = vpack.c.b16 %v1849, %v1822
      %v2552 = vpack.c.b16 %v1850, %v1823
      %v2553 = vpack.c.b16 %v1851, %v1824
      %v2554 = vpack.c.b16 %v1852, %v1825
      %v2555 = vpack.c.b16 %v1853, %v1826
      %v2556 = vpack.c.b16 %v1854, %v1827
      %v2557 = vpack.c.b16 %v1855, %v1828
      %v2558 = vpack.c.b16 %v1856, %v1829
      %v2559 = vpack.c.b16 %v1857, %v1830
      %v2560 = vpack.c.b16 %v1858, %v1831
      %v2561 = vpack.c.b16 %v1859, %v1832
      %v2562 = vpack.c.b16 %v1860, %v1833
      %v2563 = vpack.c.b16 %v1861, %v1834
      %v2564 = vpack.c.b16 %v1862, %v1835
      %v2565 = vpack.c.b16 %v1863, %v1836
      %v2566 = vpack.c.b16 %v1864, %v1837
      %v2567 = vpack.c.b16 %v1865, %v1838
      %v2568 = vpack.c.b16 %v1866, %v1839
      %v2569 = vpack.c.b16 %v1867, %v1840
      %v2570 = vpack.c.b16 %v1868, %v1841
      %v2571 = vpack.c.b16 %v1869, %v1842
      %v2572 = vpack.c.b16 %v1870, %v1843
      %v2573 = vpack.c.b16 %v1898, %v1871
      %v2574 = vpack.c.b16 %v1899, %v1872
      %v2575 = vpack.c.b16 %v1900, %v1873
      %v2576 = vpack.c.b16 %v1901, %v1874
      %v2577 = vpack.c.b16 %v1902, %v1875
      %v2578 = vpack.c.b16 %v1903, %v1876
      %v2579 = vpack.c.b16 %v1904, %v1877
      %v2580 = vpack.c.b16 %v1905, %v1878
      %v2581 = vpack.c.b16 %v1906, %v1879
      %v2582 = vpack.c.b16 %v1907, %v1880
      %v2583 = vpack.c.b16 %v1908, %v1881
      %v2584 = vpack.c.b16 %v1909, %v1882
      %v2585 = vpack.c.b16 %v1910, %v1883
      %v2586 = vpack.c.b16 %v1911, %v1884
      %v2587 = vpack.c.b16 %v1912, %v1885
      %v2588 = vpack.c.b16 %v1913, %v1886
      %v2589 = vpack.c.b16 %v1914, %v1887
      %v2590 = vpack.c.b16 %v1915, %v1888
      %v2591 = vpack.c.b16 %v1916, %v1889
      %v2592 = vpack.c.b16 %v1917, %v1890
      %v2593 = vpack.c.b16 %v1918, %v1891
      %v2594 = vpack.c.b16 %v1919, %v1892
      %v2595 = vpack.c.b16 %v1920, %v1893
      %v2596 = vpack.c.b16 %v1921, %v1894
      %v2597 = vpack.c.b16 %v1922, %v1895
      %v2598 = vpack.c.b16 %v1923, %v1896
      %v2599 = vpack.c.b16 %v1924, %v1897
      %v2600 = vpack.c.b16 %v1952, %v1925
      %v2601 = vpack.c.b16 %v1953, %v1926
      %v2602 = vpack.c.b16 %v1954, %v1927
      %v2603 = vpack.c.b16 %v1955, %v1928
      %v2604 = vpack.c.b16 %v1956, %v1929
      %v2605 = vpack.c.b16 %v1957, %v1930
      %v2606 = vpack.c.b16 %v1958, %v1931
      %v2607 = vpack.c.b16 %v1959, %v1932
      %v2608 = vpack.c.b16 %v1960, %v1933
      %v2609 = vpack.c.b16 %v1961, %v1934
      %v2610 = vpack.c.b16 %v1962, %v1935
      %v2611 = vpack.c.b16 %v1963, %v1936
      %v2612 = vpack.c.b16 %v1964, %v1937
      %v2613 = vpack.c.b16 %v1965, %v1938
      %v2614 = vpack.c.b16 %v1966, %v1939
      %v2615 = vpack.c.b16 %v1967, %v1940
      %v2616 = vpack.c.b16 %v1968, %v1941
      %v2617 = vpack.c.b16 %v1969, %v1942
      %v2618 = vpack.c.b16 %v1970, %v1943
      %v2619 = vpack.c.b16 %v1971, %v1944
      %v2620 = vpack.c.b16 %v1972, %v1945
      %v2621 = vpack.c.b16 %v1973, %v1946
      %v2622 = vpack.c.b16 %v1974, %v1947
      %v2623 = vpack.c.b16 %v1975, %v1948
      %v2624 = vpack.c.b16 %v1976, %v1949
      %v2625 = vpack.c.b16 %v1977, %v1950
      %v2626 = vpack.c.b16 %v1978, %v1951
      %v2627 = vpack.c.b16 %v2006, %v1979
      %v2628 = vpack.c.b16 %v2007, %v1980
      %v2629 = vpack.c.b16 %v2008, %v1981
      %v2630 = vpack.c.b16 %v2009, %v1982
      %v2631 = vpack.c.b16 %v2010, %v1983
      %v2632 = vpack.c.b16 %v2011, %v1984
      %v2633 = vpack.c.b16 %v2012, %v1985
      %v2634 = vpack.c.b16 %v2013, %v1986
      %v2635 = vpack.c.b16 %v2014, %v1987
      %v2636 = vpack.c.b16 %v2015, %v1988
      %v2637 = vpack.c.b16 %v2016, %v1989
      %v2638 = vpack.c.b16 %v2017, %v1990
      %v2639 = vpack.c.b16 %v2018, %v1991
      %v2640 = vpack.c.b16 %v2019, %v1992
      %v2641 = vpack.c.b16 %v2020, %v1993
      %v2642 = vpack.c.b16 %v2021, %v1994
      %v2643 = vpack.c.b16 %v2022, %v1995
      %v2644 = vpack.c.b16 %v2023, %v1996
      %v2645 = vpack.c.b16 %v2024, %v1997
      %v2646 = vpack.c.b16 %v2025, %v1998
      %v2647 = vpack.c.b16 %v2026, %v1999
      %v2648 = vpack.c.b16 %v2027, %v2000
      %v2649 = vpack.c.b16 %v2028, %v2001
      %v2650 = vpack.c.b16 %v2029, %v2002
      %v2651 = vpack.c.b16 %v2030, %v2003
      %v2652 = vpack.c.b16 %v2031, %v2004
      %v2653 = vpack.c.b16 %v2032, %v2005
      %v2654 = vpack.c.b16 %v2060, %v2033
      %v2655 = vpack.c.b16 %v2061, %v2034
      %v2656 = vpack.c.b16 %v2062, %v2035
      %v2657 = vpack.c.b16 %v2063, %v2036
      %v2658 = vpack.c.b16 %v2064, %v2037
      %v2659 = vpack.c.b16 %v2065, %v2038
      %v2660 = vpack.c.b16 %v2066, %v2039
      %v2661 = vpack.c.b16 %v2067, %v2040
      %v2662 = vpack.c.b16 %v2068, %v2041
      %v2663 = vpack.c.b16 %v2069, %v2042
      %v2664 = vpack.c.b16 %v2070, %v2043
      %v2665 = vpack.c.b16 %v2071, %v2044
      %v2666 = vpack.c.b16 %v2072, %v2045
      %v2667 = vpack.c.b16 %v2073, %v2046
      %v2668 = vpack.c.b16 %v2074, %v2047
      %v2669 = vpack.c.b16 %v2075, %v2048
      %v2670 = vpack.c.b16 %v2076, %v2049
      %v2671 = vpack.c.b16 %v2077, %v2050
      %v2672 = vpack.c.b16 %v2078, %v2051
      %v2673 = vpack.c.b16 %v2079, %v2052
      %v2674 = vpack.c.b16 %v2080, %v2053
      %v2675 = vpack.c.b16 %v2081, %v2054
      %v2676 = vpack.c.b16 %v2082, %v2055
      %v2677 = vpack.c.b16 %v2083, %v2056
      %v2678 = vpack.c.b16 %v2084, %v2057
      %v2679 = vpack.c.b16 %v2085, %v2058
      %v2680 = vpack.c.b16 %v2086, %v2059
      %v2681 = vpack.c.b16 %v2114, %v2087
      %v2682 = vpack.c.b16 %v2115, %v2088
      %v2683 = vpack.c.b16 %v2116, %v2089
      %v2684 = vpack.c.b16 %v2117, %v2090
      %v2685 = vpack.c.b16 %v2118, %v2091
      %v2686 = vpack.c.b16 %v2119, %v2092
      %v2687 = vpack.c.b16 %v2120, %v2093
      %v2688 = vpack.c.b16 %v2121, %v2094
      %v2689 = vpack.c.b16 %v2122, %v2095
      %v2690 = vpack.c.b16 %v2123, %v2096
      %v2691 = vpack.c.b16 %v2124, %v2097
      %v2692 = vpack.c.b16 %v2125, %v2098
      %v2693 = vpack.c.b16 %v2126, %v2099
      %v2694 = vpack.c.b16 %v2127, %v2100
      %v2695 = vpack.c.b16 %v2128, %v2101
      %v2696 = vpack.c.b16 %v2129, %v2102
      %v2697 = vpack.c.b16 %v2130, %v2103
      %v2698 = vpack.c.b16 %v2131, %v2104
      %v2699 = vpack.c.b16 %v2132, %v2105
      %v2700 = vpack.c.b16 %v2133, %v2106
      %v2701 = vpack.c.b16 %v2134, %v2107
      %v2702 = vpack.c.b16 %v2135, %v2108
      %v2703 = vpack.c.b16 %v2136, %v2109
      %v2704 = vpack.c.b16 %v2137, %v2110
      %v2705 = vpack.c.b16 %v2138, %v2111
      %v2706 = vpack.c.b16 %v2139, %v2112
      %v2707 = vpack.c.b16 %v2140, %v2113
      %v2708 = vpack.c.b16 %v2168, %v2141
      %v2709 = vpack.c.b16 %v2169, %v2142
      %v2710 = vpack.c.b16 %v2170, %v2143
      %v2711 = vpack.c.b16 %v2171, %v2144
      %v2712 = vpack.c.b16 %v2172, %v2145
      %v2713 = vpack.c.b16 %v2173, %v2146
      %v2714 = vpack.c.b16 %v2174, %v2147
      %v2715 = vpack.c.b16 %v2175, %v2148
      %v2716 = vpack.c.b16 %v2176, %v2149
      %v2717 = vpack.c.b16 %v2177, %v2150
      %v2718 = vpack.c.b16 %v2178, %v2151
      %v2719 = vpack.c.b16 %v2179, %v2152
      %v2720 = vpack.c.b16 %v2180, %v2153
      %v2721 = vpack.c.b16 %v2181, %v2154
      %v2722 = vpack.c.b16 %v2182, %v2155
      %v2723 = vpack.c.b16 %v2183, %v2156
      %v2724 = vpack.c.b16 %v2184, %v2157
      %v2725 = vpack.c.b16 %v2185, %v2158
      %v2726 = vpack.c.b16 %v2186, %v2159
      %v2727 = vpack.c.b16 %v2187, %v2160
      %v2728 = vpack.c.b16 %v2188, %v2161
      %v2729 = vpack.c.b16 %v2189, %v2162
      %v2730 = vpack.c.b16 %v2190, %v2163
      %v2731 = vpack.c.b16 %v2191, %v2164
      %v2732 = vpack.c.b16 %v2192, %v2165
      %v2733 = vpack.c.b16 %v2193, %v2166
      %v2734 = vpack.c.b16 %v2194, %v2167
      %v2735 = vpack.c.b16 %v2222, %v2195
      %v2736 = vpack.c.b16 %v2223, %v2196
      %v2737 = vpack.c.b16 %v2224, %v2197
      %v2738 = vpack.c.b16 %v2225, %v2198
      %v2739 = vpack.c.b16 %v2226, %v2199
      %v2740 = vpack.c.b16 %v2227, %v2200
      %v2741 = vpack.c.b16 %v2228, %v2201
      %v2742 = vpack.c.b16 %v2229, %v2202
      %v2743 = vpack.c.b16 %v2230, %v2203
      %v2744 = vpack.c.b16 %v2231, %v2204
      %v2745 = vpack.c.b16 %v2232, %v2205
      %v2746 = vpack.c.b16 %v2233, %v2206
      %v2747 = vpack.c.b16 %v2234, %v2207
      %v2748 = vpack.c.b16 %v2235, %v2208
      %v2749 = vpack.c.b16 %v2236, %v2209
      %v2750 = vpack.c.b16 %v2237, %v2210
      %v2751 = vpack.c.b16 %v2238, %v2211
      %v2752 = vpack.c.b16 %v2239, %v2212
      %v2753 = vpack.c.b16 %v2240, %v2213
      %v2754 = vpack.c.b16 %v2241, %v2214
      %v2755 = vpack.c.b16 %v2242, %v2215
      %v2756 = vpack.c.b16 %v2243, %v2216
      %v2757 = vpack.c.b16 %v2244, %v2217
      %v2758 = vpack.c.b16 %v2245, %v2218
      %v2759 = vpack.c.b16 %v2246, %v2219
      %v2760 = vpack.c.b16 %v2247, %v2220
      %v2761 = vpack.c.b16 %v2248, %v2221
      %v2762 = vpack.c.b16 %v2276, %v2249
      %v2763 = vpack.c.b16 %v2277, %v2250
      %v2764 = vpack.c.b16 %v2278, %v2251
      %v2765 = vpack.c.b16 %v2279, %v2252
      %v2766 = vpack.c.b16 %v2280, %v2253
      %v2767 = vpack.c.b16 %v2281, %v2254
      %v2768 = vpack.c.b16 %v2282, %v2255
      %v2769 = vpack.c.b16 %v2283, %v2256
      %v2770 = vpack.c.b16 %v2284, %v2257
      %v2771 = vpack.c.b16 %v2285, %v2258
      %v2772 = vpack.c.b16 %v2286, %v2259
      %v2773 = vpack.c.b16 %v2287, %v2260
      %v2774 = vpack.c.b16 %v2288, %v2261
      %v2775 = vpack.c.b16 %v2289, %v2262
      %v2776 = vpack.c.b16 %v2290, %v2263
      %v2777 = vpack.c.b16 %v2291, %v2264
      %v2778 = vpack.c.b16 %v2292, %v2265
      %v2779 = vpack.c.b16 %v2293, %v2266
      %v2780 = vpack.c.b16 %v2294, %v2267
      %v2781 = vpack.c.b16 %v2295, %v2268
      %v2782 = vpack.c.b16 %v2296, %v2269
      %v2783 = vpack.c.b16 %v2297, %v2270
      %v2784 = vpack.c.b16 %v2298, %v2271
      %v2785 = vpack.c.b16 %v2299, %v2272
      %v2786 = vpack.c.b16 %v2300, %v2273
      %v2787 = vpack.c.b16 %v2301, %v2274
      %v2788 = vpack.c.b16 %v2302, %v2275
      %v2789 = vpack.c.b16 %v2330, %v2303
      %v2790 = vpack.c.b16 %v2331, %v2304
      %v2791 = vpack.c.b16 %v2332, %v2305
      %v2792 = vpack.c.b16 %v2333, %v2306
      %v2793 = vpack.c.b16 %v2334, %v2307
      %v2794 = vpack.c.b16 %v2335, %v2308
      %v2795 = vpack.c.b16 %v2336, %v2309
      %v2796 = vpack.c.b16 %v2337, %v2310
      %v2797 = vpack.c.b16 %v2338, %v2311
      %v2798 = vpack.c.b16 %v2339, %v2312
      %v2799 = vpack.c.b16 %v2340, %v2313
      %v2800 = vpack.c.b16 %v2341, %v2314
      %v2801 = vpack.c.b16 %v2342, %v2315
      %v2802 = vpack.c.b16 %v2343, %v2316
      %v2803 = vpack.c.b16 %v2344, %v2317
      %v2804 = vpack.c.b16 %v2345, %v2318
      %v2805 = vpack.c.b16 %v2346, %v2319
      %v2806 = vpack.c.b16 %v2347, %v2320
      %v2807 = vpack.c.b16 %v2348, %v2321
      %v2808 = vpack.c.b16 %v2349, %v2322
      %v2809 = vpack.c.b16 %v2350, %v2323
      %v2810 = vpack.c.b16 %v2351, %v2324
      %v2811 = vpack.c.b16 %v2352, %v2325
      %v2812 = vpack.c.b16 %v2353, %v2326
      %v2813 = vpack.c.b16 %v2354, %v2327
      %v2814 = vpack.c.b16 %v2355, %v2328
      %v2815 = vpack.c.b16 %v2356, %v2329
      %v2816 = vpack.c.b16 %v2384, %v2357
      %v2817 = vpack.c.b16 %v2385, %v2358
      %v2818 = vpack.c.b16 %v2386, %v2359
      %v2819 = vpack.c.b16 %v2387, %v2360
      %v2820 = vpack.c.b16 %v2388, %v2361
      %v2821 = vpack.c.b16 %v2389, %v2362
      %v2822 = vpack.c.b16 %v2390, %v2363
      %v2823 = vpack.c.b16 %v2391, %v2364
      %v2824 = vpack.c.b16 %v2392, %v2365
      %v2825 = vpack.c.b16 %v2393, %v2366
      %v2826 = vpack.c.b16 %v2394, %v2367
      %v2827 = vpack.c.b16 %v2395, %v2368
      %v2828 = vpack.c.b16 %v2396, %v2369
      %v2829 = vpack.c.b16 %v2397, %v2370
      %v2830 = vpack.c.b16 %v2398, %v2371
      %v2831 = vpack.c.b16 %v2399, %v2372
      %v2832 = vpack.c.b16 %v2400, %v2373
      %v2833 = vpack.c.b16 %v2401, %v2374
      %v2834 = vpack.c.b16 %v2402, %v2375
      %v2835 = vpack.c.b16 %v2403, %v2376
      %v2836 = vpack.c.b16 %v2404, %v2377
      %v2837 = vpack.c.b16 %v2405, %v2378
      %v2838 = vpack.c.b16 %v2406, %v2379
      %v2839 = vpack.c.b16 %v2407, %v2380
      %v2840 = vpack.c.b16 %v2408, %v2381
      %v2841 = vpack.c.b16 %v2409, %v2382
      %v2842 = vpack.c.b16 %v2410, %v2383
      %v3707 = vunpack.c.l.b16 %v663
      %v3708 = vunpack.c.l.b16 %v664
      %v3709 = vunpack.c.l.b16 %v665
      %v3710 = vunpack.c.l.b16 %v666
      %v3711 = vunpack.c.l.b16 %v667
      %v3712 = vunpack.c.l.b16 %v668
      %v3713 = vunpack.c.l.b16 %v669
      %v3714 = vunpack.c.l.b16 %v670
      %v3715 = vunpack.c.l.b16 %v671
      %v3716 = vunpack.c.l.b16 %v672
      %v3717 = vunpack.c.l.b16 %v673
      %v3718 = vunpack.c.l.b16 %v674
      %v3719 = vunpack.c.l.b16 %v675
      %v3720 = vunpack.c.l.b16 %v676
      %v3721 = vunpack.c.l.b16 %v677
      %v3722 = vunpack.c.l.b16 %v678
      %v3723 = vunpack.c.l.b16 %v679
      %v3724 = vunpack.c.l.b16 %v680
      %v3725 = vunpack.c.l.b16 %v681
      %v3726 = vunpack.c.l.b16 %v682
      %v3727 = vunpack.c.l.b16 %v683
      %v3728 = vunpack.c.l.b16 %v684
      %v3729 = vunpack.c.l.b16 %v685
      %v3730 = vunpack.c.l.b16 %v686
      %v3731 = vunpack.c.l.b16 %v687
      %v3732 = vunpack.c.l.b16 %v688
      %v3733 = vunpack.c.l.b16 %v689
      %v3734 = vunpack.c.l.b16 %v690
      %v3735 = vunpack.c.l.b16 %v691
      %v3736 = vunpack.c.l.b16 %v692
      %v3737 = vunpack.c.l.b16 %v693
      %v3738 = vunpack.c.l.b16 %v694
      %v3739 = vunpack.c.l.b16 %v695
      %v3740 = vunpack.c.l.b16 %v696
      %v3741 = vunpack.c.l.b16 %v697
      %v3742 = vunpack.c.l.b16 %v698
      %v3743 = vunpack.c.l.b16 %v699
      %v3744 = vunpack.c.l.b16 %v700
      %v3745 = vunpack.c.l.b16 %v701
      %v3746 = vunpack.c.l.b16 %v702
      %v3747 = vunpack.c.l.b16 %v703
      %v3748 = vunpack.c.l.b16 %v704
      %v3749 = vunpack.c.l.b16 %v705
      %v3750 = vunpack.c.l.b16 %v706
      %v3751 = vunpack.c.l.b16 %v707
      %v3752 = vunpack.c.l.b16 %v708
      %v3753 = vunpack.c.l.b16 %v709
      %v3754 = vunpack.c.l.b16 %v710
      %v3755 = vunpack.c.l.b16 %v711
      %v3756 = vunpack.c.l.b16 %v712
      %v3757 = vunpack.c.l.b16 %v713
      %v3758 = vunpack.c.l.b16 %v714
      %v3759 = vunpack.c.l.b16 %v715
      %v3760 = vunpack.c.l.b16 %v716
      %v3761 = vunpack.c.l.b16 %v717
      %v3762 = vunpack.c.l.b16 %v718
      %v3763 = vunpack.c.l.b16 %v719
      %v3764 = vunpack.c.l.b16 %v720
      %v3765 = vunpack.c.l.b16 %v721
      %v3766 = vunpack.c.l.b16 %v722
      %v3767 = vunpack.c.l.b16 %v723
      %v3768 = vunpack.c.l.b16 %v724
      %v3769 = vunpack.c.l.b16 %v725
      %v3770 = vunpack.c.l.b16 %v726
      %v3771 = vunpack.c.l.b16 %v727
      %v3772 = vunpack.c.l.b16 %v728
      %v3773 = vunpack.c.l.b16 %v729
      %v3774 = vunpack.c.l.b16 %v730
      %v3775 = vunpack.c.l.b16 %v731
      %v3776 = vunpack.c.l.b16 %v732
      %v3777 = vunpack.c.l.b16 %v733
      %v3778 = vunpack.c.l.b16 %v734
      %v3779 = vunpack.c.l.b16 %v735
      %v3780 = vunpack.c.l.b16 %v736
      %v3781 = vunpack.c.l.b16 %v737
      %v3782 = vunpack.c.l.b16 %v738
      %v3783 = vunpack.c.l.b16 %v739
      %v3784 = vunpack.c.l.b16 %v740
      %v3785 = vunpack.c.l.b16 %v741
      %v3786 = vunpack.c.l.b16 %v742
      %v3787 = vunpack.c.l.b16 %v743
      %v3788 = vunpack.c.l.b16 %v744
      %v3789 = vunpack.c.l.b16 %v745
      %v3790 = vunpack.c.l.b16 %v746
      %v3791 = vunpack.c.l.b16 %v747
      %v3792 = vunpack.c.l.b16 %v748
      %v3793 = vunpack.c.l.b16 %v749
      %v3794 = vunpack.c.l.b16 %v750
      %v3795 = vunpack.c.l.b16 %v751
      %v3796 = vunpack.c.l.b16 %v752
      %v3797 = vunpack.c.l.b16 %v753
      %v3798 = vunpack.c.l.b16 %v754
      %v3799 = vunpack.c.l.b16 %v755
      %v3800 = vunpack.c.l.b16 %v756
      %v3801 = vunpack.c.l.b16 %v757
      %v3802 = vunpack.c.l.b16 %v758
      %v3803 = vunpack.c.l.b16 %v759
      %v3804 = vunpack.c.l.b16 %v760
      %v3805 = vunpack.c.l.b16 %v761
      %v3806 = vunpack.c.l.b16 %v762
      %v3807 = vunpack.c.l.b16 %v763
      %v3808 = vunpack.c.l.b16 %v764
      %v3809 = vunpack.c.l.b16 %v765
      %v3810 = vunpack.c.l.b16 %v766
      %v3811 = vunpack.c.l.b16 %v767
      %v3812 = vunpack.c.l.b16 %v768
      %v3813 = vunpack.c.l.b16 %v769
      %v3814 = vunpack.c.l.b16 %v770
      %v3815 = vunpack.c.l.b16 %v771
      %v3816 = vunpack.c.l.b16 %v772
      %v3817 = vunpack.c.l.b16 %v773
      %v3818 = vunpack.c.l.b16 %v774
      %v3819 = vunpack.c.l.b16 %v775
      %v3820 = vunpack.c.l.b16 %v776
      %v3821 = vunpack.c.l.b16 %v777
      %v3822 = vunpack.c.l.b16 %v778
      %v3823 = vunpack.c.l.b16 %v779
      %v3824 = vunpack.c.l.b16 %v780
      %v3825 = vunpack.c.l.b16 %v781
      %v3826 = vunpack.c.l.b16 %v782
      %v3827 = vunpack.c.l.b16 %v783
      %v3828 = vunpack.c.l.b16 %v784
      %v3829 = vunpack.c.l.b16 %v785
      %v3830 = vunpack.c.l.b16 %v786
      %v3831 = vunpack.c.l.b16 %v787
      %v3832 = vunpack.c.l.b16 %v788
      %v3833 = vunpack.c.l.b16 %v789
      %v3834 = vunpack.c.l.b16 %v790
      %v3835 = vunpack.c.l.b16 %v791
      %v3836 = vunpack.c.l.b16 %v792
      %v3837 = vunpack.c.l.b16 %v793
      %v3838 = vunpack.c.l.b16 %v794
      %v3839 = vunpack.c.l.b16 %v795
      %v3840 = vunpack.c.l.b16 %v796
      %v3841 = vunpack.c.l.b16 %v797
      %v3842 = vunpack.c.l.b16 %v798
      %v3843 = vunpack.c.l.b16 %v799
      %v3844 = vunpack.c.l.b16 %v800
      %v3845 = vunpack.c.l.b16 %v801
      %v3846 = vunpack.c.l.b16 %v802
      %v3847 = vunpack.c.l.b16 %v803
      %v3848 = vunpack.c.l.b16 %v804
      %v3849 = vunpack.c.l.b16 %v805
      %v3850 = vunpack.c.l.b16 %v806
      %v3851 = vunpack.c.l.b16 %v807
      %v3852 = vunpack.c.l.b16 %v808
      %v3853 = vunpack.c.l.b16 %v809
      %v3854 = vunpack.c.l.b16 %v810
      %v3855 = vunpack.c.l.b16 %v811
      %v3856 = vunpack.c.l.b16 %v812
      %v3857 = vunpack.c.l.b16 %v813
      %v3858 = vunpack.c.l.b16 %v814
      %v3859 = vunpack.c.l.b16 %v815
      %v3860 = vunpack.c.l.b16 %v816
      %v3861 = vunpack.c.l.b16 %v817
      %v3862 = vunpack.c.l.b16 %v818
      %v3863 = vunpack.c.l.b16 %v819
      %v3864 = vunpack.c.l.b16 %v820
      %v3865 = vunpack.c.l.b16 %v821
      %v3866 = vunpack.c.l.b16 %v822
      %v3867 = vunpack.c.l.b16 %v823
      %v3868 = vunpack.c.l.b16 %v824
      %v3869 = vunpack.c.l.b16 %v825
      %v3870 = vunpack.c.l.b16 %v826
      %v3871 = vunpack.c.l.b16 %v827
      %v3872 = vunpack.c.l.b16 %v828
      %v3873 = vunpack.c.l.b16 %v829
      %v3874 = vunpack.c.l.b16 %v830
      %v3875 = vunpack.c.l.b16 %v831
      %v3876 = vunpack.c.l.b16 %v832
      %v3877 = vunpack.c.l.b16 %v833
      %v3878 = vunpack.c.l.b16 %v834
      %v3879 = vunpack.c.l.b16 %v835
      %v3880 = vunpack.c.l.b16 %v836
      %v3881 = vunpack.c.l.b16 %v837
      %v3882 = vunpack.c.l.b16 %v838
      %v3883 = vunpack.c.l.b16 %v839
      %v3884 = vunpack.c.l.b16 %v840
      %v3885 = vunpack.c.l.b16 %v841
      %v3886 = vunpack.c.l.b16 %v842
      %v3887 = vunpack.c.l.b16 %v843
      %v3888 = vunpack.c.l.b16 %v844
      %v3889 = vunpack.c.l.b16 %v845
      %v3890 = vunpack.c.l.b16 %v846
      %v3891 = vunpack.c.l.b16 %v847
      %v3892 = vunpack.c.l.b16 %v848
      %v3893 = vunpack.c.l.b16 %v849
      %v3894 = vunpack.c.l.b16 %v850
      %v3895 = vunpack.c.l.b16 %v851
      %v3896 = vunpack.c.l.b16 %v852
      %v3897 = vunpack.c.l.b16 %v853
      %v3898 = vunpack.c.l.b16 %v854
      %v3899 = vunpack.c.l.b16 %v855
      %v3900 = vunpack.c.l.b16 %v856
      %v3901 = vunpack.c.l.b16 %v857
      %v3902 = vunpack.c.l.b16 %v858
      %v3903 = vunpack.c.l.b16 %v859
      %v3904 = vunpack.c.l.b16 %v860
      %v3905 = vunpack.c.l.b16 %v861
      %v3906 = vunpack.c.l.b16 %v862
      %v3907 = vunpack.c.l.b16 %v863
      %v3908 = vunpack.c.l.b16 %v864
      %v3909 = vunpack.c.l.b16 %v865
      %v3910 = vunpack.c.l.b16 %v866
      %v3911 = vunpack.c.l.b16 %v867
      %v3912 = vunpack.c.l.b16 %v868
      %v3913 = vunpack.c.l.b16 %v869
      %v3914 = vunpack.c.l.b16 %v870
      %v3915 = vunpack.c.l.b16 %v871
      %v3916 = vunpack.c.l.b16 %v872
      %v3917 = vunpack.c.l.b16 %v873
      %v3918 = vunpack.c.l.b16 %v874
      %v3919 = vunpack.c.l.b16 %v875
      %v3920 = vunpack.c.l.b16 %v876
      %v3921 = vunpack.c.l.b16 %v877
      %v3922 = vunpack.c.l.b16 %v878
      %v3923 = vunpack.c.l.b16 %v879
      %v3924 = vunpack.c.l.b16 %v880
      %v3925 = vunpack.c.l.b16 %v881
      %v3926 = vunpack.c.l.b16 %v882
      %v3927 = vunpack.c.l.b16 %v883
      %v3928 = vunpack.c.l.b16 %v884
      %v3929 = vunpack.c.l.b16 %v885
      %v3930 = vunpack.c.l.b16 %v886
      %v3931 = vunpack.c.l.b16 %v887
      %v3932 = vunpack.c.l.b16 %v888
      %v3933 = vunpack.c.l.b16 %v889
      %v3934 = vunpack.c.l.b16 %v890
      %v3935 = vunpack.c.l.b16 %v891
      %v3936 = vunpack.c.l.b16 %v892
      %v3937 = vunpack.c.l.b16 %v893
      %v3938 = vunpack.c.l.b16 %v894
      %v3939 = vunpack.c.l.b16 %v895
      %v3940 = vunpack.c.l.b16 %v896
      %v3941 = vunpack.c.l.b16 %v897
      %v3942 = vunpack.c.l.b16 %v898
      %v3943 = vunpack.c.l.b16 %v899
      %v3944 = vunpack.c.l.b16 %v900
      %v3945 = vunpack.c.l.b16 %v901
      %v3946 = vunpack.c.l.b16 %v902
      %v3947 = vunpack.c.l.b16 %v903
      %v3948 = vunpack.c.l.b16 %v904
      %v3949 = vunpack.c.l.b16 %v905
      %v3950 = vunpack.c.l.b16 %v906
      %v3951 = vunpack.c.l.b16 %v907
      %v3952 = vunpack.c.l.b16 %v908
      %v3953 = vunpack.c.l.b16 %v909
      %v3954 = vunpack.c.l.b16 %v910
      %v3955 = vunpack.c.l.b16 %v911
      %v3956 = vunpack.c.l.b16 %v912
      %v3957 = vunpack.c.l.b16 %v913
      %v3958 = vunpack.c.l.b16 %v914
      %v3959 = vunpack.c.l.b16 %v915
      %v3960 = vunpack.c.l.b16 %v916
      %v3961 = vunpack.c.l.b16 %v917
      %v3962 = vunpack.c.l.b16 %v918
      %v3963 = vunpack.c.l.b16 %v919
      %v3964 = vunpack.c.l.b16 %v920
      %v3965 = vunpack.c.l.b16 %v921
      %v3966 = vunpack.c.l.b16 %v922
      %v3967 = vunpack.c.l.b16 %v923
      %v3968 = vunpack.c.l.b16 %v924
      %v3969 = vunpack.c.l.b16 %v925
      %v3970 = vunpack.c.l.b16 %v926
      %v3971 = vunpack.c.l.b16 %v927
      %v3972 = vunpack.c.l.b16 %v928
      %v3973 = vunpack.c.l.b16 %v929
      %v3974 = vunpack.c.l.b16 %v930
      %v3975 = vunpack.c.l.b16 %v931
      %v3976 = vunpack.c.l.b16 %v932
      %v3977 = vunpack.c.l.b16 %v933
      %v3978 = vunpack.c.l.b16 %v934
      %v3979 = vunpack.c.l.b16 %v935
      %v3980 = vunpack.c.l.b16 %v936
      %v3981 = vunpack.c.l.b16 %v937
      %v3982 = vunpack.c.l.b16 %v938
      %v3983 = vunpack.c.l.b16 %v939
      %v3984 = vunpack.c.l.b16 %v940
      %v3985 = vunpack.c.l.b16 %v941
      %v3986 = vunpack.c.l.b16 %v942
      %v3987 = vunpack.c.l.b16 %v943
      %v3988 = vunpack.c.l.b16 %v944
      %v3989 = vunpack.c.l.b16 %v945
      %v3990 = vunpack.c.l.b16 %v946
      %v3991 = vunpack.c.l.b16 %v947
      %v3992 = vunpack.c.l.b16 %v948
      %v3993 = vunpack.c.l.b16 %v949
      %v3994 = vunpack.c.l.b16 %v950
      %v3995 = vunpack.c.l.b16 %v951
      %v3996 = vunpack.c.l.b16 %v952
      %v3997 = vunpack.c.l.b16 %v953
      %v3998 = vunpack.c.l.b16 %v954
      %v3999 = vunpack.c.l.b16 %v955
      %v4000 = vunpack.c.l.b16 %v956
      %v4001 = vunpack.c.l.b16 %v957
      %v4002 = vunpack.c.l.b16 %v958
      %v4003 = vunpack.c.l.b16 %v959
      %v4004 = vunpack.c.l.b16 %v960
      %v4005 = vunpack.c.l.b16 %v961
      %v4006 = vunpack.c.l.b16 %v962
      %v4007 = vunpack.c.l.b16 %v963
      %v4008 = vunpack.c.l.b16 %v964
      %v4009 = vunpack.c.l.b16 %v965
      %v4010 = vunpack.c.l.b16 %v966
      %v4011 = vunpack.c.l.b16 %v967
      %v4012 = vunpack.c.l.b16 %v968
      %v4013 = vunpack.c.l.b16 %v969
      %v4014 = vunpack.c.l.b16 %v970
      %v4015 = vunpack.c.l.b16 %v971
      %v4016 = vunpack.c.l.b16 %v972
      %v4017 = vunpack.c.l.b16 %v973
      %v4018 = vunpack.c.l.b16 %v974
      %v4019 = vunpack.c.l.b16 %v975
      %v4020 = vunpack.c.l.b16 %v976
      %v4021 = vunpack.c.l.b16 %v977
      %v4022 = vunpack.c.l.b16 %v978
      %v4023 = vunpack.c.l.b16 %v979
      %v4024 = vunpack.c.l.b16 %v980
      %v4025 = vunpack.c.l.b16 %v981
      %v4026 = vunpack.c.l.b16 %v982
      %v4027 = vunpack.c.l.b16 %v983
      %v4028 = vunpack.c.l.b16 %v984
      %v4029 = vunpack.c.l.b16 %v985
      %v4030 = vunpack.c.l.b16 %v986
      %v4031 = vunpack.c.l.b16 %v987
      %v4032 = vunpack.c.l.b16 %v988
      %v4033 = vunpack.c.l.b16 %v989
      %v4034 = vunpack.c.l.b16 %v990
      %v4035 = vunpack.c.l.b16 %v991
      %v4036 = vunpack.c.l.b16 %v992
      %v4037 = vunpack.c.l.b16 %v993
      %v4038 = vunpack.c.l.b16 %v994
      %v4039 = vunpack.c.l.b16 %v995
      %v4040 = vunpack.c.l.b16 %v996
      %v4041 = vunpack.c.l.b16 %v997
      %v4042 = vunpack.c.l.b16 %v998
      %v4043 = vunpack.c.l.b16 %v999
      %v4044 = vunpack.c.l.b16 %v1000
      %v4045 = vunpack.c.l.b16 %v1001
      %v4046 = vunpack.c.l.b16 %v1002
      %v4047 = vunpack.c.l.b16 %v1003
      %v4048 = vunpack.c.l.b16 %v1004
      %v4049 = vunpack.c.l.b16 %v1005
      %v4050 = vunpack.c.l.b16 %v1006
      %v4051 = vunpack.c.l.b16 %v1007
      %v4052 = vunpack.c.l.b16 %v1008
      %v4053 = vunpack.c.l.b16 %v1009
      %v4054 = vunpack.c.l.b16 %v1010
      %v4055 = vunpack.c.l.b16 %v1011
      %v4056 = vunpack.c.l.b16 %v1012
      %v4057 = vunpack.c.l.b16 %v1013
      %v4058 = vunpack.c.l.b16 %v1014
      %v4059 = vunpack.c.l.b16 %v1015
      %v4060 = vunpack.c.l.b16 %v1016
      %v4061 = vunpack.c.l.b16 %v1017
      %v4062 = vunpack.c.l.b16 %v1018
      %v4063 = vunpack.c.l.b16 %v1019
      %v4064 = vunpack.c.l.b16 %v1020
      %v4065 = vunpack.c.l.b16 %v1021
      %v4066 = vunpack.c.l.b16 %v1022
      %v4067 = vunpack.c.l.b16 %v1023
      %v4068 = vunpack.c.l.b16 %v1024
      %v4069 = vunpack.c.l.b16 %v1025
      %v4070 = vunpack.c.l.b16 %v1026
      %v4071 = vunpack.c.l.b16 %v1027
      %v4072 = vunpack.c.l.b16 %v1028
      %v4073 = vunpack.c.l.b16 %v1029
      %v4074 = vunpack.c.l.b16 %v1030
      %v4075 = vunpack.c.l.b16 %v1031
      %v4076 = vunpack.c.l.b16 %v1032
      %v4077 = vunpack.c.l.b16 %v1033
      %v4078 = vunpack.c.l.b16 %v1034
      %v4079 = vunpack.c.l.b16 %v1035
      %v4080 = vunpack.c.l.b16 %v1036
      %v4081 = vunpack.c.l.b16 %v1037
      %v4082 = vunpack.c.l.b16 %v1038
      %v4083 = vunpack.c.l.b16 %v1039
      %v4084 = vunpack.c.l.b16 %v1040
      %v4085 = vunpack.c.l.b16 %v1041
      %v4086 = vunpack.c.l.b16 %v1042
      %v4087 = vunpack.c.l.b16 %v1043
      %v4088 = vunpack.c.l.b16 %v1044
      %v4089 = vunpack.c.l.b16 %v1045
      %v4090 = vunpack.c.l.b16 %v1046
      %v4091 = vunpack.c.l.b16 %v1047
      %v4092 = vunpack.c.l.b16 %v1048
      %v4093 = vunpack.c.l.b16 %v1049
      %v4094 = vunpack.c.l.b16 %v1050
      %v4095 = vunpack.c.l.b16 %v1051
      %v4096 = vunpack.c.l.b16 %v1052
      %v4097 = vunpack.c.l.b16 %v1053
      %v4098 = vunpack.c.l.b16 %v1054
      %v4099 = vunpack.c.l.b16 %v1055
      %v4100 = vunpack.c.l.b16 %v1056
      %v4101 = vunpack.c.l.b16 %v1057
      %v4102 = vunpack.c.l.b16 %v1058
      %v4103 = vunpack.c.l.b16 %v1059
      %v4104 = vunpack.c.l.b16 %v1060
      %v4105 = vunpack.c.l.b16 %v1061
      %v4106 = vunpack.c.l.b16 %v1062
      %v4107 = vunpack.c.l.b16 %v1063
      %v4108 = vunpack.c.l.b16 %v1064
      %v4109 = vunpack.c.l.b16 %v1065
      %v4110 = vunpack.c.l.b16 %v1066
      %v4111 = vunpack.c.l.b16 %v1067
      %v4112 = vunpack.c.l.b16 %v1068
      %v4113 = vunpack.c.l.b16 %v1069
      %v4114 = vunpack.c.l.b16 %v1070
      %v4115 = vunpack.c.l.b16 %v1071
      %v4116 = vunpack.c.l.b16 %v1072
      %v4117 = vunpack.c.l.b16 %v1073
      %v4118 = vunpack.c.l.b16 %v1074
      %v4119 = vunpack.c.l.b16 %v1075
      %v4120 = vunpack.c.l.b16 %v1076
      %v4121 = vunpack.c.l.b16 %v1077
      %v4122 = vunpack.c.l.b16 %v1078
      %v4123 = vunpack.c.l.b16 %v1079
      %v4124 = vunpack.c.l.b16 %v1080
      %v4125 = vunpack.c.l.b16 %v1081
      %v4126 = vunpack.c.l.b16 %v1082
      %v4127 = vunpack.c.l.b16 %v1083
      %v4128 = vunpack.c.l.b16 %v1084
      %v4129 = vunpack.c.l.b16 %v1085
      %v4130 = vunpack.c.l.b16 %v1086
      %v4131 = vunpack.c.l.b16 %v1087
      %v4132 = vunpack.c.l.b16 %v1088
      %v4133 = vunpack.c.l.b16 %v1089
      %v4134 = vunpack.c.l.b16 %v1090
      %v4135 = vunpack.c.l.b16 %v1091
      %v4136 = vunpack.c.l.b16 %v1092
      %v4137 = vunpack.c.l.b16 %v1093
      %v4138 = vunpack.c.l.b16 %v1094
      %v4139 = vpack.c.b16 %v3708, %v3707
      %v4140 = vpack.c.b16 %v3710, %v3709
      %v4141 = vpack.c.b16 %v3712, %v3711
      %v4142 = vpack.c.b16 %v3714, %v3713
      %v4143 = vpack.c.b16 %v3716, %v3715
      %v4144 = vpack.c.b16 %v3718, %v3717
      %v4145 = vpack.c.b16 %v3720, %v3719
      %v4146 = vpack.c.b16 %v3722, %v3721
      %v4147 = vpack.c.b16 %v3724, %v3723
      %v4148 = vpack.c.b16 %v3726, %v3725
      %v4149 = vpack.c.b16 %v3728, %v3727
      %v4150 = vpack.c.b16 %v3730, %v3729
      %v4151 = vpack.c.b16 %v3732, %v3731
      %v4152 = vpack.c.b16 %v3734, %v3733
      %v4153 = vpack.c.b16 %v3736, %v3735
      %v4154 = vpack.c.b16 %v3738, %v3737
      %v4155 = vpack.c.b16 %v3740, %v3739
      %v4156 = vpack.c.b16 %v3742, %v3741
      %v4157 = vpack.c.b16 %v3744, %v3743
      %v4158 = vpack.c.b16 %v3746, %v3745
      %v4159 = vpack.c.b16 %v3748, %v3747
      %v4160 = vpack.c.b16 %v3750, %v3749
      %v4161 = vpack.c.b16 %v3752, %v3751
      %v4162 = vpack.c.b16 %v3754, %v3753
      %v4163 = vpack.c.b16 %v3756, %v3755
      %v4164 = vpack.c.b16 %v3758, %v3757
      %v4165 = vpack.c.b16 %v3760, %v3759
      %v4166 = vpack.c.b16 %v3762, %v3761
      %v4167 = vpack.c.b16 %v3764, %v3763
      %v4168 = vpack.c.b16 %v3766, %v3765
      %v4169 = vpack.c.b16 %v3768, %v3767
      %v4170 = vpack.c.b16 %v3770, %v3769
      %v4171 = vpack.c.b16 %v3772, %v3771
      %v4172 = vpack.c.b16 %v3774, %v3773
      %v4173 = vpack.c.b16 %v3776, %v3775
      %v4174 = vpack.c.b16 %v3778, %v3777
      %v4175 = vpack.c.b16 %v3780, %v3779
      %v4176 = vpack.c.b16 %v3782, %v3781
      %v4177 = vpack.c.b16 %v3784, %v3783
      %v4178 = vpack.c.b16 %v3786, %v3785
      %v4179 = vpack.c.b16 %v3788, %v3787
      %v4180 = vpack.c.b16 %v3790, %v3789
      %v4181 = vpack.c.b16 %v3792, %v3791
      %v4182 = vpack.c.b16 %v3794, %v3793
      %v4183 = vpack.c.b16 %v3796, %v3795
      %v4184 = vpack.c.b16 %v3798, %v3797
      %v4185 = vpack.c.b16 %v3800, %v3799
      %v4186 = vpack.c.b16 %v3802, %v3801
      %v4187 = vpack.c.b16 %v3804, %v3803
      %v4188 = vpack.c.b16 %v3806, %v3805
      %v4189 = vpack.c.b16 %v3808, %v3807
      %v4190 = vpack.c.b16 %v3810, %v3809
      %v4191 = vpack.c.b16 %v3812, %v3811
      %v4192 = vpack.c.b16 %v3814, %v3813
      %v4193 = vpack.c.b16 %v3816, %v3815
      %v4194 = vpack.c.b16 %v3818, %v3817
      %v4195 = vpack.c.b16 %v3820, %v3819
      %v4196 = vpack.c.b16 %v3822, %v3821
      %v4197 = vpack.c.b16 %v3824, %v3823
      %v4198 = vpack.c.b16 %v3826, %v3825
      %v4199 = vpack.c.b16 %v3828, %v3827
      %v4200 = vpack.c.b16 %v3830, %v3829
      %v4201 = vpack.c.b16 %v3832, %v3831
      %v4202 = vpack.c.b16 %v3834, %v3833
      %v4203 = vpack.c.b16 %v3836, %v3835
      %v4204 = vpack.c.b16 %v3838, %v3837
      %v4205 = vpack.c.b16 %v3840, %v3839
      %v4206 = vpack.c.b16 %v3842, %v3841
      %v4207 = vpack.c.b16 %v3844, %v3843
      %v4208 = vpack.c.b16 %v3846, %v3845
      %v4209 = vpack.c.b16 %v3848, %v3847
      %v4210 = vpack.c.b16 %v3850, %v3849
      %v4211 = vpack.c.b16 %v3852, %v3851
      %v4212 = vpack.c.b16 %v3854, %v3853
      %v4213 = vpack.c.b16 %v3856, %v3855
      %v4214 = vpack.c.b16 %v3858, %v3857
      %v4215 = vpack.c.b16 %v3860, %v3859
      %v4216 = vpack.c.b16 %v3862, %v3861
      %v4217 = vpack.c.b16 %v3864, %v3863
      %v4218 = vpack.c.b16 %v3866, %v3865
      %v4219 = vpack.c.b16 %v3868, %v3867
      %v4220 = vpack.c.b16 %v3870, %v3869
      %v4221 = vpack.c.b16 %v3872, %v3871
      %v4222 = vpack.c.b16 %v3874, %v3873
      %v4223 = vpack.c.b16 %v3876, %v3875
      %v4224 = vpack.c.b16 %v3878, %v3877
      %v4225 = vpack.c.b16 %v3880, %v3879
      %v4226 = vpack.c.b16 %v3882, %v3881
      %v4227 = vpack.c.b16 %v3884, %v3883
      %v4228 = vpack.c.b16 %v3886, %v3885
      %v4229 = vpack.c.b16 %v3888, %v3887
      %v4230 = vpack.c.b16 %v3890, %v3889
      %v4231 = vpack.c.b16 %v3892, %v3891
      %v4232 = vpack.c.b16 %v3894, %v3893
      %v4233 = vpack.c.b16 %v3896, %v3895
      %v4234 = vpack.c.b16 %v3898, %v3897
      %v4235 = vpack.c.b16 %v3900, %v3899
      %v4236 = vpack.c.b16 %v3902, %v3901
      %v4237 = vpack.c.b16 %v3904, %v3903
      %v4238 = vpack.c.b16 %v3906, %v3905
      %v4239 = vpack.c.b16 %v3908, %v3907
      %v4240 = vpack.c.b16 %v3910, %v3909
      %v4241 = vpack.c.b16 %v3912, %v3911
      %v4242 = vpack.c.b16 %v3914, %v3913
      %v4243 = vpack.c.b16 %v3916, %v3915
      %v4244 = vpack.c.b16 %v3918, %v3917
      %v4245 = vpack.c.b16 %v3920, %v3919
      %v4246 = vpack.c.b16 %v3922, %v3921
      %v4247 = vpack.c.b16 %v3924, %v3923
      %v4248 = vpack.c.b16 %v3926, %v3925
      %v4249 = vpack.c.b16 %v3928, %v3927
      %v4250 = vpack.c.b16 %v3930, %v3929
      %v4251 = vpack.c.b16 %v3932, %v3931
      %v4252 = vpack.c.b16 %v3934, %v3933
      %v4253 = vpack.c.b16 %v3936, %v3935
      %v4254 = vpack.c.b16 %v3938, %v3937
      %v4255 = vpack.c.b16 %v3940, %v3939
      %v4256 = vpack.c.b16 %v3942, %v3941
      %v4257 = vpack.c.b16 %v3944, %v3943
      %v4258 = vpack.c.b16 %v3946, %v3945
      %v4259 = vpack.c.b16 %v3948, %v3947
      %v4260 = vpack.c.b16 %v3950, %v3949
      %v4261 = vpack.c.b16 %v3952, %v3951
      %v4262 = vpack.c.b16 %v3954, %v3953
      %v4263 = vpack.c.b16 %v3956, %v3955
      %v4264 = vpack.c.b16 %v3958, %v3957
      %v4265 = vpack.c.b16 %v3960, %v3959
      %v4266 = vpack.c.b16 %v3962, %v3961
      %v4267 = vpack.c.b16 %v3964, %v3963
      %v4268 = vpack.c.b16 %v3966, %v3965
      %v4269 = vpack.c.b16 %v3968, %v3967
      %v4270 = vpack.c.b16 %v3970, %v3969
      %v4271 = vpack.c.b16 %v3972, %v3971
      %v4272 = vpack.c.b16 %v3974, %v3973
      %v4273 = vpack.c.b16 %v3976, %v3975
      %v4274 = vpack.c.b16 %v3978, %v3977
      %v4275 = vpack.c.b16 %v3980, %v3979
      %v4276 = vpack.c.b16 %v3982, %v3981
      %v4277 = vpack.c.b16 %v3984, %v3983
      %v4278 = vpack.c.b16 %v3986, %v3985
      %v4279 = vpack.c.b16 %v3988, %v3987
      %v4280 = vpack.c.b16 %v3990, %v3989
      %v4281 = vpack.c.b16 %v3992, %v3991
      %v4282 = vpack.c.b16 %v3994, %v3993
      %v4283 = vpack.c.b16 %v3996, %v3995
      %v4284 = vpack.c.b16 %v3998, %v3997
      %v4285 = vpack.c.b16 %v4000, %v3999
      %v4286 = vpack.c.b16 %v4002, %v4001
      %v4287 = vpack.c.b16 %v4004, %v4003
      %v4288 = vpack.c.b16 %v4006, %v4005
      %v4289 = vpack.c.b16 %v4008, %v4007
      %v4290 = vpack.c.b16 %v4010, %v4009
      %v4291 = vpack.c.b16 %v4012, %v4011
      %v4292 = vpack.c.b16 %v4014, %v4013
      %v4293 = vpack.c.b16 %v4016, %v4015
      %v4294 = vpack.c.b16 %v4018, %v4017
      %v4295 = vpack.c.b16 %v4020, %v4019
      %v4296 = vpack.c.b16 %v4022, %v4021
      %v4297 = vpack.c.b16 %v4024, %v4023
      %v4298 = vpack.c.b16 %v4026, %v4025
      %v4299 = vpack.c.b16 %v4028, %v4027
      %v4300 = vpack.c.b16 %v4030, %v4029
      %v4301 = vpack.c.b16 %v4032, %v4031
      %v4302 = vpack.c.b16 %v4034, %v4033
      %v4303 = vpack.c.b16 %v4036, %v4035
      %v4304 = vpack.c.b16 %v4038, %v4037
      %v4305 = vpack.c.b16 %v4040, %v4039
      %v4306 = vpack.c.b16 %v4042, %v4041
      %v4307 = vpack.c.b16 %v4044, %v4043
      %v4308 = vpack.c.b16 %v4046, %v4045
      %v4309 = vpack.c.b16 %v4048, %v4047
      %v4310 = vpack.c.b16 %v4050, %v4049
      %v4311 = vpack.c.b16 %v4052, %v4051
      %v4312 = vpack.c.b16 %v4054, %v4053
      %v4313 = vpack.c.b16 %v4056, %v4055
      %v4314 = vpack.c.b16 %v4058, %v4057
      %v4315 = vpack.c.b16 %v4060, %v4059
      %v4316 = vpack.c.b16 %v4062, %v4061
      %v4317 = vpack.c.b16 %v4064, %v4063
      %v4318 = vpack.c.b16 %v4066, %v4065
      %v4319 = vpack.c.b16 %v4068, %v4067
      %v4320 = vpack.c.b16 %v4070, %v4069
      %v4321 = vpack.c.b16 %v4072, %v4071
      %v4322 = vpack.c.b16 %v4074, %v4073
      %v4323 = vpack.c.b16 %v4076, %v4075
      %v4324 = vpack.c.b16 %v4078, %v4077
      %v4325 = vpack.c.b16 %v4080, %v4079
      %v4326 = vpack.c.b16 %v4082, %v4081
      %v4327 = vpack.c.b16 %v4084, %v4083
      %v4328 = vpack.c.b16 %v4086, %v4085
      %v4329 = vpack.c.b16 %v4088, %v4087
      %v4330 = vpack.c.b16 %v4090, %v4089
      %v4331 = vpack.c.b16 %v4092, %v4091
      %v4332 = vpack.c.b16 %v4094, %v4093
      %v4333 = vpack.c.b16 %v4096, %v4095
      %v4334 = vpack.c.b16 %v4098, %v4097
      %v4335 = vpack.c.b16 %v4100, %v4099
      %v4336 = vpack.c.b16 %v4102, %v4101
      %v4337 = vpack.c.b16 %v4104, %v4103
      %v4338 = vpack.c.b16 %v4106, %v4105
      %v4339 = vpack.c.b16 %v4108, %v4107
      %v4340 = vpack.c.b16 %v4110, %v4109
      %v4341 = vpack.c.b16 %v4112, %v4111
      %v4342 = vpack.c.b16 %v4114, %v4113
      %v4343 = vpack.c.b16 %v4116, %v4115
      %v4344 = vpack.c.b16 %v4118, %v4117
      %v4345 = vpack.c.b16 %v4120, %v4119
      %v4346 = vpack.c.b16 %v4122, %v4121
      %v4347 = vpack.c.b16 %v4124, %v4123
      %v4348 = vpack.c.b16 %v4126, %v4125
      %v4349 = vpack.c.b16 %v4128, %v4127
      %v4350 = vpack.c.b16 %v4130, %v4129
      %v4351 = vpack.c.b16 %v4132, %v4131
      %v4352 = vpack.c.b16 %v4134, %v4133
      %v4353 = vpack.c.b16 %v4136, %v4135
      %v4354 = vpack.c.b16 %v4138, %v4137
      %4571 = vmatpush.bf16.msra.mxu0 %v4146
      %4572 = vmatpush.bf16.msra.mxu0 %v4145
      %4573 = vmatpush.bf16.msra.mxu0 %v4144
      %4574 = vmatpush.bf16.msra.mxu0 %v4143
      %4575 = vmatpush.bf16.msra.mxu0 %v4142
      %4576 = vmatpush.bf16.msra.mxu0 %v4141
      %4577 = vmatpush.bf16.msra.mxu0 %v4140
      %4578 = vmatpush.bf16.msra.mxu0 %v4139
      %4579 = vmatmul.bf16.gmra.mxu0 %v2411
      %v4580 = vpop.f32.mrf.mxu0
      %v4581 = vadd.f32 %v1097, %v4580
      %v4582 = vpop.f32.mrf.mxu0
      %v4583 = vadd.f32 %v1097, %v4582
      %4584 = vmatmul.bf16.gmra.mxu0 %v2438
      %v4585 = vpop.f32.mrf.mxu0
      %v4586 = vadd.f32 %v1097, %v4585
      %v4587 = vpop.f32.mrf.mxu0
      %v4588 = vadd.f32 %v1097, %v4587
      %4589 = vmatmul.bf16.gmra.mxu0 %v2465
      %v4590 = vpop.f32.mrf.mxu0
      %v4591 = vadd.f32 %v1097, %v4590
      %v4592 = vpop.f32.mrf.mxu0
      %v4593 = vadd.f32 %v1097, %v4592
      %4594 = vmatmul.bf16.gmra.mxu0 %v2492
      %v4595 = vpop.f32.mrf.mxu0
      %v4596 = vadd.f32 %v1097, %v4595
      %v4597 = vpop.f32.mrf.mxu0
      %v4598 = vadd.f32 %v1097, %v4597
      %4599 = vmatmul.bf16.gmra.mxu0 %v2519
      %v4600 = vpop.f32.mrf.mxu0
      %v4601 = vadd.f32 %v1097, %v4600
      %v4602 = vpop.f32.mrf.mxu0
      %v4603 = vadd.f32 %v1097, %v4602
      %4604 = vmatmul.bf16.gmra.mxu0 %v2546
      %v4605 = vpop.f32.mrf.mxu0
      %v4606 = vadd.f32 %v1097, %v4605
      %v4607 = vpop.f32.mrf.mxu0
      %v4608 = vadd.f32 %v1097, %v4607
      %4609 = vmatmul.bf16.gmra.mxu0 %v2573
      %v4610 = vpop.f32.mrf.mxu0
      %v4611 = vadd.f32 %v1097, %v4610
      %v4612 = vpop.f32.mrf.mxu0
      %v4613 = vadd.f32 %v1097, %v4612
      %4614 = vmatmul.bf16.gmra.mxu0 %v2600
      %v4615 = vpop.f32.mrf.mxu0
      %v4616 = vadd.f32 %v1097, %v4615
      %v4617 = vpop.f32.mrf.mxu0
      %v4618 = vadd.f32 %v1097, %v4617
      %4619 = vmatmul.bf16.gmra.mxu0 %v2627
      %v4620 = vpop.f32.mrf.mxu0
      %v4621 = vadd.f32 %v1097, %v4620
      %v4622 = vpop.f32.mrf.mxu0
      %v4623 = vadd.f32 %v1097, %v4622
      %4624 = vmatmul.bf16.gmra.mxu0 %v2654
      %v4625 = vpop.f32.mrf.mxu0
      %v4626 = vadd.f32 %v1097, %v4625
      %v4627 = vpop.f32.mrf.mxu0
      %v4628 = vadd.f32 %v1097, %v4627
      %4629 = vmatmul.bf16.gmra.mxu0 %v2681
      %v4630 = vpop.f32.mrf.mxu0
      %v4631 = vadd.f32 %v1097, %v4630
      %v4632 = vpop.f32.mrf.mxu0
      %v4633 = vadd.f32 %v1097, %v4632
      %4634 = vmatmul.bf16.gmra.mxu0 %v2708
      %v4635 = vpop.f32.mrf.mxu0
      %v4636 = vadd.f32 %v1097, %v4635
      %v4637 = vpop.f32.mrf.mxu0
      %v4638 = vadd.f32 %v1097, %v4637
      %4639 = vmatmul.bf16.gmra.mxu0 %v2735
      %v4640 = vpop.f32.mrf.mxu0
      %v4641 = vadd.f32 %v1097, %v4640
      %v4642 = vpop.f32.mrf.mxu0
      %v4643 = vadd.f32 %v1097, %v4642
      %4644 = vmatmul.bf16.gmra.mxu0 %v2762
      %v4645 = vpop.f32.mrf.mxu0
      %v4646 = vadd.f32 %v1097, %v4645
      %v4647 = vpop.f32.mrf.mxu0
      %v4648 = vadd.f32 %v1097, %v4647
      %4649 = vmatmul.bf16.gmra.mxu0 %v2789
      %v4650 = vpop.f32.mrf.mxu0
      %v4651 = vadd.f32 %v1097, %v4650
      %v4652 = vpop.f32.mrf.mxu0
      %v4653 = vadd.f32 %v1097, %v4652
      %4654 = vmatmul.bf16.gmra.mxu0 %v2816
      %v4655 = vpop.f32.mrf.mxu0
      %v4656 = vadd.f32 %v1097, %v4655
      %v4657 = vpop.f32.mrf.mxu0
      %v4658 = vadd.f32 %v1097, %v4657
      %4659 = vdwg.mxu0
      %4660 = vmatpush.bf16.msra.mxu0 %v4154
      %4661 = vmatpush.bf16.msra.mxu0 %v4153
      %4662 = vmatpush.bf16.msra.mxu0 %v4152
      %4663 = vmatpush.bf16.msra.mxu0 %v4151
      %4664 = vmatpush.bf16.msra.mxu0 %v4150
      %4665 = vmatpush.bf16.msra.mxu0 %v4149
      %4666 = vmatpush.bf16.msra.mxu0 %v4148
      %4667 = vmatpush.bf16.msra.mxu0 %v4147
      %4668 = vmatmul.bf16.gmra.mxu0 %v2412
      %v4669 = vpop.f32.mrf.mxu0
      %v4670 = vadd.f32 %v4581, %v4669
      %v4671 = vpop.f32.mrf.mxu0
      %v4672 = vadd.f32 %v4583, %v4671
      %4673 = vmatmul.bf16.gmra.mxu0 %v2439
      %v4674 = vpop.f32.mrf.mxu0
      %v4675 = vadd.f32 %v4586, %v4674
      %v4676 = vpop.f32.mrf.mxu0
      %v4677 = vadd.f32 %v4588, %v4676
      %4678 = vmatmul.bf16.gmra.mxu0 %v2466
      %v4679 = vpop.f32.mrf.mxu0
      %v4680 = vadd.f32 %v4591, %v4679
      %v4681 = vpop.f32.mrf.mxu0
      %v4682 = vadd.f32 %v4593, %v4681
      %4683 = vmatmul.bf16.gmra.mxu0 %v2493
      %v4684 = vpop.f32.mrf.mxu0
      %v4685 = vadd.f32 %v4596, %v4684
      %v4686 = vpop.f32.mrf.mxu0
      %v4687 = vadd.f32 %v4598, %v4686
      %4688 = vmatmul.bf16.gmra.mxu0 %v2520
      %v4689 = vpop.f32.mrf.mxu0
      %v4690 = vadd.f32 %v4601, %v4689
      %v4691 = vpop.f32.mrf.mxu0
      %v4692 = vadd.f32 %v4603, %v4691
      %4693 = vmatmul.bf16.gmra.mxu0 %v2547
      %v4694 = vpop.f32.mrf.mxu0
      %v4695 = vadd.f32 %v4606, %v4694
      %v4696 = vpop.f32.mrf.mxu0
      %v4697 = vadd.f32 %v4608, %v4696
      %4698 = vmatmul.bf16.gmra.mxu0 %v2574
      %v4699 = vpop.f32.mrf.mxu0
      %v4700 = vadd.f32 %v4611, %v4699
      %v4701 = vpop.f32.mrf.mxu0
      %v4702 = vadd.f32 %v4613, %v4701
      %4703 = vmatmul.bf16.gmra.mxu0 %v2601
      %v4704 = vpop.f32.mrf.mxu0
      %v4705 = vadd.f32 %v4616, %v4704
      %v4706 = vpop.f32.mrf.mxu0
      %v4707 = vadd.f32 %v4618, %v4706
      %4708 = vmatmul.bf16.gmra.mxu0 %v2628
      %v4709 = vpop.f32.mrf.mxu0
      %v4710 = vadd.f32 %v4621, %v4709
      %v4711 = vpop.f32.mrf.mxu0
      %v4712 = vadd.f32 %v4623, %v4711
      %4713 = vmatmul.bf16.gmra.mxu0 %v2655
      %v4714 = vpop.f32.mrf.mxu0
      %v4715 = vadd.f32 %v4626, %v4714
      %v4716 = vpop.f32.mrf.mxu0
      %v4717 = vadd.f32 %v4628, %v4716
      %4718 = vmatmul.bf16.gmra.mxu0 %v2682
      %v4719 = vpop.f32.mrf.mxu0
      %v4720 = vadd.f32 %v4631, %v4719
      %v4721 = vpop.f32.mrf.mxu0
      %v4722 = vadd.f32 %v4633, %v4721
      %4723 = vmatmul.bf16.gmra.mxu0 %v2709
      %v4724 = vpop.f32.mrf.mxu0
      %v4725 = vadd.f32 %v4636, %v4724
      %v4726 = vpop.f32.mrf.mxu0
      %v4727 = vadd.f32 %v4638, %v4726
      %4728 = vmatmul.bf16.gmra.mxu0 %v2736
      %v4729 = vpop.f32.mrf.mxu0
      %v4730 = vadd.f32 %v4641, %v4729
      %v4731 = vpop.f32.mrf.mxu0
      %v4732 = vadd.f32 %v4643, %v4731
      %4733 = vmatmul.bf16.gmra.mxu0 %v2763
      %v4734 = vpop.f32.mrf.mxu0
      %v4735 = vadd.f32 %v4646, %v4734
      %v4736 = vpop.f32.mrf.mxu0
      %v4737 = vadd.f32 %v4648, %v4736
      %4738 = vmatmul.bf16.gmra.mxu0 %v2790
      %v4739 = vpop.f32.mrf.mxu0
      %v4740 = vadd.f32 %v4651, %v4739
      %v4741 = vpop.f32.mrf.mxu0
      %v4742 = vadd.f32 %v4653, %v4741
      %4743 = vmatmul.bf16.gmra.mxu0 %v2817
      %v4744 = vpop.f32.mrf.mxu0
      %v4745 = vadd.f32 %v4656, %v4744
      %v4746 = vpop.f32.mrf.mxu0
      %v4747 = vadd.f32 %v4658, %v4746
      %4748 = vdwg.mxu0
      %4749 = vmatpush.bf16.msra.mxu0 %v4162
      %4750 = vmatpush.bf16.msra.mxu0 %v4161
      %4751 = vmatpush.bf16.msra.mxu0 %v4160
      %4752 = vmatpush.bf16.msra.mxu0 %v4159
      %4753 = vmatpush.bf16.msra.mxu0 %v4158
      %4754 = vmatpush.bf16.msra.mxu0 %v4157
      %4755 = vmatpush.bf16.msra.mxu0 %v4156
      %4756 = vmatpush.bf16.msra.mxu0 %v4155
      %4757 = vmatmul.bf16.gmra.mxu0 %v2413
      %v4758 = vpop.f32.mrf.mxu0
      %v4759 = vadd.f32 %v4670, %v4758
      %v4760 = vpop.f32.mrf.mxu0
      %v4761 = vadd.f32 %v4672, %v4760
      %4762 = vmatmul.bf16.gmra.mxu0 %v2440
      %v4763 = vpop.f32.mrf.mxu0
      %v4764 = vadd.f32 %v4675, %v4763
      %v4765 = vpop.f32.mrf.mxu0
      %v4766 = vadd.f32 %v4677, %v4765
      %4767 = vmatmul.bf16.gmra.mxu0 %v2467
      %v4768 = vpop.f32.mrf.mxu0
      %v4769 = vadd.f32 %v4680, %v4768
      %v4770 = vpop.f32.mrf.mxu0
      %v4771 = vadd.f32 %v4682, %v4770
      %4772 = vmatmul.bf16.gmra.mxu0 %v2494
      %v4773 = vpop.f32.mrf.mxu0
      %v4774 = vadd.f32 %v4685, %v4773
      %v4775 = vpop.f32.mrf.mxu0
      %v4776 = vadd.f32 %v4687, %v4775
      %4777 = vmatmul.bf16.gmra.mxu0 %v2521
      %v4778 = vpop.f32.mrf.mxu0
      %v4779 = vadd.f32 %v4690, %v4778
      %v4780 = vpop.f32.mrf.mxu0
      %v4781 = vadd.f32 %v4692, %v4780
      %4782 = vmatmul.bf16.gmra.mxu0 %v2548
      %v4783 = vpop.f32.mrf.mxu0
      %v4784 = vadd.f32 %v4695, %v4783
      %v4785 = vpop.f32.mrf.mxu0
      %v4786 = vadd.f32 %v4697, %v4785
      %4787 = vmatmul.bf16.gmra.mxu0 %v2575
      %v4788 = vpop.f32.mrf.mxu0
      %v4789 = vadd.f32 %v4700, %v4788
      %v4790 = vpop.f32.mrf.mxu0
      %v4791 = vadd.f32 %v4702, %v4790
      %4792 = vmatmul.bf16.gmra.mxu0 %v2602
      %v4793 = vpop.f32.mrf.mxu0
      %v4794 = vadd.f32 %v4705, %v4793
      %v4795 = vpop.f32.mrf.mxu0
      %v4796 = vadd.f32 %v4707, %v4795
      %4797 = vmatmul.bf16.gmra.mxu0 %v2629
      %v4798 = vpop.f32.mrf.mxu0
      %v4799 = vadd.f32 %v4710, %v4798
      %v4800 = vpop.f32.mrf.mxu0
      %v4801 = vadd.f32 %v4712, %v4800
      %4802 = vmatmul.bf16.gmra.mxu0 %v2656
      %v4803 = vpop.f32.mrf.mxu0
      %v4804 = vadd.f32 %v4715, %v4803
      %v4805 = vpop.f32.mrf.mxu0
      %v4806 = vadd.f32 %v4717, %v4805
      %4807 = vmatmul.bf16.gmra.mxu0 %v2683
      %v4808 = vpop.f32.mrf.mxu0
      %v4809 = vadd.f32 %v4720, %v4808
      %v4810 = vpop.f32.mrf.mxu0
      %v4811 = vadd.f32 %v4722, %v4810
      %4812 = vmatmul.bf16.gmra.mxu0 %v2710
      %v4813 = vpop.f32.mrf.mxu0
      %v4814 = vadd.f32 %v4725, %v4813
      %v4815 = vpop.f32.mrf.mxu0
      %v4816 = vadd.f32 %v4727, %v4815
      %4817 = vmatmul.bf16.gmra.mxu0 %v2737
      %v4818 = vpop.f32.mrf.mxu0
      %v4819 = vadd.f32 %v4730, %v4818
      %v4820 = vpop.f32.mrf.mxu0
      %v4821 = vadd.f32 %v4732, %v4820
      %4822 = vmatmul.bf16.gmra.mxu0 %v2764
      %v4823 = vpop.f32.mrf.mxu0
      %v4824 = vadd.f32 %v4735, %v4823
      %v4825 = vpop.f32.mrf.mxu0
      %v4826 = vadd.f32 %v4737, %v4825
      %4827 = vmatmul.bf16.gmra.mxu0 %v2791
      %v4828 = vpop.f32.mrf.mxu0
      %v4829 = vadd.f32 %v4740, %v4828
      %v4830 = vpop.f32.mrf.mxu0
      %v4831 = vadd.f32 %v4742, %v4830
      %4832 = vmatmul.bf16.gmra.mxu0 %v2818
      %v4833 = vpop.f32.mrf.mxu0
      %v4834 = vadd.f32 %v4745, %v4833
      %v4835 = vpop.f32.mrf.mxu0
      %v4836 = vadd.f32 %v4747, %v4835
      %4837 = vdwg.mxu0
      %4838 = vmatpush.bf16.msra.mxu0 %v4170
      %4839 = vmatpush.bf16.msra.mxu0 %v4169
      %4840 = vmatpush.bf16.msra.mxu0 %v4168
      %4841 = vmatpush.bf16.msra.mxu0 %v4167
      %4842 = vmatpush.bf16.msra.mxu0 %v4166
      %4843 = vmatpush.bf16.msra.mxu0 %v4165
      %4844 = vmatpush.bf16.msra.mxu0 %v4164
      %4845 = vmatpush.bf16.msra.mxu0 %v4163
      %4846 = vmatmul.bf16.gmra.mxu0 %v2414
      %v4847 = vpop.f32.mrf.mxu0
      %v4848 = vadd.f32 %v4759, %v4847
      %v4849 = vpop.f32.mrf.mxu0
      %v4850 = vadd.f32 %v4761, %v4849
      %4851 = vmatmul.bf16.gmra.mxu0 %v2441
      %v4852 = vpop.f32.mrf.mxu0
      %v4853 = vadd.f32 %v4764, %v4852
      %v4854 = vpop.f32.mrf.mxu0
      %v4855 = vadd.f32 %v4766, %v4854
      %4856 = vmatmul.bf16.gmra.mxu0 %v2468
      %v4857 = vpop.f32.mrf.mxu0
      %v4858 = vadd.f32 %v4769, %v4857
      %v4859 = vpop.f32.mrf.mxu0
      %v4860 = vadd.f32 %v4771, %v4859
      %4861 = vmatmul.bf16.gmra.mxu0 %v2495
      %v4862 = vpop.f32.mrf.mxu0
      %v4863 = vadd.f32 %v4774, %v4862
      %v4864 = vpop.f32.mrf.mxu0
      %v4865 = vadd.f32 %v4776, %v4864
      %4866 = vmatmul.bf16.gmra.mxu0 %v2522
      %v4867 = vpop.f32.mrf.mxu0
      %v4868 = vadd.f32 %v4779, %v4867
      %v4869 = vpop.f32.mrf.mxu0
      %v4870 = vadd.f32 %v4781, %v4869
      %4871 = vmatmul.bf16.gmra.mxu0 %v2549
      %v4872 = vpop.f32.mrf.mxu0
      %v4873 = vadd.f32 %v4784, %v4872
      %v4874 = vpop.f32.mrf.mxu0
      %v4875 = vadd.f32 %v4786, %v4874
      %4876 = vmatmul.bf16.gmra.mxu0 %v2576
      %v4877 = vpop.f32.mrf.mxu0
      %v4878 = vadd.f32 %v4789, %v4877
      %v4879 = vpop.f32.mrf.mxu0
      %v4880 = vadd.f32 %v4791, %v4879
      %4881 = vmatmul.bf16.gmra.mxu0 %v2603
      %v4882 = vpop.f32.mrf.mxu0
      %v4883 = vadd.f32 %v4794, %v4882
      %v4884 = vpop.f32.mrf.mxu0
      %v4885 = vadd.f32 %v4796, %v4884
      %4886 = vmatmul.bf16.gmra.mxu0 %v2630
      %v4887 = vpop.f32.mrf.mxu0
      %v4888 = vadd.f32 %v4799, %v4887
      %v4889 = vpop.f32.mrf.mxu0
      %v4890 = vadd.f32 %v4801, %v4889
      %4891 = vmatmul.bf16.gmra.mxu0 %v2657
      %v4892 = vpop.f32.mrf.mxu0
      %v4893 = vadd.f32 %v4804, %v4892
      %v4894 = vpop.f32.mrf.mxu0
      %v4895 = vadd.f32 %v4806, %v4894
      %4896 = vmatmul.bf16.gmra.mxu0 %v2684
      %v4897 = vpop.f32.mrf.mxu0
      %v4898 = vadd.f32 %v4809, %v4897
      %v4899 = vpop.f32.mrf.mxu0
      %v4900 = vadd.f32 %v4811, %v4899
      %4901 = vmatmul.bf16.gmra.mxu0 %v2711
      %v4902 = vpop.f32.mrf.mxu0
      %v4903 = vadd.f32 %v4814, %v4902
      %v4904 = vpop.f32.mrf.mxu0
      %v4905 = vadd.f32 %v4816, %v4904
      %4906 = vmatmul.bf16.gmra.mxu0 %v2738
      %v4907 = vpop.f32.mrf.mxu0
      %v4908 = vadd.f32 %v4819, %v4907
      %v4909 = vpop.f32.mrf.mxu0
      %v4910 = vadd.f32 %v4821, %v4909
      %4911 = vmatmul.bf16.gmra.mxu0 %v2765
      %v4912 = vpop.f32.mrf.mxu0
      %v4913 = vadd.f32 %v4824, %v4912
      %v4914 = vpop.f32.mrf.mxu0
      %v4915 = vadd.f32 %v4826, %v4914
      %4916 = vmatmul.bf16.gmra.mxu0 %v2792
      %v4917 = vpop.f32.mrf.mxu0
      %v4918 = vadd.f32 %v4829, %v4917
      %v4919 = vpop.f32.mrf.mxu0
      %v4920 = vadd.f32 %v4831, %v4919
      %4921 = vmatmul.bf16.gmra.mxu0 %v2819
      %v4922 = vpop.f32.mrf.mxu0
      %v4923 = vadd.f32 %v4834, %v4922
      %v4924 = vpop.f32.mrf.mxu0
      %v4925 = vadd.f32 %v4836, %v4924
      %4926 = vdwg.mxu0
      %4927 = vmatpush.bf16.msra.mxu0 %v4178
      %4928 = vmatpush.bf16.msra.mxu0 %v4177
      %4929 = vmatpush.bf16.msra.mxu0 %v4176
      %4930 = vmatpush.bf16.msra.mxu0 %v4175
      %4931 = vmatpush.bf16.msra.mxu0 %v4174
      %4932 = vmatpush.bf16.msra.mxu0 %v4173
      %4933 = vmatpush.bf16.msra.mxu0 %v4172
      %4934 = vmatpush.bf16.msra.mxu0 %v4171
      %4935 = vmatmul.bf16.gmra.mxu0 %v2415
      %v4936 = vpop.f32.mrf.mxu0
      %v4937 = vadd.f32 %v4848, %v4936
      %v4938 = vpop.f32.mrf.mxu0
      %v4939 = vadd.f32 %v4850, %v4938
      %4940 = vmatmul.bf16.gmra.mxu0 %v2442
      %v4941 = vpop.f32.mrf.mxu0
      %v4942 = vadd.f32 %v4853, %v4941
      %v4943 = vpop.f32.mrf.mxu0
      %v4944 = vadd.f32 %v4855, %v4943
      %4945 = vmatmul.bf16.gmra.mxu0 %v2469
      %v4946 = vpop.f32.mrf.mxu0
      %v4947 = vadd.f32 %v4858, %v4946
      %v4948 = vpop.f32.mrf.mxu0
      %v4949 = vadd.f32 %v4860, %v4948
      %4950 = vmatmul.bf16.gmra.mxu0 %v2496
      %v4951 = vpop.f32.mrf.mxu0
      %v4952 = vadd.f32 %v4863, %v4951
      %v4953 = vpop.f32.mrf.mxu0
      %v4954 = vadd.f32 %v4865, %v4953
      %4955 = vmatmul.bf16.gmra.mxu0 %v2523
      %v4956 = vpop.f32.mrf.mxu0
      %v4957 = vadd.f32 %v4868, %v4956
      %v4958 = vpop.f32.mrf.mxu0
      %v4959 = vadd.f32 %v4870, %v4958
      %4960 = vmatmul.bf16.gmra.mxu0 %v2550
      %v4961 = vpop.f32.mrf.mxu0
      %v4962 = vadd.f32 %v4873, %v4961
      %v4963 = vpop.f32.mrf.mxu0
      %v4964 = vadd.f32 %v4875, %v4963
      %4965 = vmatmul.bf16.gmra.mxu0 %v2577
      %v4966 = vpop.f32.mrf.mxu0
      %v4967 = vadd.f32 %v4878, %v4966
      %v4968 = vpop.f32.mrf.mxu0
      %v4969 = vadd.f32 %v4880, %v4968
      %4970 = vmatmul.bf16.gmra.mxu0 %v2604
      %v4971 = vpop.f32.mrf.mxu0
      %v4972 = vadd.f32 %v4883, %v4971
      %v4973 = vpop.f32.mrf.mxu0
      %v4974 = vadd.f32 %v4885, %v4973
      %4975 = vmatmul.bf16.gmra.mxu0 %v2631
      %v4976 = vpop.f32.mrf.mxu0
      %v4977 = vadd.f32 %v4888, %v4976
      %v4978 = vpop.f32.mrf.mxu0
      %v4979 = vadd.f32 %v4890, %v4978
      %4980 = vmatmul.bf16.gmra.mxu0 %v2658
      %v4981 = vpop.f32.mrf.mxu0
      %v4982 = vadd.f32 %v4893, %v4981
      %v4983 = vpop.f32.mrf.mxu0
      %v4984 = vadd.f32 %v4895, %v4983
      %4985 = vmatmul.bf16.gmra.mxu0 %v2685
      %v4986 = vpop.f32.mrf.mxu0
      %v4987 = vadd.f32 %v4898, %v4986
      %v4988 = vpop.f32.mrf.mxu0
      %v4989 = vadd.f32 %v4900, %v4988
      %4990 = vmatmul.bf16.gmra.mxu0 %v2712
      %v4991 = vpop.f32.mrf.mxu0
      %v4992 = vadd.f32 %v4903, %v4991
      %v4993 = vpop.f32.mrf.mxu0
      %v4994 = vadd.f32 %v4905, %v4993
      %4995 = vmatmul.bf16.gmra.mxu0 %v2739
      %v4996 = vpop.f32.mrf.mxu0
      %v4997 = vadd.f32 %v4908, %v4996
      %v4998 = vpop.f32.mrf.mxu0
      %v4999 = vadd.f32 %v4910, %v4998
      %5000 = vmatmul.bf16.gmra.mxu0 %v2766
      %v5001 = vpop.f32.mrf.mxu0
      %v5002 = vadd.f32 %v4913, %v5001
      %v5003 = vpop.f32.mrf.mxu0
      %v5004 = vadd.f32 %v4915, %v5003
      %5005 = vmatmul.bf16.gmra.mxu0 %v2793
      %v5006 = vpop.f32.mrf.mxu0
      %v5007 = vadd.f32 %v4918, %v5006
      %v5008 = vpop.f32.mrf.mxu0
      %v5009 = vadd.f32 %v4920, %v5008
      %5010 = vmatmul.bf16.gmra.mxu0 %v2820
      %v5011 = vpop.f32.mrf.mxu0
      %v5012 = vadd.f32 %v4923, %v5011
      %v5013 = vpop.f32.mrf.mxu0
      %v5014 = vadd.f32 %v4925, %v5013
      %5015 = vdwg.mxu0
      %5016 = vmatpush.bf16.msra.mxu0 %v4186
      %5017 = vmatpush.bf16.msra.mxu0 %v4185
      %5018 = vmatpush.bf16.msra.mxu0 %v4184
      %5019 = vmatpush.bf16.msra.mxu0 %v4183
      %5020 = vmatpush.bf16.msra.mxu0 %v4182
      %5021 = vmatpush.bf16.msra.mxu0 %v4181
      %5022 = vmatpush.bf16.msra.mxu0 %v4180
      %5023 = vmatpush.bf16.msra.mxu0 %v4179
      %5024 = vmatmul.bf16.gmra.mxu0 %v2416
      %v5025 = vpop.f32.mrf.mxu0
      %v5026 = vadd.f32 %v4937, %v5025
      %v5027 = vpop.f32.mrf.mxu0
      %v5028 = vadd.f32 %v4939, %v5027
      %5029 = vmatmul.bf16.gmra.mxu0 %v2443
      %v5030 = vpop.f32.mrf.mxu0
      %v5031 = vadd.f32 %v4942, %v5030
      %v5032 = vpop.f32.mrf.mxu0
      %v5033 = vadd.f32 %v4944, %v5032
      %5034 = vmatmul.bf16.gmra.mxu0 %v2470
      %v5035 = vpop.f32.mrf.mxu0
      %v5036 = vadd.f32 %v4947, %v5035
      %v5037 = vpop.f32.mrf.mxu0
      %v5038 = vadd.f32 %v4949, %v5037
      %5039 = vmatmul.bf16.gmra.mxu0 %v2497
      %v5040 = vpop.f32.mrf.mxu0
      %v5041 = vadd.f32 %v4952, %v5040
      %v5042 = vpop.f32.mrf.mxu0
      %v5043 = vadd.f32 %v4954, %v5042
      %5044 = vmatmul.bf16.gmra.mxu0 %v2524
      %v5045 = vpop.f32.mrf.mxu0
      %v5046 = vadd.f32 %v4957, %v5045
      %v5047 = vpop.f32.mrf.mxu0
      %v5048 = vadd.f32 %v4959, %v5047
      %5049 = vmatmul.bf16.gmra.mxu0 %v2551
      %v5050 = vpop.f32.mrf.mxu0
      %v5051 = vadd.f32 %v4962, %v5050
      %v5052 = vpop.f32.mrf.mxu0
      %v5053 = vadd.f32 %v4964, %v5052
      %5054 = vmatmul.bf16.gmra.mxu0 %v2578
      %v5055 = vpop.f32.mrf.mxu0
      %v5056 = vadd.f32 %v4967, %v5055
      %v5057 = vpop.f32.mrf.mxu0
      %v5058 = vadd.f32 %v4969, %v5057
      %5059 = vmatmul.bf16.gmra.mxu0 %v2605
      %v5060 = vpop.f32.mrf.mxu0
      %v5061 = vadd.f32 %v4972, %v5060
      %v5062 = vpop.f32.mrf.mxu0
      %v5063 = vadd.f32 %v4974, %v5062
      %5064 = vmatmul.bf16.gmra.mxu0 %v2632
      %v5065 = vpop.f32.mrf.mxu0
      %v5066 = vadd.f32 %v4977, %v5065
      %v5067 = vpop.f32.mrf.mxu0
      %v5068 = vadd.f32 %v4979, %v5067
      %5069 = vmatmul.bf16.gmra.mxu0 %v2659
      %v5070 = vpop.f32.mrf.mxu0
      %v5071 = vadd.f32 %v4982, %v5070
      %v5072 = vpop.f32.mrf.mxu0
      %v5073 = vadd.f32 %v4984, %v5072
      %5074 = vmatmul.bf16.gmra.mxu0 %v2686
      %v5075 = vpop.f32.mrf.mxu0
      %v5076 = vadd.f32 %v4987, %v5075
      %v5077 = vpop.f32.mrf.mxu0
      %v5078 = vadd.f32 %v4989, %v5077
      %5079 = vmatmul.bf16.gmra.mxu0 %v2713
      %v5080 = vpop.f32.mrf.mxu0
      %v5081 = vadd.f32 %v4992, %v5080
      %v5082 = vpop.f32.mrf.mxu0
      %v5083 = vadd.f32 %v4994, %v5082
      %5084 = vmatmul.bf16.gmra.mxu0 %v2740
      %v5085 = vpop.f32.mrf.mxu0
      %v5086 = vadd.f32 %v4997, %v5085
      %v5087 = vpop.f32.mrf.mxu0
      %v5088 = vadd.f32 %v4999, %v5087
      %5089 = vmatmul.bf16.gmra.mxu0 %v2767
      %v5090 = vpop.f32.mrf.mxu0
      %v5091 = vadd.f32 %v5002, %v5090
      %v5092 = vpop.f32.mrf.mxu0
      %v5093 = vadd.f32 %v5004, %v5092
      %5094 = vmatmul.bf16.gmra.mxu0 %v2794
      %v5095 = vpop.f32.mrf.mxu0
      %v5096 = vadd.f32 %v5007, %v5095
      %v5097 = vpop.f32.mrf.mxu0
      %v5098 = vadd.f32 %v5009, %v5097
      %5099 = vmatmul.bf16.gmra.mxu0 %v2821
      %v5100 = vpop.f32.mrf.mxu0
      %v5101 = vadd.f32 %v5012, %v5100
      %v5102 = vpop.f32.mrf.mxu0
      %v5103 = vadd.f32 %v5014, %v5102
      %5104 = vdwg.mxu0
      %5105 = vmatpush.bf16.msra.mxu0 %v4194
      %5106 = vmatpush.bf16.msra.mxu0 %v4193
      %5107 = vmatpush.bf16.msra.mxu0 %v4192
      %5108 = vmatpush.bf16.msra.mxu0 %v4191
      %5109 = vmatpush.bf16.msra.mxu0 %v4190
      %5110 = vmatpush.bf16.msra.mxu0 %v4189
      %5111 = vmatpush.bf16.msra.mxu0 %v4188
      %5112 = vmatpush.bf16.msra.mxu0 %v4187
      %5113 = vmatmul.bf16.gmra.mxu0 %v2417
      %v5114 = vpop.f32.mrf.mxu0
      %v5115 = vadd.f32 %v5026, %v5114
      %v5116 = vpop.f32.mrf.mxu0
      %v5117 = vadd.f32 %v5028, %v5116
      %5118 = vmatmul.bf16.gmra.mxu0 %v2444
      %v5119 = vpop.f32.mrf.mxu0
      %v5120 = vadd.f32 %v5031, %v5119
      %v5121 = vpop.f32.mrf.mxu0
      %v5122 = vadd.f32 %v5033, %v5121
      %5123 = vmatmul.bf16.gmra.mxu0 %v2471
      %v5124 = vpop.f32.mrf.mxu0
      %v5125 = vadd.f32 %v5036, %v5124
      %v5126 = vpop.f32.mrf.mxu0
      %v5127 = vadd.f32 %v5038, %v5126
      %5128 = vmatmul.bf16.gmra.mxu0 %v2498
      %v5129 = vpop.f32.mrf.mxu0
      %v5130 = vadd.f32 %v5041, %v5129
      %v5131 = vpop.f32.mrf.mxu0
      %v5132 = vadd.f32 %v5043, %v5131
      %5133 = vmatmul.bf16.gmra.mxu0 %v2525
      %v5134 = vpop.f32.mrf.mxu0
      %v5135 = vadd.f32 %v5046, %v5134
      %v5136 = vpop.f32.mrf.mxu0
      %v5137 = vadd.f32 %v5048, %v5136
      %5138 = vmatmul.bf16.gmra.mxu0 %v2552
      %v5139 = vpop.f32.mrf.mxu0
      %v5140 = vadd.f32 %v5051, %v5139
      %v5141 = vpop.f32.mrf.mxu0
      %v5142 = vadd.f32 %v5053, %v5141
      %5143 = vmatmul.bf16.gmra.mxu0 %v2579
      %v5144 = vpop.f32.mrf.mxu0
      %v5145 = vadd.f32 %v5056, %v5144
      %v5146 = vpop.f32.mrf.mxu0
      %v5147 = vadd.f32 %v5058, %v5146
      %5148 = vmatmul.bf16.gmra.mxu0 %v2606
      %v5149 = vpop.f32.mrf.mxu0
      %v5150 = vadd.f32 %v5061, %v5149
      %v5151 = vpop.f32.mrf.mxu0
      %v5152 = vadd.f32 %v5063, %v5151
      %5153 = vmatmul.bf16.gmra.mxu0 %v2633
      %v5154 = vpop.f32.mrf.mxu0
      %v5155 = vadd.f32 %v5066, %v5154
      %v5156 = vpop.f32.mrf.mxu0
      %v5157 = vadd.f32 %v5068, %v5156
      %5158 = vmatmul.bf16.gmra.mxu0 %v2660
      %v5159 = vpop.f32.mrf.mxu0
      %v5160 = vadd.f32 %v5071, %v5159
      %v5161 = vpop.f32.mrf.mxu0
      %v5162 = vadd.f32 %v5073, %v5161
      %5163 = vmatmul.bf16.gmra.mxu0 %v2687
      %v5164 = vpop.f32.mrf.mxu0
      %v5165 = vadd.f32 %v5076, %v5164
      %v5166 = vpop.f32.mrf.mxu0
      %v5167 = vadd.f32 %v5078, %v5166
      %5168 = vmatmul.bf16.gmra.mxu0 %v2714
      %v5169 = vpop.f32.mrf.mxu0
      %v5170 = vadd.f32 %v5081, %v5169
      %v5171 = vpop.f32.mrf.mxu0
      %v5172 = vadd.f32 %v5083, %v5171
      %5173 = vmatmul.bf16.gmra.mxu0 %v2741
      %v5174 = vpop.f32.mrf.mxu0
      %v5175 = vadd.f32 %v5086, %v5174
      %v5176 = vpop.f32.mrf.mxu0
      %v5177 = vadd.f32 %v5088, %v5176
      %5178 = vmatmul.bf16.gmra.mxu0 %v2768
      %v5179 = vpop.f32.mrf.mxu0
      %v5180 = vadd.f32 %v5091, %v5179
      %v5181 = vpop.f32.mrf.mxu0
      %v5182 = vadd.f32 %v5093, %v5181
      %5183 = vmatmul.bf16.gmra.mxu0 %v2795
      %v5184 = vpop.f32.mrf.mxu0
      %v5185 = vadd.f32 %v5096, %v5184
      %v5186 = vpop.f32.mrf.mxu0
      %v5187 = vadd.f32 %v5098, %v5186
      %5188 = vmatmul.bf16.gmra.mxu0 %v2822
      %v5189 = vpop.f32.mrf.mxu0
      %v5190 = vadd.f32 %v5101, %v5189
      %v5191 = vpop.f32.mrf.mxu0
      %v5192 = vadd.f32 %v5103, %v5191
      %5193 = vdwg.mxu0
      %5194 = vmatpush.bf16.msra.mxu0 %v4202
      %5195 = vmatpush.bf16.msra.mxu0 %v4201
      %5196 = vmatpush.bf16.msra.mxu0 %v4200
      %5197 = vmatpush.bf16.msra.mxu0 %v4199
      %5198 = vmatpush.bf16.msra.mxu0 %v4198
      %5199 = vmatpush.bf16.msra.mxu0 %v4197
      %5200 = vmatpush.bf16.msra.mxu0 %v4196
      %5201 = vmatpush.bf16.msra.mxu0 %v4195
      %5202 = vmatmul.bf16.gmra.mxu0 %v2418
      %v5203 = vpop.f32.mrf.mxu0
      %v5204 = vadd.f32 %v5115, %v5203
      %v5205 = vpop.f32.mrf.mxu0
      %v5206 = vadd.f32 %v5117, %v5205
      %5207 = vmatmul.bf16.gmra.mxu0 %v2445
      %v5208 = vpop.f32.mrf.mxu0
      %v5209 = vadd.f32 %v5120, %v5208
      %v5210 = vpop.f32.mrf.mxu0
      %v5211 = vadd.f32 %v5122, %v5210
      %5212 = vmatmul.bf16.gmra.mxu0 %v2472
      %v5213 = vpop.f32.mrf.mxu0
      %v5214 = vadd.f32 %v5125, %v5213
      %v5215 = vpop.f32.mrf.mxu0
      %v5216 = vadd.f32 %v5127, %v5215
      %5217 = vmatmul.bf16.gmra.mxu0 %v2499
      %v5218 = vpop.f32.mrf.mxu0
      %v5219 = vadd.f32 %v5130, %v5218
      %v5220 = vpop.f32.mrf.mxu0
      %v5221 = vadd.f32 %v5132, %v5220
      %5222 = vmatmul.bf16.gmra.mxu0 %v2526
      %v5223 = vpop.f32.mrf.mxu0
      %v5224 = vadd.f32 %v5135, %v5223
      %v5225 = vpop.f32.mrf.mxu0
      %v5226 = vadd.f32 %v5137, %v5225
      %5227 = vmatmul.bf16.gmra.mxu0 %v2553
      %v5228 = vpop.f32.mrf.mxu0
      %v5229 = vadd.f32 %v5140, %v5228
      %v5230 = vpop.f32.mrf.mxu0
      %v5231 = vadd.f32 %v5142, %v5230
      %5232 = vmatmul.bf16.gmra.mxu0 %v2580
      %v5233 = vpop.f32.mrf.mxu0
      %v5234 = vadd.f32 %v5145, %v5233
      %v5235 = vpop.f32.mrf.mxu0
      %v5236 = vadd.f32 %v5147, %v5235
      %5237 = vmatmul.bf16.gmra.mxu0 %v2607
      %v5238 = vpop.f32.mrf.mxu0
      %v5239 = vadd.f32 %v5150, %v5238
      %v5240 = vpop.f32.mrf.mxu0
      %v5241 = vadd.f32 %v5152, %v5240
      %5242 = vmatmul.bf16.gmra.mxu0 %v2634
      %v5243 = vpop.f32.mrf.mxu0
      %v5244 = vadd.f32 %v5155, %v5243
      %v5245 = vpop.f32.mrf.mxu0
      %v5246 = vadd.f32 %v5157, %v5245
      %5247 = vmatmul.bf16.gmra.mxu0 %v2661
      %v5248 = vpop.f32.mrf.mxu0
      %v5249 = vadd.f32 %v5160, %v5248
      %v5250 = vpop.f32.mrf.mxu0
      %v5251 = vadd.f32 %v5162, %v5250
      %5252 = vmatmul.bf16.gmra.mxu0 %v2688
      %v5253 = vpop.f32.mrf.mxu0
      %v5254 = vadd.f32 %v5165, %v5253
      %v5255 = vpop.f32.mrf.mxu0
      %v5256 = vadd.f32 %v5167, %v5255
      %5257 = vmatmul.bf16.gmra.mxu0 %v2715
      %v5258 = vpop.f32.mrf.mxu0
      %v5259 = vadd.f32 %v5170, %v5258
      %v5260 = vpop.f32.mrf.mxu0
      %v5261 = vadd.f32 %v5172, %v5260
      %5262 = vmatmul.bf16.gmra.mxu0 %v2742
      %v5263 = vpop.f32.mrf.mxu0
      %v5264 = vadd.f32 %v5175, %v5263
      %v5265 = vpop.f32.mrf.mxu0
      %v5266 = vadd.f32 %v5177, %v5265
      %5267 = vmatmul.bf16.gmra.mxu0 %v2769
      %v5268 = vpop.f32.mrf.mxu0
      %v5269 = vadd.f32 %v5180, %v5268
      %v5270 = vpop.f32.mrf.mxu0
      %v5271 = vadd.f32 %v5182, %v5270
      %5272 = vmatmul.bf16.gmra.mxu0 %v2796
      %v5273 = vpop.f32.mrf.mxu0
      %v5274 = vadd.f32 %v5185, %v5273
      %v5275 = vpop.f32.mrf.mxu0
      %v5276 = vadd.f32 %v5187, %v5275
      %5277 = vmatmul.bf16.gmra.mxu0 %v2823
      %v5278 = vpop.f32.mrf.mxu0
      %v5279 = vadd.f32 %v5190, %v5278
      %v5280 = vpop.f32.mrf.mxu0
      %v5281 = vadd.f32 %v5192, %v5280
      %5282 = vdwg.mxu0
      %5283 = vmatpush.bf16.msra.mxu0 %v4210
      %5284 = vmatpush.bf16.msra.mxu0 %v4209
      %5285 = vmatpush.bf16.msra.mxu0 %v4208
      %5286 = vmatpush.bf16.msra.mxu0 %v4207
      %5287 = vmatpush.bf16.msra.mxu0 %v4206
      %5288 = vmatpush.bf16.msra.mxu0 %v4205
      %5289 = vmatpush.bf16.msra.mxu0 %v4204
      %5290 = vmatpush.bf16.msra.mxu0 %v4203
      %5291 = vmatmul.bf16.gmra.mxu0 %v2419
      %v5292 = vpop.f32.mrf.mxu0
      %v5293 = vadd.f32 %v5204, %v5292
      %v5294 = vpop.f32.mrf.mxu0
      %v5295 = vadd.f32 %v5206, %v5294
      %5296 = vmatmul.bf16.gmra.mxu0 %v2446
      %v5297 = vpop.f32.mrf.mxu0
      %v5298 = vadd.f32 %v5209, %v5297
      %v5299 = vpop.f32.mrf.mxu0
      %v5300 = vadd.f32 %v5211, %v5299
      %5301 = vmatmul.bf16.gmra.mxu0 %v2473
      %v5302 = vpop.f32.mrf.mxu0
      %v5303 = vadd.f32 %v5214, %v5302
      %v5304 = vpop.f32.mrf.mxu0
      %v5305 = vadd.f32 %v5216, %v5304
      %5306 = vmatmul.bf16.gmra.mxu0 %v2500
      %v5307 = vpop.f32.mrf.mxu0
      %v5308 = vadd.f32 %v5219, %v5307
      %v5309 = vpop.f32.mrf.mxu0
      %v5310 = vadd.f32 %v5221, %v5309
      %5311 = vmatmul.bf16.gmra.mxu0 %v2527
      %v5312 = vpop.f32.mrf.mxu0
      %v5313 = vadd.f32 %v5224, %v5312
      %v5314 = vpop.f32.mrf.mxu0
      %v5315 = vadd.f32 %v5226, %v5314
      %5316 = vmatmul.bf16.gmra.mxu0 %v2554
      %v5317 = vpop.f32.mrf.mxu0
      %v5318 = vadd.f32 %v5229, %v5317
      %v5319 = vpop.f32.mrf.mxu0
      %v5320 = vadd.f32 %v5231, %v5319
      %5321 = vmatmul.bf16.gmra.mxu0 %v2581
      %v5322 = vpop.f32.mrf.mxu0
      %v5323 = vadd.f32 %v5234, %v5322
      %v5324 = vpop.f32.mrf.mxu0
      %v5325 = vadd.f32 %v5236, %v5324
      %5326 = vmatmul.bf16.gmra.mxu0 %v2608
      %v5327 = vpop.f32.mrf.mxu0
      %v5328 = vadd.f32 %v5239, %v5327
      %v5329 = vpop.f32.mrf.mxu0
      %v5330 = vadd.f32 %v5241, %v5329
      %5331 = vmatmul.bf16.gmra.mxu0 %v2635
      %v5332 = vpop.f32.mrf.mxu0
      %v5333 = vadd.f32 %v5244, %v5332
      %v5334 = vpop.f32.mrf.mxu0
      %v5335 = vadd.f32 %v5246, %v5334
      %5336 = vmatmul.bf16.gmra.mxu0 %v2662
      %v5337 = vpop.f32.mrf.mxu0
      %v5338 = vadd.f32 %v5249, %v5337
      %v5339 = vpop.f32.mrf.mxu0
      %v5340 = vadd.f32 %v5251, %v5339
      %5341 = vmatmul.bf16.gmra.mxu0 %v2689
      %v5342 = vpop.f32.mrf.mxu0
      %v5343 = vadd.f32 %v5254, %v5342
      %v5344 = vpop.f32.mrf.mxu0
      %v5345 = vadd.f32 %v5256, %v5344
      %5346 = vmatmul.bf16.gmra.mxu0 %v2716
      %v5347 = vpop.f32.mrf.mxu0
      %v5348 = vadd.f32 %v5259, %v5347
      %v5349 = vpop.f32.mrf.mxu0
      %v5350 = vadd.f32 %v5261, %v5349
      %5351 = vmatmul.bf16.gmra.mxu0 %v2743
      %v5352 = vpop.f32.mrf.mxu0
      %v5353 = vadd.f32 %v5264, %v5352
      %v5354 = vpop.f32.mrf.mxu0
      %v5355 = vadd.f32 %v5266, %v5354
      %5356 = vmatmul.bf16.gmra.mxu0 %v2770
      %v5357 = vpop.f32.mrf.mxu0
      %v5358 = vadd.f32 %v5269, %v5357
      %v5359 = vpop.f32.mrf.mxu0
      %v5360 = vadd.f32 %v5271, %v5359
      %5361 = vmatmul.bf16.gmra.mxu0 %v2797
      %v5362 = vpop.f32.mrf.mxu0
      %v5363 = vadd.f32 %v5274, %v5362
      %v5364 = vpop.f32.mrf.mxu0
      %v5365 = vadd.f32 %v5276, %v5364
      %5366 = vmatmul.bf16.gmra.mxu0 %v2824
      %v5367 = vpop.f32.mrf.mxu0
      %v5368 = vadd.f32 %v5279, %v5367
      %v5369 = vpop.f32.mrf.mxu0
      %v5370 = vadd.f32 %v5281, %v5369
      %5371 = vdwg.mxu0
      %5372 = vmatpush.bf16.msra.mxu0 %v4218
      %5373 = vmatpush.bf16.msra.mxu0 %v4217
      %5374 = vmatpush.bf16.msra.mxu0 %v4216
      %5375 = vmatpush.bf16.msra.mxu0 %v4215
      %5376 = vmatpush.bf16.msra.mxu0 %v4214
      %5377 = vmatpush.bf16.msra.mxu0 %v4213
      %5378 = vmatpush.bf16.msra.mxu0 %v4212
      %5379 = vmatpush.bf16.msra.mxu0 %v4211
      %5380 = vmatmul.bf16.gmra.mxu0 %v2420
      %v5381 = vpop.f32.mrf.mxu0
      %v5382 = vadd.f32 %v5293, %v5381
      %v5383 = vpop.f32.mrf.mxu0
      %v5384 = vadd.f32 %v5295, %v5383
      %5385 = vmatmul.bf16.gmra.mxu0 %v2447
      %v5386 = vpop.f32.mrf.mxu0
      %v5387 = vadd.f32 %v5298, %v5386
      %v5388 = vpop.f32.mrf.mxu0
      %v5389 = vadd.f32 %v5300, %v5388
      %5390 = vmatmul.bf16.gmra.mxu0 %v2474
      %v5391 = vpop.f32.mrf.mxu0
      %v5392 = vadd.f32 %v5303, %v5391
      %v5393 = vpop.f32.mrf.mxu0
      %v5394 = vadd.f32 %v5305, %v5393
      %5395 = vmatmul.bf16.gmra.mxu0 %v2501
      %v5396 = vpop.f32.mrf.mxu0
      %v5397 = vadd.f32 %v5308, %v5396
      %v5398 = vpop.f32.mrf.mxu0
      %v5399 = vadd.f32 %v5310, %v5398
      %5400 = vmatmul.bf16.gmra.mxu0 %v2528
      %v5401 = vpop.f32.mrf.mxu0
      %v5402 = vadd.f32 %v5313, %v5401
      %v5403 = vpop.f32.mrf.mxu0
      %v5404 = vadd.f32 %v5315, %v5403
      %5405 = vmatmul.bf16.gmra.mxu0 %v2555
      %v5406 = vpop.f32.mrf.mxu0
      %v5407 = vadd.f32 %v5318, %v5406
      %v5408 = vpop.f32.mrf.mxu0
      %v5409 = vadd.f32 %v5320, %v5408
      %5410 = vmatmul.bf16.gmra.mxu0 %v2582
      %v5411 = vpop.f32.mrf.mxu0
      %v5412 = vadd.f32 %v5323, %v5411
      %v5413 = vpop.f32.mrf.mxu0
      %v5414 = vadd.f32 %v5325, %v5413
      %5415 = vmatmul.bf16.gmra.mxu0 %v2609
      %v5416 = vpop.f32.mrf.mxu0
      %v5417 = vadd.f32 %v5328, %v5416
      %v5418 = vpop.f32.mrf.mxu0
      %v5419 = vadd.f32 %v5330, %v5418
      %5420 = vmatmul.bf16.gmra.mxu0 %v2636
      %v5421 = vpop.f32.mrf.mxu0
      %v5422 = vadd.f32 %v5333, %v5421
      %v5423 = vpop.f32.mrf.mxu0
      %v5424 = vadd.f32 %v5335, %v5423
      %5425 = vmatmul.bf16.gmra.mxu0 %v2663
      %v5426 = vpop.f32.mrf.mxu0
      %v5427 = vadd.f32 %v5338, %v5426
      %v5428 = vpop.f32.mrf.mxu0
      %v5429 = vadd.f32 %v5340, %v5428
      %5430 = vmatmul.bf16.gmra.mxu0 %v2690
      %v5431 = vpop.f32.mrf.mxu0
      %v5432 = vadd.f32 %v5343, %v5431
      %v5433 = vpop.f32.mrf.mxu0
      %v5434 = vadd.f32 %v5345, %v5433
      %5435 = vmatmul.bf16.gmra.mxu0 %v2717
      %v5436 = vpop.f32.mrf.mxu0
      %v5437 = vadd.f32 %v5348, %v5436
      %v5438 = vpop.f32.mrf.mxu0
      %v5439 = vadd.f32 %v5350, %v5438
      %5440 = vmatmul.bf16.gmra.mxu0 %v2744
      %v5441 = vpop.f32.mrf.mxu0
      %v5442 = vadd.f32 %v5353, %v5441
      %v5443 = vpop.f32.mrf.mxu0
      %v5444 = vadd.f32 %v5355, %v5443
      %5445 = vmatmul.bf16.gmra.mxu0 %v2771
      %v5446 = vpop.f32.mrf.mxu0
      %v5447 = vadd.f32 %v5358, %v5446
      %v5448 = vpop.f32.mrf.mxu0
      %v5449 = vadd.f32 %v5360, %v5448
      %5450 = vmatmul.bf16.gmra.mxu0 %v2798
      %v5451 = vpop.f32.mrf.mxu0
      %v5452 = vadd.f32 %v5363, %v5451
      %v5453 = vpop.f32.mrf.mxu0
      %v5454 = vadd.f32 %v5365, %v5453
      %5455 = vmatmul.bf16.gmra.mxu0 %v2825
      %v5456 = vpop.f32.mrf.mxu0
      %v5457 = vadd.f32 %v5368, %v5456
      %v5458 = vpop.f32.mrf.mxu0
      %v5459 = vadd.f32 %v5370, %v5458
      %5460 = vdwg.mxu0
      %5461 = vmatpush.bf16.msra.mxu0 %v4226
      %5462 = vmatpush.bf16.msra.mxu0 %v4225
      %5463 = vmatpush.bf16.msra.mxu0 %v4224
      %5464 = vmatpush.bf16.msra.mxu0 %v4223
      %5465 = vmatpush.bf16.msra.mxu0 %v4222
      %5466 = vmatpush.bf16.msra.mxu0 %v4221
      %5467 = vmatpush.bf16.msra.mxu0 %v4220
      %5468 = vmatpush.bf16.msra.mxu0 %v4219
      %5469 = vmatmul.bf16.gmra.mxu0 %v2421
      %v5470 = vpop.f32.mrf.mxu0
      %v5471 = vadd.f32 %v5382, %v5470
      %v5472 = vpop.f32.mrf.mxu0
      %v5473 = vadd.f32 %v5384, %v5472
      %5474 = vmatmul.bf16.gmra.mxu0 %v2448
      %v5475 = vpop.f32.mrf.mxu0
      %v5476 = vadd.f32 %v5387, %v5475
      %v5477 = vpop.f32.mrf.mxu0
      %v5478 = vadd.f32 %v5389, %v5477
      %5479 = vmatmul.bf16.gmra.mxu0 %v2475
      %v5480 = vpop.f32.mrf.mxu0
      %v5481 = vadd.f32 %v5392, %v5480
      %v5482 = vpop.f32.mrf.mxu0
      %v5483 = vadd.f32 %v5394, %v5482
      %5484 = vmatmul.bf16.gmra.mxu0 %v2502
      %v5485 = vpop.f32.mrf.mxu0
      %v5486 = vadd.f32 %v5397, %v5485
      %v5487 = vpop.f32.mrf.mxu0
      %v5488 = vadd.f32 %v5399, %v5487
      %5489 = vmatmul.bf16.gmra.mxu0 %v2529
      %v5490 = vpop.f32.mrf.mxu0
      %v5491 = vadd.f32 %v5402, %v5490
      %v5492 = vpop.f32.mrf.mxu0
      %v5493 = vadd.f32 %v5404, %v5492
      %5494 = vmatmul.bf16.gmra.mxu0 %v2556
      %v5495 = vpop.f32.mrf.mxu0
      %v5496 = vadd.f32 %v5407, %v5495
      %v5497 = vpop.f32.mrf.mxu0
      %v5498 = vadd.f32 %v5409, %v5497
      %5499 = vmatmul.bf16.gmra.mxu0 %v2583
      %v5500 = vpop.f32.mrf.mxu0
      %v5501 = vadd.f32 %v5412, %v5500
      %v5502 = vpop.f32.mrf.mxu0
      %v5503 = vadd.f32 %v5414, %v5502
      %5504 = vmatmul.bf16.gmra.mxu0 %v2610
      %v5505 = vpop.f32.mrf.mxu0
      %v5506 = vadd.f32 %v5417, %v5505
      %v5507 = vpop.f32.mrf.mxu0
      %v5508 = vadd.f32 %v5419, %v5507
      %5509 = vmatmul.bf16.gmra.mxu0 %v2637
      %v5510 = vpop.f32.mrf.mxu0
      %v5511 = vadd.f32 %v5422, %v5510
      %v5512 = vpop.f32.mrf.mxu0
      %v5513 = vadd.f32 %v5424, %v5512
      %5514 = vmatmul.bf16.gmra.mxu0 %v2664
      %v5515 = vpop.f32.mrf.mxu0
      %v5516 = vadd.f32 %v5427, %v5515
      %v5517 = vpop.f32.mrf.mxu0
      %v5518 = vadd.f32 %v5429, %v5517
      %5519 = vmatmul.bf16.gmra.mxu0 %v2691
      %v5520 = vpop.f32.mrf.mxu0
      %v5521 = vadd.f32 %v5432, %v5520
      %v5522 = vpop.f32.mrf.mxu0
      %v5523 = vadd.f32 %v5434, %v5522
      %5524 = vmatmul.bf16.gmra.mxu0 %v2718
      %v5525 = vpop.f32.mrf.mxu0
      %v5526 = vadd.f32 %v5437, %v5525
      %v5527 = vpop.f32.mrf.mxu0
      %v5528 = vadd.f32 %v5439, %v5527
      %5529 = vmatmul.bf16.gmra.mxu0 %v2745
      %v5530 = vpop.f32.mrf.mxu0
      %v5531 = vadd.f32 %v5442, %v5530
      %v5532 = vpop.f32.mrf.mxu0
      %v5533 = vadd.f32 %v5444, %v5532
      %5534 = vmatmul.bf16.gmra.mxu0 %v2772
      %v5535 = vpop.f32.mrf.mxu0
      %v5536 = vadd.f32 %v5447, %v5535
      %v5537 = vpop.f32.mrf.mxu0
      %v5538 = vadd.f32 %v5449, %v5537
      %5539 = vmatmul.bf16.gmra.mxu0 %v2799
      %v5540 = vpop.f32.mrf.mxu0
      %v5541 = vadd.f32 %v5452, %v5540
      %v5542 = vpop.f32.mrf.mxu0
      %v5543 = vadd.f32 %v5454, %v5542
      %5544 = vmatmul.bf16.gmra.mxu0 %v2826
      %v5545 = vpop.f32.mrf.mxu0
      %v5546 = vadd.f32 %v5457, %v5545
      %v5547 = vpop.f32.mrf.mxu0
      %v5548 = vadd.f32 %v5459, %v5547
      %5549 = vdwg.mxu0
      %5550 = vmatpush.bf16.msra.mxu0 %v4234
      %5551 = vmatpush.bf16.msra.mxu0 %v4233
      %5552 = vmatpush.bf16.msra.mxu0 %v4232
      %5553 = vmatpush.bf16.msra.mxu0 %v4231
      %5554 = vmatpush.bf16.msra.mxu0 %v4230
      %5555 = vmatpush.bf16.msra.mxu0 %v4229
      %5556 = vmatpush.bf16.msra.mxu0 %v4228
      %5557 = vmatpush.bf16.msra.mxu0 %v4227
      %5558 = vmatmul.bf16.gmra.mxu0 %v2422
      %v5559 = vpop.f32.mrf.mxu0
      %v5560 = vadd.f32 %v5471, %v5559
      %v5561 = vpop.f32.mrf.mxu0
      %v5562 = vadd.f32 %v5473, %v5561
      %5563 = vmatmul.bf16.gmra.mxu0 %v2449
      %v5564 = vpop.f32.mrf.mxu0
      %v5565 = vadd.f32 %v5476, %v5564
      %v5566 = vpop.f32.mrf.mxu0
      %v5567 = vadd.f32 %v5478, %v5566
      %5568 = vmatmul.bf16.gmra.mxu0 %v2476
      %v5569 = vpop.f32.mrf.mxu0
      %v5570 = vadd.f32 %v5481, %v5569
      %v5571 = vpop.f32.mrf.mxu0
      %v5572 = vadd.f32 %v5483, %v5571
      %5573 = vmatmul.bf16.gmra.mxu0 %v2503
      %v5574 = vpop.f32.mrf.mxu0
      %v5575 = vadd.f32 %v5486, %v5574
      %v5576 = vpop.f32.mrf.mxu0
      %v5577 = vadd.f32 %v5488, %v5576
      %5578 = vmatmul.bf16.gmra.mxu0 %v2530
      %v5579 = vpop.f32.mrf.mxu0
      %v5580 = vadd.f32 %v5491, %v5579
      %v5581 = vpop.f32.mrf.mxu0
      %v5582 = vadd.f32 %v5493, %v5581
      %5583 = vmatmul.bf16.gmra.mxu0 %v2557
      %v5584 = vpop.f32.mrf.mxu0
      %v5585 = vadd.f32 %v5496, %v5584
      %v5586 = vpop.f32.mrf.mxu0
      %v5587 = vadd.f32 %v5498, %v5586
      %5588 = vmatmul.bf16.gmra.mxu0 %v2584
      %v5589 = vpop.f32.mrf.mxu0
      %v5590 = vadd.f32 %v5501, %v5589
      %v5591 = vpop.f32.mrf.mxu0
      %v5592 = vadd.f32 %v5503, %v5591
      %5593 = vmatmul.bf16.gmra.mxu0 %v2611
      %v5594 = vpop.f32.mrf.mxu0
      %v5595 = vadd.f32 %v5506, %v5594
      %v5596 = vpop.f32.mrf.mxu0
      %v5597 = vadd.f32 %v5508, %v5596
      %5598 = vmatmul.bf16.gmra.mxu0 %v2638
      %v5599 = vpop.f32.mrf.mxu0
      %v5600 = vadd.f32 %v5511, %v5599
      %v5601 = vpop.f32.mrf.mxu0
      %v5602 = vadd.f32 %v5513, %v5601
      %5603 = vmatmul.bf16.gmra.mxu0 %v2665
      %v5604 = vpop.f32.mrf.mxu0
      %v5605 = vadd.f32 %v5516, %v5604
      %v5606 = vpop.f32.mrf.mxu0
      %v5607 = vadd.f32 %v5518, %v5606
      %5608 = vmatmul.bf16.gmra.mxu0 %v2692
      %v5609 = vpop.f32.mrf.mxu0
      %v5610 = vadd.f32 %v5521, %v5609
      %v5611 = vpop.f32.mrf.mxu0
      %v5612 = vadd.f32 %v5523, %v5611
      %5613 = vmatmul.bf16.gmra.mxu0 %v2719
      %v5614 = vpop.f32.mrf.mxu0
      %v5615 = vadd.f32 %v5526, %v5614
      %v5616 = vpop.f32.mrf.mxu0
      %v5617 = vadd.f32 %v5528, %v5616
      %5618 = vmatmul.bf16.gmra.mxu0 %v2746
      %v5619 = vpop.f32.mrf.mxu0
      %v5620 = vadd.f32 %v5531, %v5619
      %v5621 = vpop.f32.mrf.mxu0
      %v5622 = vadd.f32 %v5533, %v5621
      %5623 = vmatmul.bf16.gmra.mxu0 %v2773
      %v5624 = vpop.f32.mrf.mxu0
      %v5625 = vadd.f32 %v5536, %v5624
      %v5626 = vpop.f32.mrf.mxu0
      %v5627 = vadd.f32 %v5538, %v5626
      %5628 = vmatmul.bf16.gmra.mxu0 %v2800
      %v5629 = vpop.f32.mrf.mxu0
      %v5630 = vadd.f32 %v5541, %v5629
      %v5631 = vpop.f32.mrf.mxu0
      %v5632 = vadd.f32 %v5543, %v5631
      %5633 = vmatmul.bf16.gmra.mxu0 %v2827
      %v5634 = vpop.f32.mrf.mxu0
      %v5635 = vadd.f32 %v5546, %v5634
      %v5636 = vpop.f32.mrf.mxu0
      %v5637 = vadd.f32 %v5548, %v5636
      %5638 = vdwg.mxu0
      %5639 = vmatpush.bf16.msra.mxu0 %v4242
      %5640 = vmatpush.bf16.msra.mxu0 %v4241
      %5641 = vmatpush.bf16.msra.mxu0 %v4240
      %5642 = vmatpush.bf16.msra.mxu0 %v4239
      %5643 = vmatpush.bf16.msra.mxu0 %v4238
      %5644 = vmatpush.bf16.msra.mxu0 %v4237
      %5645 = vmatpush.bf16.msra.mxu0 %v4236
      %5646 = vmatpush.bf16.msra.mxu0 %v4235
      %5647 = vmatmul.bf16.gmra.mxu0 %v2423
      %v5648 = vpop.f32.mrf.mxu0
      %v5649 = vadd.f32 %v5560, %v5648
      %v5650 = vpop.f32.mrf.mxu0
      %v5651 = vadd.f32 %v5562, %v5650
      %5652 = vmatmul.bf16.gmra.mxu0 %v2450
      %v5653 = vpop.f32.mrf.mxu0
      %v5654 = vadd.f32 %v5565, %v5653
      %v5655 = vpop.f32.mrf.mxu0
      %v5656 = vadd.f32 %v5567, %v5655
      %5657 = vmatmul.bf16.gmra.mxu0 %v2477
      %v5658 = vpop.f32.mrf.mxu0
      %v5659 = vadd.f32 %v5570, %v5658
      %v5660 = vpop.f32.mrf.mxu0
      %v5661 = vadd.f32 %v5572, %v5660
      %5662 = vmatmul.bf16.gmra.mxu0 %v2504
      %v5663 = vpop.f32.mrf.mxu0
      %v5664 = vadd.f32 %v5575, %v5663
      %v5665 = vpop.f32.mrf.mxu0
      %v5666 = vadd.f32 %v5577, %v5665
      %5667 = vmatmul.bf16.gmra.mxu0 %v2531
      %v5668 = vpop.f32.mrf.mxu0
      %v5669 = vadd.f32 %v5580, %v5668
      %v5670 = vpop.f32.mrf.mxu0
      %v5671 = vadd.f32 %v5582, %v5670
      %5672 = vmatmul.bf16.gmra.mxu0 %v2558
      %v5673 = vpop.f32.mrf.mxu0
      %v5674 = vadd.f32 %v5585, %v5673
      %v5675 = vpop.f32.mrf.mxu0
      %v5676 = vadd.f32 %v5587, %v5675
      %5677 = vmatmul.bf16.gmra.mxu0 %v2585
      %v5678 = vpop.f32.mrf.mxu0
      %v5679 = vadd.f32 %v5590, %v5678
      %v5680 = vpop.f32.mrf.mxu0
      %v5681 = vadd.f32 %v5592, %v5680
      %5682 = vmatmul.bf16.gmra.mxu0 %v2612
      %v5683 = vpop.f32.mrf.mxu0
      %v5684 = vadd.f32 %v5595, %v5683
      %v5685 = vpop.f32.mrf.mxu0
      %v5686 = vadd.f32 %v5597, %v5685
      %5687 = vmatmul.bf16.gmra.mxu0 %v2639
      %v5688 = vpop.f32.mrf.mxu0
      %v5689 = vadd.f32 %v5600, %v5688
      %v5690 = vpop.f32.mrf.mxu0
      %v5691 = vadd.f32 %v5602, %v5690
      %5692 = vmatmul.bf16.gmra.mxu0 %v2666
      %v5693 = vpop.f32.mrf.mxu0
      %v5694 = vadd.f32 %v5605, %v5693
      %v5695 = vpop.f32.mrf.mxu0
      %v5696 = vadd.f32 %v5607, %v5695
      %5697 = vmatmul.bf16.gmra.mxu0 %v2693
      %v5698 = vpop.f32.mrf.mxu0
      %v5699 = vadd.f32 %v5610, %v5698
      %v5700 = vpop.f32.mrf.mxu0
      %v5701 = vadd.f32 %v5612, %v5700
      %5702 = vmatmul.bf16.gmra.mxu0 %v2720
      %v5703 = vpop.f32.mrf.mxu0
      %v5704 = vadd.f32 %v5615, %v5703
      %v5705 = vpop.f32.mrf.mxu0
      %v5706 = vadd.f32 %v5617, %v5705
      %5707 = vmatmul.bf16.gmra.mxu0 %v2747
      %v5708 = vpop.f32.mrf.mxu0
      %v5709 = vadd.f32 %v5620, %v5708
      %v5710 = vpop.f32.mrf.mxu0
      %v5711 = vadd.f32 %v5622, %v5710
      %5712 = vmatmul.bf16.gmra.mxu0 %v2774
      %v5713 = vpop.f32.mrf.mxu0
      %v5714 = vadd.f32 %v5625, %v5713
      %v5715 = vpop.f32.mrf.mxu0
      %v5716 = vadd.f32 %v5627, %v5715
      %5717 = vmatmul.bf16.gmra.mxu0 %v2801
      %v5718 = vpop.f32.mrf.mxu0
      %v5719 = vadd.f32 %v5630, %v5718
      %v5720 = vpop.f32.mrf.mxu0
      %v5721 = vadd.f32 %v5632, %v5720
      %5722 = vmatmul.bf16.gmra.mxu0 %v2828
      %v5723 = vpop.f32.mrf.mxu0
      %v5724 = vadd.f32 %v5635, %v5723
      %v5725 = vpop.f32.mrf.mxu0
      %v5726 = vadd.f32 %v5637, %v5725
      %5727 = vdwg.mxu0
      %5728 = vmatpush.bf16.msra.mxu0 %v4250
      %5729 = vmatpush.bf16.msra.mxu0 %v4249
      %5730 = vmatpush.bf16.msra.mxu0 %v4248
      %5731 = vmatpush.bf16.msra.mxu0 %v4247
      %5732 = vmatpush.bf16.msra.mxu0 %v4246
      %5733 = vmatpush.bf16.msra.mxu0 %v4245
      %5734 = vmatpush.bf16.msra.mxu0 %v4244
      %5735 = vmatpush.bf16.msra.mxu0 %v4243
      %5736 = vmatmul.bf16.gmra.mxu0 %v2424
      %v5737 = vpop.f32.mrf.mxu0
      %v5738 = vadd.f32 %v5649, %v5737
      %v5739 = vpop.f32.mrf.mxu0
      %v5740 = vadd.f32 %v5651, %v5739
      %5741 = vmatmul.bf16.gmra.mxu0 %v2451
      %v5742 = vpop.f32.mrf.mxu0
      %v5743 = vadd.f32 %v5654, %v5742
      %v5744 = vpop.f32.mrf.mxu0
      %v5745 = vadd.f32 %v5656, %v5744
      %5746 = vmatmul.bf16.gmra.mxu0 %v2478
      %v5747 = vpop.f32.mrf.mxu0
      %v5748 = vadd.f32 %v5659, %v5747
      %v5749 = vpop.f32.mrf.mxu0
      %v5750 = vadd.f32 %v5661, %v5749
      %5751 = vmatmul.bf16.gmra.mxu0 %v2505
      %v5752 = vpop.f32.mrf.mxu0
      %v5753 = vadd.f32 %v5664, %v5752
      %v5754 = vpop.f32.mrf.mxu0
      %v5755 = vadd.f32 %v5666, %v5754
      %5756 = vmatmul.bf16.gmra.mxu0 %v2532
      %v5757 = vpop.f32.mrf.mxu0
      %v5758 = vadd.f32 %v5669, %v5757
      %v5759 = vpop.f32.mrf.mxu0
      %v5760 = vadd.f32 %v5671, %v5759
      %5761 = vmatmul.bf16.gmra.mxu0 %v2559
      %v5762 = vpop.f32.mrf.mxu0
      %v5763 = vadd.f32 %v5674, %v5762
      %v5764 = vpop.f32.mrf.mxu0
      %v5765 = vadd.f32 %v5676, %v5764
      %5766 = vmatmul.bf16.gmra.mxu0 %v2586
      %v5767 = vpop.f32.mrf.mxu0
      %v5768 = vadd.f32 %v5679, %v5767
      %v5769 = vpop.f32.mrf.mxu0
      %v5770 = vadd.f32 %v5681, %v5769
      %5771 = vmatmul.bf16.gmra.mxu0 %v2613
      %v5772 = vpop.f32.mrf.mxu0
      %v5773 = vadd.f32 %v5684, %v5772
      %v5774 = vpop.f32.mrf.mxu0
      %v5775 = vadd.f32 %v5686, %v5774
      %5776 = vmatmul.bf16.gmra.mxu0 %v2640
      %v5777 = vpop.f32.mrf.mxu0
      %v5778 = vadd.f32 %v5689, %v5777
      %v5779 = vpop.f32.mrf.mxu0
      %v5780 = vadd.f32 %v5691, %v5779
      %5781 = vmatmul.bf16.gmra.mxu0 %v2667
      %v5782 = vpop.f32.mrf.mxu0
      %v5783 = vadd.f32 %v5694, %v5782
      %v5784 = vpop.f32.mrf.mxu0
      %v5785 = vadd.f32 %v5696, %v5784
      %5786 = vmatmul.bf16.gmra.mxu0 %v2694
      %v5787 = vpop.f32.mrf.mxu0
      %v5788 = vadd.f32 %v5699, %v5787
      %v5789 = vpop.f32.mrf.mxu0
      %v5790 = vadd.f32 %v5701, %v5789
      %5791 = vmatmul.bf16.gmra.mxu0 %v2721
      %v5792 = vpop.f32.mrf.mxu0
      %v5793 = vadd.f32 %v5704, %v5792
      %v5794 = vpop.f32.mrf.mxu0
      %v5795 = vadd.f32 %v5706, %v5794
      %5796 = vmatmul.bf16.gmra.mxu0 %v2748
      %v5797 = vpop.f32.mrf.mxu0
      %v5798 = vadd.f32 %v5709, %v5797
      %v5799 = vpop.f32.mrf.mxu0
      %v5800 = vadd.f32 %v5711, %v5799
      %5801 = vmatmul.bf16.gmra.mxu0 %v2775
      %v5802 = vpop.f32.mrf.mxu0
      %v5803 = vadd.f32 %v5714, %v5802
      %v5804 = vpop.f32.mrf.mxu0
      %v5805 = vadd.f32 %v5716, %v5804
      %5806 = vmatmul.bf16.gmra.mxu0 %v2802
      %v5807 = vpop.f32.mrf.mxu0
      %v5808 = vadd.f32 %v5719, %v5807
      %v5809 = vpop.f32.mrf.mxu0
      %v5810 = vadd.f32 %v5721, %v5809
      %5811 = vmatmul.bf16.gmra.mxu0 %v2829
      %v5812 = vpop.f32.mrf.mxu0
      %v5813 = vadd.f32 %v5724, %v5812
      %v5814 = vpop.f32.mrf.mxu0
      %v5815 = vadd.f32 %v5726, %v5814
      %5816 = vdwg.mxu0
      %5817 = vmatpush.bf16.msra.mxu0 %v4258
      %5818 = vmatpush.bf16.msra.mxu0 %v4257
      %5819 = vmatpush.bf16.msra.mxu0 %v4256
      %5820 = vmatpush.bf16.msra.mxu0 %v4255
      %5821 = vmatpush.bf16.msra.mxu0 %v4254
      %5822 = vmatpush.bf16.msra.mxu0 %v4253
      %5823 = vmatpush.bf16.msra.mxu0 %v4252
      %5824 = vmatpush.bf16.msra.mxu0 %v4251
      %5825 = vmatmul.bf16.gmra.mxu0 %v2425
      %v5826 = vpop.f32.mrf.mxu0
      %v5827 = vadd.f32 %v5738, %v5826
      %v5828 = vpop.f32.mrf.mxu0
      %v5829 = vadd.f32 %v5740, %v5828
      %5830 = vmatmul.bf16.gmra.mxu0 %v2452
      %v5831 = vpop.f32.mrf.mxu0
      %v5832 = vadd.f32 %v5743, %v5831
      %v5833 = vpop.f32.mrf.mxu0
      %v5834 = vadd.f32 %v5745, %v5833
      %5835 = vmatmul.bf16.gmra.mxu0 %v2479
      %v5836 = vpop.f32.mrf.mxu0
      %v5837 = vadd.f32 %v5748, %v5836
      %v5838 = vpop.f32.mrf.mxu0
      %v5839 = vadd.f32 %v5750, %v5838
      %5840 = vmatmul.bf16.gmra.mxu0 %v2506
      %v5841 = vpop.f32.mrf.mxu0
      %v5842 = vadd.f32 %v5753, %v5841
      %v5843 = vpop.f32.mrf.mxu0
      %v5844 = vadd.f32 %v5755, %v5843
      %5845 = vmatmul.bf16.gmra.mxu0 %v2533
      %v5846 = vpop.f32.mrf.mxu0
      %v5847 = vadd.f32 %v5758, %v5846
      %v5848 = vpop.f32.mrf.mxu0
      %v5849 = vadd.f32 %v5760, %v5848
      %5850 = vmatmul.bf16.gmra.mxu0 %v2560
      %v5851 = vpop.f32.mrf.mxu0
      %v5852 = vadd.f32 %v5763, %v5851
      %v5853 = vpop.f32.mrf.mxu0
      %v5854 = vadd.f32 %v5765, %v5853
      %5855 = vmatmul.bf16.gmra.mxu0 %v2587
      %v5856 = vpop.f32.mrf.mxu0
      %v5857 = vadd.f32 %v5768, %v5856
      %v5858 = vpop.f32.mrf.mxu0
      %v5859 = vadd.f32 %v5770, %v5858
      %5860 = vmatmul.bf16.gmra.mxu0 %v2614
      %v5861 = vpop.f32.mrf.mxu0
      %v5862 = vadd.f32 %v5773, %v5861
      %v5863 = vpop.f32.mrf.mxu0
      %v5864 = vadd.f32 %v5775, %v5863
      %5865 = vmatmul.bf16.gmra.mxu0 %v2641
      %v5866 = vpop.f32.mrf.mxu0
      %v5867 = vadd.f32 %v5778, %v5866
      %v5868 = vpop.f32.mrf.mxu0
      %v5869 = vadd.f32 %v5780, %v5868
      %5870 = vmatmul.bf16.gmra.mxu0 %v2668
      %v5871 = vpop.f32.mrf.mxu0
      %v5872 = vadd.f32 %v5783, %v5871
      %v5873 = vpop.f32.mrf.mxu0
      %v5874 = vadd.f32 %v5785, %v5873
      %5875 = vmatmul.bf16.gmra.mxu0 %v2695
      %v5876 = vpop.f32.mrf.mxu0
      %v5877 = vadd.f32 %v5788, %v5876
      %v5878 = vpop.f32.mrf.mxu0
      %v5879 = vadd.f32 %v5790, %v5878
      %5880 = vmatmul.bf16.gmra.mxu0 %v2722
      %v5881 = vpop.f32.mrf.mxu0
      %v5882 = vadd.f32 %v5793, %v5881
      %v5883 = vpop.f32.mrf.mxu0
      %v5884 = vadd.f32 %v5795, %v5883
      %5885 = vmatmul.bf16.gmra.mxu0 %v2749
      %v5886 = vpop.f32.mrf.mxu0
      %v5887 = vadd.f32 %v5798, %v5886
      %v5888 = vpop.f32.mrf.mxu0
      %v5889 = vadd.f32 %v5800, %v5888
      %5890 = vmatmul.bf16.gmra.mxu0 %v2776
      %v5891 = vpop.f32.mrf.mxu0
      %v5892 = vadd.f32 %v5803, %v5891
      %v5893 = vpop.f32.mrf.mxu0
      %v5894 = vadd.f32 %v5805, %v5893
      %5895 = vmatmul.bf16.gmra.mxu0 %v2803
      %v5896 = vpop.f32.mrf.mxu0
      %v5897 = vadd.f32 %v5808, %v5896
      %v5898 = vpop.f32.mrf.mxu0
      %v5899 = vadd.f32 %v5810, %v5898
      %5900 = vmatmul.bf16.gmra.mxu0 %v2830
      %v5901 = vpop.f32.mrf.mxu0
      %v5902 = vadd.f32 %v5813, %v5901
      %v5903 = vpop.f32.mrf.mxu0
      %v5904 = vadd.f32 %v5815, %v5903
      %5905 = vdwg.mxu0
      %5906 = vmatpush.bf16.msra.mxu0 %v4266
      %5907 = vmatpush.bf16.msra.mxu0 %v4265
      %5908 = vmatpush.bf16.msra.mxu0 %v4264
      %5909 = vmatpush.bf16.msra.mxu0 %v4263
      %5910 = vmatpush.bf16.msra.mxu0 %v4262
      %5911 = vmatpush.bf16.msra.mxu0 %v4261
      %5912 = vmatpush.bf16.msra.mxu0 %v4260
      %5913 = vmatpush.bf16.msra.mxu0 %v4259
      %5914 = vmatmul.bf16.gmra.mxu0 %v2426
      %v5915 = vpop.f32.mrf.mxu0
      %v5916 = vadd.f32 %v5827, %v5915
      %v5917 = vpop.f32.mrf.mxu0
      %v5918 = vadd.f32 %v5829, %v5917
      %5919 = vmatmul.bf16.gmra.mxu0 %v2453
      %v5920 = vpop.f32.mrf.mxu0
      %v5921 = vadd.f32 %v5832, %v5920
      %v5922 = vpop.f32.mrf.mxu0
      %v5923 = vadd.f32 %v5834, %v5922
      %5924 = vmatmul.bf16.gmra.mxu0 %v2480
      %v5925 = vpop.f32.mrf.mxu0
      %v5926 = vadd.f32 %v5837, %v5925
      %v5927 = vpop.f32.mrf.mxu0
      %v5928 = vadd.f32 %v5839, %v5927
      %5929 = vmatmul.bf16.gmra.mxu0 %v2507
      %v5930 = vpop.f32.mrf.mxu0
      %v5931 = vadd.f32 %v5842, %v5930
      %v5932 = vpop.f32.mrf.mxu0
      %v5933 = vadd.f32 %v5844, %v5932
      %5934 = vmatmul.bf16.gmra.mxu0 %v2534
      %v5935 = vpop.f32.mrf.mxu0
      %v5936 = vadd.f32 %v5847, %v5935
      %v5937 = vpop.f32.mrf.mxu0
      %v5938 = vadd.f32 %v5849, %v5937
      %5939 = vmatmul.bf16.gmra.mxu0 %v2561
      %v5940 = vpop.f32.mrf.mxu0
      %v5941 = vadd.f32 %v5852, %v5940
      %v5942 = vpop.f32.mrf.mxu0
      %v5943 = vadd.f32 %v5854, %v5942
      %5944 = vmatmul.bf16.gmra.mxu0 %v2588
      %v5945 = vpop.f32.mrf.mxu0
      %v5946 = vadd.f32 %v5857, %v5945
      %v5947 = vpop.f32.mrf.mxu0
      %v5948 = vadd.f32 %v5859, %v5947
      %5949 = vmatmul.bf16.gmra.mxu0 %v2615
      %v5950 = vpop.f32.mrf.mxu0
      %v5951 = vadd.f32 %v5862, %v5950
      %v5952 = vpop.f32.mrf.mxu0
      %v5953 = vadd.f32 %v5864, %v5952
      %5954 = vmatmul.bf16.gmra.mxu0 %v2642
      %v5955 = vpop.f32.mrf.mxu0
      %v5956 = vadd.f32 %v5867, %v5955
      %v5957 = vpop.f32.mrf.mxu0
      %v5958 = vadd.f32 %v5869, %v5957
      %5959 = vmatmul.bf16.gmra.mxu0 %v2669
      %v5960 = vpop.f32.mrf.mxu0
      %v5961 = vadd.f32 %v5872, %v5960
      %v5962 = vpop.f32.mrf.mxu0
      %v5963 = vadd.f32 %v5874, %v5962
      %5964 = vmatmul.bf16.gmra.mxu0 %v2696
      %v5965 = vpop.f32.mrf.mxu0
      %v5966 = vadd.f32 %v5877, %v5965
      %v5967 = vpop.f32.mrf.mxu0
      %v5968 = vadd.f32 %v5879, %v5967
      %5969 = vmatmul.bf16.gmra.mxu0 %v2723
      %v5970 = vpop.f32.mrf.mxu0
      %v5971 = vadd.f32 %v5882, %v5970
      %v5972 = vpop.f32.mrf.mxu0
      %v5973 = vadd.f32 %v5884, %v5972
      %5974 = vmatmul.bf16.gmra.mxu0 %v2750
      %v5975 = vpop.f32.mrf.mxu0
      %v5976 = vadd.f32 %v5887, %v5975
      %v5977 = vpop.f32.mrf.mxu0
      %v5978 = vadd.f32 %v5889, %v5977
      %5979 = vmatmul.bf16.gmra.mxu0 %v2777
      %v5980 = vpop.f32.mrf.mxu0
      %v5981 = vadd.f32 %v5892, %v5980
      %v5982 = vpop.f32.mrf.mxu0
      %v5983 = vadd.f32 %v5894, %v5982
      %5984 = vmatmul.bf16.gmra.mxu0 %v2804
      %v5985 = vpop.f32.mrf.mxu0
      %v5986 = vadd.f32 %v5897, %v5985
      %v5987 = vpop.f32.mrf.mxu0
      %v5988 = vadd.f32 %v5899, %v5987
      %5989 = vmatmul.bf16.gmra.mxu0 %v2831
      %v5990 = vpop.f32.mrf.mxu0
      %v5991 = vadd.f32 %v5902, %v5990
      %v5992 = vpop.f32.mrf.mxu0
      %v5993 = vadd.f32 %v5904, %v5992
      %5994 = vdwg.mxu0
      %5995 = vmatpush.bf16.msra.mxu0 %v4274
      %5996 = vmatpush.bf16.msra.mxu0 %v4273
      %5997 = vmatpush.bf16.msra.mxu0 %v4272
      %5998 = vmatpush.bf16.msra.mxu0 %v4271
      %5999 = vmatpush.bf16.msra.mxu0 %v4270
      %6000 = vmatpush.bf16.msra.mxu0 %v4269
      %6001 = vmatpush.bf16.msra.mxu0 %v4268
      %6002 = vmatpush.bf16.msra.mxu0 %v4267
      %6003 = vmatmul.bf16.gmra.mxu0 %v2427
      %v6004 = vpop.f32.mrf.mxu0
      %v6005 = vadd.f32 %v5916, %v6004
      %v6006 = vpop.f32.mrf.mxu0
      %v6007 = vadd.f32 %v5918, %v6006
      %6008 = vmatmul.bf16.gmra.mxu0 %v2454
      %v6009 = vpop.f32.mrf.mxu0
      %v6010 = vadd.f32 %v5921, %v6009
      %v6011 = vpop.f32.mrf.mxu0
      %v6012 = vadd.f32 %v5923, %v6011
      %6013 = vmatmul.bf16.gmra.mxu0 %v2481
      %v6014 = vpop.f32.mrf.mxu0
      %v6015 = vadd.f32 %v5926, %v6014
      %v6016 = vpop.f32.mrf.mxu0
      %v6017 = vadd.f32 %v5928, %v6016
      %6018 = vmatmul.bf16.gmra.mxu0 %v2508
      %v6019 = vpop.f32.mrf.mxu0
      %v6020 = vadd.f32 %v5931, %v6019
      %v6021 = vpop.f32.mrf.mxu0
      %v6022 = vadd.f32 %v5933, %v6021
      %6023 = vmatmul.bf16.gmra.mxu0 %v2535
      %v6024 = vpop.f32.mrf.mxu0
      %v6025 = vadd.f32 %v5936, %v6024
      %v6026 = vpop.f32.mrf.mxu0
      %v6027 = vadd.f32 %v5938, %v6026
      %6028 = vmatmul.bf16.gmra.mxu0 %v2562
      %v6029 = vpop.f32.mrf.mxu0
      %v6030 = vadd.f32 %v5941, %v6029
      %v6031 = vpop.f32.mrf.mxu0
      %v6032 = vadd.f32 %v5943, %v6031
      %6033 = vmatmul.bf16.gmra.mxu0 %v2589
      %v6034 = vpop.f32.mrf.mxu0
      %v6035 = vadd.f32 %v5946, %v6034
      %v6036 = vpop.f32.mrf.mxu0
      %v6037 = vadd.f32 %v5948, %v6036
      %6038 = vmatmul.bf16.gmra.mxu0 %v2616
      %v6039 = vpop.f32.mrf.mxu0
      %v6040 = vadd.f32 %v5951, %v6039
      %v6041 = vpop.f32.mrf.mxu0
      %v6042 = vadd.f32 %v5953, %v6041
      %6043 = vmatmul.bf16.gmra.mxu0 %v2643
      %v6044 = vpop.f32.mrf.mxu0
      %v6045 = vadd.f32 %v5956, %v6044
      %v6046 = vpop.f32.mrf.mxu0
      %v6047 = vadd.f32 %v5958, %v6046
      %6048 = vmatmul.bf16.gmra.mxu0 %v2670
      %v6049 = vpop.f32.mrf.mxu0
      %v6050 = vadd.f32 %v5961, %v6049
      %v6051 = vpop.f32.mrf.mxu0
      %v6052 = vadd.f32 %v5963, %v6051
      %6053 = vmatmul.bf16.gmra.mxu0 %v2697
      %v6054 = vpop.f32.mrf.mxu0
      %v6055 = vadd.f32 %v5966, %v6054
      %v6056 = vpop.f32.mrf.mxu0
      %v6057 = vadd.f32 %v5968, %v6056
      %6058 = vmatmul.bf16.gmra.mxu0 %v2724
      %v6059 = vpop.f32.mrf.mxu0
      %v6060 = vadd.f32 %v5971, %v6059
      %v6061 = vpop.f32.mrf.mxu0
      %v6062 = vadd.f32 %v5973, %v6061
      %6063 = vmatmul.bf16.gmra.mxu0 %v2751
      %v6064 = vpop.f32.mrf.mxu0
      %v6065 = vadd.f32 %v5976, %v6064
      %v6066 = vpop.f32.mrf.mxu0
      %v6067 = vadd.f32 %v5978, %v6066
      %6068 = vmatmul.bf16.gmra.mxu0 %v2778
      %v6069 = vpop.f32.mrf.mxu0
      %v6070 = vadd.f32 %v5981, %v6069
      %v6071 = vpop.f32.mrf.mxu0
      %v6072 = vadd.f32 %v5983, %v6071
      %6073 = vmatmul.bf16.gmra.mxu0 %v2805
      %v6074 = vpop.f32.mrf.mxu0
      %v6075 = vadd.f32 %v5986, %v6074
      %v6076 = vpop.f32.mrf.mxu0
      %v6077 = vadd.f32 %v5988, %v6076
      %6078 = vmatmul.bf16.gmra.mxu0 %v2832
      %v6079 = vpop.f32.mrf.mxu0
      %v6080 = vadd.f32 %v5991, %v6079
      %v6081 = vpop.f32.mrf.mxu0
      %v6082 = vadd.f32 %v5993, %v6081
      %6083 = vdwg.mxu0
      %6084 = vmatpush.bf16.msra.mxu0 %v4282
      %6085 = vmatpush.bf16.msra.mxu0 %v4281
      %6086 = vmatpush.bf16.msra.mxu0 %v4280
      %6087 = vmatpush.bf16.msra.mxu0 %v4279
      %6088 = vmatpush.bf16.msra.mxu0 %v4278
      %6089 = vmatpush.bf16.msra.mxu0 %v4277
      %6090 = vmatpush.bf16.msra.mxu0 %v4276
      %6091 = vmatpush.bf16.msra.mxu0 %v4275
      %6092 = vmatmul.bf16.gmra.mxu0 %v2428
      %v6093 = vpop.f32.mrf.mxu0
      %v6094 = vadd.f32 %v6005, %v6093
      %v6095 = vpop.f32.mrf.mxu0
      %v6096 = vadd.f32 %v6007, %v6095
      %6097 = vmatmul.bf16.gmra.mxu0 %v2455
      %v6098 = vpop.f32.mrf.mxu0
      %v6099 = vadd.f32 %v6010, %v6098
      %v6100 = vpop.f32.mrf.mxu0
      %v6101 = vadd.f32 %v6012, %v6100
      %6102 = vmatmul.bf16.gmra.mxu0 %v2482
      %v6103 = vpop.f32.mrf.mxu0
      %v6104 = vadd.f32 %v6015, %v6103
      %v6105 = vpop.f32.mrf.mxu0
      %v6106 = vadd.f32 %v6017, %v6105
      %6107 = vmatmul.bf16.gmra.mxu0 %v2509
      %v6108 = vpop.f32.mrf.mxu0
      %v6109 = vadd.f32 %v6020, %v6108
      %v6110 = vpop.f32.mrf.mxu0
      %v6111 = vadd.f32 %v6022, %v6110
      %6112 = vmatmul.bf16.gmra.mxu0 %v2536
      %v6113 = vpop.f32.mrf.mxu0
      %v6114 = vadd.f32 %v6025, %v6113
      %v6115 = vpop.f32.mrf.mxu0
      %v6116 = vadd.f32 %v6027, %v6115
      %6117 = vmatmul.bf16.gmra.mxu0 %v2563
      %v6118 = vpop.f32.mrf.mxu0
      %v6119 = vadd.f32 %v6030, %v6118
      %v6120 = vpop.f32.mrf.mxu0
      %v6121 = vadd.f32 %v6032, %v6120
      %6122 = vmatmul.bf16.gmra.mxu0 %v2590
      %v6123 = vpop.f32.mrf.mxu0
      %v6124 = vadd.f32 %v6035, %v6123
      %v6125 = vpop.f32.mrf.mxu0
      %v6126 = vadd.f32 %v6037, %v6125
      %6127 = vmatmul.bf16.gmra.mxu0 %v2617
      %v6128 = vpop.f32.mrf.mxu0
      %v6129 = vadd.f32 %v6040, %v6128
      %v6130 = vpop.f32.mrf.mxu0
      %v6131 = vadd.f32 %v6042, %v6130
      %6132 = vmatmul.bf16.gmra.mxu0 %v2644
      %v6133 = vpop.f32.mrf.mxu0
      %v6134 = vadd.f32 %v6045, %v6133
      %v6135 = vpop.f32.mrf.mxu0
      %v6136 = vadd.f32 %v6047, %v6135
      %6137 = vmatmul.bf16.gmra.mxu0 %v2671
      %v6138 = vpop.f32.mrf.mxu0
      %v6139 = vadd.f32 %v6050, %v6138
      %v6140 = vpop.f32.mrf.mxu0
      %v6141 = vadd.f32 %v6052, %v6140
      %6142 = vmatmul.bf16.gmra.mxu0 %v2698
      %v6143 = vpop.f32.mrf.mxu0
      %v6144 = vadd.f32 %v6055, %v6143
      %v6145 = vpop.f32.mrf.mxu0
      %v6146 = vadd.f32 %v6057, %v6145
      %6147 = vmatmul.bf16.gmra.mxu0 %v2725
      %v6148 = vpop.f32.mrf.mxu0
      %v6149 = vadd.f32 %v6060, %v6148
      %v6150 = vpop.f32.mrf.mxu0
      %v6151 = vadd.f32 %v6062, %v6150
      %6152 = vmatmul.bf16.gmra.mxu0 %v2752
      %v6153 = vpop.f32.mrf.mxu0
      %v6154 = vadd.f32 %v6065, %v6153
      %v6155 = vpop.f32.mrf.mxu0
      %v6156 = vadd.f32 %v6067, %v6155
      %6157 = vmatmul.bf16.gmra.mxu0 %v2779
      %v6158 = vpop.f32.mrf.mxu0
      %v6159 = vadd.f32 %v6070, %v6158
      %v6160 = vpop.f32.mrf.mxu0
      %v6161 = vadd.f32 %v6072, %v6160
      %6162 = vmatmul.bf16.gmra.mxu0 %v2806
      %v6163 = vpop.f32.mrf.mxu0
      %v6164 = vadd.f32 %v6075, %v6163
      %v6165 = vpop.f32.mrf.mxu0
      %v6166 = vadd.f32 %v6077, %v6165
      %6167 = vmatmul.bf16.gmra.mxu0 %v2833
      %v6168 = vpop.f32.mrf.mxu0
      %v6169 = vadd.f32 %v6080, %v6168
      %v6170 = vpop.f32.mrf.mxu0
      %v6171 = vadd.f32 %v6082, %v6170
      %6172 = vdwg.mxu0
      %6173 = vmatpush.bf16.msra.mxu0 %v4290
      %6174 = vmatpush.bf16.msra.mxu0 %v4289
      %6175 = vmatpush.bf16.msra.mxu0 %v4288
      %6176 = vmatpush.bf16.msra.mxu0 %v4287
      %6177 = vmatpush.bf16.msra.mxu0 %v4286
      %6178 = vmatpush.bf16.msra.mxu0 %v4285
      %6179 = vmatpush.bf16.msra.mxu0 %v4284
      %6180 = vmatpush.bf16.msra.mxu0 %v4283
      %6181 = vmatmul.bf16.gmra.mxu0 %v2429
      %v6182 = vpop.f32.mrf.mxu0
      %v6183 = vadd.f32 %v6094, %v6182
      %v6184 = vpop.f32.mrf.mxu0
      %v6185 = vadd.f32 %v6096, %v6184
      %6186 = vmatmul.bf16.gmra.mxu0 %v2456
      %v6187 = vpop.f32.mrf.mxu0
      %v6188 = vadd.f32 %v6099, %v6187
      %v6189 = vpop.f32.mrf.mxu0
      %v6190 = vadd.f32 %v6101, %v6189
      %6191 = vmatmul.bf16.gmra.mxu0 %v2483
      %v6192 = vpop.f32.mrf.mxu0
      %v6193 = vadd.f32 %v6104, %v6192
      %v6194 = vpop.f32.mrf.mxu0
      %v6195 = vadd.f32 %v6106, %v6194
      %6196 = vmatmul.bf16.gmra.mxu0 %v2510
      %v6197 = vpop.f32.mrf.mxu0
      %v6198 = vadd.f32 %v6109, %v6197
      %v6199 = vpop.f32.mrf.mxu0
      %v6200 = vadd.f32 %v6111, %v6199
      %6201 = vmatmul.bf16.gmra.mxu0 %v2537
      %v6202 = vpop.f32.mrf.mxu0
      %v6203 = vadd.f32 %v6114, %v6202
      %v6204 = vpop.f32.mrf.mxu0
      %v6205 = vadd.f32 %v6116, %v6204
      %6206 = vmatmul.bf16.gmra.mxu0 %v2564
      %v6207 = vpop.f32.mrf.mxu0
      %v6208 = vadd.f32 %v6119, %v6207
      %v6209 = vpop.f32.mrf.mxu0
      %v6210 = vadd.f32 %v6121, %v6209
      %6211 = vmatmul.bf16.gmra.mxu0 %v2591
      %v6212 = vpop.f32.mrf.mxu0
      %v6213 = vadd.f32 %v6124, %v6212
      %v6214 = vpop.f32.mrf.mxu0
      %v6215 = vadd.f32 %v6126, %v6214
      %6216 = vmatmul.bf16.gmra.mxu0 %v2618
      %v6217 = vpop.f32.mrf.mxu0
      %v6218 = vadd.f32 %v6129, %v6217
      %v6219 = vpop.f32.mrf.mxu0
      %v6220 = vadd.f32 %v6131, %v6219
      %6221 = vmatmul.bf16.gmra.mxu0 %v2645
      %v6222 = vpop.f32.mrf.mxu0
      %v6223 = vadd.f32 %v6134, %v6222
      %v6224 = vpop.f32.mrf.mxu0
      %v6225 = vadd.f32 %v6136, %v6224
      %6226 = vmatmul.bf16.gmra.mxu0 %v2672
      %v6227 = vpop.f32.mrf.mxu0
      %v6228 = vadd.f32 %v6139, %v6227
      %v6229 = vpop.f32.mrf.mxu0
      %v6230 = vadd.f32 %v6141, %v6229
      %6231 = vmatmul.bf16.gmra.mxu0 %v2699
      %v6232 = vpop.f32.mrf.mxu0
      %v6233 = vadd.f32 %v6144, %v6232
      %v6234 = vpop.f32.mrf.mxu0
      %v6235 = vadd.f32 %v6146, %v6234
      %6236 = vmatmul.bf16.gmra.mxu0 %v2726
      %v6237 = vpop.f32.mrf.mxu0
      %v6238 = vadd.f32 %v6149, %v6237
      %v6239 = vpop.f32.mrf.mxu0
      %v6240 = vadd.f32 %v6151, %v6239
      %6241 = vmatmul.bf16.gmra.mxu0 %v2753
      %v6242 = vpop.f32.mrf.mxu0
      %v6243 = vadd.f32 %v6154, %v6242
      %v6244 = vpop.f32.mrf.mxu0
      %v6245 = vadd.f32 %v6156, %v6244
      %6246 = vmatmul.bf16.gmra.mxu0 %v2780
      %v6247 = vpop.f32.mrf.mxu0
      %v6248 = vadd.f32 %v6159, %v6247
      %v6249 = vpop.f32.mrf.mxu0
      %v6250 = vadd.f32 %v6161, %v6249
      %6251 = vmatmul.bf16.gmra.mxu0 %v2807
      %v6252 = vpop.f32.mrf.mxu0
      %v6253 = vadd.f32 %v6164, %v6252
      %v6254 = vpop.f32.mrf.mxu0
      %v6255 = vadd.f32 %v6166, %v6254
      %6256 = vmatmul.bf16.gmra.mxu0 %v2834
      %v6257 = vpop.f32.mrf.mxu0
      %v6258 = vadd.f32 %v6169, %v6257
      %v6259 = vpop.f32.mrf.mxu0
      %v6260 = vadd.f32 %v6171, %v6259
      %6261 = vdwg.mxu0
      %6262 = vmatpush.bf16.msra.mxu0 %v4298
      %6263 = vmatpush.bf16.msra.mxu0 %v4297
      %6264 = vmatpush.bf16.msra.mxu0 %v4296
      %6265 = vmatpush.bf16.msra.mxu0 %v4295
      %6266 = vmatpush.bf16.msra.mxu0 %v4294
      %6267 = vmatpush.bf16.msra.mxu0 %v4293
      %6268 = vmatpush.bf16.msra.mxu0 %v4292
      %6269 = vmatpush.bf16.msra.mxu0 %v4291
      %6270 = vmatmul.bf16.gmra.mxu0 %v2430
      %v6271 = vpop.f32.mrf.mxu0
      %v6272 = vadd.f32 %v6183, %v6271
      %v6273 = vpop.f32.mrf.mxu0
      %v6274 = vadd.f32 %v6185, %v6273
      %6275 = vmatmul.bf16.gmra.mxu0 %v2457
      %v6276 = vpop.f32.mrf.mxu0
      %v6277 = vadd.f32 %v6188, %v6276
      %v6278 = vpop.f32.mrf.mxu0
      %v6279 = vadd.f32 %v6190, %v6278
      %6280 = vmatmul.bf16.gmra.mxu0 %v2484
      %v6281 = vpop.f32.mrf.mxu0
      %v6282 = vadd.f32 %v6193, %v6281
      %v6283 = vpop.f32.mrf.mxu0
      %v6284 = vadd.f32 %v6195, %v6283
      %6285 = vmatmul.bf16.gmra.mxu0 %v2511
      %v6286 = vpop.f32.mrf.mxu0
      %v6287 = vadd.f32 %v6198, %v6286
      %v6288 = vpop.f32.mrf.mxu0
      %v6289 = vadd.f32 %v6200, %v6288
      %6290 = vmatmul.bf16.gmra.mxu0 %v2538
      %v6291 = vpop.f32.mrf.mxu0
      %v6292 = vadd.f32 %v6203, %v6291
      %v6293 = vpop.f32.mrf.mxu0
      %v6294 = vadd.f32 %v6205, %v6293
      %6295 = vmatmul.bf16.gmra.mxu0 %v2565
      %v6296 = vpop.f32.mrf.mxu0
      %v6297 = vadd.f32 %v6208, %v6296
      %v6298 = vpop.f32.mrf.mxu0
      %v6299 = vadd.f32 %v6210, %v6298
      %6300 = vmatmul.bf16.gmra.mxu0 %v2592
      %v6301 = vpop.f32.mrf.mxu0
      %v6302 = vadd.f32 %v6213, %v6301
      %v6303 = vpop.f32.mrf.mxu0
      %v6304 = vadd.f32 %v6215, %v6303
      %6305 = vmatmul.bf16.gmra.mxu0 %v2619
      %v6306 = vpop.f32.mrf.mxu0
      %v6307 = vadd.f32 %v6218, %v6306
      %v6308 = vpop.f32.mrf.mxu0
      %v6309 = vadd.f32 %v6220, %v6308
      %6310 = vmatmul.bf16.gmra.mxu0 %v2646
      %v6311 = vpop.f32.mrf.mxu0
      %v6312 = vadd.f32 %v6223, %v6311
      %v6313 = vpop.f32.mrf.mxu0
      %v6314 = vadd.f32 %v6225, %v6313
      %6315 = vmatmul.bf16.gmra.mxu0 %v2673
      %v6316 = vpop.f32.mrf.mxu0
      %v6317 = vadd.f32 %v6228, %v6316
      %v6318 = vpop.f32.mrf.mxu0
      %v6319 = vadd.f32 %v6230, %v6318
      %6320 = vmatmul.bf16.gmra.mxu0 %v2700
      %v6321 = vpop.f32.mrf.mxu0
      %v6322 = vadd.f32 %v6233, %v6321
      %v6323 = vpop.f32.mrf.mxu0
      %v6324 = vadd.f32 %v6235, %v6323
      %6325 = vmatmul.bf16.gmra.mxu0 %v2727
      %v6326 = vpop.f32.mrf.mxu0
      %v6327 = vadd.f32 %v6238, %v6326
      %v6328 = vpop.f32.mrf.mxu0
      %v6329 = vadd.f32 %v6240, %v6328
      %6330 = vmatmul.bf16.gmra.mxu0 %v2754
      %v6331 = vpop.f32.mrf.mxu0
      %v6332 = vadd.f32 %v6243, %v6331
      %v6333 = vpop.f32.mrf.mxu0
      %v6334 = vadd.f32 %v6245, %v6333
      %6335 = vmatmul.bf16.gmra.mxu0 %v2781
      %v6336 = vpop.f32.mrf.mxu0
      %v6337 = vadd.f32 %v6248, %v6336
      %v6338 = vpop.f32.mrf.mxu0
      %v6339 = vadd.f32 %v6250, %v6338
      %6340 = vmatmul.bf16.gmra.mxu0 %v2808
      %v6341 = vpop.f32.mrf.mxu0
      %v6342 = vadd.f32 %v6253, %v6341
      %v6343 = vpop.f32.mrf.mxu0
      %v6344 = vadd.f32 %v6255, %v6343
      %6345 = vmatmul.bf16.gmra.mxu0 %v2835
      %v6346 = vpop.f32.mrf.mxu0
      %v6347 = vadd.f32 %v6258, %v6346
      %v6348 = vpop.f32.mrf.mxu0
      %v6349 = vadd.f32 %v6260, %v6348
      %6350 = vdwg.mxu0
      %6351 = vmatpush.bf16.msra.mxu0 %v4306
      %6352 = vmatpush.bf16.msra.mxu0 %v4305
      %6353 = vmatpush.bf16.msra.mxu0 %v4304
      %6354 = vmatpush.bf16.msra.mxu0 %v4303
      %6355 = vmatpush.bf16.msra.mxu0 %v4302
      %6356 = vmatpush.bf16.msra.mxu0 %v4301
      %6357 = vmatpush.bf16.msra.mxu0 %v4300
      %6358 = vmatpush.bf16.msra.mxu0 %v4299
      %6359 = vmatmul.bf16.gmra.mxu0 %v2431
      %v6360 = vpop.f32.mrf.mxu0
      %v6361 = vadd.f32 %v6272, %v6360
      %v6362 = vpop.f32.mrf.mxu0
      %v6363 = vadd.f32 %v6274, %v6362
      %6364 = vmatmul.bf16.gmra.mxu0 %v2458
      %v6365 = vpop.f32.mrf.mxu0
      %v6366 = vadd.f32 %v6277, %v6365
      %v6367 = vpop.f32.mrf.mxu0
      %v6368 = vadd.f32 %v6279, %v6367
      %6369 = vmatmul.bf16.gmra.mxu0 %v2485
      %v6370 = vpop.f32.mrf.mxu0
      %v6371 = vadd.f32 %v6282, %v6370
      %v6372 = vpop.f32.mrf.mxu0
      %v6373 = vadd.f32 %v6284, %v6372
      %6374 = vmatmul.bf16.gmra.mxu0 %v2512
      %v6375 = vpop.f32.mrf.mxu0
      %v6376 = vadd.f32 %v6287, %v6375
      %v6377 = vpop.f32.mrf.mxu0
      %v6378 = vadd.f32 %v6289, %v6377
      %6379 = vmatmul.bf16.gmra.mxu0 %v2539
      %v6380 = vpop.f32.mrf.mxu0
      %v6381 = vadd.f32 %v6292, %v6380
      %v6382 = vpop.f32.mrf.mxu0
      %v6383 = vadd.f32 %v6294, %v6382
      %6384 = vmatmul.bf16.gmra.mxu0 %v2566
      %v6385 = vpop.f32.mrf.mxu0
      %v6386 = vadd.f32 %v6297, %v6385
      %v6387 = vpop.f32.mrf.mxu0
      %v6388 = vadd.f32 %v6299, %v6387
      %6389 = vmatmul.bf16.gmra.mxu0 %v2593
      %v6390 = vpop.f32.mrf.mxu0
      %v6391 = vadd.f32 %v6302, %v6390
      %v6392 = vpop.f32.mrf.mxu0
      %v6393 = vadd.f32 %v6304, %v6392
      %6394 = vmatmul.bf16.gmra.mxu0 %v2620
      %v6395 = vpop.f32.mrf.mxu0
      %v6396 = vadd.f32 %v6307, %v6395
      %v6397 = vpop.f32.mrf.mxu0
      %v6398 = vadd.f32 %v6309, %v6397
      %6399 = vmatmul.bf16.gmra.mxu0 %v2647
      %v6400 = vpop.f32.mrf.mxu0
      %v6401 = vadd.f32 %v6312, %v6400
      %v6402 = vpop.f32.mrf.mxu0
      %v6403 = vadd.f32 %v6314, %v6402
      %6404 = vmatmul.bf16.gmra.mxu0 %v2674
      %v6405 = vpop.f32.mrf.mxu0
      %v6406 = vadd.f32 %v6317, %v6405
      %v6407 = vpop.f32.mrf.mxu0
      %v6408 = vadd.f32 %v6319, %v6407
      %6409 = vmatmul.bf16.gmra.mxu0 %v2701
      %v6410 = vpop.f32.mrf.mxu0
      %v6411 = vadd.f32 %v6322, %v6410
      %v6412 = vpop.f32.mrf.mxu0
      %v6413 = vadd.f32 %v6324, %v6412
      %6414 = vmatmul.bf16.gmra.mxu0 %v2728
      %v6415 = vpop.f32.mrf.mxu0
      %v6416 = vadd.f32 %v6327, %v6415
      %v6417 = vpop.f32.mrf.mxu0
      %v6418 = vadd.f32 %v6329, %v6417
      %6419 = vmatmul.bf16.gmra.mxu0 %v2755
      %v6420 = vpop.f32.mrf.mxu0
      %v6421 = vadd.f32 %v6332, %v6420
      %v6422 = vpop.f32.mrf.mxu0
      %v6423 = vadd.f32 %v6334, %v6422
      %6424 = vmatmul.bf16.gmra.mxu0 %v2782
      %v6425 = vpop.f32.mrf.mxu0
      %v6426 = vadd.f32 %v6337, %v6425
      %v6427 = vpop.f32.mrf.mxu0
      %v6428 = vadd.f32 %v6339, %v6427
      %6429 = vmatmul.bf16.gmra.mxu0 %v2809
      %v6430 = vpop.f32.mrf.mxu0
      %v6431 = vadd.f32 %v6342, %v6430
      %v6432 = vpop.f32.mrf.mxu0
      %v6433 = vadd.f32 %v6344, %v6432
      %6434 = vmatmul.bf16.gmra.mxu0 %v2836
      %v6435 = vpop.f32.mrf.mxu0
      %v6436 = vadd.f32 %v6347, %v6435
      %v6437 = vpop.f32.mrf.mxu0
      %v6438 = vadd.f32 %v6349, %v6437
      %6439 = vdwg.mxu0
      %6440 = vmatpush.bf16.msra.mxu0 %v4314
      %6441 = vmatpush.bf16.msra.mxu0 %v4313
      %6442 = vmatpush.bf16.msra.mxu0 %v4312
      %6443 = vmatpush.bf16.msra.mxu0 %v4311
      %6444 = vmatpush.bf16.msra.mxu0 %v4310
      %6445 = vmatpush.bf16.msra.mxu0 %v4309
      %6446 = vmatpush.bf16.msra.mxu0 %v4308
      %6447 = vmatpush.bf16.msra.mxu0 %v4307
      %6448 = vmatmul.bf16.gmra.mxu0 %v2432
      %v6449 = vpop.f32.mrf.mxu0
      %v6450 = vadd.f32 %v6361, %v6449
      %v6451 = vpop.f32.mrf.mxu0
      %v6452 = vadd.f32 %v6363, %v6451
      %6453 = vmatmul.bf16.gmra.mxu0 %v2459
      %v6454 = vpop.f32.mrf.mxu0
      %v6455 = vadd.f32 %v6366, %v6454
      %v6456 = vpop.f32.mrf.mxu0
      %v6457 = vadd.f32 %v6368, %v6456
      %6458 = vmatmul.bf16.gmra.mxu0 %v2486
      %v6459 = vpop.f32.mrf.mxu0
      %v6460 = vadd.f32 %v6371, %v6459
      %v6461 = vpop.f32.mrf.mxu0
      %v6462 = vadd.f32 %v6373, %v6461
      %6463 = vmatmul.bf16.gmra.mxu0 %v2513
      %v6464 = vpop.f32.mrf.mxu0
      %v6465 = vadd.f32 %v6376, %v6464
      %v6466 = vpop.f32.mrf.mxu0
      %v6467 = vadd.f32 %v6378, %v6466
      %6468 = vmatmul.bf16.gmra.mxu0 %v2540
      %v6469 = vpop.f32.mrf.mxu0
      %v6470 = vadd.f32 %v6381, %v6469
      %v6471 = vpop.f32.mrf.mxu0
      %v6472 = vadd.f32 %v6383, %v6471
      %6473 = vmatmul.bf16.gmra.mxu0 %v2567
      %v6474 = vpop.f32.mrf.mxu0
      %v6475 = vadd.f32 %v6386, %v6474
      %v6476 = vpop.f32.mrf.mxu0
      %v6477 = vadd.f32 %v6388, %v6476
      %6478 = vmatmul.bf16.gmra.mxu0 %v2594
      %v6479 = vpop.f32.mrf.mxu0
      %v6480 = vadd.f32 %v6391, %v6479
      %v6481 = vpop.f32.mrf.mxu0
      %v6482 = vadd.f32 %v6393, %v6481
      %6483 = vmatmul.bf16.gmra.mxu0 %v2621
      %v6484 = vpop.f32.mrf.mxu0
      %v6485 = vadd.f32 %v6396, %v6484
      %v6486 = vpop.f32.mrf.mxu0
      %v6487 = vadd.f32 %v6398, %v6486
      %6488 = vmatmul.bf16.gmra.mxu0 %v2648
      %v6489 = vpop.f32.mrf.mxu0
      %v6490 = vadd.f32 %v6401, %v6489
      %v6491 = vpop.f32.mrf.mxu0
      %v6492 = vadd.f32 %v6403, %v6491
      %6493 = vmatmul.bf16.gmra.mxu0 %v2675
      %v6494 = vpop.f32.mrf.mxu0
      %v6495 = vadd.f32 %v6406, %v6494
      %v6496 = vpop.f32.mrf.mxu0
      %v6497 = vadd.f32 %v6408, %v6496
      %6498 = vmatmul.bf16.gmra.mxu0 %v2702
      %v6499 = vpop.f32.mrf.mxu0
      %v6500 = vadd.f32 %v6411, %v6499
      %v6501 = vpop.f32.mrf.mxu0
      %v6502 = vadd.f32 %v6413, %v6501
      %6503 = vmatmul.bf16.gmra.mxu0 %v2729
      %v6504 = vpop.f32.mrf.mxu0
      %v6505 = vadd.f32 %v6416, %v6504
      %v6506 = vpop.f32.mrf.mxu0
      %v6507 = vadd.f32 %v6418, %v6506
      %6508 = vmatmul.bf16.gmra.mxu0 %v2756
      %v6509 = vpop.f32.mrf.mxu0
      %v6510 = vadd.f32 %v6421, %v6509
      %v6511 = vpop.f32.mrf.mxu0
      %v6512 = vadd.f32 %v6423, %v6511
      %6513 = vmatmul.bf16.gmra.mxu0 %v2783
      %v6514 = vpop.f32.mrf.mxu0
      %v6515 = vadd.f32 %v6426, %v6514
      %v6516 = vpop.f32.mrf.mxu0
      %v6517 = vadd.f32 %v6428, %v6516
      %6518 = vmatmul.bf16.gmra.mxu0 %v2810
      %v6519 = vpop.f32.mrf.mxu0
      %v6520 = vadd.f32 %v6431, %v6519
      %v6521 = vpop.f32.mrf.mxu0
      %v6522 = vadd.f32 %v6433, %v6521
      %6523 = vmatmul.bf16.gmra.mxu0 %v2837
      %v6524 = vpop.f32.mrf.mxu0
      %v6525 = vadd.f32 %v6436, %v6524
      %v6526 = vpop.f32.mrf.mxu0
      %v6527 = vadd.f32 %v6438, %v6526
      %6528 = vdwg.mxu0
      %6529 = vmatpush.bf16.msra.mxu0 %v4322
      %6530 = vmatpush.bf16.msra.mxu0 %v4321
      %6531 = vmatpush.bf16.msra.mxu0 %v4320
      %6532 = vmatpush.bf16.msra.mxu0 %v4319
      %6533 = vmatpush.bf16.msra.mxu0 %v4318
      %6534 = vmatpush.bf16.msra.mxu0 %v4317
      %6535 = vmatpush.bf16.msra.mxu0 %v4316
      %6536 = vmatpush.bf16.msra.mxu0 %v4315
      %6537 = vmatmul.bf16.gmra.mxu0 %v2433
      %v6538 = vpop.f32.mrf.mxu0
      %v6539 = vadd.f32 %v6450, %v6538
      %v6540 = vpop.f32.mrf.mxu0
      %v6541 = vadd.f32 %v6452, %v6540
      %6542 = vmatmul.bf16.gmra.mxu0 %v2460
      %v6543 = vpop.f32.mrf.mxu0
      %v6544 = vadd.f32 %v6455, %v6543
      %v6545 = vpop.f32.mrf.mxu0
      %v6546 = vadd.f32 %v6457, %v6545
      %6547 = vmatmul.bf16.gmra.mxu0 %v2487
      %v6548 = vpop.f32.mrf.mxu0
      %v6549 = vadd.f32 %v6460, %v6548
      %v6550 = vpop.f32.mrf.mxu0
      %v6551 = vadd.f32 %v6462, %v6550
      %6552 = vmatmul.bf16.gmra.mxu0 %v2514
      %v6553 = vpop.f32.mrf.mxu0
      %v6554 = vadd.f32 %v6465, %v6553
      %v6555 = vpop.f32.mrf.mxu0
      %v6556 = vadd.f32 %v6467, %v6555
      %6557 = vmatmul.bf16.gmra.mxu0 %v2541
      %v6558 = vpop.f32.mrf.mxu0
      %v6559 = vadd.f32 %v6470, %v6558
      %v6560 = vpop.f32.mrf.mxu0
      %v6561 = vadd.f32 %v6472, %v6560
      %6562 = vmatmul.bf16.gmra.mxu0 %v2568
      %v6563 = vpop.f32.mrf.mxu0
      %v6564 = vadd.f32 %v6475, %v6563
      %v6565 = vpop.f32.mrf.mxu0
      %v6566 = vadd.f32 %v6477, %v6565
      %6567 = vmatmul.bf16.gmra.mxu0 %v2595
      %v6568 = vpop.f32.mrf.mxu0
      %v6569 = vadd.f32 %v6480, %v6568
      %v6570 = vpop.f32.mrf.mxu0
      %v6571 = vadd.f32 %v6482, %v6570
      %6572 = vmatmul.bf16.gmra.mxu0 %v2622
      %v6573 = vpop.f32.mrf.mxu0
      %v6574 = vadd.f32 %v6485, %v6573
      %v6575 = vpop.f32.mrf.mxu0
      %v6576 = vadd.f32 %v6487, %v6575
      %6577 = vmatmul.bf16.gmra.mxu0 %v2649
      %v6578 = vpop.f32.mrf.mxu0
      %v6579 = vadd.f32 %v6490, %v6578
      %v6580 = vpop.f32.mrf.mxu0
      %v6581 = vadd.f32 %v6492, %v6580
      %6582 = vmatmul.bf16.gmra.mxu0 %v2676
      %v6583 = vpop.f32.mrf.mxu0
      %v6584 = vadd.f32 %v6495, %v6583
      %v6585 = vpop.f32.mrf.mxu0
      %v6586 = vadd.f32 %v6497, %v6585
      %6587 = vmatmul.bf16.gmra.mxu0 %v2703
      %v6588 = vpop.f32.mrf.mxu0
      %v6589 = vadd.f32 %v6500, %v6588
      %v6590 = vpop.f32.mrf.mxu0
      %v6591 = vadd.f32 %v6502, %v6590
      %6592 = vmatmul.bf16.gmra.mxu0 %v2730
      %v6593 = vpop.f32.mrf.mxu0
      %v6594 = vadd.f32 %v6505, %v6593
      %v6595 = vpop.f32.mrf.mxu0
      %v6596 = vadd.f32 %v6507, %v6595
      %6597 = vmatmul.bf16.gmra.mxu0 %v2757
      %v6598 = vpop.f32.mrf.mxu0
      %v6599 = vadd.f32 %v6510, %v6598
      %v6600 = vpop.f32.mrf.mxu0
      %v6601 = vadd.f32 %v6512, %v6600
      %6602 = vmatmul.bf16.gmra.mxu0 %v2784
      %v6603 = vpop.f32.mrf.mxu0
      %v6604 = vadd.f32 %v6515, %v6603
      %v6605 = vpop.f32.mrf.mxu0
      %v6606 = vadd.f32 %v6517, %v6605
      %6607 = vmatmul.bf16.gmra.mxu0 %v2811
      %v6608 = vpop.f32.mrf.mxu0
      %v6609 = vadd.f32 %v6520, %v6608
      %v6610 = vpop.f32.mrf.mxu0
      %v6611 = vadd.f32 %v6522, %v6610
      %6612 = vmatmul.bf16.gmra.mxu0 %v2838
      %v6613 = vpop.f32.mrf.mxu0
      %v6614 = vadd.f32 %v6525, %v6613
      %v6615 = vpop.f32.mrf.mxu0
      %v6616 = vadd.f32 %v6527, %v6615
      %6617 = vdwg.mxu0
      %6618 = vmatpush.bf16.msra.mxu0 %v4330
      %6619 = vmatpush.bf16.msra.mxu0 %v4329
      %6620 = vmatpush.bf16.msra.mxu0 %v4328
      %6621 = vmatpush.bf16.msra.mxu0 %v4327
      %6622 = vmatpush.bf16.msra.mxu0 %v4326
      %6623 = vmatpush.bf16.msra.mxu0 %v4325
      %6624 = vmatpush.bf16.msra.mxu0 %v4324
      %6625 = vmatpush.bf16.msra.mxu0 %v4323
      %6626 = vmatmul.bf16.gmra.mxu0 %v2434
      %v6627 = vpop.f32.mrf.mxu0
      %v6628 = vadd.f32 %v6539, %v6627
      %v6629 = vpop.f32.mrf.mxu0
      %v6630 = vadd.f32 %v6541, %v6629
      %6631 = vmatmul.bf16.gmra.mxu0 %v2461
      %v6632 = vpop.f32.mrf.mxu0
      %v6633 = vadd.f32 %v6544, %v6632
      %v6634 = vpop.f32.mrf.mxu0
      %v6635 = vadd.f32 %v6546, %v6634
      %6636 = vmatmul.bf16.gmra.mxu0 %v2488
      %v6637 = vpop.f32.mrf.mxu0
      %v6638 = vadd.f32 %v6549, %v6637
      %v6639 = vpop.f32.mrf.mxu0
      %v6640 = vadd.f32 %v6551, %v6639
      %6641 = vmatmul.bf16.gmra.mxu0 %v2515
      %v6642 = vpop.f32.mrf.mxu0
      %v6643 = vadd.f32 %v6554, %v6642
      %v6644 = vpop.f32.mrf.mxu0
      %v6645 = vadd.f32 %v6556, %v6644
      %6646 = vmatmul.bf16.gmra.mxu0 %v2542
      %v6647 = vpop.f32.mrf.mxu0
      %v6648 = vadd.f32 %v6559, %v6647
      %v6649 = vpop.f32.mrf.mxu0
      %v6650 = vadd.f32 %v6561, %v6649
      %6651 = vmatmul.bf16.gmra.mxu0 %v2569
      %v6652 = vpop.f32.mrf.mxu0
      %v6653 = vadd.f32 %v6564, %v6652
      %v6654 = vpop.f32.mrf.mxu0
      %v6655 = vadd.f32 %v6566, %v6654
      %6656 = vmatmul.bf16.gmra.mxu0 %v2596
      %v6657 = vpop.f32.mrf.mxu0
      %v6658 = vadd.f32 %v6569, %v6657
      %v6659 = vpop.f32.mrf.mxu0
      %v6660 = vadd.f32 %v6571, %v6659
      %6661 = vmatmul.bf16.gmra.mxu0 %v2623
      %v6662 = vpop.f32.mrf.mxu0
      %v6663 = vadd.f32 %v6574, %v6662
      %v6664 = vpop.f32.mrf.mxu0
      %v6665 = vadd.f32 %v6576, %v6664
      %6666 = vmatmul.bf16.gmra.mxu0 %v2650
      %v6667 = vpop.f32.mrf.mxu0
      %v6668 = vadd.f32 %v6579, %v6667
      %v6669 = vpop.f32.mrf.mxu0
      %v6670 = vadd.f32 %v6581, %v6669
      %6671 = vmatmul.bf16.gmra.mxu0 %v2677
      %v6672 = vpop.f32.mrf.mxu0
      %v6673 = vadd.f32 %v6584, %v6672
      %v6674 = vpop.f32.mrf.mxu0
      %v6675 = vadd.f32 %v6586, %v6674
      %6676 = vmatmul.bf16.gmra.mxu0 %v2704
      %v6677 = vpop.f32.mrf.mxu0
      %v6678 = vadd.f32 %v6589, %v6677
      %v6679 = vpop.f32.mrf.mxu0
      %v6680 = vadd.f32 %v6591, %v6679
      %6681 = vmatmul.bf16.gmra.mxu0 %v2731
      %v6682 = vpop.f32.mrf.mxu0
      %v6683 = vadd.f32 %v6594, %v6682
      %v6684 = vpop.f32.mrf.mxu0
      %v6685 = vadd.f32 %v6596, %v6684
      %6686 = vmatmul.bf16.gmra.mxu0 %v2758
      %v6687 = vpop.f32.mrf.mxu0
      %v6688 = vadd.f32 %v6599, %v6687
      %v6689 = vpop.f32.mrf.mxu0
      %v6690 = vadd.f32 %v6601, %v6689
      %6691 = vmatmul.bf16.gmra.mxu0 %v2785
      %v6692 = vpop.f32.mrf.mxu0
      %v6693 = vadd.f32 %v6604, %v6692
      %v6694 = vpop.f32.mrf.mxu0
      %v6695 = vadd.f32 %v6606, %v6694
      %6696 = vmatmul.bf16.gmra.mxu0 %v2812
      %v6697 = vpop.f32.mrf.mxu0
      %v6698 = vadd.f32 %v6609, %v6697
      %v6699 = vpop.f32.mrf.mxu0
      %v6700 = vadd.f32 %v6611, %v6699
      %6701 = vmatmul.bf16.gmra.mxu0 %v2839
      %v6702 = vpop.f32.mrf.mxu0
      %v6703 = vadd.f32 %v6614, %v6702
      %v6704 = vpop.f32.mrf.mxu0
      %v6705 = vadd.f32 %v6616, %v6704
      %6706 = vdwg.mxu0
      %6707 = vmatpush.bf16.msra.mxu0 %v4338
      %6708 = vmatpush.bf16.msra.mxu0 %v4337
      %6709 = vmatpush.bf16.msra.mxu0 %v4336
      %6710 = vmatpush.bf16.msra.mxu0 %v4335
      %6711 = vmatpush.bf16.msra.mxu0 %v4334
      %6712 = vmatpush.bf16.msra.mxu0 %v4333
      %6713 = vmatpush.bf16.msra.mxu0 %v4332
      %6714 = vmatpush.bf16.msra.mxu0 %v4331
      %6715 = vmatmul.bf16.gmra.mxu0 %v2435
      %v6716 = vpop.f32.mrf.mxu0
      %v6717 = vadd.f32 %v6628, %v6716
      %v6718 = vpop.f32.mrf.mxu0
      %v6719 = vadd.f32 %v6630, %v6718
      %6720 = vmatmul.bf16.gmra.mxu0 %v2462
      %v6721 = vpop.f32.mrf.mxu0
      %v6722 = vadd.f32 %v6633, %v6721
      %v6723 = vpop.f32.mrf.mxu0
      %v6724 = vadd.f32 %v6635, %v6723
      %6725 = vmatmul.bf16.gmra.mxu0 %v2489
      %v6726 = vpop.f32.mrf.mxu0
      %v6727 = vadd.f32 %v6638, %v6726
      %v6728 = vpop.f32.mrf.mxu0
      %v6729 = vadd.f32 %v6640, %v6728
      %6730 = vmatmul.bf16.gmra.mxu0 %v2516
      %v6731 = vpop.f32.mrf.mxu0
      %v6732 = vadd.f32 %v6643, %v6731
      %v6733 = vpop.f32.mrf.mxu0
      %v6734 = vadd.f32 %v6645, %v6733
      %6735 = vmatmul.bf16.gmra.mxu0 %v2543
      %v6736 = vpop.f32.mrf.mxu0
      %v6737 = vadd.f32 %v6648, %v6736
      %v6738 = vpop.f32.mrf.mxu0
      %v6739 = vadd.f32 %v6650, %v6738
      %6740 = vmatmul.bf16.gmra.mxu0 %v2570
      %v6741 = vpop.f32.mrf.mxu0
      %v6742 = vadd.f32 %v6653, %v6741
      %v6743 = vpop.f32.mrf.mxu0
      %v6744 = vadd.f32 %v6655, %v6743
      %6745 = vmatmul.bf16.gmra.mxu0 %v2597
      %v6746 = vpop.f32.mrf.mxu0
      %v6747 = vadd.f32 %v6658, %v6746
      %v6748 = vpop.f32.mrf.mxu0
      %v6749 = vadd.f32 %v6660, %v6748
      %6750 = vmatmul.bf16.gmra.mxu0 %v2624
      %v6751 = vpop.f32.mrf.mxu0
      %v6752 = vadd.f32 %v6663, %v6751
      %v6753 = vpop.f32.mrf.mxu0
      %v6754 = vadd.f32 %v6665, %v6753
      %6755 = vmatmul.bf16.gmra.mxu0 %v2651
      %v6756 = vpop.f32.mrf.mxu0
      %v6757 = vadd.f32 %v6668, %v6756
      %v6758 = vpop.f32.mrf.mxu0
      %v6759 = vadd.f32 %v6670, %v6758
      %6760 = vmatmul.bf16.gmra.mxu0 %v2678
      %v6761 = vpop.f32.mrf.mxu0
      %v6762 = vadd.f32 %v6673, %v6761
      %v6763 = vpop.f32.mrf.mxu0
      %v6764 = vadd.f32 %v6675, %v6763
      %6765 = vmatmul.bf16.gmra.mxu0 %v2705
      %v6766 = vpop.f32.mrf.mxu0
      %v6767 = vadd.f32 %v6678, %v6766
      %v6768 = vpop.f32.mrf.mxu0
      %v6769 = vadd.f32 %v6680, %v6768
      %6770 = vmatmul.bf16.gmra.mxu0 %v2732
      %v6771 = vpop.f32.mrf.mxu0
      %v6772 = vadd.f32 %v6683, %v6771
      %v6773 = vpop.f32.mrf.mxu0
      %v6774 = vadd.f32 %v6685, %v6773
      %6775 = vmatmul.bf16.gmra.mxu0 %v2759
      %v6776 = vpop.f32.mrf.mxu0
      %v6777 = vadd.f32 %v6688, %v6776
      %v6778 = vpop.f32.mrf.mxu0
      %v6779 = vadd.f32 %v6690, %v6778
      %6780 = vmatmul.bf16.gmra.mxu0 %v2786
      %v6781 = vpop.f32.mrf.mxu0
      %v6782 = vadd.f32 %v6693, %v6781
      %v6783 = vpop.f32.mrf.mxu0
      %v6784 = vadd.f32 %v6695, %v6783
      %6785 = vmatmul.bf16.gmra.mxu0 %v2813
      %v6786 = vpop.f32.mrf.mxu0
      %v6787 = vadd.f32 %v6698, %v6786
      %v6788 = vpop.f32.mrf.mxu0
      %v6789 = vadd.f32 %v6700, %v6788
      %6790 = vmatmul.bf16.gmra.mxu0 %v2840
      %v6791 = vpop.f32.mrf.mxu0
      %v6792 = vadd.f32 %v6703, %v6791
      %v6793 = vpop.f32.mrf.mxu0
      %v6794 = vadd.f32 %v6705, %v6793
      %6795 = vdwg.mxu0
      %6796 = vmatpush.bf16.msra.mxu0 %v4346
      %6797 = vmatpush.bf16.msra.mxu0 %v4345
      %6798 = vmatpush.bf16.msra.mxu0 %v4344
      %6799 = vmatpush.bf16.msra.mxu0 %v4343
      %6800 = vmatpush.bf16.msra.mxu0 %v4342
      %6801 = vmatpush.bf16.msra.mxu0 %v4341
      %6802 = vmatpush.bf16.msra.mxu0 %v4340
      %6803 = vmatpush.bf16.msra.mxu0 %v4339
      %6804 = vmatmul.bf16.gmra.mxu0 %v2436
      %v6805 = vpop.f32.mrf.mxu0
      %v6806 = vadd.f32 %v6717, %v6805
      %v6807 = vpop.f32.mrf.mxu0
      %v6808 = vadd.f32 %v6719, %v6807
      %6809 = vmatmul.bf16.gmra.mxu0 %v2463
      %v6810 = vpop.f32.mrf.mxu0
      %v6811 = vadd.f32 %v6722, %v6810
      %v6812 = vpop.f32.mrf.mxu0
      %v6813 = vadd.f32 %v6724, %v6812
      %6814 = vmatmul.bf16.gmra.mxu0 %v2490
      %v6815 = vpop.f32.mrf.mxu0
      %v6816 = vadd.f32 %v6727, %v6815
      %v6817 = vpop.f32.mrf.mxu0
      %v6818 = vadd.f32 %v6729, %v6817
      %6819 = vmatmul.bf16.gmra.mxu0 %v2517
      %v6820 = vpop.f32.mrf.mxu0
      %v6821 = vadd.f32 %v6732, %v6820
      %v6822 = vpop.f32.mrf.mxu0
      %v6823 = vadd.f32 %v6734, %v6822
      %6824 = vmatmul.bf16.gmra.mxu0 %v2544
      %v6825 = vpop.f32.mrf.mxu0
      %v6826 = vadd.f32 %v6737, %v6825
      %v6827 = vpop.f32.mrf.mxu0
      %v6828 = vadd.f32 %v6739, %v6827
      %6829 = vmatmul.bf16.gmra.mxu0 %v2571
      %v6830 = vpop.f32.mrf.mxu0
      %v6831 = vadd.f32 %v6742, %v6830
      %v6832 = vpop.f32.mrf.mxu0
      %v6833 = vadd.f32 %v6744, %v6832
      %6834 = vmatmul.bf16.gmra.mxu0 %v2598
      %v6835 = vpop.f32.mrf.mxu0
      %v6836 = vadd.f32 %v6747, %v6835
      %v6837 = vpop.f32.mrf.mxu0
      %v6838 = vadd.f32 %v6749, %v6837
      %6839 = vmatmul.bf16.gmra.mxu0 %v2625
      %v6840 = vpop.f32.mrf.mxu0
      %v6841 = vadd.f32 %v6752, %v6840
      %v6842 = vpop.f32.mrf.mxu0
      %v6843 = vadd.f32 %v6754, %v6842
      %6844 = vmatmul.bf16.gmra.mxu0 %v2652
      %v6845 = vpop.f32.mrf.mxu0
      %v6846 = vadd.f32 %v6757, %v6845
      %v6847 = vpop.f32.mrf.mxu0
      %v6848 = vadd.f32 %v6759, %v6847
      %6849 = vmatmul.bf16.gmra.mxu0 %v2679
      %v6850 = vpop.f32.mrf.mxu0
      %v6851 = vadd.f32 %v6762, %v6850
      %v6852 = vpop.f32.mrf.mxu0
      %v6853 = vadd.f32 %v6764, %v6852
      %6854 = vmatmul.bf16.gmra.mxu0 %v2706
      %v6855 = vpop.f32.mrf.mxu0
      %v6856 = vadd.f32 %v6767, %v6855
      %v6857 = vpop.f32.mrf.mxu0
      %v6858 = vadd.f32 %v6769, %v6857
      %6859 = vmatmul.bf16.gmra.mxu0 %v2733
      %v6860 = vpop.f32.mrf.mxu0
      %v6861 = vadd.f32 %v6772, %v6860
      %v6862 = vpop.f32.mrf.mxu0
      %v6863 = vadd.f32 %v6774, %v6862
      %6864 = vmatmul.bf16.gmra.mxu0 %v2760
      %v6865 = vpop.f32.mrf.mxu0
      %v6866 = vadd.f32 %v6777, %v6865
      %v6867 = vpop.f32.mrf.mxu0
      %v6868 = vadd.f32 %v6779, %v6867
      %6869 = vmatmul.bf16.gmra.mxu0 %v2787
      %v6870 = vpop.f32.mrf.mxu0
      %v6871 = vadd.f32 %v6782, %v6870
      %v6872 = vpop.f32.mrf.mxu0
      %v6873 = vadd.f32 %v6784, %v6872
      %6874 = vmatmul.bf16.gmra.mxu0 %v2814
      %v6875 = vpop.f32.mrf.mxu0
      %v6876 = vadd.f32 %v6787, %v6875
      %v6877 = vpop.f32.mrf.mxu0
      %v6878 = vadd.f32 %v6789, %v6877
      %6879 = vmatmul.bf16.gmra.mxu0 %v2841
      %v6880 = vpop.f32.mrf.mxu0
      %v6881 = vadd.f32 %v6792, %v6880
      %v6882 = vpop.f32.mrf.mxu0
      %v6883 = vadd.f32 %v6794, %v6882
      %6884 = vdwg.mxu0
      %6885 = vmatpush.bf16.msra.mxu0 %v4354
      %6886 = vmatpush.bf16.msra.mxu0 %v4353
      %6887 = vmatpush.bf16.msra.mxu0 %v4352
      %6888 = vmatpush.bf16.msra.mxu0 %v4351
      %6889 = vmatpush.bf16.msra.mxu0 %v4350
      %6890 = vmatpush.bf16.msra.mxu0 %v4349
      %6891 = vmatpush.bf16.msra.mxu0 %v4348
      %6892 = vmatpush.bf16.msra.mxu0 %v4347
      %6893 = vmatmul.bf16.gmra.mxu0 %v2437
      %v6894 = vpop.f32.mrf.mxu0
      %v6895 = vadd.f32 %v6806, %v6894
      %v6896 = vpop.f32.mrf.mxu0
      %v6897 = vadd.f32 %v6808, %v6896
      %6898 = vmatmul.bf16.gmra.mxu0 %v2464
      %v6899 = vpop.f32.mrf.mxu0
      %v6900 = vadd.f32 %v6811, %v6899
      %v6901 = vpop.f32.mrf.mxu0
      %v6902 = vadd.f32 %v6813, %v6901
      %6903 = vmatmul.bf16.gmra.mxu0 %v2491
      %v6904 = vpop.f32.mrf.mxu0
      %v6905 = vadd.f32 %v6816, %v6904
      %v6906 = vpop.f32.mrf.mxu0
      %v6907 = vadd.f32 %v6818, %v6906
      %6908 = vmatmul.bf16.gmra.mxu0 %v2518
      %v6909 = vpop.f32.mrf.mxu0
      %v6910 = vadd.f32 %v6821, %v6909
      %v6911 = vpop.f32.mrf.mxu0
      %v6912 = vadd.f32 %v6823, %v6911
      %6913 = vmatmul.bf16.gmra.mxu0 %v2545
      %v6914 = vpop.f32.mrf.mxu0
      %v6915 = vadd.f32 %v6826, %v6914
      %v6916 = vpop.f32.mrf.mxu0
      %v6917 = vadd.f32 %v6828, %v6916
      %6918 = vmatmul.bf16.gmra.mxu0 %v2572
      %v6919 = vpop.f32.mrf.mxu0
      %v6920 = vadd.f32 %v6831, %v6919
      %v6921 = vpop.f32.mrf.mxu0
      %v6922 = vadd.f32 %v6833, %v6921
      %6923 = vmatmul.bf16.gmra.mxu0 %v2599
      %v6924 = vpop.f32.mrf.mxu0
      %v6925 = vadd.f32 %v6836, %v6924
      %v6926 = vpop.f32.mrf.mxu0
      %v6927 = vadd.f32 %v6838, %v6926
      %6928 = vmatmul.bf16.gmra.mxu0 %v2626
      %v6929 = vpop.f32.mrf.mxu0
      %v6930 = vadd.f32 %v6841, %v6929
      %v6931 = vpop.f32.mrf.mxu0
      %v6932 = vadd.f32 %v6843, %v6931
      %6933 = vmatmul.bf16.gmra.mxu0 %v2653
      %v6934 = vpop.f32.mrf.mxu0
      %v6935 = vadd.f32 %v6846, %v6934
      %v6936 = vpop.f32.mrf.mxu0
      %v6937 = vadd.f32 %v6848, %v6936
      %6938 = vmatmul.bf16.gmra.mxu0 %v2680
      %v6939 = vpop.f32.mrf.mxu0
      %v6940 = vadd.f32 %v6851, %v6939
      %v6941 = vpop.f32.mrf.mxu0
      %v6942 = vadd.f32 %v6853, %v6941
      %6943 = vmatmul.bf16.gmra.mxu0 %v2707
      %v6944 = vpop.f32.mrf.mxu0
      %v6945 = vadd.f32 %v6856, %v6944
      %v6946 = vpop.f32.mrf.mxu0
      %v6947 = vadd.f32 %v6858, %v6946
      %6948 = vmatmul.bf16.gmra.mxu0 %v2734
      %v6949 = vpop.f32.mrf.mxu0
      %v6950 = vadd.f32 %v6861, %v6949
      %v6951 = vpop.f32.mrf.mxu0
      %v6952 = vadd.f32 %v6863, %v6951
      %6953 = vmatmul.bf16.gmra.mxu0 %v2761
      %v6954 = vpop.f32.mrf.mxu0
      %v6955 = vadd.f32 %v6866, %v6954
      %v6956 = vpop.f32.mrf.mxu0
      %v6957 = vadd.f32 %v6868, %v6956
      %6958 = vmatmul.bf16.gmra.mxu0 %v2788
      %v6959 = vpop.f32.mrf.mxu0
      %v6960 = vadd.f32 %v6871, %v6959
      %v6961 = vpop.f32.mrf.mxu0
      %v6962 = vadd.f32 %v6873, %v6961
      %6963 = vmatmul.bf16.gmra.mxu0 %v2815
      %v6964 = vpop.f32.mrf.mxu0
      %v6965 = vadd.f32 %v6876, %v6964
      %v6966 = vpop.f32.mrf.mxu0
      %v6967 = vadd.f32 %v6878, %v6966
      %6968 = vmatmul.bf16.gmra.mxu0 %v2842
      %v6969 = vpop.f32.mrf.mxu0
      %v6970 = vadd.f32 %v6881, %v6969
      %v6971 = vpop.f32.mrf.mxu0
      %v6972 = vadd.f32 %v6883, %v6971
      %6973 = vdwg.mxu0
      %v6974 = vmax.f32 %v6895, 0.0
      %v6975 = vmax.f32 %v6897, 0.0
      %v6976 = vmax.f32 %v6900, 0.0
      %v6977 = vmax.f32 %v6902, 0.0
      %v6978 = vmax.f32 %v6905, 0.0
      %v6979 = vmax.f32 %v6907, 0.0
      %v6980 = vmax.f32 %v6910, 0.0
      %v6981 = vmax.f32 %v6912, 0.0
      %v6982 = vmax.f32 %v6915, 0.0
      %v6983 = vmax.f32 %v6917, 0.0
      %v6984 = vmax.f32 %v6920, 0.0
      %v6985 = vmax.f32 %v6922, 0.0
      %v6986 = vmax.f32 %v6925, 0.0
      %v6987 = vmax.f32 %v6927, 0.0
      %v6988 = vmax.f32 %v6930, 0.0
      %v6989 = vmax.f32 %v6932, 0.0
      %v6990 = vmax.f32 %v6935, 0.0
      %v6991 = vmax.f32 %v6937, 0.0
      %v6992 = vmax.f32 %v6940, 0.0
      %v6993 = vmax.f32 %v6942, 0.0
      %v6994 = vmax.f32 %v6945, 0.0
      %v6995 = vmax.f32 %v6947, 0.0
      %v6996 = vmax.f32 %v6950, 0.0
      %v6997 = vmax.f32 %v6952, 0.0
      %v6998 = vmax.f32 %v6955, 0.0
      %v6999 = vmax.f32 %v6957, 0.0
      %v7000 = vmax.f32 %v6960, 0.0
      %v7001 = vmax.f32 %v6962, 0.0
      %v7002 = vmax.f32 %v6965, 0.0
      %v7003 = vmax.f32 %v6967, 0.0
      %v7004 = vmax.f32 %v6970, 0.0
      %v7005 = vmax.f32 %v6972, 0.0
      %7006 = vst [vmem:[%s209] sm:$0xff] %v6974
      %7007 = vst [vmem:[%s209 + $0x8] sm:$0xff] %v6975
      %7008 = vst [vmem:[%s209 + $0x10] sm:$0xff] %v6976
      %7009 = vst [vmem:[%s209 + $0x18] sm:$0xff] %v6977
      %7010 = vst [vmem:[%s209 + $0x20] sm:$0xff] %v6978
      %7011 = vst [vmem:[%s209 + $0x28] sm:$0xff] %v6979
      %7012 = vst [vmem:[%s209 + $0x30] sm:$0xff] %v6980
      %7013 = vst [vmem:[%s209 + $0x38] sm:$0xff] %v6981
      %7014 = vst [vmem:[%s209 + $0x40] sm:$0xff] %v6982
      %7015 = vst [vmem:[%s209 + $0x48] sm:$0xff] %v6983
      %7016 = vst [vmem:[%s209 + $0x50] sm:$0xff] %v6984
      %7017 = vst [vmem:[%s209 + $0x58] sm:$0xff] %v6985
      %7018 = vst [vmem:[%s209 + $0x60] sm:$0xff] %v6986
      %7019 = vst [vmem:[%s209 + $0x68] sm:$0xff] %v6987
      %7020 = vst [vmem:[%s209 + $0x70] sm:$0xff] %v6988
      %7021 = vst [vmem:[%s209 + $0x78] sm:$0xff] %v6989
      %7022 = vst [vmem:[%s209 + $0x80] sm:$0xff] %v6990
      %7023 = vst [vmem:[%s209 + $0x88] sm:$0xff] %v6991
      %7024 = vst [vmem:[%s209 + $0x90] sm:$0xff] %v6992
      %7025 = vst [vmem:[%s209 + $0x98] sm:$0xff] %v6993
      %7026 = vst [vmem:[%s209 + $0xa0] sm:$0xff] %v6994
      %7027 = vst [vmem:[%s209 + $0xa8] sm:$0xff] %v6995
      %7028 = vst [vmem:[%s209 + $0xb0] sm:$0xff] %v6996
      %7029 = vst [vmem:[%s209 + $0xb8] sm:$0xff] %v6997
      %7030 = vst [vmem:[%s209 + $0xc0] sm:$0xff] %v6998
      %7031 = vst [vmem:[%s209 + $0xc8] sm:$0xff] %v6999
      %7032 = vst [vmem:[%s209 + $0xd0] sm:$0xff] %v7000
      %7033 = vst [vmem:[%s209 + $0xd8] sm:$0xff] %v7001
      %7034 = vst [vmem:[%s209 + $0xe0] sm:$0xff] %v7002
      %7035 = vst [vmem:[%s209 + $0xe8] sm:$0xff] %v7003
      %7036 = vst [vmem:[%s209 + $0xf0] sm:$0xff] %v7004
      %7037 = vst [vmem:[%s209 + $0xf8] sm:$0xff] %v7005
      %v7038 = vlaneseq
      %v7039 = vshrl.u32 %v7038, 7
      %v7040 = vadd.s32 %v7039, 8
      %v7041 = vadd.s32 %v7039, 16
      %v7042 = vadd.s32 %v7039, 24
      %v7043 = vadd.s32 %v7039, 32
      %v7044 = vadd.s32 %v7039, 40
      %v7045 = vadd.s32 %v7039, 48
      %v7046 = vadd.s32 %v7039, 56
      %v7047 = vadd.s32 %v7039, 64
      %v7048 = vadd.s32 %v7039, 72
      %v7049 = vadd.s32 %v7039, 80
      %v7050 = vadd.s32 %v7039, 88
      %v7051 = vadd.s32 %v7039, 96
      %v7052 = vadd.s32 %v7039, 104
      %v7053 = vadd.s32 %v7039, 112
      %v7054 = vadd.s32 %v7039, 120
      %v7055 = vadd.s32 %v7039, 128
      %v7056 = vadd.s32 %v7039, 136
      %v7057 = vadd.s32 %v7039, 144
      %v7058 = vadd.s32 %v7039, 152
      %v7059 = vadd.s32 %v7039, 160
      %v7060 = vadd.s32 %v7039, 168
      %v7061 = vadd.s32 %v7039, 176
      %v7062 = vadd.s32 %v7039, 184
      %v7063 = vadd.s32 %v7039, 192
      %v7064 = vadd.s32 %v7039, 200
      %v7065 = vadd.s32 %v7039, 208
      %v7066 = vadd.s32 %v7039, 216
      %v7067 = vadd.s32 %v7039, 224
      %v7068 = vadd.s32 %v7039, 232
      %v7069 = vadd.s32 %v7039, 240
      %v7070 = vadd.s32 %v7039, 248
      %s7071 = smul.u32 %s16, 256
      %v7072 = vstv %s7071
      %v7073 = vadd.s32 %v7039, %v7072
      %v7074 = vadd.s32 %v7040, %v7072
      %v7075 = vadd.s32 %v7041, %v7072
      %v7076 = vadd.s32 %v7042, %v7072
      %v7077 = vadd.s32 %v7043, %v7072
      %v7078 = vadd.s32 %v7044, %v7072
      %v7079 = vadd.s32 %v7045, %v7072
      %v7080 = vadd.s32 %v7046, %v7072
      %v7081 = vadd.s32 %v7047, %v7072
      %v7082 = vadd.s32 %v7048, %v7072
      %v7083 = vadd.s32 %v7049, %v7072
      %v7084 = vadd.s32 %v7050, %v7072
      %v7085 = vadd.s32 %v7051, %v7072
      %v7086 = vadd.s32 %v7052, %v7072
      %v7087 = vadd.s32 %v7053, %v7072
      %v7088 = vadd.s32 %v7054, %v7072
      %v7089 = vadd.s32 %v7055, %v7072
      %v7090 = vadd.s32 %v7056, %v7072
      %v7091 = vadd.s32 %v7057, %v7072
      %v7092 = vadd.s32 %v7058, %v7072
      %v7093 = vadd.s32 %v7059, %v7072
      %v7094 = vadd.s32 %v7060, %v7072
      %v7095 = vadd.s32 %v7061, %v7072
      %v7096 = vadd.s32 %v7062, %v7072
      %v7097 = vadd.s32 %v7063, %v7072
      %v7098 = vadd.s32 %v7064, %v7072
      %v7099 = vadd.s32 %v7065, %v7072
      %v7100 = vadd.s32 %v7066, %v7072
      %v7101 = vadd.s32 %v7067, %v7072
      %v7102 = vadd.s32 %v7068, %v7072
      %v7103 = vadd.s32 %v7069, %v7072
      %v7104 = vadd.s32 %v7070, %v7072
      %vm7105 = vcmp.lt.s32.totalorder %v7073, 512
      %vm7106 = vcmp.lt.s32.totalorder %v7074, 512
      %vm7107 = vcmp.lt.s32.totalorder %v7075, 512
      %vm7108 = vcmp.lt.s32.totalorder %v7076, 512
      %vm7109 = vcmp.lt.s32.totalorder %v7077, 512
      %vm7110 = vcmp.lt.s32.totalorder %v7078, 512
      %vm7111 = vcmp.lt.s32.totalorder %v7079, 512
      %vm7112 = vcmp.lt.s32.totalorder %v7080, 512
      %vm7113 = vcmp.lt.s32.totalorder %v7081, 512
      %vm7114 = vcmp.lt.s32.totalorder %v7082, 512
      %vm7115 = vcmp.lt.s32.totalorder %v7083, 512
      %vm7116 = vcmp.lt.s32.totalorder %v7084, 512
      %vm7117 = vcmp.lt.s32.totalorder %v7085, 512
      %vm7118 = vcmp.lt.s32.totalorder %v7086, 512
      %vm7119 = vcmp.lt.s32.totalorder %v7087, 512
      %vm7120 = vcmp.lt.s32.totalorder %v7088, 512
      %vm7121 = vcmp.lt.s32.totalorder %v7089, 512
      %vm7122 = vcmp.lt.s32.totalorder %v7090, 512
      %vm7123 = vcmp.lt.s32.totalorder %v7091, 512
      %vm7124 = vcmp.lt.s32.totalorder %v7092, 512
      %vm7125 = vcmp.lt.s32.totalorder %v7093, 512
      %vm7126 = vcmp.lt.s32.totalorder %v7094, 512
      %vm7127 = vcmp.lt.s32.totalorder %v7095, 512
      %vm7128 = vcmp.lt.s32.totalorder %v7096, 512
      %vm7129 = vcmp.lt.s32.totalorder %v7097, 512
      %vm7130 = vcmp.lt.s32.totalorder %v7098, 512
      %vm7131 = vcmp.lt.s32.totalorder %v7099, 512
      %vm7132 = vcmp.lt.s32.totalorder %v7100, 512
      %vm7133 = vcmp.lt.s32.totalorder %v7101, 512
      %vm7134 = vcmp.lt.s32.totalorder %v7102, 512
      %vm7135 = vcmp.lt.s32.totalorder %v7103, 512
      %vm7136 = vcmp.lt.s32.totalorder %v7104, 512
      %v7137 = vsel %vm7105, 1, 0
      %v7138 = vsel %vm7106, 1, 0
      %v7139 = vsel %vm7107, 1, 0
      %v7140 = vsel %vm7108, 1, 0
      %v7141 = vsel %vm7109, 1, 0
      %v7142 = vsel %vm7110, 1, 0
      %v7143 = vsel %vm7111, 1, 0
      %v7144 = vsel %vm7112, 1, 0
      %v7145 = vsel %vm7113, 1, 0
      %v7146 = vsel %vm7114, 1, 0
      %v7147 = vsel %vm7115, 1, 0
      %v7148 = vsel %vm7116, 1, 0
      %v7149 = vsel %vm7117, 1, 0
      %v7150 = vsel %vm7118, 1, 0
      %v7151 = vsel %vm7119, 1, 0
      %v7152 = vsel %vm7120, 1, 0
      %v7153 = vsel %vm7121, 1, 0
      %v7154 = vsel %vm7122, 1, 0
      %v7155 = vsel %vm7123, 1, 0
      %v7156 = vsel %vm7124, 1, 0
      %v7157 = vsel %vm7125, 1, 0
      %v7158 = vsel %vm7126, 1, 0
      %v7159 = vsel %vm7127, 1, 0
      %v7160 = vsel %vm7128, 1, 0
      %v7161 = vsel %vm7129, 1, 0
      %v7162 = vsel %vm7130, 1, 0
      %v7163 = vsel %vm7131, 1, 0
      %v7164 = vsel %vm7132, 1, 0
      %v7165 = vsel %vm7133, 1, 0
      %v7166 = vsel %vm7134, 1, 0
      %v7167 = vsel %vm7135, 1, 0
      %v7168 = vsel %vm7136, 1, 0
      %vm7169 = vcmp.eq.s32.totalorder %v7137, 1
      %vm7170 = vcmp.eq.s32.totalorder %v7138, 1
      %vm7171 = vcmp.eq.s32.totalorder %v7139, 1
      %vm7172 = vcmp.eq.s32.totalorder %v7140, 1
      %vm7173 = vcmp.eq.s32.totalorder %v7141, 1
      %vm7174 = vcmp.eq.s32.totalorder %v7142, 1
      %vm7175 = vcmp.eq.s32.totalorder %v7143, 1
      %vm7176 = vcmp.eq.s32.totalorder %v7144, 1
      %vm7177 = vcmp.eq.s32.totalorder %v7145, 1
      %vm7178 = vcmp.eq.s32.totalorder %v7146, 1
      %vm7179 = vcmp.eq.s32.totalorder %v7147, 1
      %vm7180 = vcmp.eq.s32.totalorder %v7148, 1
      %vm7181 = vcmp.eq.s32.totalorder %v7149, 1
      %vm7182 = vcmp.eq.s32.totalorder %v7150, 1
      %vm7183 = vcmp.eq.s32.totalorder %v7151, 1
      %vm7184 = vcmp.eq.s32.totalorder %v7152, 1
      %vm7185 = vcmp.eq.s32.totalorder %v7153, 1
      %vm7186 = vcmp.eq.s32.totalorder %v7154, 1
      %vm7187 = vcmp.eq.s32.totalorder %v7155, 1
      %vm7188 = vcmp.eq.s32.totalorder %v7156, 1
      %vm7189 = vcmp.eq.s32.totalorder %v7157, 1
      %vm7190 = vcmp.eq.s32.totalorder %v7158, 1
      %vm7191 = vcmp.eq.s32.totalorder %v7159, 1
      %vm7192 = vcmp.eq.s32.totalorder %v7160, 1
      %vm7193 = vcmp.eq.s32.totalorder %v7161, 1
      %vm7194 = vcmp.eq.s32.totalorder %v7162, 1
      %vm7195 = vcmp.eq.s32.totalorder %v7163, 1
      %vm7196 = vcmp.eq.s32.totalorder %v7164, 1
      %vm7197 = vcmp.eq.s32.totalorder %v7165, 1
      %vm7198 = vcmp.eq.s32.totalorder %v7166, 1
      %vm7199 = vcmp.eq.s32.totalorder %v7167, 1
      %vm7200 = vcmp.eq.s32.totalorder %v7168, 1
      %v7201 = vsel %vm7169, %v6974, 0.0
      %v7202 = vsel %vm7170, %v6975, 0.0
      %v7203 = vsel %vm7171, %v6976, 0.0
      %v7204 = vsel %vm7172, %v6977, 0.0
      %v7205 = vsel %vm7173, %v6978, 0.0
      %v7206 = vsel %vm7174, %v6979, 0.0
      %v7207 = vsel %vm7175, %v6980, 0.0
      %v7208 = vsel %vm7176, %v6981, 0.0
      %v7209 = vsel %vm7177, %v6982, 0.0
      %v7210 = vsel %vm7178, %v6983, 0.0
      %v7211 = vsel %vm7179, %v6984, 0.0
      %v7212 = vsel %vm7180, %v6985, 0.0
      %v7213 = vsel %vm7181, %v6986, 0.0
      %v7214 = vsel %vm7182, %v6987, 0.0
      %v7215 = vsel %vm7183, %v6988, 0.0
      %v7216 = vsel %vm7184, %v6989, 0.0
      %v7217 = vsel %vm7185, %v6990, 0.0
      %v7218 = vsel %vm7186, %v6991, 0.0
      %v7219 = vsel %vm7187, %v6992, 0.0
      %v7220 = vsel %vm7188, %v6993, 0.0
      %v7221 = vsel %vm7189, %v6994, 0.0
      %v7222 = vsel %vm7190, %v6995, 0.0
      %v7223 = vsel %vm7191, %v6996, 0.0
      %v7224 = vsel %vm7192, %v6997, 0.0
      %v7225 = vsel %vm7193, %v6998, 0.0
      %v7226 = vsel %vm7194, %v6999, 0.0
      %v7227 = vsel %vm7195, %v7000, 0.0
      %v7228 = vsel %vm7196, %v7001, 0.0
      %v7229 = vsel %vm7197, %v7002, 0.0
      %v7230 = vsel %vm7198, %v7003, 0.0
      %v7231 = vsel %vm7199, %v7004, 0.0
      %v7232 = vsel %vm7200, %v7005, 0.0
      %v7233 = vadd.f32 %v7201, %v7202
      %v7234 = vadd.f32 %v7233, %v7203
      %v7235 = vadd.f32 %v7234, %v7204
      %v7236 = vadd.f32 %v7235, %v7205
      %v7237 = vadd.f32 %v7236, %v7206
      %v7238 = vadd.f32 %v7237, %v7207
      %v7239 = vadd.f32 %v7238, %v7208
      %v7240 = vadd.f32 %v7239, %v7209
      %v7241 = vadd.f32 %v7240, %v7210
      %v7242 = vadd.f32 %v7241, %v7211
      %v7243 = vadd.f32 %v7242, %v7212
      %v7244 = vadd.f32 %v7243, %v7213
      %v7245 = vadd.f32 %v7244, %v7214
      %v7246 = vadd.f32 %v7245, %v7215
      %v7247 = vadd.f32 %v7246, %v7216
      %v7248 = vadd.f32 %v7247, %v7217
      %v7249 = vadd.f32 %v7248, %v7218
      %v7250 = vadd.f32 %v7249, %v7219
      %v7251 = vadd.f32 %v7250, %v7220
      %v7252 = vadd.f32 %v7251, %v7221
      %v7253 = vadd.f32 %v7252, %v7222
      %v7254 = vadd.f32 %v7253, %v7223
      %v7255 = vadd.f32 %v7254, %v7224
      %v7256 = vadd.f32 %v7255, %v7225
      %v7257 = vadd.f32 %v7256, %v7226
      %v7258 = vadd.f32 %v7257, %v7227
      %v7259 = vadd.f32 %v7258, %v7228
      %v7260 = vadd.f32 %v7259, %v7229
      %v7261 = vadd.f32 %v7260, %v7230
      %v7262 = vadd.f32 %v7261, %v7231
      %v7263 = vadd.f32 %v7262, %v7232
      %v7264 = vrot.slane %v7263, 4
      %v7265 = vadd.f32 %v7263, %v7264
      %v7266 = vrot.slane %v7265, 2
      %v7267 = vadd.f32 %v7265, %v7266
      %v7268 = vrot.slane %v7267, 1
      %v7269 = vadd.f32 %v7267, %v7268
      %v7270 = vmul.f32 %v7201, %v7201
      %v7271 = vmul.f32 %v7202, %v7202
      %v7272 = vmul.f32 %v7203, %v7203
      %v7273 = vmul.f32 %v7204, %v7204
      %v7274 = vmul.f32 %v7205, %v7205
      %v7275 = vmul.f32 %v7206, %v7206
      %v7276 = vmul.f32 %v7207, %v7207
      %v7277 = vmul.f32 %v7208, %v7208
      %v7278 = vmul.f32 %v7209, %v7209
      %v7279 = vmul.f32 %v7210, %v7210
      %v7280 = vmul.f32 %v7211, %v7211
      %v7281 = vmul.f32 %v7212, %v7212
      %v7282 = vmul.f32 %v7213, %v7213
      %v7283 = vmul.f32 %v7214, %v7214
      %v7284 = vmul.f32 %v7215, %v7215
      %v7285 = vmul.f32 %v7216, %v7216
      %v7286 = vmul.f32 %v7217, %v7217
      %v7287 = vmul.f32 %v7218, %v7218
      %v7288 = vmul.f32 %v7219, %v7219
      %v7289 = vmul.f32 %v7220, %v7220
      %v7290 = vmul.f32 %v7221, %v7221
      %v7291 = vmul.f32 %v7222, %v7222
      %v7292 = vmul.f32 %v7223, %v7223
      %v7293 = vmul.f32 %v7224, %v7224
      %v7294 = vmul.f32 %v7225, %v7225
      %v7295 = vmul.f32 %v7226, %v7226
      %v7296 = vmul.f32 %v7227, %v7227
      %v7297 = vmul.f32 %v7228, %v7228
      %v7298 = vmul.f32 %v7229, %v7229
      %v7299 = vmul.f32 %v7230, %v7230
      %v7300 = vmul.f32 %v7231, %v7231
      %v7301 = vmul.f32 %v7232, %v7232
      %v7302 = vadd.f32 %v7270, %v7271
      %v7303 = vadd.f32 %v7302, %v7272
      %v7304 = vadd.f32 %v7303, %v7273
      %v7305 = vadd.f32 %v7304, %v7274
      %v7306 = vadd.f32 %v7305, %v7275
      %v7307 = vadd.f32 %v7306, %v7276
      %v7308 = vadd.f32 %v7307, %v7277
      %v7309 = vadd.f32 %v7308, %v7278
      %v7310 = vadd.f32 %v7309, %v7279
      %v7311 = vadd.f32 %v7310, %v7280
      %v7312 = vadd.f32 %v7311, %v7281
      %v7313 = vadd.f32 %v7312, %v7282
      %v7314 = vadd.f32 %v7313, %v7283
      %v7315 = vadd.f32 %v7314, %v7284
      %v7316 = vadd.f32 %v7315, %v7285
      %v7317 = vadd.f32 %v7316, %v7286
      %v7318 = vadd.f32 %v7317, %v7287
      %v7319 = vadd.f32 %v7318, %v7288
      %v7320 = vadd.f32 %v7319, %v7289
      %v7321 = vadd.f32 %v7320, %v7290
      %v7322 = vadd.f32 %v7321, %v7291
      %v7323 = vadd.f32 %v7322, %v7292
      %v7324 = vadd.f32 %v7323, %v7293
      %v7325 = vadd.f32 %v7324, %v7294
      %v7326 = vadd.f32 %v7325, %v7295
      %v7327 = vadd.f32 %v7326, %v7296
      %v7328 = vadd.f32 %v7327, %v7297
      %v7329 = vadd.f32 %v7328, %v7298
      %v7330 = vadd.f32 %v7329, %v7299
      %v7331 = vadd.f32 %v7330, %v7300
      %v7332 = vadd.f32 %v7331, %v7301
      %v7333 = vrot.slane %v7332, 4
      %v7334 = vadd.f32 %v7332, %v7333
      %v7335 = vrot.slane %v7334, 2
      %v7336 = vadd.f32 %v7334, %v7335
      %v7337 = vrot.slane %v7336, 1
      %v7338 = vadd.f32 %v7336, %v7337
      %vm7339 = vcmp.eq.s32.totalorder %v7039, 0
      %vm7340 = vcmp.eq.s32.totalorder %v7039, 1
      %v7341 = vsel %vm7340, 1, 0
      %vm7342 = vcmp.eq.s32.totalorder %v7341, 1
      %v7343 = vsel %vm7342, %v7338, 0.0
      %v7344 = vsel %vm7339, 1, 0
      %vm7345 = vcmp.eq.s32.totalorder %v7344, 1
      %v7346 = vsel %vm7345, %v7269, %v7343
      %7347 = vst [vmem:[%s214] sm:$0xff] %v7346
      %s7348 = smul.u32 32, %s16
      %p7349 = scmp.lt.s32.totalorder %s7348, 63
      %s7350 = scalar_select %p7349, %s7348, 63
      %s7351 = smul.addr %s7350, 8
      %s7352 = scalar_lea.vmem %s3, %s7351
      %p7353 = scmp.lt.s32.totalorder %s16, 1
      %s7354 = scalar_select %p7353, %s16, 1
      %s7355 = smul.addr %s7354, 8
      %s7356 = scalar_lea.vmem %s4, %s7355
      // Predicated region
      $region33: #{deresblock_forward.4} parent=31 // pred_check
        %p7357 = pneg %p102
      $region34: #{deresblock_forward.4} parent=31 // pred_check_branch
        %7359 = sbr.rel (%p7357) target = $region36
      $region35: #{deresblock_forward.4} parent=31 // pred_region
        %s7360 = smul.u32 32, %s16
      $region36: #{deresblock_forward.4} parent=31 // pred_fallthru
        _
      // Predicated region
      $region37: #{deresblock_forward.4} parent=31 // pred_check
        %p7361 = pneg %p128
      $region38: #{deresblock_forward.4} parent=31 // pred_check_branch
        %7363 = sbr.rel (%p7361) target = $region40
      $region39: #{deresblock_forward.4} parent=31 // pred_region
        _
      $region40: #{deresblock_forward.4} parent=31 // pred_fallthru
        _
    $region32: #{deresblock_forward.4} parent=5 // pred_fallthru
      _
    %p7364 = scmp.le.s32.totalorder 2, %s11
    // Predicated region
    $region41: #{deresblock_forward.4} parent=5 // pred_check
      %p7365 = pneg %p7364
    $region42: #{deresblock_forward.4} parent=5 // pred_check_branch
      %7367 = sbr.rel (%p7365) target = $region44
    $region43: #{deresblock_forward.4} parent=5 // pred_region
      %s7368 = ssub.s32 %s11, 2
      // Predicated region
      $region45: #{deresblock_forward.4} parent=43 // pred_check
        %p7369 = pneg %p108
      $region46: #{deresblock_forward.4} parent=43 // pred_check_branch
        %7371 = sbr.rel (%p7369) target = $region48
      $region47: #{deresblock_forward.4} parent=43 // pred_region
        %s7372 = smul.u32 32, %s17
        %p7373 = scmp.lt.s32.totalorder %s7372, 63
        %s7374 = scalar_select %p7373, %s7372, 63
        %s7375 = smul.addr %s7374, 8
        %s7376 = scalar_lea.vmem %s3, %s7375
      $region48: #{deresblock_forward.4} parent=43 // pred_fallthru
        _
      // Predicated region
      $region49: #{deresblock_forward.4} parent=43 // pred_check
        %p7377 = pneg %p134
      $region50: #{deresblock_forward.4} parent=43 // pred_check_branch
        %7379 = sbr.rel (%p7377) target = $region52
      $region51: #{deresblock_forward.4} parent=43 // pred_region
        %p7380 = scmp.lt.s32.totalorder %s17, 1
        %s7381 = scalar_select %p7380, %s17, 1
        %s7382 = smul.addr %s7381, 8
        %s7383 = scalar_lea.vmem %s4, %s7382
      $region52: #{deresblock_forward.4} parent=43 // pred_fallthru
        _
    $region44: #{deresblock_forward.4} parent=5 // pred_fallthru
      _
  $region6: #{deresblock_forward.4} parent=0 // loop_footer
    %s15 = sadd.s32 1, %s11
  $region7: #{deresblock_forward.4} parent=0 // loop_footer_branch
    %10 = sbr.rel target = $region3
  $region8: #{deresblock_forward.4} parent=0 // loop_exit
    _

// kernel: deresblock_forward.5
$region0: #{deresblock_forward.5}
  #allocation0 [shape = 'u32[]', space=smem, size = 0x4, offset = 0x4, fixed_abs, tag = 'smem constant byte address 0x4 - core index']
  #allocation1 [shape = 'u32[72,128]{1,0:T(1,128)}', space=vmem, size = 0x9000, scoped, tag = 'internal scratch']
  %s0 = inlined_call_operand.vmem [shape: f32[512,128], index: 0, kind: input, shape index: {}]
  %s1 = inlined_call_operand.vmem [shape: f32[512,128], index: 1, kind: input, shape index: {}]
  %s2 = inlined_call_operand.vmem [shape: f32[1,128], index: 2, kind: input, shape index: {}]
  %s3 = inlined_call_operand.vmem [shape: f32[1,128], index: 3, kind: input, shape index: {}]
  %s4 = inlined_call_operand.vmem [shape: f32[512,128], index: 4, kind: output, shape index: {}]
  %s5 = sld [smem:[#allocation0]]
  $region49: #{deresblock_forward.5} parent=0
    _
  %s7 = ssub.s32 1, %s5
  %s8 = scalar_select 0, %s7, %s5
  loop: start=0, step=1, limit=4
  $region2: #{deresblock_forward.5} parent=0 // loop_pre_header
    _
  $region3: #{deresblock_forward.5} parent=0 // loop_header
    %s10 = sphi 0, %s14
    %p11 = scmp.ge.s32.totalorder %s10, 4
    %s20 = sphi 0, %s22
    %s23 = sphi 0, %s20
    %s24 = sphi 0, %s23
    %s40 = sphi 0, %s24
    %s46 = sphi 0, %s48
    %s49 = sphi 0, %s46
    %s50 = sphi 0, %s49
    %s66 = sphi 0, %s50
    %s70 = sphi 0, %s70
    %s72 = sphi 0, %s70
    %s73 = sphi 0, %s72
    %s87 = sphi 0, %s73
    %s91 = sphi 0, %s91
    %s93 = sphi 0, %s91
    %s94 = sphi 0, %s93
    %s108 = sphi 0, %s94
    %s114 = sphi 0, %s116
    %s117 = sphi 0, %s114
    %s118 = sphi 0, %s117
    %s134 = sphi 0, %s118
  $region4: #{deresblock_forward.5} parent=0 // loop_header_branch
    %13 = sbr.rel (%p11) target = $region8
  $region5: #{deresblock_forward.5} parent=0 // loop_body
    %s15 = ssub.s32 %s10, 1
    %s16 = ssub.s32 %s10, 2
    %s17 = sadd.s32 %s10, 1
    %s18 = ssub.s32 %s10, %s17
    %p19 = scmp.eq.s32.totalorder %s18, 0
    %s21 = sadd.s32 %s20, 1
    %s22 = scalar_select %p19, %s20, %s21
    %p25 = pneg %p19
    %p26 = scmp.eq.s32.totalorder %s10, 1
    %p27 = por %p25, %p26
    %p28 = scmp.ne.s32.totalorder %s20, %s23
    %p29 = scmp.eq.s32.totalorder %s10, 0
    %p30 = por %p28, %p29
    %p31 = scmp.ne.s32.totalorder %s20, %s23
    %p32 = scmp.eq.s32.totalorder %s15, 1
    %p33 = por %p31, %p32
    %p34 = scmp.ne.s32.totalorder %s23, %s24
    %p35 = scmp.eq.s32.totalorder %s15, 0
    %p36 = por %p34, %p35
    %p37 = scmp.ne.s32.totalorder %s23, %s24
    %p38 = scmp.eq.s32.totalorder %s16, 1
    %p39 = por %p37, %p38
    %p41 = scmp.ne.s32.totalorder %s24, %s40
    %p42 = scmp.eq.s32.totalorder %s16, 0
    %p43 = por %p41, %p42
    %s44 = ssub.s32 %s10, %s17
    %p45 = scmp.eq.s32.totalorder %s44, 0
    %s47 = sadd.s32 %s46, 1
    %s48 = scalar_select %p45, %s46, %s47
    %p51 = pneg %p45
    %p52 = scmp.eq.s32.totalorder %s10, 1
    %p53 = por %p51, %p52
    %p54 = scmp.ne.s32.totalorder %s46, %s49
    %p55 = scmp.eq.s32.totalorder %s10, 0
    %p56 = por %p54, %p55
    %p57 = scmp.ne.s32.totalorder %s46, %s49
    %p58 = scmp.eq.s32.totalorder %s15, 1
    %p59 = por %p57, %p58
    %p60 = scmp.ne.s32.totalorder %s49, %s50
    %p61 = scmp.eq.s32.totalorder %s15, 0
    %p62 = por %p60, %p61
    %p63 = scmp.ne.s32.totalorder %s49, %s50
    %p64 = scmp.eq.s32.totalorder %s16, 1
    %p65 = por %p63, %p64
    %p67 = scmp.ne.s32.totalorder %s50, %s66
    %p68 = scmp.eq.s32.totalorder %s16, 0
    %p69 = por %p67, %p68
    %s71 = sadd.s32 %s70, 1
    %p74 = scmp.eq.s32.totalorder %s10, 1
    %p75 = scmp.ne.s32.totalorder %s70, %s72
    %p76 = scmp.eq.s32.totalorder %s10, 0
    %p77 = por %p75, %p76
    %p78 = scmp.ne.s32.totalorder %s70, %s72
    %p79 = scmp.eq.s32.totalorder %s15, 1
    %p80 = por %p78, %p79
    %p81 = scmp.ne.s32.totalorder %s72, %s73
    %p82 = scmp.eq.s32.totalorder %s15, 0
    %p83 = por %p81, %p82
    %p84 = scmp.ne.s32.totalorder %s72, %s73
    %p85 = scmp.eq.s32.totalorder %s16, 1
    %p86 = por %p84, %p85
    %p88 = scmp.ne.s32.totalorder %s73, %s87
    %p89 = scmp.eq.s32.totalorder %s16, 0
    %p90 = por %p88, %p89
    %s92 = sadd.s32 %s91, 1
    %p95 = scmp.eq.s32.totalorder %s10, 1
    %p96 = scmp.ne.s32.totalorder %s91, %s93
    %p97 = scmp.eq.s32.totalorder %s10, 0
    %p98 = por %p96, %p97
    %p99 = scmp.ne.s32.totalorder %s91, %s93
    %p100 = scmp.eq.s32.totalorder %s15, 1
    %p101 = por %p99, %p100
    %p102 = scmp.ne.s32.totalorder %s93, %s94
    %p103 = scmp.eq.s32.totalorder %s15, 0
    %p104 = por %p102, %p103
    %p105 = scmp.ne.s32.totalorder %s93, %s94
    %p106 = scmp.eq.s32.totalorder %s16, 1
    %p107 = por %p105, %p106
    %p109 = scmp.ne.s32.totalorder %s94, %s108
    %p110 = scmp.eq.s32.totalorder %s16, 0
    %p111 = por %p109, %p110
    %s112 = ssub.s32 %s10, %s17
    %p113 = scmp.eq.s32.totalorder %s112, 0
    %s115 = sadd.s32 %s114, 1
    %s116 = scalar_select %p113, %s114, %s115
    %p119 = pneg %p113
    %p120 = scmp.eq.s32.totalorder %s10, 1
    %p121 = por %p119, %p120
    %p122 = scmp.ne.s32.totalorder %s114, %s117
    %p123 = scmp.eq.s32.totalorder %s10, 0
    %p124 = por %p122, %p123
    %p125 = scmp.ne.s32.totalorder %s114, %s117
    %p126 = scmp.eq.s32.totalorder %s15, 1
    %p127 = por %p125, %p126
    %p128 = scmp.ne.s32.totalorder %s117, %s118
    %p129 = scmp.eq.s32.totalorder %s15, 0
    %p130 = por %p128, %p129
    %p131 = scmp.ne.s32.totalorder %s117, %s118
    %p132 = scmp.eq.s32.totalorder %s16, 1
    %p133 = por %p131, %p132
    %p135 = scmp.ne.s32.totalorder %s118, %s134
    %p136 = scmp.eq.s32.totalorder %s16, 0
    %p137 = por %p135, %p136
    %p138 = scmp.le.s32.totalorder 1, %s10
    %p139 = scmp.lt.s32.totalorder %s10, 3
    %p140 = pnand %p138, %p139
    %p141 = pneg %p140
    // Predicated region
    $region9: #{deresblock_forward.5} parent=5 // pred_check
      _
    $region10: #{deresblock_forward.5} parent=5 // pred_check_branch
      %143 = sbr.rel (%p140) target = $region12
    $region11: #{deresblock_forward.5} parent=5 // pred_region
      %s144 = ssub.s32 %s10, 1
      // Predicated region
      $region13: #{deresblock_forward.5} parent=11 // pred_check
        %p145 = pneg %p83
      $region14: #{deresblock_forward.5} parent=11 // pred_check_branch
        %147 = sbr.rel (%p145) target = $region16
      $region15: #{deresblock_forward.5} parent=11 // pred_region
        _
      $region16: #{deresblock_forward.5} parent=11 // pred_fallthru
        _
      // Predicated region
      $region17: #{deresblock_forward.5} parent=11 // pred_check
        %p148 = pneg %p104
      $region18: #{deresblock_forward.5} parent=11 // pred_check_branch
        %150 = sbr.rel (%p148) target = $region20
      $region19: #{deresblock_forward.5} parent=11 // pred_region
        _
      $region20: #{deresblock_forward.5} parent=11 // pred_fallthru
        _
    $region12: #{deresblock_forward.5} parent=5 // pred_fallthru
      _
    %p151 = scmp.lt.s32.totalorder %s10, 2
    // Predicated region
    $region21: #{deresblock_forward.5} parent=5 // pred_check
      %p152 = pneg %p151
    $region22: #{deresblock_forward.5} parent=5 // pred_check_branch
      %154 = sbr.rel (%p152) target = $region24
    $region23: #{deresblock_forward.5} parent=5 // pred_region
      // Predicated region
      $region25: #{deresblock_forward.5} parent=23 // pred_check
        %p155 = pneg %p30
      $region26: #{deresblock_forward.5} parent=23 // pred_check_branch
        %157 = sbr.rel (%p155) target = $region28
      $region27: #{deresblock_forward.5} parent=23 // pred_region
        %s158 = smul.u32 32, %s10
        %p159 = scmp.lt.s32.totalorder %s158, 63
        %s160 = scalar_select %p159, %s158, 63
        %s161 = smul.addr %s160, 8
        %s162 = scalar_lea.vmem %s0, %s161
        %s163 = smul.u32 32, %s10
      $region28: #{deresblock_forward.5} parent=23 // pred_fallthru
        _
      // Predicated region
      $region29: #{deresblock_forward.5} parent=23 // pred_check
        %p164 = pneg %p56
      $region30: #{deresblock_forward.5} parent=23 // pred_check_branch
        %166 = sbr.rel (%p164) target = $region32
      $region31: #{deresblock_forward.5} parent=23 // pred_region
        %s167 = smul.u32 32, %s10
        %p168 = scmp.lt.s32.totalorder %s167, 63
        %s169 = scalar_select %p168, %s167, 63
        %s170 = smul.addr %s169, 8
        %s171 = scalar_lea.vmem %s1, %s170
        %s172 = smul.u32 32, %s10
      $region32: #{deresblock_forward.5} parent=23 // pred_fallthru
        _
    $region24: #{deresblock_forward.5} parent=5 // pred_fallthru
      _
    %p173 = scmp.le.s32.totalorder 1, %s10
    %p174 = scmp.lt.s32.totalorder %s10, 3
    %p175 = pnand %p173, %p174
    %p176 = pneg %p175
    // Predicated region
    $region33: #{deresblock_forward.5} parent=5 // pred_check
      _
    $region34: #{deresblock_forward.5} parent=5 // pred_check_branch
      %178 = sbr.rel (%p175) target = $region36
    $region35: #{deresblock_forward.5} parent=5 // pred_region
      %s179 = ssub.s32 %s10, 1
      %s180 = smul.u32 32, %s15
      %p181 = scmp.lt.s32.totalorder %s180, 63
      %s182 = scalar_select %p181, %s180, 63
      %s183 = smul.addr %s182, 8
      %s184 = scalar_lea.vmem %s0, %s183
      %p185 = pneg %p36
      %p186 = pneg %p33
      %s187 = smul.u32 32, %s15
      %p188 = scmp.lt.s32.totalorder %s187, 63
      %s189 = scalar_select %p188, %s187, 63
      %s190 = smul.addr %s189, 8
      %s191 = scalar_lea.vmem %s1, %s190
      %p192 = pneg %p62
      %p193 = pneg %p59
      %p194 = pneg %p83
      %p195 = pneg %p80
      %p196 = pneg %p104
      %p197 = pneg %p101
      %p198 = pneg %p130
      %p199 = pneg %p127
      %s200 = smul.u32 32, %s15
      %p201 = scmp.lt.s32.totalorder %s200, 63
      %s202 = scalar_select %p201, %s200, 63
      %s203 = smul.addr %s202, 8
      %s204 = scalar_lea.vmem %s4, %s203
      %s205 = smul.u32 32, %s15
      %p206 = scmp.lt.s32.totalorder %s205, 63
      %s207 = scalar_select %p206, %s205, 63
      %s208 = smul.addr %s207, 8
      %s209 = scalar_lea.vmem %s0, %s208
      %s210 = smul.u32 32, %s15
      %s211 = smul.u32 32, %s15
      %p212 = scmp.lt.s32.totalorder %s211, 63
      %s213 = scalar_select %p212, %s211, 63
      %s214 = smul.addr %s213, 8
      %s215 = scalar_lea.vmem %s1, %s214
      %s216 = smul.u32 32, %s15
      %s217 = smul.u32 32, %s15
      %p218 = scmp.lt.s32.totalorder %s217, 63
      %s219 = scalar_select %p218, %s217, 63
      %s220 = smul.addr %s219, 8
      %s221 = scalar_lea.vmem %s4, %s220
      %s222 = smul.u32 32, %s15
      %v223 = vld [vmem:[%s209] sm:$0xff]
      %v224 = vld [vmem:[%s209 + $0x8] sm:$0xff]
      %v225 = vld [vmem:[%s209 + $0x10] sm:$0xff]
      %v226 = vld [vmem:[%s209 + $0x18] sm:$0xff]
      %v227 = vld [vmem:[%s209 + $0x20] sm:$0xff]
      %v228 = vld [vmem:[%s209 + $0x28] sm:$0xff]
      %v229 = vld [vmem:[%s209 + $0x30] sm:$0xff]
      %v230 = vld [vmem:[%s209 + $0x38] sm:$0xff]
      %v231 = vld [vmem:[%s209 + $0x40] sm:$0xff]
      %v232 = vld [vmem:[%s209 + $0x48] sm:$0xff]
      %v233 = vld [vmem:[%s209 + $0x50] sm:$0xff]
      %v234 = vld [vmem:[%s209 + $0x58] sm:$0xff]
      %v235 = vld [vmem:[%s209 + $0x60] sm:$0xff]
      %v236 = vld [vmem:[%s209 + $0x68] sm:$0xff]
      %v237 = vld [vmem:[%s209 + $0x70] sm:$0xff]
      %v238 = vld [vmem:[%s209 + $0x78] sm:$0xff]
      %v239 = vld [vmem:[%s209 + $0x80] sm:$0xff]
      %v240 = vld [vmem:[%s209 + $0x88] sm:$0xff]
      %v241 = vld [vmem:[%s209 + $0x90] sm:$0xff]
      %v242 = vld [vmem:[%s209 + $0x98] sm:$0xff]
      %v243 = vld [vmem:[%s209 + $0xa0] sm:$0xff]
      %v244 = vld [vmem:[%s209 + $0xa8] sm:$0xff]
      %v245 = vld [vmem:[%s209 + $0xb0] sm:$0xff]
      %v246 = vld [vmem:[%s209 + $0xb8] sm:$0xff]
      %v247 = vld [vmem:[%s209 + $0xc0] sm:$0xff]
      %v248 = vld [vmem:[%s209 + $0xc8] sm:$0xff]
      %v249 = vld [vmem:[%s209 + $0xd0] sm:$0xff]
      %v250 = vld [vmem:[%s209 + $0xd8] sm:$0xff]
      %v251 = vld [vmem:[%s209 + $0xe0] sm:$0xff]
      %v252 = vld [vmem:[%s209 + $0xe8] sm:$0xff]
      %v253 = vld [vmem:[%s209 + $0xf0] sm:$0xff]
      %v254 = vld [vmem:[%s209 + $0xf8] sm:$0xff]
      %v255 = vld [vmem:[%s2] sm:$0x1]
      %v257 = vperm.slane %v255, 0
      %v259 = vmul.f32 %v223, %v257
      %v260 = vmul.f32 %v224, %v257
      %v261 = vmul.f32 %v225, %v257
      %v262 = vmul.f32 %v226, %v257
      %v263 = vmul.f32 %v227, %v257
      %v264 = vmul.f32 %v228, %v257
      %v265 = vmul.f32 %v229, %v257
      %v266 = vmul.f32 %v230, %v257
      %v267 = vmul.f32 %v231, %v257
      %v268 = vmul.f32 %v232, %v257
      %v269 = vmul.f32 %v233, %v257
      %v270 = vmul.f32 %v234, %v257
      %v271 = vmul.f32 %v235, %v257
      %v272 = vmul.f32 %v236, %v257
      %v273 = vmul.f32 %v237, %v257
      %v274 = vmul.f32 %v238, %v257
      %v275 = vmul.f32 %v239, %v257
      %v276 = vmul.f32 %v240, %v257
      %v277 = vmul.f32 %v241, %v257
      %v278 = vmul.f32 %v242, %v257
      %v279 = vmul.f32 %v243, %v257
      %v280 = vmul.f32 %v244, %v257
      %v281 = vmul.f32 %v245, %v257
      %v282 = vmul.f32 %v246, %v257
      %v283 = vmul.f32 %v247, %v257
      %v284 = vmul.f32 %v248, %v257
      %v285 = vmul.f32 %v249, %v257
      %v286 = vmul.f32 %v250, %v257
      %v287 = vmul.f32 %v251, %v257
      %v288 = vmul.f32 %v252, %v257
      %v289 = vmul.f32 %v253, %v257
      %v290 = vmul.f32 %v254, %v257
      %v291 = vld [vmem:[%s3] sm:$0x1]
      %v293 = vperm.slane %v291, 0
      %v295 = vadd.f32 %v259, %v293
      %v296 = vadd.f32 %v260, %v293
      %v297 = vadd.f32 %v261, %v293
      %v298 = vadd.f32 %v262, %v293
      %v299 = vadd.f32 %v263, %v293
      %v300 = vadd.f32 %v264, %v293
      %v301 = vadd.f32 %v265, %v293
      %v302 = vadd.f32 %v266, %v293
      %v303 = vadd.f32 %v267, %v293
      %v304 = vadd.f32 %v268, %v293
      %v305 = vadd.f32 %v269, %v293
      %v306 = vadd.f32 %v270, %v293
      %v307 = vadd.f32 %v271, %v293
      %v308 = vadd.f32 %v272, %v293
      %v309 = vadd.f32 %v273, %v293
      %v310 = vadd.f32 %v274, %v293
      %v311 = vadd.f32 %v275, %v293
      %v312 = vadd.f32 %v276, %v293
      %v313 = vadd.f32 %v277, %v293
      %v314 = vadd.f32 %v278, %v293
      %v315 = vadd.f32 %v279, %v293
      %v316 = vadd.f32 %v280, %v293
      %v317 = vadd.f32 %v281, %v293
      %v318 = vadd.f32 %v282, %v293
      %v319 = vadd.f32 %v283, %v293
      %v320 = vadd.f32 %v284, %v293
      %v321 = vadd.f32 %v285, %v293
      %v322 = vadd.f32 %v286, %v293
      %v323 = vadd.f32 %v287, %v293
      %v324 = vadd.f32 %v288, %v293
      %v325 = vadd.f32 %v289, %v293
      %v326 = vadd.f32 %v290, %v293
      %v327 = vld [vmem:[%s215] sm:$0xff]
      %v328 = vld [vmem:[%s215 + $0x8] sm:$0xff]
      %v329 = vld [vmem:[%s215 + $0x10] sm:$0xff]
      %v330 = vld [vmem:[%s215 + $0x18] sm:$0xff]
      %v331 = vld [vmem:[%s215 + $0x20] sm:$0xff]
      %v332 = vld [vmem:[%s215 + $0x28] sm:$0xff]
      %v333 = vld [vmem:[%s215 + $0x30] sm:$0xff]
      %v334 = vld [vmem:[%s215 + $0x38] sm:$0xff]
      %v335 = vld [vmem:[%s215 + $0x40] sm:$0xff]
      %v336 = vld [vmem:[%s215 + $0x48] sm:$0xff]
      %v337 = vld [vmem:[%s215 + $0x50] sm:$0xff]
      %v338 = vld [vmem:[%s215 + $0x58] sm:$0xff]
      %v339 = vld [vmem:[%s215 + $0x60] sm:$0xff]
      %v340 = vld [vmem:[%s215 + $0x68] sm:$0xff]
      %v341 = vld [vmem:[%s215 + $0x70] sm:$0xff]
      %v342 = vld [vmem:[%s215 + $0x78] sm:$0xff]
      %v343 = vld [vmem:[%s215 + $0x80] sm:$0xff]
      %v344 = vld [vmem:[%s215 + $0x88] sm:$0xff]
      %v345 = vld [vmem:[%s215 + $0x90] sm:$0xff]
      %v346 = vld [vmem:[%s215 + $0x98] sm:$0xff]
      %v347 = vld [vmem:[%s215 + $0xa0] sm:$0xff]
      %v348 = vld [vmem:[%s215 + $0xa8] sm:$0xff]
      %v349 = vld [vmem:[%s215 + $0xb0] sm:$0xff]
      %v350 = vld [vmem:[%s215 + $0xb8] sm:$0xff]
      %v351 = vld [vmem:[%s215 + $0xc0] sm:$0xff]
      %v352 = vld [vmem:[%s215 + $0xc8] sm:$0xff]
      %v353 = vld [vmem:[%s215 + $0xd0] sm:$0xff]
      %v354 = vld [vmem:[%s215 + $0xd8] sm:$0xff]
      %v355 = vld [vmem:[%s215 + $0xe0] sm:$0xff]
      %v356 = vld [vmem:[%s215 + $0xe8] sm:$0xff]
      %v357 = vld [vmem:[%s215 + $0xf0] sm:$0xff]
      %v358 = vld [vmem:[%s215 + $0xf8] sm:$0xff]
      %v359 = vadd.f32 %v295, %v327
      %v360 = vadd.f32 %v296, %v328
      %v361 = vadd.f32 %v297, %v329
      %v362 = vadd.f32 %v298, %v330
      %v363 = vadd.f32 %v299, %v331
      %v364 = vadd.f32 %v300, %v332
      %v365 = vadd.f32 %v301, %v333
      %v366 = vadd.f32 %v302, %v334
      %v367 = vadd.f32 %v303, %v335
      %v368 = vadd.f32 %v304, %v336
      %v369 = vadd.f32 %v305, %v337
      %v370 = vadd.f32 %v306, %v338
      %v371 = vadd.f32 %v307, %v339
      %v372 = vadd.f32 %v308, %v340
      %v373 = vadd.f32 %v309, %v341
      %v374 = vadd.f32 %v310, %v342
      %v375 = vadd.f32 %v311, %v343
      %v376 = vadd.f32 %v312, %v344
      %v377 = vadd.f32 %v313, %v345
      %v378 = vadd.f32 %v314, %v346
      %v379 = vadd.f32 %v315, %v347
      %v380 = vadd.f32 %v316, %v348
      %v381 = vadd.f32 %v317, %v349
      %v382 = vadd.f32 %v318, %v350
      %v383 = vadd.f32 %v319, %v351
      %v384 = vadd.f32 %v320, %v352
      %v385 = vadd.f32 %v321, %v353
      %v386 = vadd.f32 %v322, %v354
      %v387 = vadd.f32 %v323, %v355
      %v388 = vadd.f32 %v324, %v356
      %v389 = vadd.f32 %v325, %v357
      %v390 = vadd.f32 %v326, %v358
      %391 = vst [vmem:[%s221] sm:$0xff] %v359
      %392 = vst [vmem:[%s221 + $0x8] sm:$0xff] %v360
      %393 = vst [vmem:[%s221 + $0x10] sm:$0xff] %v361
      %394 = vst [vmem:[%s221 + $0x18] sm:$0xff] %v362
      %395 = vst [vmem:[%s221 + $0x20] sm:$0xff] %v363
      %396 = vst [vmem:[%s221 + $0x28] sm:$0xff] %v364
      %397 = vst [vmem:[%s221 + $0x30] sm:$0xff] %v365
      %398 = vst [vmem:[%s221 + $0x38] sm:$0xff] %v366
      %399 = vst [vmem:[%s221 + $0x40] sm:$0xff] %v367
      %400 = vst [vmem:[%s221 + $0x48] sm:$0xff] %v368
      %401 = vst [vmem:[%s221 + $0x50] sm:$0xff] %v369
      %402 = vst [vmem:[%s221 + $0x58] sm:$0xff] %v370
      %403 = vst [vmem:[%s221 + $0x60] sm:$0xff] %v371
      %404 = vst [vmem:[%s221 + $0x68] sm:$0xff] %v372
      %405 = vst [vmem:[%s221 + $0x70] sm:$0xff] %v373
      %406 = vst [vmem:[%s221 + $0x78] sm:$0xff] %v374
      %407 = vst [vmem:[%s221 + $0x80] sm:$0xff] %v375
      %408 = vst [vmem:[%s221 + $0x88] sm:$0xff] %v376
      %409 = vst [vmem:[%s221 + $0x90] sm:$0xff] %v377
      %410 = vst [vmem:[%s221 + $0x98] sm:$0xff] %v378
      %411 = vst [vmem:[%s221 + $0xa0] sm:$0xff] %v379
      %412 = vst [vmem:[%s221 + $0xa8] sm:$0xff] %v380
      %413 = vst [vmem:[%s221 + $0xb0] sm:$0xff] %v381
      %414 = vst [vmem:[%s221 + $0xb8] sm:$0xff] %v382
      %415 = vst [vmem:[%s221 + $0xc0] sm:$0xff] %v383
      %416 = vst [vmem:[%s221 + $0xc8] sm:$0xff] %v384
      %417 = vst [vmem:[%s221 + $0xd0] sm:$0xff] %v385
      %418 = vst [vmem:[%s221 + $0xd8] sm:$0xff] %v386
      %419 = vst [vmem:[%s221 + $0xe0] sm:$0xff] %v387
      %420 = vst [vmem:[%s221 + $0xe8] sm:$0xff] %v388
      %421 = vst [vmem:[%s221 + $0xf0] sm:$0xff] %v389
      %422 = vst [vmem:[%s221 + $0xf8] sm:$0xff] %v390
      %s423 = smul.u32 32, %s15
      %p424 = scmp.lt.s32.totalorder %s423, 63
      %s425 = scalar_select %p424, %s423, 63
      %s426 = smul.addr %s425, 8
      %s427 = scalar_lea.vmem %s4, %s426
      // Predicated region
      $region37: #{deresblock_forward.5} parent=35 // pred_check
        %p428 = pneg %p127
      $region38: #{deresblock_forward.5} parent=35 // pred_check_branch
        %430 = sbr.rel (%p428) target = $region40
      $region39: #{deresblock_forward.5} parent=35 // pred_region
        %s431 = smul.u32 32, %s15
      $region40: #{deresblock_forward.5} parent=35 // pred_fallthru
        _
    $region36: #{deresblock_forward.5} parent=5 // pred_fallthru
      _
    %p432 = scmp.le.s32.totalorder 2, %s10
    // Predicated region
    $region41: #{deresblock_forward.5} parent=5 // pred_check
      %p433 = pneg %p432
    $region42: #{deresblock_forward.5} parent=5 // pred_check_branch
      %435 = sbr.rel (%p433) target = $region44
    $region43: #{deresblock_forward.5} parent=5 // pred_region
      %s436 = ssub.s32 %s10, 2
      // Predicated region
      $region45: #{deresblock_forward.5} parent=43 // pred_check
        %p437 = pneg %p133
      $region46: #{deresblock_forward.5} parent=43 // pred_check_branch
        %439 = sbr.rel (%p437) target = $region48
      $region47: #{deresblock_forward.5} parent=43 // pred_region
        %s440 = smul.u32 32, %s16
        %p441 = scmp.lt.s32.totalorder %s440, 63
        %s442 = scalar_select %p441, %s440, 63
        %s443 = smul.addr %s442, 8
        %s444 = scalar_lea.vmem %s4, %s443
      $region48: #{deresblock_forward.5} parent=43 // pred_fallthru
        _
    $region44: #{deresblock_forward.5} parent=5 // pred_fallthru
      _
  $region6: #{deresblock_forward.5} parent=0 // loop_footer
    %s14 = sadd.s32 1, %s10
  $region7: #{deresblock_forward.5} parent=0 // loop_footer_branch
    %9 = sbr.rel target = $region3
  $region8: #{deresblock_forward.5} parent=0 // loop_exit
    _

</llo_original>
